<compile_context>
chip_gen: v5e
topology: v5e:2x2
jax: 0.10.0
libtpu: 0.0.40
codegen_flags: <defaults>
</compile_context>

<pallas_src>
import functools

import jax
import jax.numpy as jnp
from jax import lax
from jax.experimental import pallas as pl
from jax.experimental.pallas import tpu as pltpu

VMEM_SPEC = pl.BlockSpec(memory_space=pltpu.MemorySpace.VMEM)


# ----------------------------------------------------------------------------
# Fused Pallas kernel
# ----------------------------------------------------------------------------
def music_vae_fused_kernel(
    # ---- inputs ----
    x_ref, eps_ref,
    ef_wih_ref, ef_whh_ref, ef_b_ref,          # encoder forward  (per-gate packed)
    eb_wih_ref, eb_whh_ref, eb_b_ref,          # encoder backward (per-gate packed)
    mu_wf_ref, mu_wb_ref, mu_b_ref,            # mu head (split by fwd/bwd half)
    lv_wf_ref, lv_wb_ref, lv_b_ref,            # logVar head
    con_wih_ref, con_whh_ref, con_b_ref,       # conductor LSTM (per-gate packed)
    c2d_w_ref, c2d_b_ref,                      # conductor -> decoder init
    dec_wn_ref, dec_wc_ref, dec_whh_ref, dec_b_ref,  # decoder LSTM (per-gate)
    out_w_ref, out_b_ref,                      # output projection
    # ---- outputs ----
    out_ref, mu_ref, lv_ref,
    *, step_per_bar):
    T, B, _ = x_ref.shape
    He = ef_whh_ref.shape[-1]
    Hc = con_whh_ref.shape[-1]
    Hd = dec_whh_ref.shape[-1]
    F = out_w_ref.shape[-1]
    total_step = out_ref.shape[0]
    n_bars = total_step // step_per_bar

    def dot(a, b):
        return jnp.dot(a, b, preferred_element_type=jnp.float32)

    def gates_to_hc(g_i, g_f, g_g, g_o, c):
        """PyTorch LSTM cell gate order (i, f, g, o)."""
        i = jax.nn.sigmoid(g_i)
        f = jax.nn.sigmoid(g_f)
        g = jnp.tanh(g_g)
        o = jax.nn.sigmoid(g_o)
        c_new = f * c + i * g
        h_new = o * jnp.tanh(c_new)
        return h_new, c_new

    # ------------------ encoder: fwd + bwd interleaved -----------------------
    ef_wih = [ef_wih_ref[k] for k in range(4)]
    ef_whh = [ef_whh_ref[k] for k in range(4)]
    ef_b = [ef_b_ref[k] for k in range(4)]
    eb_wih = [eb_wih_ref[k] for k in range(4)]
    eb_whh = [eb_whh_ref[k] for k in range(4)]
    eb_b = [eb_b_ref[k] for k in range(4)]

    def enc_step(t, carry):
        hf, cf, hb, cb = carry
        xf = x_ref[t]
        xb = x_ref[T - 1 - t]          # reversed direction, indexed in-kernel
        gf = [dot(xf, ef_wih[k]) + dot(hf, ef_whh[k]) + ef_b[k] for k in range(4)]
        gb = [dot(xb, eb_wih[k]) + dot(hb, eb_whh[k]) + eb_b[k] for k in range(4)]
        hf, cf = gates_to_hc(gf[0], gf[1], gf[2], gf[3], cf)
        hb, cb = gates_to_hc(gb[0], gb[1], gb[2], gb[3], cb)
        return hf, cf, hb, cb

    z0 = jnp.zeros((B, He), jnp.float32)
    h_fwd, _, h_bwd, _ = lax.fori_loop(0, T, enc_step, (z0, z0, z0, z0))

    # ------------------ mu / logVar / reparameterize -------------------------
    mu = dot(h_fwd, mu_wf_ref[...]) + dot(h_bwd, mu_wb_ref[...]) + mu_b_ref[...]
    lv = dot(h_fwd, lv_wf_ref[...]) + dot(h_bwd, lv_wb_ref[...]) + lv_b_ref[...]
    mu_ref[...] = mu
    lv_ref[...] = lv
    sigma = jnp.exp(lv * 2.0)          # matches reference: sigma = exp(logVar*2)
    z = mu + sigma * eps_ref[...]

    # ------------------ conductor (constant-z input hoisted) ------------------
    con_whh = [con_whh_ref[k] for k in range(4)]
    con_x = [dot(z, con_wih_ref[k]) + con_b_ref[k] for k in range(4)]  # once
    c2d_w = c2d_w_ref[...]
    c2d_b = c2d_b_ref[...]

    hc = jnp.zeros((B, Hc), jnp.float32)
    cc = jnp.zeros((B, Hc), jnp.float32)
    cond_out = []
    dec_init = []
    for _bar in range(n_bars):
        g = [con_x[k] + dot(hc, con_whh[k]) for k in range(4)]
        hc, cc = gates_to_hc(g[0], g[1], g[2], g[3], cc)
        cond_out.append(hc)
        dec_init.append(jnp.tanh(dot(hc, c2d_w) + c2d_b))

    # ------------------ hierarchical autoregressive decoder ------------------
    dec_wn = [dec_wn_ref[k] for k in range(4)]      # prev-note input block
    dec_whh = [dec_whh_ref[k] for k in range(4)]
    out_w = out_w_ref[...]
    out_b = out_b_ref[...]

    prev = jnp.zeros((B, F), jnp.float32)
    for bar in range(n_bars):
        cond_emb = cond_out[bar]
        # conductor-embedding contribution + bias hoisted out of the step loop
        pre = [dot(cond_emb, dec_wc_ref[k]) + dec_b_ref[k] for k in range(4)]
        h = dec_init[bar]
        c = jnp.zeros((B, Hd), jnp.float32)

        def dec_step(s, carry, bar=bar, pre=pre):
            h, c, prev = carry
            g = [pre[k] + dot(prev, dec_wn[k]) + dot(h, dec_whh[k])
                 for k in range(4)]
            h, c = gates_to_hc(g[0], g[1], g[2], g[3], c)
            logits = dot(h, out_w) + out_b
            out_ref[bar * step_per_bar + s] = logits
            # softmax feedback (no teacher forcing); approx recip -> EUP slot
            m = jnp.max(logits, axis=-1, keepdims=True)
            e = jnp.exp(logits - m)
            denom = jnp.sum(e, axis=-1, keepdims=True)
            prev = e * pl.reciprocal(denom, approx=True)
            return h, c, prev

        h, c, prev = lax.fori_loop(0, step_per_bar, dec_step, (h, c, prev),
                                   unroll=True)


# ----------------------------------------------------------------------------
# Parameter packing (pure-JAX, done once per call in the wrapper)
# ----------------------------------------------------------------------------
def _pack_gate_w(w, hidden):
    """(In, 4H) -> (4, In, H), PyTorch gate order (i, f, g, o)."""
    in_dim = w.shape[0]
    return jnp.transpose(w.reshape(in_dim, 4, hidden), (1, 0, 2))


def _pack_gate_b(b, hidden, batch):
    """(1, 4H) -> (4, B, H) pre-broadcast bias."""
    return jnp.broadcast_to(b.reshape(4, hidden)[:, None, :], (4, batch, hidden))


# ----------------------------------------------------------------------------
# Deterministic parameter initialization (same layout as a PyTorch port)
# ----------------------------------------------------------------------------
def init_lstm_params(key, in_size, hidden_size, scale=0.1):
    k1, k2, k3 = jax.random.split(key, 3)
    return dict(
        wih=scale * jax.random.normal(k1, (in_size, 4 * hidden_size), jnp.float32),
        whh=scale * jax.random.normal(k2, (hidden_size, 4 * hidden_size), jnp.float32),
        b=scale * jax.random.normal(k3, (1, 4 * hidden_size), jnp.float32),
    )


def init_linear_params(key, in_size, out_size, scale=0.1):
    k1, k2 = jax.random.split(key)
    return dict(
        w=scale * jax.random.normal(k1, (in_size, out_size), jnp.float32),
        b=scale * jax.random.normal(k2, (1, out_size), jnp.float32),
    )


def init_params(key, cfg):
    ks = jax.random.split(key, 7)
    enc_in, enc_h = cfg["encInputSize"], cfg["encHiddenSize"]
    fv = cfg["FVSize"]
    con_h = cfg["conHiddenSize"]
    dec_h = cfg["decHiddenSize"]
    final = cfg["finalSize"]
    dec_in = final + con_h  # prev note concat conductor embedding
    return dict(
        enc_f=init_lstm_params(ks[0], enc_in, enc_h),
        enc_b=init_lstm_params(ks[1], enc_in, enc_h),
        mu=init_linear_params(ks[2], 2 * enc_h, fv),
        logvar=init_linear_params(ks[3], 2 * enc_h, fv),
        con=init_lstm_params(ks[4], fv, con_h),
        con2dec=init_linear_params(ks[5], con_h, dec_h),
        dec=init_lstm_params(ks[6], dec_in, dec_h),
        out=init_linear_params(jax.random.fold_in(key, 99), dec_h, final),
    )


# ----------------------------------------------------------------------------
# Forward pass wrapper: one fused pallas_call
# ----------------------------------------------------------------------------
def music_vae_forward(params, x, eps, cfg):
    """x: (B, totalStep, encInputSize) float32.

    Returns (finalOut (B, totalStep, finalSize), mu (B, FVSize), logVar (B, FVSize)).
    """
    B, T, _ = x.shape
    He = cfg["encHiddenSize"]
    Hc = cfg["conHiddenSize"]
    Hd = cfg["decHiddenSize"]
    FV = cfg["FVSize"]
    F = cfg["finalSize"]
    spb = cfg["stepPerBar"]

    x_tbi = jnp.transpose(x, (1, 0, 2))                       # (T, B, I)

    ef_wih = _pack_gate_w(params["enc_f"]["wih"], He)
    ef_whh = _pack_gate_w(params["enc_f"]["whh"], He)
    ef_b = _pack_gate_b(params["enc_f"]["b"], He, B)
    eb_wih = _pack_gate_w(params["enc_b"]["wih"], He)
    eb_whh = _pack_gate_w(params["enc_b"]["whh"], He)
    eb_b = _pack_gate_b(params["enc_b"]["b"], He, B)

    mu_wf = params["mu"]["w"][:He]
    mu_wb = params["mu"]["w"][He:]
    mu_b = jnp.broadcast_to(params["mu"]["b"], (B, FV))
    lv_wf = params["logvar"]["w"][:He]
    lv_wb = params["logvar"]["w"][He:]
    lv_b = jnp.broadcast_to(params["logvar"]["b"], (B, FV))

    con_wih = _pack_gate_w(params["con"]["wih"], Hc)
    con_whh = _pack_gate_w(params["con"]["whh"], Hc)
    con_b = _pack_gate_b(params["con"]["b"], Hc, B)
    c2d_w = params["con2dec"]["w"]
    c2d_b = jnp.broadcast_to(params["con2dec"]["b"], (B, Hd))

    dec_w = _pack_gate_w(params["dec"]["wih"], Hd)            # (4, F+Hc, Hd)
    dec_wn = dec_w[:, :F, :]                                  # prev-note block
    dec_wc = dec_w[:, F:, :]                                  # conductor block
    dec_whh = _pack_gate_w(params["dec"]["whh"], Hd)
    dec_b = _pack_gate_b(params["dec"]["b"], Hd, B)

    out_w = params["out"]["w"]
    out_b = jnp.broadcast_to(params["out"]["b"], (B, F))

    kernel = functools.partial(music_vae_fused_kernel, step_per_bar=spb)
    out_shape = (
        jax.ShapeDtypeStruct((T, B, F), jnp.float32),         # logits (time-major)
        jax.ShapeDtypeStruct((B, FV), jnp.float32),           # mu
        jax.ShapeDtypeStruct((B, FV), jnp.float32),           # logVar
    )
    out_tbf, mu, lv = pl.pallas_call(
        kernel,
        out_shape=out_shape,
        in_specs=[VMEM_SPEC] * 25,
        out_specs=(VMEM_SPEC, VMEM_SPEC, VMEM_SPEC),
    )(x_tbi, eps,
      ef_wih, ef_whh, ef_b,
      eb_wih, eb_whh, eb_b,
      mu_wf, mu_wb, mu_b,
      lv_wf, lv_wb, lv_b,
      con_wih, con_whh, con_b,
      c2d_w, c2d_b,
      dec_wn, dec_wc, dec_whh, dec_b,
      out_w, out_b)

    final_out = jnp.transpose(out_tbf, (1, 0, 2))             # (B, totalStep, F)
    return final_out, mu, lv


# ----------------------------------------------------------------------------
# main
# ----------------------------------------------------------------------------
if __name__ == "__main__":
    cfg = dict(
        encInputSize=16,
        encHiddenSize=32,
        FVSize=16,
        conHiddenSize=32,
        decHiddenSize=32,
        finalSize=16,
        stepPerBar=4,        # totalStep = 4 * stepPerBar = 16
    )
    B = 2
    total_step = 4 * cfg["stepPerBar"]

    key = jax.random.PRNGKey(0)
    k_param, k_x, k_eps = jax.random.split(key, 3)

    params = init_params(k_param, cfg)
    x = jax.random.uniform(k_x, (B, total_step, cfg["encInputSize"]), jnp.float32)
    eps = jax.random.normal(k_eps, (B, cfg["FVSize"]), jnp.float32)

    fwd = jax.jit(functools.partial(music_vae_forward, cfg=cfg))
    final_out, mu, log_var = fwd(params, x, eps)
    jax.block_until_ready((final_out, mu, log_var))

    assert final_out.shape == (B, total_step, cfg["finalSize"])
    assert mu.shape == (B, cfg["FVSize"]) and log_var.shape == (B, cfg["FVSize"])
    assert bool(jnp.all(jnp.isfinite(final_out)))
    print("KERNEL_OK")
</pallas_src>

<mosaic_0001>
module attributes {stable_mosaic.version = 11 : i64} {
  func.func @music_vae_fused_kernel(%arg0: memref<16x2x16xf32, #tpu.memory_space<vmem>>, %arg1: memref<2x16xf32, #tpu.memory_space<vmem>>, %arg2: memref<4x16x32xf32, #tpu.memory_space<vmem>>, %arg3: memref<4x32x32xf32, #tpu.memory_space<vmem>>, %arg4: memref<4x2x32xf32, #tpu.memory_space<vmem>>, %arg5: memref<4x16x32xf32, #tpu.memory_space<vmem>>, %arg6: memref<4x32x32xf32, #tpu.memory_space<vmem>>, %arg7: memref<4x2x32xf32, #tpu.memory_space<vmem>>, %arg8: memref<32x16xf32, #tpu.memory_space<vmem>>, %arg9: memref<32x16xf32, #tpu.memory_space<vmem>>, %arg10: memref<2x16xf32, #tpu.memory_space<vmem>>, %arg11: memref<32x16xf32, #tpu.memory_space<vmem>>, %arg12: memref<32x16xf32, #tpu.memory_space<vmem>>, %arg13: memref<2x16xf32, #tpu.memory_space<vmem>>, %arg14: memref<4x16x32xf32, #tpu.memory_space<vmem>>, %arg15: memref<4x32x32xf32, #tpu.memory_space<vmem>>, %arg16: memref<4x2x32xf32, #tpu.memory_space<vmem>>, %arg17: memref<32x32xf32, #tpu.memory_space<vmem>>, %arg18: memref<2x32xf32, #tpu.memory_space<vmem>>, %arg19: memref<4x16x32xf32, #tpu.memory_space<vmem>>, %arg20: memref<4x32x32xf32, #tpu.memory_space<vmem>>, %arg21: memref<4x32x32xf32, #tpu.memory_space<vmem>>, %arg22: memref<4x2x32xf32, #tpu.memory_space<vmem>>, %arg23: memref<32x16xf32, #tpu.memory_space<vmem>>, %arg24: memref<2x16xf32, #tpu.memory_space<vmem>>, %arg25: memref<16x2x16xf32, #tpu.memory_space<vmem>>, %arg26: memref<2x16xf32, #tpu.memory_space<vmem>>, %arg27: memref<2x16xf32, #tpu.memory_space<vmem>>) attributes {dimension_semantics = [], scalar_prefetch = 0 : i64, scratch_operands = 0 : i64, tpu.core_type = #tpu.core_type<tc>} {
    %c0 = arith.constant 0 : index
    %c0_0 = arith.constant 0 : index
    %c0_1 = arith.constant 0 : index
    %0 = vector.load %arg2[%c0, %c0_0, %c0_1] : memref<4x16x32xf32, #tpu.memory_space<vmem>>, vector<1x16x32xf32>
    %1 = vector.shape_cast %0 : vector<1x16x32xf32> to vector<16x32xf32>
    %c1 = arith.constant 1 : index
    %c0_2 = arith.constant 0 : index
    %c0_3 = arith.constant 0 : index
    %2 = vector.load %arg2[%c1, %c0_2, %c0_3] : memref<4x16x32xf32, #tpu.memory_space<vmem>>, vector<1x16x32xf32>
    %3 = vector.shape_cast %2 : vector<1x16x32xf32> to vector<16x32xf32>
    %c2 = arith.constant 2 : index
    %c0_4 = arith.constant 0 : index
    %c0_5 = arith.constant 0 : index
    %4 = vector.load %arg2[%c2, %c0_4, %c0_5] : memref<4x16x32xf32, #tpu.memory_space<vmem>>, vector<1x16x32xf32>
    %5 = vector.shape_cast %4 : vector<1x16x32xf32> to vector<16x32xf32>
    %c3 = arith.constant 3 : index
    %c0_6 = arith.constant 0 : index
    %c0_7 = arith.constant 0 : index
    %6 = vector.load %arg2[%c3, %c0_6, %c0_7] : memref<4x16x32xf32, #tpu.memory_space<vmem>>, vector<1x16x32xf32>
    %7 = vector.shape_cast %6 : vector<1x16x32xf32> to vector<16x32xf32>
    %c0_8 = arith.constant 0 : index
    %c0_9 = arith.constant 0 : index
    %c0_10 = arith.constant 0 : index
    %8 = vector.load %arg3[%c0_8, %c0_9, %c0_10] : memref<4x32x32xf32, #tpu.memory_space<vmem>>, vector<1x32x32xf32>
    %9 = vector.shape_cast %8 : vector<1x32x32xf32> to vector<32x32xf32>
    %c1_11 = arith.constant 1 : index
    %c0_12 = arith.constant 0 : index
    %c0_13 = arith.constant 0 : index
    %10 = vector.load %arg3[%c1_11, %c0_12, %c0_13] : memref<4x32x32xf32, #tpu.memory_space<vmem>>, vector<1x32x32xf32>
    %11 = vector.shape_cast %10 : vector<1x32x32xf32> to vector<32x32xf32>
    %c2_14 = arith.constant 2 : index
    %c0_15 = arith.constant 0 : index
    %c0_16 = arith.constant 0 : index
    %12 = vector.load %arg3[%c2_14, %c0_15, %c0_16] : memref<4x32x32xf32, #tpu.memory_space<vmem>>, vector<1x32x32xf32>
    %13 = vector.shape_cast %12 : vector<1x32x32xf32> to vector<32x32xf32>
    %c3_17 = arith.constant 3 : index
    %c0_18 = arith.constant 0 : index
    %c0_19 = arith.constant 0 : index
    %14 = vector.load %arg3[%c3_17, %c0_18, %c0_19] : memref<4x32x32xf32, #tpu.memory_space<vmem>>, vector<1x32x32xf32>
    %15 = vector.shape_cast %14 : vector<1x32x32xf32> to vector<32x32xf32>
    %c0_20 = arith.constant 0 : index
    %c0_21 = arith.constant 0 : index
    %c0_22 = arith.constant 0 : index
    %16 = vector.load %arg4[%c0_20, %c0_21, %c0_22] : memref<4x2x32xf32, #tpu.memory_space<vmem>>, vector<1x2x32xf32>
    %17 = vector.shape_cast %16 : vector<1x2x32xf32> to vector<2x32xf32>
    %c1_23 = arith.constant 1 : index
    %c0_24 = arith.constant 0 : index
    %c0_25 = arith.constant 0 : index
    %18 = vector.load %arg4[%c1_23, %c0_24, %c0_25] : memref<4x2x32xf32, #tpu.memory_space<vmem>>, vector<1x2x32xf32>
    %19 = vector.shape_cast %18 : vector<1x2x32xf32> to vector<2x32xf32>
    %c2_26 = arith.constant 2 : index
    %c0_27 = arith.constant 0 : index
    %c0_28 = arith.constant 0 : index
    %20 = vector.load %arg4[%c2_26, %c0_27, %c0_28] : memref<4x2x32xf32, #tpu.memory_space<vmem>>, vector<1x2x32xf32>
    %21 = vector.shape_cast %20 : vector<1x2x32xf32> to vector<2x32xf32>
    %c3_29 = arith.constant 3 : index
    %c0_30 = arith.constant 0 : index
    %c0_31 = arith.constant 0 : index
    %22 = vector.load %arg4[%c3_29, %c0_30, %c0_31] : memref<4x2x32xf32, #tpu.memory_space<vmem>>, vector<1x2x32xf32>
    %23 = vector.shape_cast %22 : vector<1x2x32xf32> to vector<2x32xf32>
    %c0_32 = arith.constant 0 : index
    %c0_33 = arith.constant 0 : index
    %c0_34 = arith.constant 0 : index
    %24 = vector.load %arg5[%c0_32, %c0_33, %c0_34] : memref<4x16x32xf32, #tpu.memory_space<vmem>>, vector<1x16x32xf32>
    %25 = vector.shape_cast %24 : vector<1x16x32xf32> to vector<16x32xf32>
    %c1_35 = arith.constant 1 : index
    %c0_36 = arith.constant 0 : index
    %c0_37 = arith.constant 0 : index
    %26 = vector.load %arg5[%c1_35, %c0_36, %c0_37] : memref<4x16x32xf32, #tpu.memory_space<vmem>>, vector<1x16x32xf32>
    %27 = vector.shape_cast %26 : vector<1x16x32xf32> to vector<16x32xf32>
    %c2_38 = arith.constant 2 : index
    %c0_39 = arith.constant 0 : index
    %c0_40 = arith.constant 0 : index
    %28 = vector.load %arg5[%c2_38, %c0_39, %c0_40] : memref<4x16x32xf32, #tpu.memory_space<vmem>>, vector<1x16x32xf32>
    %29 = vector.shape_cast %28 : vector<1x16x32xf32> to vector<16x32xf32>
    %c3_41 = arith.constant 3 : index
    %c0_42 = arith.constant 0 : index
    %c0_43 = arith.constant 0 : index
    %30 = vector.load %arg5[%c3_41, %c0_42, %c0_43] : memref<4x16x32xf32, #tpu.memory_space<vmem>>, vector<1x16x32xf32>
    %31 = vector.shape_cast %30 : vector<1x16x32xf32> to vector<16x32xf32>
    %c0_44 = arith.constant 0 : index
    %c0_45 = arith.constant 0 : index
    %c0_46 = arith.constant 0 : index
    %32 = vector.load %arg6[%c0_44, %c0_45, %c0_46] : memref<4x32x32xf32, #tpu.memory_space<vmem>>, vector<1x32x32xf32>
    %33 = vector.shape_cast %32 : vector<1x32x32xf32> to vector<32x32xf32>
    %c1_47 = arith.constant 1 : index
    %c0_48 = arith.constant 0 : index
    %c0_49 = arith.constant 0 : index
    %34 = vector.load %arg6[%c1_47, %c0_48, %c0_49] : memref<4x32x32xf32, #tpu.memory_space<vmem>>, vector<1x32x32xf32>
    %35 = vector.shape_cast %34 : vector<1x32x32xf32> to vector<32x32xf32>
    %c2_50 = arith.constant 2 : index
    %c0_51 = arith.constant 0 : index
    %c0_52 = arith.constant 0 : index
    %36 = vector.load %arg6[%c2_50, %c0_51, %c0_52] : memref<4x32x32xf32, #tpu.memory_space<vmem>>, vector<1x32x32xf32>
    %37 = vector.shape_cast %36 : vector<1x32x32xf32> to vector<32x32xf32>
    %c3_53 = arith.constant 3 : index
    %c0_54 = arith.constant 0 : index
    %c0_55 = arith.constant 0 : index
    %38 = vector.load %arg6[%c3_53, %c0_54, %c0_55] : memref<4x32x32xf32, #tpu.memory_space<vmem>>, vector<1x32x32xf32>
    %39 = vector.shape_cast %38 : vector<1x32x32xf32> to vector<32x32xf32>
    %c0_56 = arith.constant 0 : index
    %c0_57 = arith.constant 0 : index
    %c0_58 = arith.constant 0 : index
    %40 = vector.load %arg7[%c0_56, %c0_57, %c0_58] : memref<4x2x32xf32, #tpu.memory_space<vmem>>, vector<1x2x32xf32>
    %41 = vector.shape_cast %40 : vector<1x2x32xf32> to vector<2x32xf32>
    %c1_59 = arith.constant 1 : index
    %c0_60 = arith.constant 0 : index
    %c0_61 = arith.constant 0 : index
    %42 = vector.load %arg7[%c1_59, %c0_60, %c0_61] : memref<4x2x32xf32, #tpu.memory_space<vmem>>, vector<1x2x32xf32>
    %43 = vector.shape_cast %42 : vector<1x2x32xf32> to vector<2x32xf32>
    %c2_62 = arith.constant 2 : index
    %c0_63 = arith.constant 0 : index
    %c0_64 = arith.constant 0 : index
    %44 = vector.load %arg7[%c2_62, %c0_63, %c0_64] : memref<4x2x32xf32, #tpu.memory_space<vmem>>, vector<1x2x32xf32>
    %45 = vector.shape_cast %44 : vector<1x2x32xf32> to vector<2x32xf32>
    %c3_65 = arith.constant 3 : index
    %c0_66 = arith.constant 0 : index
    %c0_67 = arith.constant 0 : index
    %46 = vector.load %arg7[%c3_65, %c0_66, %c0_67] : memref<4x2x32xf32, #tpu.memory_space<vmem>>, vector<1x2x32xf32>
    %47 = vector.shape_cast %46 : vector<1x2x32xf32> to vector<2x32xf32>
    %cst = arith.constant 0.000000e+00 : f32
    %48 = vector.broadcast %cst : f32 to vector<2x32xf32>
    %c0_i32 = arith.constant 0 : i32
    %c16_i32 = arith.constant 16 : i32
    %49 = arith.addi %c0_i32, %c16_i32 : i32
    %c1_i32 = arith.constant 1 : i32
    %50:4 = scf.for %arg28 = %c0_i32 to %49 step %c1_i32 iter_args(%arg29 = %48, %arg30 = %48, %arg31 = %48, %arg32 = %48) -> (vector<2x32xf32>, vector<2x32xf32>, vector<2x32xf32>, vector<2x32xf32>)  : i32 {
      %1220 = arith.index_cast %arg28 : i32 to index
      %c0_602 = arith.constant 0 : index
      %c0_603 = arith.constant 0 : index
      %1221 = vector.load %arg0[%1220, %c0_602, %c0_603] : memref<16x2x16xf32, #tpu.memory_space<vmem>>, vector<1x2x16xf32>
      %1222 = vector.shape_cast %1221 : vector<1x2x16xf32> to vector<2x16xf32>
      %c15_i32 = arith.constant 15 : i32
      %1223 = arith.subi %c15_i32, %arg28 : i32
      %1224 = arith.index_cast %1223 : i32 to index
      %c0_604 = arith.constant 0 : index
      %c0_605 = arith.constant 0 : index
      %1225 = vector.load %arg0[%1224, %c0_604, %c0_605] : memref<16x2x16xf32, #tpu.memory_space<vmem>>, vector<1x2x16xf32>
      %1226 = vector.shape_cast %1225 : vector<1x2x16xf32> to vector<2x16xf32>
      %cst_606 = arith.constant dense<0.000000e+00> : vector<2x32xf32>
      %1227 = tpu.matmul %1222, %1, %cst_606 {dimension_numbers = #tpu.dot_dimension_numbers<[1], [0], [0], [1], [0, 0, 1, 1], [], []>} : vector<2x16xf32>, vector<16x32xf32>, vector<2x32xf32> -> vector<2x32xf32>
      %cst_607 = arith.constant dense<0.000000e+00> : vector<2x32xf32>
      %1228 = tpu.matmul %arg29, %9, %cst_607 {dimension_numbers = #tpu.dot_dimension_numbers<[1], [0], [0], [1], [0, 0, 1, 1], [], []>} : vector<2x32xf32>, vector<32x32xf32>, vector<2x32xf32> -> vector<2x32xf32>
      %1229 = arith.addf %1227, %1228 : vector<2x32xf32>
      %1230 = arith.addf %1229, %17 : vector<2x32xf32>
      %cst_608 = arith.constant dense<0.000000e+00> : vector<2x32xf32>
      %1231 = tpu.matmul %1222, %3, %cst_608 {dimension_numbers = #tpu.dot_dimension_numbers<[1], [0], [0], [1], [0, 0, 1, 1], [], []>} : vector<2x16xf32>, vector<16x32xf32>, vector<2x32xf32> -> vector<2x32xf32>
      %cst_609 = arith.constant dense<0.000000e+00> : vector<2x32xf32>
      %1232 = tpu.matmul %arg29, %11, %cst_609 {dimension_numbers = #tpu.dot_dimension_numbers<[1], [0], [0], [1], [0, 0, 1, 1], [], []>} : vector<2x32xf32>, vector<32x32xf32>, vector<2x32xf32> -> vector<2x32xf32>
      %1233 = arith.addf %1231, %1232 : vector<2x32xf32>
      %1234 = arith.addf %1233, %19 : vector<2x32xf32>
      %cst_610 = arith.constant dense<0.000000e+00> : vector<2x32xf32>
      %1235 = tpu.matmul %1222, %5, %cst_610 {dimension_numbers = #tpu.dot_dimension_numbers<[1], [0], [0], [1], [0, 0, 1, 1], [], []>} : vector<2x16xf32>, vector<16x32xf32>, vector<2x32xf32> -> vector<2x32xf32>
      %cst_611 = arith.constant dense<0.000000e+00> : vector<2x32xf32>
      %1236 = tpu.matmul %arg29, %13, %cst_611 {dimension_numbers = #tpu.dot_dimension_numbers<[1], [0], [0], [1], [0, 0, 1, 1], [], []>} : vector<2x32xf32>, vector<32x32xf32>, vector<2x32xf32> -> vector<2x32xf32>
      %1237 = arith.addf %1235, %1236 : vector<2x32xf32>
      %1238 = arith.addf %1237, %21 : vector<2x32xf32>
      %cst_612 = arith.constant dense<0.000000e+00> : vector<2x32xf32>
      %1239 = tpu.matmul %1222, %7, %cst_612 {dimension_numbers = #tpu.dot_dimension_numbers<[1], [0], [0], [1], [0, 0, 1, 1], [], []>} : vector<2x16xf32>, vector<16x32xf32>, vector<2x32xf32> -> vector<2x32xf32>
      %cst_613 = arith.constant dense<0.000000e+00> : vector<2x32xf32>
      %1240 = tpu.matmul %arg29, %15, %cst_613 {dimension_numbers = #tpu.dot_dimension_numbers<[1], [0], [0], [1], [0, 0, 1, 1], [], []>} : vector<2x32xf32>, vector<32x32xf32>, vector<2x32xf32> -> vector<2x32xf32>
      %1241 = arith.addf %1239, %1240 : vector<2x32xf32>
      %1242 = arith.addf %1241, %23 : vector<2x32xf32>
      %cst_614 = arith.constant dense<0.000000e+00> : vector<2x32xf32>
      %1243 = tpu.matmul %1226, %25, %cst_614 {dimension_numbers = #tpu.dot_dimension_numbers<[1], [0], [0], [1], [0, 0, 1, 1], [], []>} : vector<2x16xf32>, vector<16x32xf32>, vector<2x32xf32> -> vector<2x32xf32>
      %cst_615 = arith.constant dense<0.000000e+00> : vector<2x32xf32>
      %1244 = tpu.matmul %arg31, %33, %cst_615 {dimension_numbers = #tpu.dot_dimension_numbers<[1], [0], [0], [1], [0, 0, 1, 1], [], []>} : vector<2x32xf32>, vector<32x32xf32>, vector<2x32xf32> -> vector<2x32xf32>
      %1245 = arith.addf %1243, %1244 : vector<2x32xf32>
      %1246 = arith.addf %1245, %41 : vector<2x32xf32>
      %cst_616 = arith.constant dense<0.000000e+00> : vector<2x32xf32>
      %1247 = tpu.matmul %1226, %27, %cst_616 {dimension_numbers = #tpu.dot_dimension_numbers<[1], [0], [0], [1], [0, 0, 1, 1], [], []>} : vector<2x16xf32>, vector<16x32xf32>, vector<2x32xf32> -> vector<2x32xf32>
      %cst_617 = arith.constant dense<0.000000e+00> : vector<2x32xf32>
      %1248 = tpu.matmul %arg31, %35, %cst_617 {dimension_numbers = #tpu.dot_dimension_numbers<[1], [0], [0], [1], [0, 0, 1, 1], [], []>} : vector<2x32xf32>, vector<32x32xf32>, vector<2x32xf32> -> vector<2x32xf32>
      %1249 = arith.addf %1247, %1248 : vector<2x32xf32>
      %1250 = arith.addf %1249, %43 : vector<2x32xf32>
      %cst_618 = arith.constant dense<0.000000e+00> : vector<2x32xf32>
      %1251 = tpu.matmul %1226, %29, %cst_618 {dimension_numbers = #tpu.dot_dimension_numbers<[1], [0], [0], [1], [0, 0, 1, 1], [], []>} : vector<2x16xf32>, vector<16x32xf32>, vector<2x32xf32> -> vector<2x32xf32>
      %cst_619 = arith.constant dense<0.000000e+00> : vector<2x32xf32>
      %1252 = tpu.matmul %arg31, %37, %cst_619 {dimension_numbers = #tpu.dot_dimension_numbers<[1], [0], [0], [1], [0, 0, 1, 1], [], []>} : vector<2x32xf32>, vector<32x32xf32>, vector<2x32xf32> -> vector<2x32xf32>
      %1253 = arith.addf %1251, %1252 : vector<2x32xf32>
      %1254 = arith.addf %1253, %45 : vector<2x32xf32>
      %cst_620 = arith.constant dense<0.000000e+00> : vector<2x32xf32>
      %1255 = tpu.matmul %1226, %31, %cst_620 {dimension_numbers = #tpu.dot_dimension_numbers<[1], [0], [0], [1], [0, 0, 1, 1], [], []>} : vector<2x16xf32>, vector<16x32xf32>, vector<2x32xf32> -> vector<2x32xf32>
      %cst_621 = arith.constant dense<0.000000e+00> : vector<2x32xf32>
      %1256 = tpu.matmul %arg31, %39, %cst_621 {dimension_numbers = #tpu.dot_dimension_numbers<[1], [0], [0], [1], [0, 0, 1, 1], [], []>} : vector<2x32xf32>, vector<32x32xf32>, vector<2x32xf32> -> vector<2x32xf32>
      %1257 = arith.addf %1255, %1256 : vector<2x32xf32>
      %1258 = arith.addf %1257, %47 : vector<2x32xf32>
      %1259 = arith.negf %1230 : vector<2x32xf32>
      %1260 = math.exp %1259 : vector<2x32xf32>
      %cst_622 = arith.constant 1.000000e+00 : f32
      %1261 = vector.broadcast %cst_622 : f32 to vector<2x32xf32>
      %1262 = arith.addf %1261, %1260 : vector<2x32xf32>
      %1263 = arith.divf %1261, %1262 : vector<2x32xf32>
      %1264 = arith.negf %1234 : vector<2x32xf32>
      %1265 = math.exp %1264 : vector<2x32xf32>
      %cst_623 = arith.constant 1.000000e+00 : f32
      %1266 = vector.broadcast %cst_623 : f32 to vector<2x32xf32>
      %1267 = arith.addf %1266, %1265 : vector<2x32xf32>
      %1268 = arith.divf %1266, %1267 : vector<2x32xf32>
      %1269 = math.tanh %1238 : vector<2x32xf32>
      %1270 = arith.negf %1242 : vector<2x32xf32>
      %1271 = math.exp %1270 : vector<2x32xf32>
      %cst_624 = arith.constant 1.000000e+00 : f32
      %1272 = vector.broadcast %cst_624 : f32 to vector<2x32xf32>
      %1273 = arith.addf %1272, %1271 : vector<2x32xf32>
      %1274 = arith.divf %1272, %1273 : vector<2x32xf32>
      %1275 = arith.mulf %1268, %arg30 : vector<2x32xf32>
      %1276 = arith.mulf %1263, %1269 : vector<2x32xf32>
      %1277 = arith.addf %1275, %1276 : vector<2x32xf32>
      %1278 = math.tanh %1277 : vector<2x32xf32>
      %1279 = arith.mulf %1274, %1278 : vector<2x32xf32>
      %1280 = arith.negf %1246 : vector<2x32xf32>
      %1281 = math.exp %1280 : vector<2x32xf32>
      %cst_625 = arith.constant 1.000000e+00 : f32
      %1282 = vector.broadcast %cst_625 : f32 to vector<2x32xf32>
      %1283 = arith.addf %1282, %1281 : vector<2x32xf32>
      %1284 = arith.divf %1282, %1283 : vector<2x32xf32>
      %1285 = arith.negf %1250 : vector<2x32xf32>
      %1286 = math.exp %1285 : vector<2x32xf32>
      %cst_626 = arith.constant 1.000000e+00 : f32
      %1287 = vector.broadcast %cst_626 : f32 to vector<2x32xf32>
      %1288 = arith.addf %1287, %1286 : vector<2x32xf32>
      %1289 = arith.divf %1287, %1288 : vector<2x32xf32>
      %1290 = math.tanh %1254 : vector<2x32xf32>
      %1291 = arith.negf %1258 : vector<2x32xf32>
      %1292 = math.exp %1291 : vector<2x32xf32>
      %cst_627 = arith.constant 1.000000e+00 : f32
      %1293 = vector.broadcast %cst_627 : f32 to vector<2x32xf32>
      %1294 = arith.addf %1293, %1292 : vector<2x32xf32>
      %1295 = arith.divf %1293, %1294 : vector<2x32xf32>
      %1296 = arith.mulf %1289, %arg32 : vector<2x32xf32>
      %1297 = arith.mulf %1284, %1290 : vector<2x32xf32>
      %1298 = arith.addf %1296, %1297 : vector<2x32xf32>
      %1299 = math.tanh %1298 : vector<2x32xf32>
      %1300 = arith.mulf %1295, %1299 : vector<2x32xf32>
      scf.yield %1279, %1277, %1300, %1298 : vector<2x32xf32>, vector<2x32xf32>, vector<2x32xf32>, vector<2x32xf32>
    }
    %c16_i32_68 = arith.constant 16 : i32
    %c0_69 = arith.constant 0 : index
    %c0_70 = arith.constant 0 : index
    %51 = vector.load %arg8[%c0_69, %c0_70] : memref<32x16xf32, #tpu.memory_space<vmem>>, vector<32x16xf32>
    %cst_71 = arith.constant dense<0.000000e+00> : vector<2x16xf32>
    %52 = tpu.matmul %50#0, %51, %cst_71 {dimension_numbers = #tpu.dot_dimension_numbers<[1], [0], [0], [1], [0, 0, 1, 1], [], []>} : vector<2x32xf32>, vector<32x16xf32>, vector<2x16xf32> -> vector<2x16xf32>
    %c0_72 = arith.constant 0 : index
    %c0_73 = arith.constant 0 : index
    %53 = vector.load %arg9[%c0_72, %c0_73] : memref<32x16xf32, #tpu.memory_space<vmem>>, vector<32x16xf32>
    %cst_74 = arith.constant dense<0.000000e+00> : vector<2x16xf32>
    %54 = tpu.matmul %50#2, %53, %cst_74 {dimension_numbers = #tpu.dot_dimension_numbers<[1], [0], [0], [1], [0, 0, 1, 1], [], []>} : vector<2x32xf32>, vector<32x16xf32>, vector<2x16xf32> -> vector<2x16xf32>
    %55 = arith.addf %52, %54 : vector<2x16xf32>
    %c0_75 = arith.constant 0 : index
    %c0_76 = arith.constant 0 : index
    %56 = vector.load %arg10[%c0_75, %c0_76] : memref<2x16xf32, #tpu.memory_space<vmem>>, vector<2x16xf32>
    %57 = arith.addf %55, %56 : vector<2x16xf32>
    %c0_77 = arith.constant 0 : index
    %c0_78 = arith.constant 0 : index
    %58 = vector.load %arg11[%c0_77, %c0_78] : memref<32x16xf32, #tpu.memory_space<vmem>>, vector<32x16xf32>
    %cst_79 = arith.constant dense<0.000000e+00> : vector<2x16xf32>
    %59 = tpu.matmul %50#0, %58, %cst_79 {dimension_numbers = #tpu.dot_dimension_numbers<[1], [0], [0], [1], [0, 0, 1, 1], [], []>} : vector<2x32xf32>, vector<32x16xf32>, vector<2x16xf32> -> vector<2x16xf32>
    %c0_80 = arith.constant 0 : index
    %c0_81 = arith.constant 0 : index
    %60 = vector.load %arg12[%c0_80, %c0_81] : memref<32x16xf32, #tpu.memory_space<vmem>>, vector<32x16xf32>
    %cst_82 = arith.constant dense<0.000000e+00> : vector<2x16xf32>
    %61 = tpu.matmul %50#2, %60, %cst_82 {dimension_numbers = #tpu.dot_dimension_numbers<[1], [0], [0], [1], [0, 0, 1, 1], [], []>} : vector<2x32xf32>, vector<32x16xf32>, vector<2x16xf32> -> vector<2x16xf32>
    %62 = arith.addf %59, %61 : vector<2x16xf32>
    %c0_83 = arith.constant 0 : index
    %c0_84 = arith.constant 0 : index
    %63 = vector.load %arg13[%c0_83, %c0_84] : memref<2x16xf32, #tpu.memory_space<vmem>>, vector<2x16xf32>
    %64 = arith.addf %62, %63 : vector<2x16xf32>
    %c0_85 = arith.constant 0 : index
    %c0_86 = arith.constant 0 : index
    %65 = vector.load %arg26[%c0_85, %c0_86] : memref<2x16xf32, #tpu.memory_space<vmem>>, vector<2x16xf32>
    tpu.vector_store %arg26[%c0_85, %c0_86], %57 {strides = array<i32>} : memref<2x16xf32, #tpu.memory_space<vmem>>, vector<2x16xf32>,
    %c0_87 = arith.constant 0 : index
    %c0_88 = arith.constant 0 : index
    %66 = vector.load %arg27[%c0_87, %c0_88] : memref<2x16xf32, #tpu.memory_space<vmem>>, vector<2x16xf32>
    tpu.vector_store %arg27[%c0_87, %c0_88], %64 {strides = array<i32>} : memref<2x16xf32, #tpu.memory_space<vmem>>, vector<2x16xf32>,
    %cst_89 = arith.constant 2.000000e+00 : f32
    %67 = vector.broadcast %cst_89 : f32 to vector<2x16xf32>
    %68 = arith.mulf %64, %67 : vector<2x16xf32>
    %69 = math.exp %68 : vector<2x16xf32>
    %c0_90 = arith.constant 0 : index
    %c0_91 = arith.constant 0 : index
    %70 = vector.load %arg1[%c0_90, %c0_91] : memref<2x16xf32, #tpu.memory_space<vmem>>, vector<2x16xf32>
    %71 = arith.mulf %69, %70 : vector<2x16xf32>
    %72 = arith.addf %57, %71 : vector<2x16xf32>
    %c0_92 = arith.constant 0 : index
    %c0_93 = arith.constant 0 : index
    %c0_94 = arith.constant 0 : index
    %73 = vector.load %arg15[%c0_92, %c0_93, %c0_94] : memref<4x32x32xf32, #tpu.memory_space<vmem>>, vector<1x32x32xf32>
    %74 = vector.shape_cast %73 : vector<1x32x32xf32> to vector<32x32xf32>
    %c1_95 = arith.constant 1 : index
    %c0_96 = arith.constant 0 : index
    %c0_97 = arith.constant 0 : index
    %75 = vector.load %arg15[%c1_95, %c0_96, %c0_97] : memref<4x32x32xf32, #tpu.memory_space<vmem>>, vector<1x32x32xf32>
    %76 = vector.shape_cast %75 : vector<1x32x32xf32> to vector<32x32xf32>
    %c2_98 = arith.constant 2 : index
    %c0_99 = arith.constant 0 : index
    %c0_100 = arith.constant 0 : index
    %77 = vector.load %arg15[%c2_98, %c0_99, %c0_100] : memref<4x32x32xf32, #tpu.memory_space<vmem>>, vector<1x32x32xf32>
    %78 = vector.shape_cast %77 : vector<1x32x32xf32> to vector<32x32xf32>
    %c3_101 = arith.constant 3 : index
    %c0_102 = arith.constant 0 : index
    %c0_103 = arith.constant 0 : index
    %79 = vector.load %arg15[%c3_101, %c0_102, %c0_103] : memref<4x32x32xf32, #tpu.memory_space<vmem>>, vector<1x32x32xf32>
    %80 = vector.shape_cast %79 : vector<1x32x32xf32> to vector<32x32xf32>
    %c0_104 = arith.constant 0 : index
    %c0_105 = arith.constant 0 : index
    %c0_106 = arith.constant 0 : index
    %81 = vector.load %arg14[%c0_104, %c0_105, %c0_106] : memref<4x16x32xf32, #tpu.memory_space<vmem>>, vector<1x16x32xf32>
    %82 = vector.shape_cast %81 : vector<1x16x32xf32> to vector<16x32xf32>
    %cst_107 = arith.constant dense<0.000000e+00> : vector<2x32xf32>
    %83 = tpu.matmul %72, %82, %cst_107 {dimension_numbers = #tpu.dot_dimension_numbers<[1], [0], [0], [1], [0, 0, 1, 1], [], []>} : vector<2x16xf32>, vector<16x32xf32>, vector<2x32xf32> -> vector<2x32xf32>
    %c0_108 = arith.constant 0 : index
    %c0_109 = arith.constant 0 : index
    %c0_110 = arith.constant 0 : index
    %84 = vector.load %arg16[%c0_108, %c0_109, %c0_110] : memref<4x2x32xf32, #tpu.memory_space<vmem>>, vector<1x2x32xf32>
    %85 = vector.shape_cast %84 : vector<1x2x32xf32> to vector<2x32xf32>
    %86 = arith.addf %83, %85 : vector<2x32xf32>
    %c1_111 = arith.constant 1 : index
    %c0_112 = arith.constant 0 : index
    %c0_113 = arith.constant 0 : index
    %87 = vector.load %arg14[%c1_111, %c0_112, %c0_113] : memref<4x16x32xf32, #tpu.memory_space<vmem>>, vector<1x16x32xf32>
    %88 = vector.shape_cast %87 : vector<1x16x32xf32> to vector<16x32xf32>
    %cst_114 = arith.constant dense<0.000000e+00> : vector<2x32xf32>
    %89 = tpu.matmul %72, %88, %cst_114 {dimension_numbers = #tpu.dot_dimension_numbers<[1], [0], [0], [1], [0, 0, 1, 1], [], []>} : vector<2x16xf32>, vector<16x32xf32>, vector<2x32xf32> -> vector<2x32xf32>
    %c1_115 = arith.constant 1 : index
    %c0_116 = arith.constant 0 : index
    %c0_117 = arith.constant 0 : index
    %90 = vector.load %arg16[%c1_115, %c0_116, %c0_117] : memref<4x2x32xf32, #tpu.memory_space<vmem>>, vector<1x2x32xf32>
    %91 = vector.shape_cast %90 : vector<1x2x32xf32> to vector<2x32xf32>
    %92 = arith.addf %89, %91 : vector<2x32xf32>
    %c2_118 = arith.constant 2 : index
    %c0_119 = arith.constant 0 : index
    %c0_120 = arith.constant 0 : index
    %93 = vector.load %arg14[%c2_118, %c0_119, %c0_120] : memref<4x16x32xf32, #tpu.memory_space<vmem>>, vector<1x16x32xf32>
    %94 = vector.shape_cast %93 : vector<1x16x32xf32> to vector<16x32xf32>
    %cst_121 = arith.constant dense<0.000000e+00> : vector<2x32xf32>
    %95 = tpu.matmul %72, %94, %cst_121 {dimension_numbers = #tpu.dot_dimension_numbers<[1], [0], [0], [1], [0, 0, 1, 1], [], []>} : vector<2x16xf32>, vector<16x32xf32>, vector<2x32xf32> -> vector<2x32xf32>
    %c2_122 = arith.constant 2 : index
    %c0_123 = arith.constant 0 : index
    %c0_124 = arith.constant 0 : index
    %96 = vector.load %arg16[%c2_122, %c0_123, %c0_124] : memref<4x2x32xf32, #tpu.memory_space<vmem>>, vector<1x2x32xf32>
    %97 = vector.shape_cast %96 : vector<1x2x32xf32> to vector<2x32xf32>
    %98 = arith.addf %95, %97 : vector<2x32xf32>
    %c3_125 = arith.constant 3 : index
    %c0_126 = arith.constant 0 : index
    %c0_127 = arith.constant 0 : index
    %99 = vector.load %arg14[%c3_125, %c0_126, %c0_127] : memref<4x16x32xf32, #tpu.memory_space<vmem>>, vector<1x16x32xf32>
    %100 = vector.shape_cast %99 : vector<1x16x32xf32> to vector<16x32xf32>
    %cst_128 = arith.constant dense<0.000000e+00> : vector<2x32xf32>
    %101 = tpu.matmul %72, %100, %cst_128 {dimension_numbers = #tpu.dot_dimension_numbers<[1], [0], [0], [1], [0, 0, 1, 1], [], []>} : vector<2x16xf32>, vector<16x32xf32>, vector<2x32xf32> -> vector<2x32xf32>
    %c3_129 = arith.constant 3 : index
    %c0_130 = arith.constant 0 : index
    %c0_131 = arith.constant 0 : index
    %102 = vector.load %arg16[%c3_129, %c0_130, %c0_131] : memref<4x2x32xf32, #tpu.memory_space<vmem>>, vector<1x2x32xf32>
    %103 = vector.shape_cast %102 : vector<1x2x32xf32> to vector<2x32xf32>
    %104 = arith.addf %101, %103 : vector<2x32xf32>
    %c0_132 = arith.constant 0 : index
    %c0_133 = arith.constant 0 : index
    %105 = vector.load %arg17[%c0_132, %c0_133] : memref<32x32xf32, #tpu.memory_space<vmem>>, vector<32x32xf32>
    %c0_134 = arith.constant 0 : index
    %c0_135 = arith.constant 0 : index
    %106 = vector.load %arg18[%c0_134, %c0_135] : memref<2x32xf32, #tpu.memory_space<vmem>>, vector<2x32xf32>
    %cst_136 = arith.constant 0.000000e+00 : f32
    %107 = vector.broadcast %cst_136 : f32 to vector<2x32xf32>
    %cst_137 = arith.constant 0.000000e+00 : f32
    %108 = vector.broadcast %cst_137 : f32 to vector<2x32xf32>
    %cst_138 = arith.constant dense<0.000000e+00> : vector<2x32xf32>
    %109 = tpu.matmul %107, %74, %cst_138 {dimension_numbers = #tpu.dot_dimension_numbers<[1], [0], [0], [1], [0, 0, 1, 1], [], []>} : vector<2x32xf32>, vector<32x32xf32>, vector<2x32xf32> -> vector<2x32xf32>
    %110 = arith.addf %86, %109 : vector<2x32xf32>
    %cst_139 = arith.constant dense<0.000000e+00> : vector<2x32xf32>
    %111 = tpu.matmul %107, %76, %cst_139 {dimension_numbers = #tpu.dot_dimension_numbers<[1], [0], [0], [1], [0, 0, 1, 1], [], []>} : vector<2x32xf32>, vector<32x32xf32>, vector<2x32xf32> -> vector<2x32xf32>
    %112 = arith.addf %92, %111 : vector<2x32xf32>
    %cst_140 = arith.constant dense<0.000000e+00> : vector<2x32xf32>
    %113 = tpu.matmul %107, %78, %cst_140 {dimension_numbers = #tpu.dot_dimension_numbers<[1], [0], [0], [1], [0, 0, 1, 1], [], []>} : vector<2x32xf32>, vector<32x32xf32>, vector<2x32xf32> -> vector<2x32xf32>
    %114 = arith.addf %98, %113 : vector<2x32xf32>
    %cst_141 = arith.constant dense<0.000000e+00> : vector<2x32xf32>
    %115 = tpu.matmul %107, %80, %cst_141 {dimension_numbers = #tpu.dot_dimension_numbers<[1], [0], [0], [1], [0, 0, 1, 1], [], []>} : vector<2x32xf32>, vector<32x32xf32>, vector<2x32xf32> -> vector<2x32xf32>
    %116 = arith.addf %104, %115 : vector<2x32xf32>
    %117 = arith.negf %110 : vector<2x32xf32>
    %118 = math.exp %117 : vector<2x32xf32>
    %cst_142 = arith.constant 1.000000e+00 : f32
    %119 = vector.broadcast %cst_142 : f32 to vector<2x32xf32>
    %120 = arith.addf %119, %118 : vector<2x32xf32>
    %121 = arith.divf %119, %120 : vector<2x32xf32>
    %122 = arith.negf %112 : vector<2x32xf32>
    %123 = math.exp %122 : vector<2x32xf32>
    %cst_143 = arith.constant 1.000000e+00 : f32
    %124 = vector.broadcast %cst_143 : f32 to vector<2x32xf32>
    %125 = arith.addf %124, %123 : vector<2x32xf32>
    %126 = arith.divf %124, %125 : vector<2x32xf32>
    %127 = math.tanh %114 : vector<2x32xf32>
    %128 = arith.negf %116 : vector<2x32xf32>
    %129 = math.exp %128 : vector<2x32xf32>
    %cst_144 = arith.constant 1.000000e+00 : f32
    %130 = vector.broadcast %cst_144 : f32 to vector<2x32xf32>
    %131 = arith.addf %130, %129 : vector<2x32xf32>
    %132 = arith.divf %130, %131 : vector<2x32xf32>
    %133 = arith.mulf %126, %108 : vector<2x32xf32>
    %134 = arith.mulf %121, %127 : vector<2x32xf32>
    %135 = arith.addf %133, %134 : vector<2x32xf32>
    %136 = math.tanh %135 : vector<2x32xf32>
    %137 = arith.mulf %132, %136 : vector<2x32xf32>
    %cst_145 = arith.constant dense<0.000000e+00> : vector<2x32xf32>
    %138 = tpu.matmul %137, %105, %cst_145 {dimension_numbers = #tpu.dot_dimension_numbers<[1], [0], [0], [1], [0, 0, 1, 1], [], []>} : vector<2x32xf32>, vector<32x32xf32>, vector<2x32xf32> -> vector<2x32xf32>
    %139 = arith.addf %138, %106 : vector<2x32xf32>
    %140 = math.tanh %139 : vector<2x32xf32>
    %cst_146 = arith.constant dense<0.000000e+00> : vector<2x32xf32>
    %141 = tpu.matmul %137, %74, %cst_146 {dimension_numbers = #tpu.dot_dimension_numbers<[1], [0], [0], [1], [0, 0, 1, 1], [], []>} : vector<2x32xf32>, vector<32x32xf32>, vector<2x32xf32> -> vector<2x32xf32>
    %142 = arith.addf %86, %141 : vector<2x32xf32>
    %cst_147 = arith.constant dense<0.000000e+00> : vector<2x32xf32>
    %143 = tpu.matmul %137, %76, %cst_147 {dimension_numbers = #tpu.dot_dimension_numbers<[1], [0], [0], [1], [0, 0, 1, 1], [], []>} : vector<2x32xf32>, vector<32x32xf32>, vector<2x32xf32> -> vector<2x32xf32>
    %144 = arith.addf %92, %143 : vector<2x32xf32>
    %cst_148 = arith.constant dense<0.000000e+00> : vector<2x32xf32>
    %145 = tpu.matmul %137, %78, %cst_148 {dimension_numbers = #tpu.dot_dimension_numbers<[1], [0], [0], [1], [0, 0, 1, 1], [], []>} : vector<2x32xf32>, vector<32x32xf32>, vector<2x32xf32> -> vector<2x32xf32>
    %146 = arith.addf %98, %145 : vector<2x32xf32>
    %cst_149 = arith.constant dense<0.000000e+00> : vector<2x32xf32>
    %147 = tpu.matmul %137, %80, %cst_149 {dimension_numbers = #tpu.dot_dimension_numbers<[1], [0], [0], [1], [0, 0, 1, 1], [], []>} : vector<2x32xf32>, vector<32x32xf32>, vector<2x32xf32> -> vector<2x32xf32>
    %148 = arith.addf %104, %147 : vector<2x32xf32>
    %149 = arith.negf %142 : vector<2x32xf32>
    %150 = math.exp %149 : vector<2x32xf32>
    %cst_150 = arith.constant 1.000000e+00 : f32
    %151 = vector.broadcast %cst_150 : f32 to vector<2x32xf32>
    %152 = arith.addf %151, %150 : vector<2x32xf32>
    %153 = arith.divf %151, %152 : vector<2x32xf32>
    %154 = arith.negf %144 : vector<2x32xf32>
    %155 = math.exp %154 : vector<2x32xf32>
    %cst_151 = arith.constant 1.000000e+00 : f32
    %156 = vector.broadcast %cst_151 : f32 to vector<2x32xf32>
    %157 = arith.addf %156, %155 : vector<2x32xf32>
    %158 = arith.divf %156, %157 : vector<2x32xf32>
    %159 = math.tanh %146 : vector<2x32xf32>
    %160 = arith.negf %148 : vector<2x32xf32>
    %161 = math.exp %160 : vector<2x32xf32>
    %cst_152 = arith.constant 1.000000e+00 : f32
    %162 = vector.broadcast %cst_152 : f32 to vector<2x32xf32>
    %163 = arith.addf %162, %161 : vector<2x32xf32>
    %164 = arith.divf %162, %163 : vector<2x32xf32>
    %165 = arith.mulf %158, %135 : vector<2x32xf32>
    %166 = arith.mulf %153, %159 : vector<2x32xf32>
    %167 = arith.addf %165, %166 : vector<2x32xf32>
    %168 = math.tanh %167 : vector<2x32xf32>
    %169 = arith.mulf %164, %168 : vector<2x32xf32>
    %cst_153 = arith.constant dense<0.000000e+00> : vector<2x32xf32>
    %170 = tpu.matmul %169, %105, %cst_153 {dimension_numbers = #tpu.dot_dimension_numbers<[1], [0], [0], [1], [0, 0, 1, 1], [], []>} : vector<2x32xf32>, vector<32x32xf32>, vector<2x32xf32> -> vector<2x32xf32>
    %171 = arith.addf %170, %106 : vector<2x32xf32>
    %172 = math.tanh %171 : vector<2x32xf32>
    %cst_154 = arith.constant dense<0.000000e+00> : vector<2x32xf32>
    %173 = tpu.matmul %169, %74, %cst_154 {dimension_numbers = #tpu.dot_dimension_numbers<[1], [0], [0], [1], [0, 0, 1, 1], [], []>} : vector<2x32xf32>, vector<32x32xf32>, vector<2x32xf32> -> vector<2x32xf32>
    %174 = arith.addf %86, %173 : vector<2x32xf32>
    %cst_155 = arith.constant dense<0.000000e+00> : vector<2x32xf32>
    %175 = tpu.matmul %169, %76, %cst_155 {dimension_numbers = #tpu.dot_dimension_numbers<[1], [0], [0], [1], [0, 0, 1, 1], [], []>} : vector<2x32xf32>, vector<32x32xf32>, vector<2x32xf32> -> vector<2x32xf32>
    %176 = arith.addf %92, %175 : vector<2x32xf32>
    %cst_156 = arith.constant dense<0.000000e+00> : vector<2x32xf32>
    %177 = tpu.matmul %169, %78, %cst_156 {dimension_numbers = #tpu.dot_dimension_numbers<[1], [0], [0], [1], [0, 0, 1, 1], [], []>} : vector<2x32xf32>, vector<32x32xf32>, vector<2x32xf32> -> vector<2x32xf32>
    %178 = arith.addf %98, %177 : vector<2x32xf32>
    %cst_157 = arith.constant dense<0.000000e+00> : vector<2x32xf32>
    %179 = tpu.matmul %169, %80, %cst_157 {dimension_numbers = #tpu.dot_dimension_numbers<[1], [0], [0], [1], [0, 0, 1, 1], [], []>} : vector<2x32xf32>, vector<32x32xf32>, vector<2x32xf32> -> vector<2x32xf32>
    %180 = arith.addf %104, %179 : vector<2x32xf32>
    %181 = arith.negf %174 : vector<2x32xf32>
    %182 = math.exp %181 : vector<2x32xf32>
    %cst_158 = arith.constant 1.000000e+00 : f32
    %183 = vector.broadcast %cst_158 : f32 to vector<2x32xf32>
    %184 = arith.addf %183, %182 : vector<2x32xf32>
    %185 = arith.divf %183, %184 : vector<2x32xf32>
    %186 = arith.negf %176 : vector<2x32xf32>
    %187 = math.exp %186 : vector<2x32xf32>
    %cst_159 = arith.constant 1.000000e+00 : f32
    %188 = vector.broadcast %cst_159 : f32 to vector<2x32xf32>
    %189 = arith.addf %188, %187 : vector<2x32xf32>
    %190 = arith.divf %188, %189 : vector<2x32xf32>
    %191 = math.tanh %178 : vector<2x32xf32>
    %192 = arith.negf %180 : vector<2x32xf32>
    %193 = math.exp %192 : vector<2x32xf32>
    %cst_160 = arith.constant 1.000000e+00 : f32
    %194 = vector.broadcast %cst_160 : f32 to vector<2x32xf32>
    %195 = arith.addf %194, %193 : vector<2x32xf32>
    %196 = arith.divf %194, %195 : vector<2x32xf32>
    %197 = arith.mulf %190, %167 : vector<2x32xf32>
    %198 = arith.mulf %185, %191 : vector<2x32xf32>
    %199 = arith.addf %197, %198 : vector<2x32xf32>
    %200 = math.tanh %199 : vector<2x32xf32>
    %201 = arith.mulf %196, %200 : vector<2x32xf32>
    %cst_161 = arith.constant dense<0.000000e+00> : vector<2x32xf32>
    %202 = tpu.matmul %201, %105, %cst_161 {dimension_numbers = #tpu.dot_dimension_numbers<[1], [0], [0], [1], [0, 0, 1, 1], [], []>} : vector<2x32xf32>, vector<32x32xf32>, vector<2x32xf32> -> vector<2x32xf32>
    %203 = arith.addf %202, %106 : vector<2x32xf32>
    %204 = math.tanh %203 : vector<2x32xf32>
    %cst_162 = arith.constant dense<0.000000e+00> : vector<2x32xf32>
    %205 = tpu.matmul %201, %74, %cst_162 {dimension_numbers = #tpu.dot_dimension_numbers<[1], [0], [0], [1], [0, 0, 1, 1], [], []>} : vector<2x32xf32>, vector<32x32xf32>, vector<2x32xf32> -> vector<2x32xf32>
    %206 = arith.addf %86, %205 : vector<2x32xf32>
    %cst_163 = arith.constant dense<0.000000e+00> : vector<2x32xf32>
    %207 = tpu.matmul %201, %76, %cst_163 {dimension_numbers = #tpu.dot_dimension_numbers<[1], [0], [0], [1], [0, 0, 1, 1], [], []>} : vector<2x32xf32>, vector<32x32xf32>, vector<2x32xf32> -> vector<2x32xf32>
    %208 = arith.addf %92, %207 : vector<2x32xf32>
    %cst_164 = arith.constant dense<0.000000e+00> : vector<2x32xf32>
    %209 = tpu.matmul %201, %78, %cst_164 {dimension_numbers = #tpu.dot_dimension_numbers<[1], [0], [0], [1], [0, 0, 1, 1], [], []>} : vector<2x32xf32>, vector<32x32xf32>, vector<2x32xf32> -> vector<2x32xf32>
    %210 = arith.addf %98, %209 : vector<2x32xf32>
    %cst_165 = arith.constant dense<0.000000e+00> : vector<2x32xf32>
    %211 = tpu.matmul %201, %80, %cst_165 {dimension_numbers = #tpu.dot_dimension_numbers<[1], [0], [0], [1], [0, 0, 1, 1], [], []>} : vector<2x32xf32>, vector<32x32xf32>, vector<2x32xf32> -> vector<2x32xf32>
    %212 = arith.addf %104, %211 : vector<2x32xf32>
    %213 = arith.negf %206 : vector<2x32xf32>
    %214 = math.exp %213 : vector<2x32xf32>
    %cst_166 = arith.constant 1.000000e+00 : f32
    %215 = vector.broadcast %cst_166 : f32 to vector<2x32xf32>
    %216 = arith.addf %215, %214 : vector<2x32xf32>
    %217 = arith.divf %215, %216 : vector<2x32xf32>
    %218 = arith.negf %208 : vector<2x32xf32>
    %219 = math.exp %218 : vector<2x32xf32>
    %cst_167 = arith.constant 1.000000e+00 : f32
    %220 = vector.broadcast %cst_167 : f32 to vector<2x32xf32>
    %221 = arith.addf %220, %219 : vector<2x32xf32>
    %222 = arith.divf %220, %221 : vector<2x32xf32>
    %223 = math.tanh %210 : vector<2x32xf32>
    %224 = arith.negf %212 : vector<2x32xf32>
    %225 = math.exp %224 : vector<2x32xf32>
    %cst_168 = arith.constant 1.000000e+00 : f32
    %226 = vector.broadcast %cst_168 : f32 to vector<2x32xf32>
    %227 = arith.addf %226, %225 : vector<2x32xf32>
    %228 = arith.divf %226, %227 : vector<2x32xf32>
    %229 = arith.mulf %222, %199 : vector<2x32xf32>
    %230 = arith.mulf %217, %223 : vector<2x32xf32>
    %231 = arith.addf %229, %230 : vector<2x32xf32>
    %232 = math.tanh %231 : vector<2x32xf32>
    %233 = arith.mulf %228, %232 : vector<2x32xf32>
    %cst_169 = arith.constant dense<0.000000e+00> : vector<2x32xf32>
    %234 = tpu.matmul %233, %105, %cst_169 {dimension_numbers = #tpu.dot_dimension_numbers<[1], [0], [0], [1], [0, 0, 1, 1], [], []>} : vector<2x32xf32>, vector<32x32xf32>, vector<2x32xf32> -> vector<2x32xf32>
    %235 = arith.addf %234, %106 : vector<2x32xf32>
    %236 = math.tanh %235 : vector<2x32xf32>
    %c0_170 = arith.constant 0 : index
    %c0_171 = arith.constant 0 : index
    %c0_172 = arith.constant 0 : index
    %237 = vector.load %arg19[%c0_170, %c0_171, %c0_172] : memref<4x16x32xf32, #tpu.memory_space<vmem>>, vector<1x16x32xf32>
    %238 = vector.shape_cast %237 : vector<1x16x32xf32> to vector<16x32xf32>
    %c1_173 = arith.constant 1 : index
    %c0_174 = arith.constant 0 : index
    %c0_175 = arith.constant 0 : index
    %239 = vector.load %arg19[%c1_173, %c0_174, %c0_175] : memref<4x16x32xf32, #tpu.memory_space<vmem>>, vector<1x16x32xf32>
    %240 = vector.shape_cast %239 : vector<1x16x32xf32> to vector<16x32xf32>
    %c2_176 = arith.constant 2 : index
    %c0_177 = arith.constant 0 : index
    %c0_178 = arith.constant 0 : index
    %241 = vector.load %arg19[%c2_176, %c0_177, %c0_178] : memref<4x16x32xf32, #tpu.memory_space<vmem>>, vector<1x16x32xf32>
    %242 = vector.shape_cast %241 : vector<1x16x32xf32> to vector<16x32xf32>
    %c3_179 = arith.constant 3 : index
    %c0_180 = arith.constant 0 : index
    %c0_181 = arith.constant 0 : index
    %243 = vector.load %arg19[%c3_179, %c0_180, %c0_181] : memref<4x16x32xf32, #tpu.memory_space<vmem>>, vector<1x16x32xf32>
    %244 = vector.shape_cast %243 : vector<1x16x32xf32> to vector<16x32xf32>
    %c0_182 = arith.constant 0 : index
    %c0_183 = arith.constant 0 : index
    %c0_184 = arith.constant 0 : index
    %245 = vector.load %arg21[%c0_182, %c0_183, %c0_184] : memref<4x32x32xf32, #tpu.memory_space<vmem>>, vector<1x32x32xf32>
    %246 = vector.shape_cast %245 : vector<1x32x32xf32> to vector<32x32xf32>
    %c1_185 = arith.constant 1 : index
    %c0_186 = arith.constant 0 : index
    %c0_187 = arith.constant 0 : index
    %247 = vector.load %arg21[%c1_185, %c0_186, %c0_187] : memref<4x32x32xf32, #tpu.memory_space<vmem>>, vector<1x32x32xf32>
    %248 = vector.shape_cast %247 : vector<1x32x32xf32> to vector<32x32xf32>
    %c2_188 = arith.constant 2 : index
    %c0_189 = arith.constant 0 : index
    %c0_190 = arith.constant 0 : index
    %249 = vector.load %arg21[%c2_188, %c0_189, %c0_190] : memref<4x32x32xf32, #tpu.memory_space<vmem>>, vector<1x32x32xf32>
    %250 = vector.shape_cast %249 : vector<1x32x32xf32> to vector<32x32xf32>
    %c3_191 = arith.constant 3 : index
    %c0_192 = arith.constant 0 : index
    %c0_193 = arith.constant 0 : index
    %251 = vector.load %arg21[%c3_191, %c0_192, %c0_193] : memref<4x32x32xf32, #tpu.memory_space<vmem>>, vector<1x32x32xf32>
    %252 = vector.shape_cast %251 : vector<1x32x32xf32> to vector<32x32xf32>
    %c0_194 = arith.constant 0 : index
    %c0_195 = arith.constant 0 : index
    %253 = vector.load %arg23[%c0_194, %c0_195] : memref<32x16xf32, #tpu.memory_space<vmem>>, vector<32x16xf32>
    %c0_196 = arith.constant 0 : index
    %c0_197 = arith.constant 0 : index
    %254 = vector.load %arg24[%c0_196, %c0_197] : memref<2x16xf32, #tpu.memory_space<vmem>>, vector<2x16xf32>
    %cst_198 = arith.constant 0.000000e+00 : f32
    %255 = vector.broadcast %cst_198 : f32 to vector<2x16xf32>
    %c0_199 = arith.constant 0 : index
    %c0_200 = arith.constant 0 : index
    %c0_201 = arith.constant 0 : index
    %256 = vector.load %arg20[%c0_199, %c0_200, %c0_201] : memref<4x32x32xf32, #tpu.memory_space<vmem>>, vector<1x32x32xf32>
    %257 = vector.shape_cast %256 : vector<1x32x32xf32> to vector<32x32xf32>
    %cst_202 = arith.constant dense<0.000000e+00> : vector<2x32xf32>
    %258 = tpu.matmul %137, %257, %cst_202 {dimension_numbers = #tpu.dot_dimension_numbers<[1], [0], [0], [1], [0, 0, 1, 1], [], []>} : vector<2x32xf32>, vector<32x32xf32>, vector<2x32xf32> -> vector<2x32xf32>
    %c0_203 = arith.constant 0 : index
    %c0_204 = arith.constant 0 : index
    %c0_205 = arith.constant 0 : index
    %259 = vector.load %arg22[%c0_203, %c0_204, %c0_205] : memref<4x2x32xf32, #tpu.memory_space<vmem>>, vector<1x2x32xf32>
    %260 = vector.shape_cast %259 : vector<1x2x32xf32> to vector<2x32xf32>
    %261 = arith.addf %258, %260 : vector<2x32xf32>
    %c1_206 = arith.constant 1 : index
    %c0_207 = arith.constant 0 : index
    %c0_208 = arith.constant 0 : index
    %262 = vector.load %arg20[%c1_206, %c0_207, %c0_208] : memref<4x32x32xf32, #tpu.memory_space<vmem>>, vector<1x32x32xf32>
    %263 = vector.shape_cast %262 : vector<1x32x32xf32> to vector<32x32xf32>
    %cst_209 = arith.constant dense<0.000000e+00> : vector<2x32xf32>
    %264 = tpu.matmul %137, %263, %cst_209 {dimension_numbers = #tpu.dot_dimension_numbers<[1], [0], [0], [1], [0, 0, 1, 1], [], []>} : vector<2x32xf32>, vector<32x32xf32>, vector<2x32xf32> -> vector<2x32xf32>
    %c1_210 = arith.constant 1 : index
    %c0_211 = arith.constant 0 : index
    %c0_212 = arith.constant 0 : index
    %265 = vector.load %arg22[%c1_210, %c0_211, %c0_212] : memref<4x2x32xf32, #tpu.memory_space<vmem>>, vector<1x2x32xf32>
    %266 = vector.shape_cast %265 : vector<1x2x32xf32> to vector<2x32xf32>
    %267 = arith.addf %264, %266 : vector<2x32xf32>
    %c2_213 = arith.constant 2 : index
    %c0_214 = arith.constant 0 : index
    %c0_215 = arith.constant 0 : index
    %268 = vector.load %arg20[%c2_213, %c0_214, %c0_215] : memref<4x32x32xf32, #tpu.memory_space<vmem>>, vector<1x32x32xf32>
    %269 = vector.shape_cast %268 : vector<1x32x32xf32> to vector<32x32xf32>
    %cst_216 = arith.constant dense<0.000000e+00> : vector<2x32xf32>
    %270 = tpu.matmul %137, %269, %cst_216 {dimension_numbers = #tpu.dot_dimension_numbers<[1], [0], [0], [1], [0, 0, 1, 1], [], []>} : vector<2x32xf32>, vector<32x32xf32>, vector<2x32xf32> -> vector<2x32xf32>
    %c2_217 = arith.constant 2 : index
    %c0_218 = arith.constant 0 : index
    %c0_219 = arith.constant 0 : index
    %271 = vector.load %arg22[%c2_217, %c0_218, %c0_219] : memref<4x2x32xf32, #tpu.memory_space<vmem>>, vector<1x2x32xf32>
    %272 = vector.shape_cast %271 : vector<1x2x32xf32> to vector<2x32xf32>
    %273 = arith.addf %270, %272 : vector<2x32xf32>
    %c3_220 = arith.constant 3 : index
    %c0_221 = arith.constant 0 : index
    %c0_222 = arith.constant 0 : index
    %274 = vector.load %arg20[%c3_220, %c0_221, %c0_222] : memref<4x32x32xf32, #tpu.memory_space<vmem>>, vector<1x32x32xf32>
    %275 = vector.shape_cast %274 : vector<1x32x32xf32> to vector<32x32xf32>
    %cst_223 = arith.constant dense<0.000000e+00> : vector<2x32xf32>
    %276 = tpu.matmul %137, %275, %cst_223 {dimension_numbers = #tpu.dot_dimension_numbers<[1], [0], [0], [1], [0, 0, 1, 1], [], []>} : vector<2x32xf32>, vector<32x32xf32>, vector<2x32xf32> -> vector<2x32xf32>
    %c3_224 = arith.constant 3 : index
    %c0_225 = arith.constant 0 : index
    %c0_226 = arith.constant 0 : index
    %277 = vector.load %arg22[%c3_224, %c0_225, %c0_226] : memref<4x2x32xf32, #tpu.memory_space<vmem>>, vector<1x2x32xf32>
    %278 = vector.shape_cast %277 : vector<1x2x32xf32> to vector<2x32xf32>
    %279 = arith.addf %276, %278 : vector<2x32xf32>
    %cst_227 = arith.constant 0.000000e+00 : f32
    %280 = vector.broadcast %cst_227 : f32 to vector<2x32xf32>
    %c0_i32_228 = arith.constant 0 : i32
    %cst_229 = arith.constant dense<0.000000e+00> : vector<2x32xf32>
    %281 = tpu.matmul %255, %238, %cst_229 {dimension_numbers = #tpu.dot_dimension_numbers<[1], [0], [0], [1], [0, 0, 1, 1], [], []>} : vector<2x16xf32>, vector<16x32xf32>, vector<2x32xf32> -> vector<2x32xf32>
    %282 = arith.addf %261, %281 : vector<2x32xf32>
    %cst_230 = arith.constant dense<0.000000e+00> : vector<2x32xf32>
    %283 = tpu.matmul %140, %246, %cst_230 {dimension_numbers = #tpu.dot_dimension_numbers<[1], [0], [0], [1], [0, 0, 1, 1], [], []>} : vector<2x32xf32>, vector<32x32xf32>, vector<2x32xf32> -> vector<2x32xf32>
    %284 = arith.addf %282, %283 : vector<2x32xf32>
    %cst_231 = arith.constant dense<0.000000e+00> : vector<2x32xf32>
    %285 = tpu.matmul %255, %240, %cst_231 {dimension_numbers = #tpu.dot_dimension_numbers<[1], [0], [0], [1], [0, 0, 1, 1], [], []>} : vector<2x16xf32>, vector<16x32xf32>, vector<2x32xf32> -> vector<2x32xf32>
    %286 = arith.addf %267, %285 : vector<2x32xf32>
    %cst_232 = arith.constant dense<0.000000e+00> : vector<2x32xf32>
    %287 = tpu.matmul %140, %248, %cst_232 {dimension_numbers = #tpu.dot_dimension_numbers<[1], [0], [0], [1], [0, 0, 1, 1], [], []>} : vector<2x32xf32>, vector<32x32xf32>, vector<2x32xf32> -> vector<2x32xf32>
    %288 = arith.addf %286, %287 : vector<2x32xf32>
    %cst_233 = arith.constant dense<0.000000e+00> : vector<2x32xf32>
    %289 = tpu.matmul %255, %242, %cst_233 {dimension_numbers = #tpu.dot_dimension_numbers<[1], [0], [0], [1], [0, 0, 1, 1], [], []>} : vector<2x16xf32>, vector<16x32xf32>, vector<2x32xf32> -> vector<2x32xf32>
    %290 = arith.addf %273, %289 : vector<2x32xf32>
    %cst_234 = arith.constant dense<0.000000e+00> : vector<2x32xf32>
    %291 = tpu.matmul %140, %250, %cst_234 {dimension_numbers = #tpu.dot_dimension_numbers<[1], [0], [0], [1], [0, 0, 1, 1], [], []>} : vector<2x32xf32>, vector<32x32xf32>, vector<2x32xf32> -> vector<2x32xf32>
    %292 = arith.addf %290, %291 : vector<2x32xf32>
    %cst_235 = arith.constant dense<0.000000e+00> : vector<2x32xf32>
    %293 = tpu.matmul %255, %244, %cst_235 {dimension_numbers = #tpu.dot_dimension_numbers<[1], [0], [0], [1], [0, 0, 1, 1], [], []>} : vector<2x16xf32>, vector<16x32xf32>, vector<2x32xf32> -> vector<2x32xf32>
    %294 = arith.addf %279, %293 : vector<2x32xf32>
    %cst_236 = arith.constant dense<0.000000e+00> : vector<2x32xf32>
    %295 = tpu.matmul %140, %252, %cst_236 {dimension_numbers = #tpu.dot_dimension_numbers<[1], [0], [0], [1], [0, 0, 1, 1], [], []>} : vector<2x32xf32>, vector<32x32xf32>, vector<2x32xf32> -> vector<2x32xf32>
    %296 = arith.addf %294, %295 : vector<2x32xf32>
    %297 = arith.negf %284 : vector<2x32xf32>
    %298 = math.exp %297 : vector<2x32xf32>
    %cst_237 = arith.constant 1.000000e+00 : f32
    %299 = vector.broadcast %cst_237 : f32 to vector<2x32xf32>
    %300 = arith.addf %299, %298 : vector<2x32xf32>
    %301 = arith.divf %299, %300 : vector<2x32xf32>
    %302 = arith.negf %288 : vector<2x32xf32>
    %303 = math.exp %302 : vector<2x32xf32>
    %cst_238 = arith.constant 1.000000e+00 : f32
    %304 = vector.broadcast %cst_238 : f32 to vector<2x32xf32>
    %305 = arith.addf %304, %303 : vector<2x32xf32>
    %306 = arith.divf %304, %305 : vector<2x32xf32>
    %307 = math.tanh %292 : vector<2x32xf32>
    %308 = arith.negf %296 : vector<2x32xf32>
    %309 = math.exp %308 : vector<2x32xf32>
    %cst_239 = arith.constant 1.000000e+00 : f32
    %310 = vector.broadcast %cst_239 : f32 to vector<2x32xf32>
    %311 = arith.addf %310, %309 : vector<2x32xf32>
    %312 = arith.divf %310, %311 : vector<2x32xf32>
    %313 = arith.mulf %306, %280 : vector<2x32xf32>
    %314 = arith.mulf %301, %307 : vector<2x32xf32>
    %315 = arith.addf %313, %314 : vector<2x32xf32>
    %316 = math.tanh %315 : vector<2x32xf32>
    %317 = arith.mulf %312, %316 : vector<2x32xf32>
    %cst_240 = arith.constant dense<0.000000e+00> : vector<2x16xf32>
    %318 = tpu.matmul %317, %253, %cst_240 {dimension_numbers = #tpu.dot_dimension_numbers<[1], [0], [0], [1], [0, 0, 1, 1], [], []>} : vector<2x32xf32>, vector<32x16xf32>, vector<2x16xf32> -> vector<2x16xf32>
    %319 = arith.addf %318, %254 : vector<2x16xf32>
    %c0_i32_241 = arith.constant 0 : i32
    %320 = arith.addi %c0_i32_241, %c0_i32_228 : i32
    %321 = arith.index_cast %320 : i32 to index
    %c0_242 = arith.constant 0 : index
    %c0_243 = arith.constant 0 : index
    %322 = vector.load %arg25[%321, %c0_242, %c0_243] : memref<16x2x16xf32, #tpu.memory_space<vmem>>, vector<1x2x16xf32>
    %323 = vector.shape_cast %322 : vector<1x2x16xf32> to vector<2x16xf32>
    %324 = vector.shape_cast %319 : vector<2x16xf32> to vector<1x2x16xf32>
    tpu.vector_store %arg25[%321, %c0_242, %c0_243], %324 {strides = array<i32>} : memref<16x2x16xf32, #tpu.memory_space<vmem>>, vector<1x2x16xf32>,
    %cst_244 = arith.constant dense<0xFF800000> : vector<2xf32>
    %325 = vector.multi_reduction <maximumf>, %319, %cst_244 [1] : vector<2x16xf32> to vector<2xf32>
    %326 = vector.shape_cast %325 : vector<2xf32> to vector<2x1xf32>
    %327 = vector.broadcast %326 : vector<2x1xf32> to vector<2x16xf32>
    %328 = arith.subf %319, %327 : vector<2x16xf32>
    %329 = math.exp %328 : vector<2x16xf32>
    %cst_245 = arith.constant dense<0.000000e+00> : vector<2xf32>
    %330 = vector.multi_reduction <add>, %329, %cst_245 [1] : vector<2x16xf32> to vector<2xf32>
    %331 = vector.shape_cast %330 : vector<2xf32> to vector<2x1xf32>
    %332 = tpu.reciprocal %331 {approx = true} : vector<2x1xf32> -> vector<2x1xf32>
    %333 = vector.broadcast %332 : vector<2x1xf32> to vector<2x16xf32>
    %334 = arith.mulf %329, %333 : vector<2x16xf32>
    %c1_i32_246 = arith.constant 1 : i32
    %cst_247 = arith.constant dense<0.000000e+00> : vector<2x32xf32>
    %335 = tpu.matmul %334, %238, %cst_247 {dimension_numbers = #tpu.dot_dimension_numbers<[1], [0], [0], [1], [0, 0, 1, 1], [], []>} : vector<2x16xf32>, vector<16x32xf32>, vector<2x32xf32> -> vector<2x32xf32>
    %336 = arith.addf %261, %335 : vector<2x32xf32>
    %cst_248 = arith.constant dense<0.000000e+00> : vector<2x32xf32>
    %337 = tpu.matmul %317, %246, %cst_248 {dimension_numbers = #tpu.dot_dimension_numbers<[1], [0], [0], [1], [0, 0, 1, 1], [], []>} : vector<2x32xf32>, vector<32x32xf32>, vector<2x32xf32> -> vector<2x32xf32>
    %338 = arith.addf %336, %337 : vector<2x32xf32>
    %cst_249 = arith.constant dense<0.000000e+00> : vector<2x32xf32>
    %339 = tpu.matmul %334, %240, %cst_249 {dimension_numbers = #tpu.dot_dimension_numbers<[1], [0], [0], [1], [0, 0, 1, 1], [], []>} : vector<2x16xf32>, vector<16x32xf32>, vector<2x32xf32> -> vector<2x32xf32>
    %340 = arith.addf %267, %339 : vector<2x32xf32>
    %cst_250 = arith.constant dense<0.000000e+00> : vector<2x32xf32>
    %341 = tpu.matmul %317, %248, %cst_250 {dimension_numbers = #tpu.dot_dimension_numbers<[1], [0], [0], [1], [0, 0, 1, 1], [], []>} : vector<2x32xf32>, vector<32x32xf32>, vector<2x32xf32> -> vector<2x32xf32>
    %342 = arith.addf %340, %341 : vector<2x32xf32>
    %cst_251 = arith.constant dense<0.000000e+00> : vector<2x32xf32>
    %343 = tpu.matmul %334, %242, %cst_251 {dimension_numbers = #tpu.dot_dimension_numbers<[1], [0], [0], [1], [0, 0, 1, 1], [], []>} : vector<2x16xf32>, vector<16x32xf32>, vector<2x32xf32> -> vector<2x32xf32>
    %344 = arith.addf %273, %343 : vector<2x32xf32>
    %cst_252 = arith.constant dense<0.000000e+00> : vector<2x32xf32>
    %345 = tpu.matmul %317, %250, %cst_252 {dimension_numbers = #tpu.dot_dimension_numbers<[1], [0], [0], [1], [0, 0, 1, 1], [], []>} : vector<2x32xf32>, vector<32x32xf32>, vector<2x32xf32> -> vector<2x32xf32>
    %346 = arith.addf %344, %345 : vector<2x32xf32>
    %cst_253 = arith.constant dense<0.000000e+00> : vector<2x32xf32>
    %347 = tpu.matmul %334, %244, %cst_253 {dimension_numbers = #tpu.dot_dimension_numbers<[1], [0], [0], [1], [0, 0, 1, 1], [], []>} : vector<2x16xf32>, vector<16x32xf32>, vector<2x32xf32> -> vector<2x32xf32>
    %348 = arith.addf %279, %347 : vector<2x32xf32>
    %cst_254 = arith.constant dense<0.000000e+00> : vector<2x32xf32>
    %349 = tpu.matmul %317, %252, %cst_254 {dimension_numbers = #tpu.dot_dimension_numbers<[1], [0], [0], [1], [0, 0, 1, 1], [], []>} : vector<2x32xf32>, vector<32x32xf32>, vector<2x32xf32> -> vector<2x32xf32>
    %350 = arith.addf %348, %349 : vector<2x32xf32>
    %351 = arith.negf %338 : vector<2x32xf32>
    %352 = math.exp %351 : vector<2x32xf32>
    %cst_255 = arith.constant 1.000000e+00 : f32
    %353 = vector.broadcast %cst_255 : f32 to vector<2x32xf32>
    %354 = arith.addf %353, %352 : vector<2x32xf32>
    %355 = arith.divf %353, %354 : vector<2x32xf32>
    %356 = arith.negf %342 : vector<2x32xf32>
    %357 = math.exp %356 : vector<2x32xf32>
    %cst_256 = arith.constant 1.000000e+00 : f32
    %358 = vector.broadcast %cst_256 : f32 to vector<2x32xf32>
    %359 = arith.addf %358, %357 : vector<2x32xf32>
    %360 = arith.divf %358, %359 : vector<2x32xf32>
    %361 = math.tanh %346 : vector<2x32xf32>
    %362 = arith.negf %350 : vector<2x32xf32>
    %363 = math.exp %362 : vector<2x32xf32>
    %cst_257 = arith.constant 1.000000e+00 : f32
    %364 = vector.broadcast %cst_257 : f32 to vector<2x32xf32>
    %365 = arith.addf %364, %363 : vector<2x32xf32>
    %366 = arith.divf %364, %365 : vector<2x32xf32>
    %367 = arith.mulf %360, %315 : vector<2x32xf32>
    %368 = arith.mulf %355, %361 : vector<2x32xf32>
    %369 = arith.addf %367, %368 : vector<2x32xf32>
    %370 = math.tanh %369 : vector<2x32xf32>
    %371 = arith.mulf %366, %370 : vector<2x32xf32>
    %cst_258 = arith.constant dense<0.000000e+00> : vector<2x16xf32>
    %372 = tpu.matmul %371, %253, %cst_258 {dimension_numbers = #tpu.dot_dimension_numbers<[1], [0], [0], [1], [0, 0, 1, 1], [], []>} : vector<2x32xf32>, vector<32x16xf32>, vector<2x16xf32> -> vector<2x16xf32>
    %373 = arith.addf %372, %254 : vector<2x16xf32>
    %c0_i32_259 = arith.constant 0 : i32
    %374 = arith.addi %c0_i32_259, %c1_i32_246 : i32
    %375 = arith.index_cast %374 : i32 to index
    %c0_260 = arith.constant 0 : index
    %c0_261 = arith.constant 0 : index
    %376 = vector.load %arg25[%375, %c0_260, %c0_261] : memref<16x2x16xf32, #tpu.memory_space<vmem>>, vector<1x2x16xf32>
    %377 = vector.shape_cast %376 : vector<1x2x16xf32> to vector<2x16xf32>
    %378 = vector.shape_cast %373 : vector<2x16xf32> to vector<1x2x16xf32>
    tpu.vector_store %arg25[%375, %c0_260, %c0_261], %378 {strides = array<i32>} : memref<16x2x16xf32, #tpu.memory_space<vmem>>, vector<1x2x16xf32>,
    %cst_262 = arith.constant dense<0xFF800000> : vector<2xf32>
    %379 = vector.multi_reduction <maximumf>, %373, %cst_262 [1] : vector<2x16xf32> to vector<2xf32>
    %380 = vector.shape_cast %379 : vector<2xf32> to vector<2x1xf32>
    %381 = vector.broadcast %380 : vector<2x1xf32> to vector<2x16xf32>
    %382 = arith.subf %373, %381 : vector<2x16xf32>
    %383 = math.exp %382 : vector<2x16xf32>
    %cst_263 = arith.constant dense<0.000000e+00> : vector<2xf32>
    %384 = vector.multi_reduction <add>, %383, %cst_263 [1] : vector<2x16xf32> to vector<2xf32>
    %385 = vector.shape_cast %384 : vector<2xf32> to vector<2x1xf32>
    %386 = tpu.reciprocal %385 {approx = true} : vector<2x1xf32> -> vector<2x1xf32>
    %387 = vector.broadcast %386 : vector<2x1xf32> to vector<2x16xf32>
    %388 = arith.mulf %383, %387 : vector<2x16xf32>
    %c2_i32 = arith.constant 2 : i32
    %cst_264 = arith.constant dense<0.000000e+00> : vector<2x32xf32>
    %389 = tpu.matmul %388, %238, %cst_264 {dimension_numbers = #tpu.dot_dimension_numbers<[1], [0], [0], [1], [0, 0, 1, 1], [], []>} : vector<2x16xf32>, vector<16x32xf32>, vector<2x32xf32> -> vector<2x32xf32>
    %390 = arith.addf %261, %389 : vector<2x32xf32>
    %cst_265 = arith.constant dense<0.000000e+00> : vector<2x32xf32>
    %391 = tpu.matmul %371, %246, %cst_265 {dimension_numbers = #tpu.dot_dimension_numbers<[1], [0], [0], [1], [0, 0, 1, 1], [], []>} : vector<2x32xf32>, vector<32x32xf32>, vector<2x32xf32> -> vector<2x32xf32>
    %392 = arith.addf %390, %391 : vector<2x32xf32>
    %cst_266 = arith.constant dense<0.000000e+00> : vector<2x32xf32>
    %393 = tpu.matmul %388, %240, %cst_266 {dimension_numbers = #tpu.dot_dimension_numbers<[1], [0], [0], [1], [0, 0, 1, 1], [], []>} : vector<2x16xf32>, vector<16x32xf32>, vector<2x32xf32> -> vector<2x32xf32>
    %394 = arith.addf %267, %393 : vector<2x32xf32>
    %cst_267 = arith.constant dense<0.000000e+00> : vector<2x32xf32>
    %395 = tpu.matmul %371, %248, %cst_267 {dimension_numbers = #tpu.dot_dimension_numbers<[1], [0], [0], [1], [0, 0, 1, 1], [], []>} : vector<2x32xf32>, vector<32x32xf32>, vector<2x32xf32> -> vector<2x32xf32>
    %396 = arith.addf %394, %395 : vector<2x32xf32>
    %cst_268 = arith.constant dense<0.000000e+00> : vector<2x32xf32>
    %397 = tpu.matmul %388, %242, %cst_268 {dimension_numbers = #tpu.dot_dimension_numbers<[1], [0], [0], [1], [0, 0, 1, 1], [], []>} : vector<2x16xf32>, vector<16x32xf32>, vector<2x32xf32> -> vector<2x32xf32>
    %398 = arith.addf %273, %397 : vector<2x32xf32>
    %cst_269 = arith.constant dense<0.000000e+00> : vector<2x32xf32>
    %399 = tpu.matmul %371, %250, %cst_269 {dimension_numbers = #tpu.dot_dimension_numbers<[1], [0], [0], [1], [0, 0, 1, 1], [], []>} : vector<2x32xf32>, vector<32x32xf32>, vector<2x32xf32> -> vector<2x32xf32>
    %400 = arith.addf %398, %399 : vector<2x32xf32>
    %cst_270 = arith.constant dense<0.000000e+00> : vector<2x32xf32>
    %401 = tpu.matmul %388, %244, %cst_270 {dimension_numbers = #tpu.dot_dimension_numbers<[1], [0], [0], [1], [0, 0, 1, 1], [], []>} : vector<2x16xf32>, vector<16x32xf32>, vector<2x32xf32> -> vector<2x32xf32>
    %402 = arith.addf %279, %401 : vector<2x32xf32>
    %cst_271 = arith.constant dense<0.000000e+00> : vector<2x32xf32>
    %403 = tpu.matmul %371, %252, %cst_271 {dimension_numbers = #tpu.dot_dimension_numbers<[1], [0], [0], [1], [0, 0, 1, 1], [], []>} : vector<2x32xf32>, vector<32x32xf32>, vector<2x32xf32> -> vector<2x32xf32>
    %404 = arith.addf %402, %403 : vector<2x32xf32>
    %405 = arith.negf %392 : vector<2x32xf32>
    %406 = math.exp %405 : vector<2x32xf32>
    %cst_272 = arith.constant 1.000000e+00 : f32
    %407 = vector.broadcast %cst_272 : f32 to vector<2x32xf32>
    %408 = arith.addf %407, %406 : vector<2x32xf32>
    %409 = arith.divf %407, %408 : vector<2x32xf32>
    %410 = arith.negf %396 : vector<2x32xf32>
    %411 = math.exp %410 : vector<2x32xf32>
    %cst_273 = arith.constant 1.000000e+00 : f32
    %412 = vector.broadcast %cst_273 : f32 to vector<2x32xf32>
    %413 = arith.addf %412, %411 : vector<2x32xf32>
    %414 = arith.divf %412, %413 : vector<2x32xf32>
    %415 = math.tanh %400 : vector<2x32xf32>
    %416 = arith.negf %404 : vector<2x32xf32>
    %417 = math.exp %416 : vector<2x32xf32>
    %cst_274 = arith.constant 1.000000e+00 : f32
    %418 = vector.broadcast %cst_274 : f32 to vector<2x32xf32>
    %419 = arith.addf %418, %417 : vector<2x32xf32>
    %420 = arith.divf %418, %419 : vector<2x32xf32>
    %421 = arith.mulf %414, %369 : vector<2x32xf32>
    %422 = arith.mulf %409, %415 : vector<2x32xf32>
    %423 = arith.addf %421, %422 : vector<2x32xf32>
    %424 = math.tanh %423 : vector<2x32xf32>
    %425 = arith.mulf %420, %424 : vector<2x32xf32>
    %cst_275 = arith.constant dense<0.000000e+00> : vector<2x16xf32>
    %426 = tpu.matmul %425, %253, %cst_275 {dimension_numbers = #tpu.dot_dimension_numbers<[1], [0], [0], [1], [0, 0, 1, 1], [], []>} : vector<2x32xf32>, vector<32x16xf32>, vector<2x16xf32> -> vector<2x16xf32>
    %427 = arith.addf %426, %254 : vector<2x16xf32>
    %c0_i32_276 = arith.constant 0 : i32
    %428 = arith.addi %c0_i32_276, %c2_i32 : i32
    %429 = arith.index_cast %428 : i32 to index
    %c0_277 = arith.constant 0 : index
    %c0_278 = arith.constant 0 : index
    %430 = vector.load %arg25[%429, %c0_277, %c0_278] : memref<16x2x16xf32, #tpu.memory_space<vmem>>, vector<1x2x16xf32>
    %431 = vector.shape_cast %430 : vector<1x2x16xf32> to vector<2x16xf32>
    %432 = vector.shape_cast %427 : vector<2x16xf32> to vector<1x2x16xf32>
    tpu.vector_store %arg25[%429, %c0_277, %c0_278], %432 {strides = array<i32>} : memref<16x2x16xf32, #tpu.memory_space<vmem>>, vector<1x2x16xf32>,
    %cst_279 = arith.constant dense<0xFF800000> : vector<2xf32>
    %433 = vector.multi_reduction <maximumf>, %427, %cst_279 [1] : vector<2x16xf32> to vector<2xf32>
    %434 = vector.shape_cast %433 : vector<2xf32> to vector<2x1xf32>
    %435 = vector.broadcast %434 : vector<2x1xf32> to vector<2x16xf32>
    %436 = arith.subf %427, %435 : vector<2x16xf32>
    %437 = math.exp %436 : vector<2x16xf32>
    %cst_280 = arith.constant dense<0.000000e+00> : vector<2xf32>
    %438 = vector.multi_reduction <add>, %437, %cst_280 [1] : vector<2x16xf32> to vector<2xf32>
    %439 = vector.shape_cast %438 : vector<2xf32> to vector<2x1xf32>
    %440 = tpu.reciprocal %439 {approx = true} : vector<2x1xf32> -> vector<2x1xf32>
    %441 = vector.broadcast %440 : vector<2x1xf32> to vector<2x16xf32>
    %442 = arith.mulf %437, %441 : vector<2x16xf32>
    %c3_i32 = arith.constant 3 : i32
    %cst_281 = arith.constant dense<0.000000e+00> : vector<2x32xf32>
    %443 = tpu.matmul %442, %238, %cst_281 {dimension_numbers = #tpu.dot_dimension_numbers<[1], [0], [0], [1], [0, 0, 1, 1], [], []>} : vector<2x16xf32>, vector<16x32xf32>, vector<2x32xf32> -> vector<2x32xf32>
    %444 = arith.addf %261, %443 : vector<2x32xf32>
    %cst_282 = arith.constant dense<0.000000e+00> : vector<2x32xf32>
    %445 = tpu.matmul %425, %246, %cst_282 {dimension_numbers = #tpu.dot_dimension_numbers<[1], [0], [0], [1], [0, 0, 1, 1], [], []>} : vector<2x32xf32>, vector<32x32xf32>, vector<2x32xf32> -> vector<2x32xf32>
    %446 = arith.addf %444, %445 : vector<2x32xf32>
    %cst_283 = arith.constant dense<0.000000e+00> : vector<2x32xf32>
    %447 = tpu.matmul %442, %240, %cst_283 {dimension_numbers = #tpu.dot_dimension_numbers<[1], [0], [0], [1], [0, 0, 1, 1], [], []>} : vector<2x16xf32>, vector<16x32xf32>, vector<2x32xf32> -> vector<2x32xf32>
    %448 = arith.addf %267, %447 : vector<2x32xf32>
    %cst_284 = arith.constant dense<0.000000e+00> : vector<2x32xf32>
    %449 = tpu.matmul %425, %248, %cst_284 {dimension_numbers = #tpu.dot_dimension_numbers<[1], [0], [0], [1], [0, 0, 1, 1], [], []>} : vector<2x32xf32>, vector<32x32xf32>, vector<2x32xf32> -> vector<2x32xf32>
    %450 = arith.addf %448, %449 : vector<2x32xf32>
    %cst_285 = arith.constant dense<0.000000e+00> : vector<2x32xf32>
    %451 = tpu.matmul %442, %242, %cst_285 {dimension_numbers = #tpu.dot_dimension_numbers<[1], [0], [0], [1], [0, 0, 1, 1], [], []>} : vector<2x16xf32>, vector<16x32xf32>, vector<2x32xf32> -> vector<2x32xf32>
    %452 = arith.addf %273, %451 : vector<2x32xf32>
    %cst_286 = arith.constant dense<0.000000e+00> : vector<2x32xf32>
    %453 = tpu.matmul %425, %250, %cst_286 {dimension_numbers = #tpu.dot_dimension_numbers<[1], [0], [0], [1], [0, 0, 1, 1], [], []>} : vector<2x32xf32>, vector<32x32xf32>, vector<2x32xf32> -> vector<2x32xf32>
    %454 = arith.addf %452, %453 : vector<2x32xf32>
    %cst_287 = arith.constant dense<0.000000e+00> : vector<2x32xf32>
    %455 = tpu.matmul %442, %244, %cst_287 {dimension_numbers = #tpu.dot_dimension_numbers<[1], [0], [0], [1], [0, 0, 1, 1], [], []>} : vector<2x16xf32>, vector<16x32xf32>, vector<2x32xf32> -> vector<2x32xf32>
    %456 = arith.addf %279, %455 : vector<2x32xf32>
    %cst_288 = arith.constant dense<0.000000e+00> : vector<2x32xf32>
    %457 = tpu.matmul %425, %252, %cst_288 {dimension_numbers = #tpu.dot_dimension_numbers<[1], [0], [0], [1], [0, 0, 1, 1], [], []>} : vector<2x32xf32>, vector<32x32xf32>, vector<2x32xf32> -> vector<2x32xf32>
    %458 = arith.addf %456, %457 : vector<2x32xf32>
    %459 = arith.negf %446 : vector<2x32xf32>
    %460 = math.exp %459 : vector<2x32xf32>
    %cst_289 = arith.constant 1.000000e+00 : f32
    %461 = vector.broadcast %cst_289 : f32 to vector<2x32xf32>
    %462 = arith.addf %461, %460 : vector<2x32xf32>
    %463 = arith.divf %461, %462 : vector<2x32xf32>
    %464 = arith.negf %450 : vector<2x32xf32>
    %465 = math.exp %464 : vector<2x32xf32>
    %cst_290 = arith.constant 1.000000e+00 : f32
    %466 = vector.broadcast %cst_290 : f32 to vector<2x32xf32>
    %467 = arith.addf %466, %465 : vector<2x32xf32>
    %468 = arith.divf %466, %467 : vector<2x32xf32>
    %469 = math.tanh %454 : vector<2x32xf32>
    %470 = arith.negf %458 : vector<2x32xf32>
    %471 = math.exp %470 : vector<2x32xf32>
    %cst_291 = arith.constant 1.000000e+00 : f32
    %472 = vector.broadcast %cst_291 : f32 to vector<2x32xf32>
    %473 = arith.addf %472, %471 : vector<2x32xf32>
    %474 = arith.divf %472, %473 : vector<2x32xf32>
    %475 = arith.mulf %468, %423 : vector<2x32xf32>
    %476 = arith.mulf %463, %469 : vector<2x32xf32>
    %477 = arith.addf %475, %476 : vector<2x32xf32>
    %478 = math.tanh %477 : vector<2x32xf32>
    %479 = arith.mulf %474, %478 : vector<2x32xf32>
    %cst_292 = arith.constant dense<0.000000e+00> : vector<2x16xf32>
    %480 = tpu.matmul %479, %253, %cst_292 {dimension_numbers = #tpu.dot_dimension_numbers<[1], [0], [0], [1], [0, 0, 1, 1], [], []>} : vector<2x32xf32>, vector<32x16xf32>, vector<2x16xf32> -> vector<2x16xf32>
    %481 = arith.addf %480, %254 : vector<2x16xf32>
    %c0_i32_293 = arith.constant 0 : i32
    %482 = arith.addi %c0_i32_293, %c3_i32 : i32
    %483 = arith.index_cast %482 : i32 to index
    %c0_294 = arith.constant 0 : index
    %c0_295 = arith.constant 0 : index
    %484 = vector.load %arg25[%483, %c0_294, %c0_295] : memref<16x2x16xf32, #tpu.memory_space<vmem>>, vector<1x2x16xf32>
    %485 = vector.shape_cast %484 : vector<1x2x16xf32> to vector<2x16xf32>
    %486 = vector.shape_cast %481 : vector<2x16xf32> to vector<1x2x16xf32>
    tpu.vector_store %arg25[%483, %c0_294, %c0_295], %486 {strides = array<i32>} : memref<16x2x16xf32, #tpu.memory_space<vmem>>, vector<1x2x16xf32>,
    %cst_296 = arith.constant dense<0xFF800000> : vector<2xf32>
    %487 = vector.multi_reduction <maximumf>, %481, %cst_296 [1] : vector<2x16xf32> to vector<2xf32>
    %488 = vector.shape_cast %487 : vector<2xf32> to vector<2x1xf32>
    %489 = vector.broadcast %488 : vector<2x1xf32> to vector<2x16xf32>
    %490 = arith.subf %481, %489 : vector<2x16xf32>
    %491 = math.exp %490 : vector<2x16xf32>
    %cst_297 = arith.constant dense<0.000000e+00> : vector<2xf32>
    %492 = vector.multi_reduction <add>, %491, %cst_297 [1] : vector<2x16xf32> to vector<2xf32>
    %493 = vector.shape_cast %492 : vector<2xf32> to vector<2x1xf32>
    %494 = tpu.reciprocal %493 {approx = true} : vector<2x1xf32> -> vector<2x1xf32>
    %495 = vector.broadcast %494 : vector<2x1xf32> to vector<2x16xf32>
    %496 = arith.mulf %491, %495 : vector<2x16xf32>
    %c4_i32 = arith.constant 4 : i32
    %c0_298 = arith.constant 0 : index
    %c0_299 = arith.constant 0 : index
    %c0_300 = arith.constant 0 : index
    %497 = vector.load %arg20[%c0_298, %c0_299, %c0_300] : memref<4x32x32xf32, #tpu.memory_space<vmem>>, vector<1x32x32xf32>
    %498 = vector.shape_cast %497 : vector<1x32x32xf32> to vector<32x32xf32>
    %cst_301 = arith.constant dense<0.000000e+00> : vector<2x32xf32>
    %499 = tpu.matmul %169, %498, %cst_301 {dimension_numbers = #tpu.dot_dimension_numbers<[1], [0], [0], [1], [0, 0, 1, 1], [], []>} : vector<2x32xf32>, vector<32x32xf32>, vector<2x32xf32> -> vector<2x32xf32>
    %c0_302 = arith.constant 0 : index
    %c0_303 = arith.constant 0 : index
    %c0_304 = arith.constant 0 : index
    %500 = vector.load %arg22[%c0_302, %c0_303, %c0_304] : memref<4x2x32xf32, #tpu.memory_space<vmem>>, vector<1x2x32xf32>
    %501 = vector.shape_cast %500 : vector<1x2x32xf32> to vector<2x32xf32>
    %502 = arith.addf %499, %501 : vector<2x32xf32>
    %c1_305 = arith.constant 1 : index
    %c0_306 = arith.constant 0 : index
    %c0_307 = arith.constant 0 : index
    %503 = vector.load %arg20[%c1_305, %c0_306, %c0_307] : memref<4x32x32xf32, #tpu.memory_space<vmem>>, vector<1x32x32xf32>
    %504 = vector.shape_cast %503 : vector<1x32x32xf32> to vector<32x32xf32>
    %cst_308 = arith.constant dense<0.000000e+00> : vector<2x32xf32>
    %505 = tpu.matmul %169, %504, %cst_308 {dimension_numbers = #tpu.dot_dimension_numbers<[1], [0], [0], [1], [0, 0, 1, 1], [], []>} : vector<2x32xf32>, vector<32x32xf32>, vector<2x32xf32> -> vector<2x32xf32>
    %c1_309 = arith.constant 1 : index
    %c0_310 = arith.constant 0 : index
    %c0_311 = arith.constant 0 : index
    %506 = vector.load %arg22[%c1_309, %c0_310, %c0_311] : memref<4x2x32xf32, #tpu.memory_space<vmem>>, vector<1x2x32xf32>
    %507 = vector.shape_cast %506 : vector<1x2x32xf32> to vector<2x32xf32>
    %508 = arith.addf %505, %507 : vector<2x32xf32>
    %c2_312 = arith.constant 2 : index
    %c0_313 = arith.constant 0 : index
    %c0_314 = arith.constant 0 : index
    %509 = vector.load %arg20[%c2_312, %c0_313, %c0_314] : memref<4x32x32xf32, #tpu.memory_space<vmem>>, vector<1x32x32xf32>
    %510 = vector.shape_cast %509 : vector<1x32x32xf32> to vector<32x32xf32>
    %cst_315 = arith.constant dense<0.000000e+00> : vector<2x32xf32>
    %511 = tpu.matmul %169, %510, %cst_315 {dimension_numbers = #tpu.dot_dimension_numbers<[1], [0], [0], [1], [0, 0, 1, 1], [], []>} : vector<2x32xf32>, vector<32x32xf32>, vector<2x32xf32> -> vector<2x32xf32>
    %c2_316 = arith.constant 2 : index
    %c0_317 = arith.constant 0 : index
    %c0_318 = arith.constant 0 : index
    %512 = vector.load %arg22[%c2_316, %c0_317, %c0_318] : memref<4x2x32xf32, #tpu.memory_space<vmem>>, vector<1x2x32xf32>
    %513 = vector.shape_cast %512 : vector<1x2x32xf32> to vector<2x32xf32>
    %514 = arith.addf %511, %513 : vector<2x32xf32>
    %c3_319 = arith.constant 3 : index
    %c0_320 = arith.constant 0 : index
    %c0_321 = arith.constant 0 : index
    %515 = vector.load %arg20[%c3_319, %c0_320, %c0_321] : memref<4x32x32xf32, #tpu.memory_space<vmem>>, vector<1x32x32xf32>
    %516 = vector.shape_cast %515 : vector<1x32x32xf32> to vector<32x32xf32>
    %cst_322 = arith.constant dense<0.000000e+00> : vector<2x32xf32>
    %517 = tpu.matmul %169, %516, %cst_322 {dimension_numbers = #tpu.dot_dimension_numbers<[1], [0], [0], [1], [0, 0, 1, 1], [], []>} : vector<2x32xf32>, vector<32x32xf32>, vector<2x32xf32> -> vector<2x32xf32>
    %c3_323 = arith.constant 3 : index
    %c0_324 = arith.constant 0 : index
    %c0_325 = arith.constant 0 : index
    %518 = vector.load %arg22[%c3_323, %c0_324, %c0_325] : memref<4x2x32xf32, #tpu.memory_space<vmem>>, vector<1x2x32xf32>
    %519 = vector.shape_cast %518 : vector<1x2x32xf32> to vector<2x32xf32>
    %520 = arith.addf %517, %519 : vector<2x32xf32>
    %cst_326 = arith.constant 0.000000e+00 : f32
    %521 = vector.broadcast %cst_326 : f32 to vector<2x32xf32>
    %c0_i32_327 = arith.constant 0 : i32
    %cst_328 = arith.constant dense<0.000000e+00> : vector<2x32xf32>
    %522 = tpu.matmul %496, %238, %cst_328 {dimension_numbers = #tpu.dot_dimension_numbers<[1], [0], [0], [1], [0, 0, 1, 1], [], []>} : vector<2x16xf32>, vector<16x32xf32>, vector<2x32xf32> -> vector<2x32xf32>
    %523 = arith.addf %502, %522 : vector<2x32xf32>
    %cst_329 = arith.constant dense<0.000000e+00> : vector<2x32xf32>
    %524 = tpu.matmul %172, %246, %cst_329 {dimension_numbers = #tpu.dot_dimension_numbers<[1], [0], [0], [1], [0, 0, 1, 1], [], []>} : vector<2x32xf32>, vector<32x32xf32>, vector<2x32xf32> -> vector<2x32xf32>
    %525 = arith.addf %523, %524 : vector<2x32xf32>
    %cst_330 = arith.constant dense<0.000000e+00> : vector<2x32xf32>
    %526 = tpu.matmul %496, %240, %cst_330 {dimension_numbers = #tpu.dot_dimension_numbers<[1], [0], [0], [1], [0, 0, 1, 1], [], []>} : vector<2x16xf32>, vector<16x32xf32>, vector<2x32xf32> -> vector<2x32xf32>
    %527 = arith.addf %508, %526 : vector<2x32xf32>
    %cst_331 = arith.constant dense<0.000000e+00> : vector<2x32xf32>
    %528 = tpu.matmul %172, %248, %cst_331 {dimension_numbers = #tpu.dot_dimension_numbers<[1], [0], [0], [1], [0, 0, 1, 1], [], []>} : vector<2x32xf32>, vector<32x32xf32>, vector<2x32xf32> -> vector<2x32xf32>
    %529 = arith.addf %527, %528 : vector<2x32xf32>
    %cst_332 = arith.constant dense<0.000000e+00> : vector<2x32xf32>
    %530 = tpu.matmul %496, %242, %cst_332 {dimension_numbers = #tpu.dot_dimension_numbers<[1], [0], [0], [1], [0, 0, 1, 1], [], []>} : vector<2x16xf32>, vector<16x32xf32>, vector<2x32xf32> -> vector<2x32xf32>
    %531 = arith.addf %514, %530 : vector<2x32xf32>
    %cst_333 = arith.constant dense<0.000000e+00> : vector<2x32xf32>
    %532 = tpu.matmul %172, %250, %cst_333 {dimension_numbers = #tpu.dot_dimension_numbers<[1], [0], [0], [1], [0, 0, 1, 1], [], []>} : vector<2x32xf32>, vector<32x32xf32>, vector<2x32xf32> -> vector<2x32xf32>
    %533 = arith.addf %531, %532 : vector<2x32xf32>
    %cst_334 = arith.constant dense<0.000000e+00> : vector<2x32xf32>
    %534 = tpu.matmul %496, %244, %cst_334 {dimension_numbers = #tpu.dot_dimension_numbers<[1], [0], [0], [1], [0, 0, 1, 1], [], []>} : vector<2x16xf32>, vector<16x32xf32>, vector<2x32xf32> -> vector<2x32xf32>
    %535 = arith.addf %520, %534 : vector<2x32xf32>
    %cst_335 = arith.constant dense<0.000000e+00> : vector<2x32xf32>
    %536 = tpu.matmul %172, %252, %cst_335 {dimension_numbers = #tpu.dot_dimension_numbers<[1], [0], [0], [1], [0, 0, 1, 1], [], []>} : vector<2x32xf32>, vector<32x32xf32>, vector<2x32xf32> -> vector<2x32xf32>
    %537 = arith.addf %535, %536 : vector<2x32xf32>
    %538 = arith.negf %525 : vector<2x32xf32>
    %539 = math.exp %538 : vector<2x32xf32>
    %cst_336 = arith.constant 1.000000e+00 : f32
    %540 = vector.broadcast %cst_336 : f32 to vector<2x32xf32>
    %541 = arith.addf %540, %539 : vector<2x32xf32>
    %542 = arith.divf %540, %541 : vector<2x32xf32>
    %543 = arith.negf %529 : vector<2x32xf32>
    %544 = math.exp %543 : vector<2x32xf32>
    %cst_337 = arith.constant 1.000000e+00 : f32
    %545 = vector.broadcast %cst_337 : f32 to vector<2x32xf32>
    %546 = arith.addf %545, %544 : vector<2x32xf32>
    %547 = arith.divf %545, %546 : vector<2x32xf32>
    %548 = math.tanh %533 : vector<2x32xf32>
    %549 = arith.negf %537 : vector<2x32xf32>
    %550 = math.exp %549 : vector<2x32xf32>
    %cst_338 = arith.constant 1.000000e+00 : f32
    %551 = vector.broadcast %cst_338 : f32 to vector<2x32xf32>
    %552 = arith.addf %551, %550 : vector<2x32xf32>
    %553 = arith.divf %551, %552 : vector<2x32xf32>
    %554 = arith.mulf %547, %521 : vector<2x32xf32>
    %555 = arith.mulf %542, %548 : vector<2x32xf32>
    %556 = arith.addf %554, %555 : vector<2x32xf32>
    %557 = math.tanh %556 : vector<2x32xf32>
    %558 = arith.mulf %553, %557 : vector<2x32xf32>
    %cst_339 = arith.constant dense<0.000000e+00> : vector<2x16xf32>
    %559 = tpu.matmul %558, %253, %cst_339 {dimension_numbers = #tpu.dot_dimension_numbers<[1], [0], [0], [1], [0, 0, 1, 1], [], []>} : vector<2x32xf32>, vector<32x16xf32>, vector<2x16xf32> -> vector<2x16xf32>
    %560 = arith.addf %559, %254 : vector<2x16xf32>
    %c4_i32_340 = arith.constant 4 : i32
    %561 = arith.addi %c4_i32_340, %c0_i32_327 : i32
    %562 = arith.index_cast %561 : i32 to index
    %c0_341 = arith.constant 0 : index
    %c0_342 = arith.constant 0 : index
    %563 = vector.load %arg25[%562, %c0_341, %c0_342] : memref<16x2x16xf32, #tpu.memory_space<vmem>>, vector<1x2x16xf32>
    %564 = vector.shape_cast %563 : vector<1x2x16xf32> to vector<2x16xf32>
    %565 = vector.shape_cast %560 : vector<2x16xf32> to vector<1x2x16xf32>
    tpu.vector_store %arg25[%562, %c0_341, %c0_342], %565 {strides = array<i32>} : memref<16x2x16xf32, #tpu.memory_space<vmem>>, vector<1x2x16xf32>,
    %cst_343 = arith.constant dense<0xFF800000> : vector<2xf32>
    %566 = vector.multi_reduction <maximumf>, %560, %cst_343 [1] : vector<2x16xf32> to vector<2xf32>
    %567 = vector.shape_cast %566 : vector<2xf32> to vector<2x1xf32>
    %568 = vector.broadcast %567 : vector<2x1xf32> to vector<2x16xf32>
    %569 = arith.subf %560, %568 : vector<2x16xf32>
    %570 = math.exp %569 : vector<2x16xf32>
    %cst_344 = arith.constant dense<0.000000e+00> : vector<2xf32>
    %571 = vector.multi_reduction <add>, %570, %cst_344 [1] : vector<2x16xf32> to vector<2xf32>
    %572 = vector.shape_cast %571 : vector<2xf32> to vector<2x1xf32>
    %573 = tpu.reciprocal %572 {approx = true} : vector<2x1xf32> -> vector<2x1xf32>
    %574 = vector.broadcast %573 : vector<2x1xf32> to vector<2x16xf32>
    %575 = arith.mulf %570, %574 : vector<2x16xf32>
    %c1_i32_345 = arith.constant 1 : i32
    %cst_346 = arith.constant dense<0.000000e+00> : vector<2x32xf32>
    %576 = tpu.matmul %575, %238, %cst_346 {dimension_numbers = #tpu.dot_dimension_numbers<[1], [0], [0], [1], [0, 0, 1, 1], [], []>} : vector<2x16xf32>, vector<16x32xf32>, vector<2x32xf32> -> vector<2x32xf32>
    %577 = arith.addf %502, %576 : vector<2x32xf32>
    %cst_347 = arith.constant dense<0.000000e+00> : vector<2x32xf32>
    %578 = tpu.matmul %558, %246, %cst_347 {dimension_numbers = #tpu.dot_dimension_numbers<[1], [0], [0], [1], [0, 0, 1, 1], [], []>} : vector<2x32xf32>, vector<32x32xf32>, vector<2x32xf32> -> vector<2x32xf32>
    %579 = arith.addf %577, %578 : vector<2x32xf32>
    %cst_348 = arith.constant dense<0.000000e+00> : vector<2x32xf32>
    %580 = tpu.matmul %575, %240, %cst_348 {dimension_numbers = #tpu.dot_dimension_numbers<[1], [0], [0], [1], [0, 0, 1, 1], [], []>} : vector<2x16xf32>, vector<16x32xf32>, vector<2x32xf32> -> vector<2x32xf32>
    %581 = arith.addf %508, %580 : vector<2x32xf32>
    %cst_349 = arith.constant dense<0.000000e+00> : vector<2x32xf32>
    %582 = tpu.matmul %558, %248, %cst_349 {dimension_numbers = #tpu.dot_dimension_numbers<[1], [0], [0], [1], [0, 0, 1, 1], [], []>} : vector<2x32xf32>, vector<32x32xf32>, vector<2x32xf32> -> vector<2x32xf32>
    %583 = arith.addf %581, %582 : vector<2x32xf32>
    %cst_350 = arith.constant dense<0.000000e+00> : vector<2x32xf32>
    %584 = tpu.matmul %575, %242, %cst_350 {dimension_numbers = #tpu.dot_dimension_numbers<[1], [0], [0], [1], [0, 0, 1, 1], [], []>} : vector<2x16xf32>, vector<16x32xf32>, vector<2x32xf32> -> vector<2x32xf32>
    %585 = arith.addf %514, %584 : vector<2x32xf32>
    %cst_351 = arith.constant dense<0.000000e+00> : vector<2x32xf32>
    %586 = tpu.matmul %558, %250, %cst_351 {dimension_numbers = #tpu.dot_dimension_numbers<[1], [0], [0], [1], [0, 0, 1, 1], [], []>} : vector<2x32xf32>, vector<32x32xf32>, vector<2x32xf32> -> vector<2x32xf32>
    %587 = arith.addf %585, %586 : vector<2x32xf32>
    %cst_352 = arith.constant dense<0.000000e+00> : vector<2x32xf32>
    %588 = tpu.matmul %575, %244, %cst_352 {dimension_numbers = #tpu.dot_dimension_numbers<[1], [0], [0], [1], [0, 0, 1, 1], [], []>} : vector<2x16xf32>, vector<16x32xf32>, vector<2x32xf32> -> vector<2x32xf32>
    %589 = arith.addf %520, %588 : vector<2x32xf32>
    %cst_353 = arith.constant dense<0.000000e+00> : vector<2x32xf32>
    %590 = tpu.matmul %558, %252, %cst_353 {dimension_numbers = #tpu.dot_dimension_numbers<[1], [0], [0], [1], [0, 0, 1, 1], [], []>} : vector<2x32xf32>, vector<32x32xf32>, vector<2x32xf32> -> vector<2x32xf32>
    %591 = arith.addf %589, %590 : vector<2x32xf32>
    %592 = arith.negf %579 : vector<2x32xf32>
    %593 = math.exp %592 : vector<2x32xf32>
    %cst_354 = arith.constant 1.000000e+00 : f32
    %594 = vector.broadcast %cst_354 : f32 to vector<2x32xf32>
    %595 = arith.addf %594, %593 : vector<2x32xf32>
    %596 = arith.divf %594, %595 : vector<2x32xf32>
    %597 = arith.negf %583 : vector<2x32xf32>
    %598 = math.exp %597 : vector<2x32xf32>
    %cst_355 = arith.constant 1.000000e+00 : f32
    %599 = vector.broadcast %cst_355 : f32 to vector<2x32xf32>
    %600 = arith.addf %599, %598 : vector<2x32xf32>
    %601 = arith.divf %599, %600 : vector<2x32xf32>
    %602 = math.tanh %587 : vector<2x32xf32>
    %603 = arith.negf %591 : vector<2x32xf32>
    %604 = math.exp %603 : vector<2x32xf32>
    %cst_356 = arith.constant 1.000000e+00 : f32
    %605 = vector.broadcast %cst_356 : f32 to vector<2x32xf32>
    %606 = arith.addf %605, %604 : vector<2x32xf32>
    %607 = arith.divf %605, %606 : vector<2x32xf32>
    %608 = arith.mulf %601, %556 : vector<2x32xf32>
    %609 = arith.mulf %596, %602 : vector<2x32xf32>
    %610 = arith.addf %608, %609 : vector<2x32xf32>
    %611 = math.tanh %610 : vector<2x32xf32>
    %612 = arith.mulf %607, %611 : vector<2x32xf32>
    %cst_357 = arith.constant dense<0.000000e+00> : vector<2x16xf32>
    %613 = tpu.matmul %612, %253, %cst_357 {dimension_numbers = #tpu.dot_dimension_numbers<[1], [0], [0], [1], [0, 0, 1, 1], [], []>} : vector<2x32xf32>, vector<32x16xf32>, vector<2x16xf32> -> vector<2x16xf32>
    %614 = arith.addf %613, %254 : vector<2x16xf32>
    %c4_i32_358 = arith.constant 4 : i32
    %615 = arith.addi %c4_i32_358, %c1_i32_345 : i32
    %616 = arith.index_cast %615 : i32 to index
    %c0_359 = arith.constant 0 : index
    %c0_360 = arith.constant 0 : index
    %617 = vector.load %arg25[%616, %c0_359, %c0_360] : memref<16x2x16xf32, #tpu.memory_space<vmem>>, vector<1x2x16xf32>
    %618 = vector.shape_cast %617 : vector<1x2x16xf32> to vector<2x16xf32>
    %619 = vector.shape_cast %614 : vector<2x16xf32> to vector<1x2x16xf32>
    tpu.vector_store %arg25[%616, %c0_359, %c0_360], %619 {strides = array<i32>} : memref<16x2x16xf32, #tpu.memory_space<vmem>>, vector<1x2x16xf32>,
    %cst_361 = arith.constant dense<0xFF800000> : vector<2xf32>
    %620 = vector.multi_reduction <maximumf>, %614, %cst_361 [1] : vector<2x16xf32> to vector<2xf32>
    %621 = vector.shape_cast %620 : vector<2xf32> to vector<2x1xf32>
    %622 = vector.broadcast %621 : vector<2x1xf32> to vector<2x16xf32>
    %623 = arith.subf %614, %622 : vector<2x16xf32>
    %624 = math.exp %623 : vector<2x16xf32>
    %cst_362 = arith.constant dense<0.000000e+00> : vector<2xf32>
    %625 = vector.multi_reduction <add>, %624, %cst_362 [1] : vector<2x16xf32> to vector<2xf32>
    %626 = vector.shape_cast %625 : vector<2xf32> to vector<2x1xf32>
    %627 = tpu.reciprocal %626 {approx = true} : vector<2x1xf32> -> vector<2x1xf32>
    %628 = vector.broadcast %627 : vector<2x1xf32> to vector<2x16xf32>
    %629 = arith.mulf %624, %628 : vector<2x16xf32>
    %c2_i32_363 = arith.constant 2 : i32
    %cst_364 = arith.constant dense<0.000000e+00> : vector<2x32xf32>
    %630 = tpu.matmul %629, %238, %cst_364 {dimension_numbers = #tpu.dot_dimension_numbers<[1], [0], [0], [1], [0, 0, 1, 1], [], []>} : vector<2x16xf32>, vector<16x32xf32>, vector<2x32xf32> -> vector<2x32xf32>
    %631 = arith.addf %502, %630 : vector<2x32xf32>
    %cst_365 = arith.constant dense<0.000000e+00> : vector<2x32xf32>
    %632 = tpu.matmul %612, %246, %cst_365 {dimension_numbers = #tpu.dot_dimension_numbers<[1], [0], [0], [1], [0, 0, 1, 1], [], []>} : vector<2x32xf32>, vector<32x32xf32>, vector<2x32xf32> -> vector<2x32xf32>
    %633 = arith.addf %631, %632 : vector<2x32xf32>
    %cst_366 = arith.constant dense<0.000000e+00> : vector<2x32xf32>
    %634 = tpu.matmul %629, %240, %cst_366 {dimension_numbers = #tpu.dot_dimension_numbers<[1], [0], [0], [1], [0, 0, 1, 1], [], []>} : vector<2x16xf32>, vector<16x32xf32>, vector<2x32xf32> -> vector<2x32xf32>
    %635 = arith.addf %508, %634 : vector<2x32xf32>
    %cst_367 = arith.constant dense<0.000000e+00> : vector<2x32xf32>
    %636 = tpu.matmul %612, %248, %cst_367 {dimension_numbers = #tpu.dot_dimension_numbers<[1], [0], [0], [1], [0, 0, 1, 1], [], []>} : vector<2x32xf32>, vector<32x32xf32>, vector<2x32xf32> -> vector<2x32xf32>
    %637 = arith.addf %635, %636 : vector<2x32xf32>
    %cst_368 = arith.constant dense<0.000000e+00> : vector<2x32xf32>
    %638 = tpu.matmul %629, %242, %cst_368 {dimension_numbers = #tpu.dot_dimension_numbers<[1], [0], [0], [1], [0, 0, 1, 1], [], []>} : vector<2x16xf32>, vector<16x32xf32>, vector<2x32xf32> -> vector<2x32xf32>
    %639 = arith.addf %514, %638 : vector<2x32xf32>
    %cst_369 = arith.constant dense<0.000000e+00> : vector<2x32xf32>
    %640 = tpu.matmul %612, %250, %cst_369 {dimension_numbers = #tpu.dot_dimension_numbers<[1], [0], [0], [1], [0, 0, 1, 1], [], []>} : vector<2x32xf32>, vector<32x32xf32>, vector<2x32xf32> -> vector<2x32xf32>
    %641 = arith.addf %639, %640 : vector<2x32xf32>
    %cst_370 = arith.constant dense<0.000000e+00> : vector<2x32xf32>
    %642 = tpu.matmul %629, %244, %cst_370 {dimension_numbers = #tpu.dot_dimension_numbers<[1], [0], [0], [1], [0, 0, 1, 1], [], []>} : vector<2x16xf32>, vector<16x32xf32>, vector<2x32xf32> -> vector<2x32xf32>
    %643 = arith.addf %520, %642 : vector<2x32xf32>
    %cst_371 = arith.constant dense<0.000000e+00> : vector<2x32xf32>
    %644 = tpu.matmul %612, %252, %cst_371 {dimension_numbers = #tpu.dot_dimension_numbers<[1], [0], [0], [1], [0, 0, 1, 1], [], []>} : vector<2x32xf32>, vector<32x32xf32>, vector<2x32xf32> -> vector<2x32xf32>
    %645 = arith.addf %643, %644 : vector<2x32xf32>
    %646 = arith.negf %633 : vector<2x32xf32>
    %647 = math.exp %646 : vector<2x32xf32>
    %cst_372 = arith.constant 1.000000e+00 : f32
    %648 = vector.broadcast %cst_372 : f32 to vector<2x32xf32>
    %649 = arith.addf %648, %647 : vector<2x32xf32>
    %650 = arith.divf %648, %649 : vector<2x32xf32>
    %651 = arith.negf %637 : vector<2x32xf32>
    %652 = math.exp %651 : vector<2x32xf32>
    %cst_373 = arith.constant 1.000000e+00 : f32
    %653 = vector.broadcast %cst_373 : f32 to vector<2x32xf32>
    %654 = arith.addf %653, %652 : vector<2x32xf32>
    %655 = arith.divf %653, %654 : vector<2x32xf32>
    %656 = math.tanh %641 : vector<2x32xf32>
    %657 = arith.negf %645 : vector<2x32xf32>
    %658 = math.exp %657 : vector<2x32xf32>
    %cst_374 = arith.constant 1.000000e+00 : f32
    %659 = vector.broadcast %cst_374 : f32 to vector<2x32xf32>
    %660 = arith.addf %659, %658 : vector<2x32xf32>
    %661 = arith.divf %659, %660 : vector<2x32xf32>
    %662 = arith.mulf %655, %610 : vector<2x32xf32>
    %663 = arith.mulf %650, %656 : vector<2x32xf32>
    %664 = arith.addf %662, %663 : vector<2x32xf32>
    %665 = math.tanh %664 : vector<2x32xf32>
    %666 = arith.mulf %661, %665 : vector<2x32xf32>
    %cst_375 = arith.constant dense<0.000000e+00> : vector<2x16xf32>
    %667 = tpu.matmul %666, %253, %cst_375 {dimension_numbers = #tpu.dot_dimension_numbers<[1], [0], [0], [1], [0, 0, 1, 1], [], []>} : vector<2x32xf32>, vector<32x16xf32>, vector<2x16xf32> -> vector<2x16xf32>
    %668 = arith.addf %667, %254 : vector<2x16xf32>
    %c4_i32_376 = arith.constant 4 : i32
    %669 = arith.addi %c4_i32_376, %c2_i32_363 : i32
    %670 = arith.index_cast %669 : i32 to index
    %c0_377 = arith.constant 0 : index
    %c0_378 = arith.constant 0 : index
    %671 = vector.load %arg25[%670, %c0_377, %c0_378] : memref<16x2x16xf32, #tpu.memory_space<vmem>>, vector<1x2x16xf32>
    %672 = vector.shape_cast %671 : vector<1x2x16xf32> to vector<2x16xf32>
    %673 = vector.shape_cast %668 : vector<2x16xf32> to vector<1x2x16xf32>
    tpu.vector_store %arg25[%670, %c0_377, %c0_378], %673 {strides = array<i32>} : memref<16x2x16xf32, #tpu.memory_space<vmem>>, vector<1x2x16xf32>,
    %cst_379 = arith.constant dense<0xFF800000> : vector<2xf32>
    %674 = vector.multi_reduction <maximumf>, %668, %cst_379 [1] : vector<2x16xf32> to vector<2xf32>
    %675 = vector.shape_cast %674 : vector<2xf32> to vector<2x1xf32>
    %676 = vector.broadcast %675 : vector<2x1xf32> to vector<2x16xf32>
    %677 = arith.subf %668, %676 : vector<2x16xf32>
    %678 = math.exp %677 : vector<2x16xf32>
    %cst_380 = arith.constant dense<0.000000e+00> : vector<2xf32>
    %679 = vector.multi_reduction <add>, %678, %cst_380 [1] : vector<2x16xf32> to vector<2xf32>
    %680 = vector.shape_cast %679 : vector<2xf32> to vector<2x1xf32>
    %681 = tpu.reciprocal %680 {approx = true} : vector<2x1xf32> -> vector<2x1xf32>
    %682 = vector.broadcast %681 : vector<2x1xf32> to vector<2x16xf32>
    %683 = arith.mulf %678, %682 : vector<2x16xf32>
    %c3_i32_381 = arith.constant 3 : i32
    %cst_382 = arith.constant dense<0.000000e+00> : vector<2x32xf32>
    %684 = tpu.matmul %683, %238, %cst_382 {dimension_numbers = #tpu.dot_dimension_numbers<[1], [0], [0], [1], [0, 0, 1, 1], [], []>} : vector<2x16xf32>, vector<16x32xf32>, vector<2x32xf32> -> vector<2x32xf32>
    %685 = arith.addf %502, %684 : vector<2x32xf32>
    %cst_383 = arith.constant dense<0.000000e+00> : vector<2x32xf32>
    %686 = tpu.matmul %666, %246, %cst_383 {dimension_numbers = #tpu.dot_dimension_numbers<[1], [0], [0], [1], [0, 0, 1, 1], [], []>} : vector<2x32xf32>, vector<32x32xf32>, vector<2x32xf32> -> vector<2x32xf32>
    %687 = arith.addf %685, %686 : vector<2x32xf32>
    %cst_384 = arith.constant dense<0.000000e+00> : vector<2x32xf32>
    %688 = tpu.matmul %683, %240, %cst_384 {dimension_numbers = #tpu.dot_dimension_numbers<[1], [0], [0], [1], [0, 0, 1, 1], [], []>} : vector<2x16xf32>, vector<16x32xf32>, vector<2x32xf32> -> vector<2x32xf32>
    %689 = arith.addf %508, %688 : vector<2x32xf32>
    %cst_385 = arith.constant dense<0.000000e+00> : vector<2x32xf32>
    %690 = tpu.matmul %666, %248, %cst_385 {dimension_numbers = #tpu.dot_dimension_numbers<[1], [0], [0], [1], [0, 0, 1, 1], [], []>} : vector<2x32xf32>, vector<32x32xf32>, vector<2x32xf32> -> vector<2x32xf32>
    %691 = arith.addf %689, %690 : vector<2x32xf32>
    %cst_386 = arith.constant dense<0.000000e+00> : vector<2x32xf32>
    %692 = tpu.matmul %683, %242, %cst_386 {dimension_numbers = #tpu.dot_dimension_numbers<[1], [0], [0], [1], [0, 0, 1, 1], [], []>} : vector<2x16xf32>, vector<16x32xf32>, vector<2x32xf32> -> vector<2x32xf32>
    %693 = arith.addf %514, %692 : vector<2x32xf32>
    %cst_387 = arith.constant dense<0.000000e+00> : vector<2x32xf32>
    %694 = tpu.matmul %666, %250, %cst_387 {dimension_numbers = #tpu.dot_dimension_numbers<[1], [0], [0], [1], [0, 0, 1, 1], [], []>} : vector<2x32xf32>, vector<32x32xf32>, vector<2x32xf32> -> vector<2x32xf32>
    %695 = arith.addf %693, %694 : vector<2x32xf32>
    %cst_388 = arith.constant dense<0.000000e+00> : vector<2x32xf32>
    %696 = tpu.matmul %683, %244, %cst_388 {dimension_numbers = #tpu.dot_dimension_numbers<[1], [0], [0], [1], [0, 0, 1, 1], [], []>} : vector<2x16xf32>, vector<16x32xf32>, vector<2x32xf32> -> vector<2x32xf32>
    %697 = arith.addf %520, %696 : vector<2x32xf32>
    %cst_389 = arith.constant dense<0.000000e+00> : vector<2x32xf32>
    %698 = tpu.matmul %666, %252, %cst_389 {dimension_numbers = #tpu.dot_dimension_numbers<[1], [0], [0], [1], [0, 0, 1, 1], [], []>} : vector<2x32xf32>, vector<32x32xf32>, vector<2x32xf32> -> vector<2x32xf32>
    %699 = arith.addf %697, %698 : vector<2x32xf32>
    %700 = arith.negf %687 : vector<2x32xf32>
    %701 = math.exp %700 : vector<2x32xf32>
    %cst_390 = arith.constant 1.000000e+00 : f32
    %702 = vector.broadcast %cst_390 : f32 to vector<2x32xf32>
    %703 = arith.addf %702, %701 : vector<2x32xf32>
    %704 = arith.divf %702, %703 : vector<2x32xf32>
    %705 = arith.negf %691 : vector<2x32xf32>
    %706 = math.exp %705 : vector<2x32xf32>
    %cst_391 = arith.constant 1.000000e+00 : f32
    %707 = vector.broadcast %cst_391 : f32 to vector<2x32xf32>
    %708 = arith.addf %707, %706 : vector<2x32xf32>
    %709 = arith.divf %707, %708 : vector<2x32xf32>
    %710 = math.tanh %695 : vector<2x32xf32>
    %711 = arith.negf %699 : vector<2x32xf32>
    %712 = math.exp %711 : vector<2x32xf32>
    %cst_392 = arith.constant 1.000000e+00 : f32
    %713 = vector.broadcast %cst_392 : f32 to vector<2x32xf32>
    %714 = arith.addf %713, %712 : vector<2x32xf32>
    %715 = arith.divf %713, %714 : vector<2x32xf32>
    %716 = arith.mulf %709, %664 : vector<2x32xf32>
    %717 = arith.mulf %704, %710 : vector<2x32xf32>
    %718 = arith.addf %716, %717 : vector<2x32xf32>
    %719 = math.tanh %718 : vector<2x32xf32>
    %720 = arith.mulf %715, %719 : vector<2x32xf32>
    %cst_393 = arith.constant dense<0.000000e+00> : vector<2x16xf32>
    %721 = tpu.matmul %720, %253, %cst_393 {dimension_numbers = #tpu.dot_dimension_numbers<[1], [0], [0], [1], [0, 0, 1, 1], [], []>} : vector<2x32xf32>, vector<32x16xf32>, vector<2x16xf32> -> vector<2x16xf32>
    %722 = arith.addf %721, %254 : vector<2x16xf32>
    %c4_i32_394 = arith.constant 4 : i32
    %723 = arith.addi %c4_i32_394, %c3_i32_381 : i32
    %724 = arith.index_cast %723 : i32 to index
    %c0_395 = arith.constant 0 : index
    %c0_396 = arith.constant 0 : index
    %725 = vector.load %arg25[%724, %c0_395, %c0_396] : memref<16x2x16xf32, #tpu.memory_space<vmem>>, vector<1x2x16xf32>
    %726 = vector.shape_cast %725 : vector<1x2x16xf32> to vector<2x16xf32>
    %727 = vector.shape_cast %722 : vector<2x16xf32> to vector<1x2x16xf32>
    tpu.vector_store %arg25[%724, %c0_395, %c0_396], %727 {strides = array<i32>} : memref<16x2x16xf32, #tpu.memory_space<vmem>>, vector<1x2x16xf32>,
    %cst_397 = arith.constant dense<0xFF800000> : vector<2xf32>
    %728 = vector.multi_reduction <maximumf>, %722, %cst_397 [1] : vector<2x16xf32> to vector<2xf32>
    %729 = vector.shape_cast %728 : vector<2xf32> to vector<2x1xf32>
    %730 = vector.broadcast %729 : vector<2x1xf32> to vector<2x16xf32>
    %731 = arith.subf %722, %730 : vector<2x16xf32>
    %732 = math.exp %731 : vector<2x16xf32>
    %cst_398 = arith.constant dense<0.000000e+00> : vector<2xf32>
    %733 = vector.multi_reduction <add>, %732, %cst_398 [1] : vector<2x16xf32> to vector<2xf32>
    %734 = vector.shape_cast %733 : vector<2xf32> to vector<2x1xf32>
    %735 = tpu.reciprocal %734 {approx = true} : vector<2x1xf32> -> vector<2x1xf32>
    %736 = vector.broadcast %735 : vector<2x1xf32> to vector<2x16xf32>
    %737 = arith.mulf %732, %736 : vector<2x16xf32>
    %c4_i32_399 = arith.constant 4 : i32
    %c0_400 = arith.constant 0 : index
    %c0_401 = arith.constant 0 : index
    %c0_402 = arith.constant 0 : index
    %738 = vector.load %arg20[%c0_400, %c0_401, %c0_402] : memref<4x32x32xf32, #tpu.memory_space<vmem>>, vector<1x32x32xf32>
    %739 = vector.shape_cast %738 : vector<1x32x32xf32> to vector<32x32xf32>
    %cst_403 = arith.constant dense<0.000000e+00> : vector<2x32xf32>
    %740 = tpu.matmul %201, %739, %cst_403 {dimension_numbers = #tpu.dot_dimension_numbers<[1], [0], [0], [1], [0, 0, 1, 1], [], []>} : vector<2x32xf32>, vector<32x32xf32>, vector<2x32xf32> -> vector<2x32xf32>
    %c0_404 = arith.constant 0 : index
    %c0_405 = arith.constant 0 : index
    %c0_406 = arith.constant 0 : index
    %741 = vector.load %arg22[%c0_404, %c0_405, %c0_406] : memref<4x2x32xf32, #tpu.memory_space<vmem>>, vector<1x2x32xf32>
    %742 = vector.shape_cast %741 : vector<1x2x32xf32> to vector<2x32xf32>
    %743 = arith.addf %740, %742 : vector<2x32xf32>
    %c1_407 = arith.constant 1 : index
    %c0_408 = arith.constant 0 : index
    %c0_409 = arith.constant 0 : index
    %744 = vector.load %arg20[%c1_407, %c0_408, %c0_409] : memref<4x32x32xf32, #tpu.memory_space<vmem>>, vector<1x32x32xf32>
    %745 = vector.shape_cast %744 : vector<1x32x32xf32> to vector<32x32xf32>
    %cst_410 = arith.constant dense<0.000000e+00> : vector<2x32xf32>
    %746 = tpu.matmul %201, %745, %cst_410 {dimension_numbers = #tpu.dot_dimension_numbers<[1], [0], [0], [1], [0, 0, 1, 1], [], []>} : vector<2x32xf32>, vector<32x32xf32>, vector<2x32xf32> -> vector<2x32xf32>
    %c1_411 = arith.constant 1 : index
    %c0_412 = arith.constant 0 : index
    %c0_413 = arith.constant 0 : index
    %747 = vector.load %arg22[%c1_411, %c0_412, %c0_413] : memref<4x2x32xf32, #tpu.memory_space<vmem>>, vector<1x2x32xf32>
    %748 = vector.shape_cast %747 : vector<1x2x32xf32> to vector<2x32xf32>
    %749 = arith.addf %746, %748 : vector<2x32xf32>
    %c2_414 = arith.constant 2 : index
    %c0_415 = arith.constant 0 : index
    %c0_416 = arith.constant 0 : index
    %750 = vector.load %arg20[%c2_414, %c0_415, %c0_416] : memref<4x32x32xf32, #tpu.memory_space<vmem>>, vector<1x32x32xf32>
    %751 = vector.shape_cast %750 : vector<1x32x32xf32> to vector<32x32xf32>
    %cst_417 = arith.constant dense<0.000000e+00> : vector<2x32xf32>
    %752 = tpu.matmul %201, %751, %cst_417 {dimension_numbers = #tpu.dot_dimension_numbers<[1], [0], [0], [1], [0, 0, 1, 1], [], []>} : vector<2x32xf32>, vector<32x32xf32>, vector<2x32xf32> -> vector<2x32xf32>
    %c2_418 = arith.constant 2 : index
    %c0_419 = arith.constant 0 : index
    %c0_420 = arith.constant 0 : index
    %753 = vector.load %arg22[%c2_418, %c0_419, %c0_420] : memref<4x2x32xf32, #tpu.memory_space<vmem>>, vector<1x2x32xf32>
    %754 = vector.shape_cast %753 : vector<1x2x32xf32> to vector<2x32xf32>
    %755 = arith.addf %752, %754 : vector<2x32xf32>
    %c3_421 = arith.constant 3 : index
    %c0_422 = arith.constant 0 : index
    %c0_423 = arith.constant 0 : index
    %756 = vector.load %arg20[%c3_421, %c0_422, %c0_423] : memref<4x32x32xf32, #tpu.memory_space<vmem>>, vector<1x32x32xf32>
    %757 = vector.shape_cast %756 : vector<1x32x32xf32> to vector<32x32xf32>
    %cst_424 = arith.constant dense<0.000000e+00> : vector<2x32xf32>
    %758 = tpu.matmul %201, %757, %cst_424 {dimension_numbers = #tpu.dot_dimension_numbers<[1], [0], [0], [1], [0, 0, 1, 1], [], []>} : vector<2x32xf32>, vector<32x32xf32>, vector<2x32xf32> -> vector<2x32xf32>
    %c3_425 = arith.constant 3 : index
    %c0_426 = arith.constant 0 : index
    %c0_427 = arith.constant 0 : index
    %759 = vector.load %arg22[%c3_425, %c0_426, %c0_427] : memref<4x2x32xf32, #tpu.memory_space<vmem>>, vector<1x2x32xf32>
    %760 = vector.shape_cast %759 : vector<1x2x32xf32> to vector<2x32xf32>
    %761 = arith.addf %758, %760 : vector<2x32xf32>
    %cst_428 = arith.constant 0.000000e+00 : f32
    %762 = vector.broadcast %cst_428 : f32 to vector<2x32xf32>
    %c0_i32_429 = arith.constant 0 : i32
    %cst_430 = arith.constant dense<0.000000e+00> : vector<2x32xf32>
    %763 = tpu.matmul %737, %238, %cst_430 {dimension_numbers = #tpu.dot_dimension_numbers<[1], [0], [0], [1], [0, 0, 1, 1], [], []>} : vector<2x16xf32>, vector<16x32xf32>, vector<2x32xf32> -> vector<2x32xf32>
    %764 = arith.addf %743, %763 : vector<2x32xf32>
    %cst_431 = arith.constant dense<0.000000e+00> : vector<2x32xf32>
    %765 = tpu.matmul %204, %246, %cst_431 {dimension_numbers = #tpu.dot_dimension_numbers<[1], [0], [0], [1], [0, 0, 1, 1], [], []>} : vector<2x32xf32>, vector<32x32xf32>, vector<2x32xf32> -> vector<2x32xf32>
    %766 = arith.addf %764, %765 : vector<2x32xf32>
    %cst_432 = arith.constant dense<0.000000e+00> : vector<2x32xf32>
    %767 = tpu.matmul %737, %240, %cst_432 {dimension_numbers = #tpu.dot_dimension_numbers<[1], [0], [0], [1], [0, 0, 1, 1], [], []>} : vector<2x16xf32>, vector<16x32xf32>, vector<2x32xf32> -> vector<2x32xf32>
    %768 = arith.addf %749, %767 : vector<2x32xf32>
    %cst_433 = arith.constant dense<0.000000e+00> : vector<2x32xf32>
    %769 = tpu.matmul %204, %248, %cst_433 {dimension_numbers = #tpu.dot_dimension_numbers<[1], [0], [0], [1], [0, 0, 1, 1], [], []>} : vector<2x32xf32>, vector<32x32xf32>, vector<2x32xf32> -> vector<2x32xf32>
    %770 = arith.addf %768, %769 : vector<2x32xf32>
    %cst_434 = arith.constant dense<0.000000e+00> : vector<2x32xf32>
    %771 = tpu.matmul %737, %242, %cst_434 {dimension_numbers = #tpu.dot_dimension_numbers<[1], [0], [0], [1], [0, 0, 1, 1], [], []>} : vector<2x16xf32>, vector<16x32xf32>, vector<2x32xf32> -> vector<2x32xf32>
    %772 = arith.addf %755, %771 : vector<2x32xf32>
    %cst_435 = arith.constant dense<0.000000e+00> : vector<2x32xf32>
    %773 = tpu.matmul %204, %250, %cst_435 {dimension_numbers = #tpu.dot_dimension_numbers<[1], [0], [0], [1], [0, 0, 1, 1], [], []>} : vector<2x32xf32>, vector<32x32xf32>, vector<2x32xf32> -> vector<2x32xf32>
    %774 = arith.addf %772, %773 : vector<2x32xf32>
    %cst_436 = arith.constant dense<0.000000e+00> : vector<2x32xf32>
    %775 = tpu.matmul %737, %244, %cst_436 {dimension_numbers = #tpu.dot_dimension_numbers<[1], [0], [0], [1], [0, 0, 1, 1], [], []>} : vector<2x16xf32>, vector<16x32xf32>, vector<2x32xf32> -> vector<2x32xf32>
    %776 = arith.addf %761, %775 : vector<2x32xf32>
    %cst_437 = arith.constant dense<0.000000e+00> : vector<2x32xf32>
    %777 = tpu.matmul %204, %252, %cst_437 {dimension_numbers = #tpu.dot_dimension_numbers<[1], [0], [0], [1], [0, 0, 1, 1], [], []>} : vector<2x32xf32>, vector<32x32xf32>, vector<2x32xf32> -> vector<2x32xf32>
    %778 = arith.addf %776, %777 : vector<2x32xf32>
    %779 = arith.negf %766 : vector<2x32xf32>
    %780 = math.exp %779 : vector<2x32xf32>
    %cst_438 = arith.constant 1.000000e+00 : f32
    %781 = vector.broadcast %cst_438 : f32 to vector<2x32xf32>
    %782 = arith.addf %781, %780 : vector<2x32xf32>
    %783 = arith.divf %781, %782 : vector<2x32xf32>
    %784 = arith.negf %770 : vector<2x32xf32>
    %785 = math.exp %784 : vector<2x32xf32>
    %cst_439 = arith.constant 1.000000e+00 : f32
    %786 = vector.broadcast %cst_439 : f32 to vector<2x32xf32>
    %787 = arith.addf %786, %785 : vector<2x32xf32>
    %788 = arith.divf %786, %787 : vector<2x32xf32>
    %789 = math.tanh %774 : vector<2x32xf32>
    %790 = arith.negf %778 : vector<2x32xf32>
    %791 = math.exp %790 : vector<2x32xf32>
    %cst_440 = arith.constant 1.000000e+00 : f32
    %792 = vector.broadcast %cst_440 : f32 to vector<2x32xf32>
    %793 = arith.addf %792, %791 : vector<2x32xf32>
    %794 = arith.divf %792, %793 : vector<2x32xf32>
    %795 = arith.mulf %788, %762 : vector<2x32xf32>
    %796 = arith.mulf %783, %789 : vector<2x32xf32>
    %797 = arith.addf %795, %796 : vector<2x32xf32>
    %798 = math.tanh %797 : vector<2x32xf32>
    %799 = arith.mulf %794, %798 : vector<2x32xf32>
    %cst_441 = arith.constant dense<0.000000e+00> : vector<2x16xf32>
    %800 = tpu.matmul %799, %253, %cst_441 {dimension_numbers = #tpu.dot_dimension_numbers<[1], [0], [0], [1], [0, 0, 1, 1], [], []>} : vector<2x32xf32>, vector<32x16xf32>, vector<2x16xf32> -> vector<2x16xf32>
    %801 = arith.addf %800, %254 : vector<2x16xf32>
    %c8_i32 = arith.constant 8 : i32
    %802 = arith.addi %c8_i32, %c0_i32_429 : i32
    %803 = arith.index_cast %802 : i32 to index
    %c0_442 = arith.constant 0 : index
    %c0_443 = arith.constant 0 : index
    %804 = vector.load %arg25[%803, %c0_442, %c0_443] : memref<16x2x16xf32, #tpu.memory_space<vmem>>, vector<1x2x16xf32>
    %805 = vector.shape_cast %804 : vector<1x2x16xf32> to vector<2x16xf32>
    %806 = vector.shape_cast %801 : vector<2x16xf32> to vector<1x2x16xf32>
    tpu.vector_store %arg25[%803, %c0_442, %c0_443], %806 {strides = array<i32>} : memref<16x2x16xf32, #tpu.memory_space<vmem>>, vector<1x2x16xf32>,
    %cst_444 = arith.constant dense<0xFF800000> : vector<2xf32>
    %807 = vector.multi_reduction <maximumf>, %801, %cst_444 [1] : vector<2x16xf32> to vector<2xf32>
    %808 = vector.shape_cast %807 : vector<2xf32> to vector<2x1xf32>
    %809 = vector.broadcast %808 : vector<2x1xf32> to vector<2x16xf32>
    %810 = arith.subf %801, %809 : vector<2x16xf32>
    %811 = math.exp %810 : vector<2x16xf32>
    %cst_445 = arith.constant dense<0.000000e+00> : vector<2xf32>
    %812 = vector.multi_reduction <add>, %811, %cst_445 [1] : vector<2x16xf32> to vector<2xf32>
    %813 = vector.shape_cast %812 : vector<2xf32> to vector<2x1xf32>
    %814 = tpu.reciprocal %813 {approx = true} : vector<2x1xf32> -> vector<2x1xf32>
    %815 = vector.broadcast %814 : vector<2x1xf32> to vector<2x16xf32>
    %816 = arith.mulf %811, %815 : vector<2x16xf32>
    %c1_i32_446 = arith.constant 1 : i32
    %cst_447 = arith.constant dense<0.000000e+00> : vector<2x32xf32>
    %817 = tpu.matmul %816, %238, %cst_447 {dimension_numbers = #tpu.dot_dimension_numbers<[1], [0], [0], [1], [0, 0, 1, 1], [], []>} : vector<2x16xf32>, vector<16x32xf32>, vector<2x32xf32> -> vector<2x32xf32>
    %818 = arith.addf %743, %817 : vector<2x32xf32>
    %cst_448 = arith.constant dense<0.000000e+00> : vector<2x32xf32>
    %819 = tpu.matmul %799, %246, %cst_448 {dimension_numbers = #tpu.dot_dimension_numbers<[1], [0], [0], [1], [0, 0, 1, 1], [], []>} : vector<2x32xf32>, vector<32x32xf32>, vector<2x32xf32> -> vector<2x32xf32>
    %820 = arith.addf %818, %819 : vector<2x32xf32>
    %cst_449 = arith.constant dense<0.000000e+00> : vector<2x32xf32>
    %821 = tpu.matmul %816, %240, %cst_449 {dimension_numbers = #tpu.dot_dimension_numbers<[1], [0], [0], [1], [0, 0, 1, 1], [], []>} : vector<2x16xf32>, vector<16x32xf32>, vector<2x32xf32> -> vector<2x32xf32>
    %822 = arith.addf %749, %821 : vector<2x32xf32>
    %cst_450 = arith.constant dense<0.000000e+00> : vector<2x32xf32>
    %823 = tpu.matmul %799, %248, %cst_450 {dimension_numbers = #tpu.dot_dimension_numbers<[1], [0], [0], [1], [0, 0, 1, 1], [], []>} : vector<2x32xf32>, vector<32x32xf32>, vector<2x32xf32> -> vector<2x32xf32>
    %824 = arith.addf %822, %823 : vector<2x32xf32>
    %cst_451 = arith.constant dense<0.000000e+00> : vector<2x32xf32>
    %825 = tpu.matmul %816, %242, %cst_451 {dimension_numbers = #tpu.dot_dimension_numbers<[1], [0], [0], [1], [0, 0, 1, 1], [], []>} : vector<2x16xf32>, vector<16x32xf32>, vector<2x32xf32> -> vector<2x32xf32>
    %826 = arith.addf %755, %825 : vector<2x32xf32>
    %cst_452 = arith.constant dense<0.000000e+00> : vector<2x32xf32>
    %827 = tpu.matmul %799, %250, %cst_452 {dimension_numbers = #tpu.dot_dimension_numbers<[1], [0], [0], [1], [0, 0, 1, 1], [], []>} : vector<2x32xf32>, vector<32x32xf32>, vector<2x32xf32> -> vector<2x32xf32>
    %828 = arith.addf %826, %827 : vector<2x32xf32>
    %cst_453 = arith.constant dense<0.000000e+00> : vector<2x32xf32>
    %829 = tpu.matmul %816, %244, %cst_453 {dimension_numbers = #tpu.dot_dimension_numbers<[1], [0], [0], [1], [0, 0, 1, 1], [], []>} : vector<2x16xf32>, vector<16x32xf32>, vector<2x32xf32> -> vector<2x32xf32>
    %830 = arith.addf %761, %829 : vector<2x32xf32>
    %cst_454 = arith.constant dense<0.000000e+00> : vector<2x32xf32>
    %831 = tpu.matmul %799, %252, %cst_454 {dimension_numbers = #tpu.dot_dimension_numbers<[1], [0], [0], [1], [0, 0, 1, 1], [], []>} : vector<2x32xf32>, vector<32x32xf32>, vector<2x32xf32> -> vector<2x32xf32>
    %832 = arith.addf %830, %831 : vector<2x32xf32>
    %833 = arith.negf %820 : vector<2x32xf32>
    %834 = math.exp %833 : vector<2x32xf32>
    %cst_455 = arith.constant 1.000000e+00 : f32
    %835 = vector.broadcast %cst_455 : f32 to vector<2x32xf32>
    %836 = arith.addf %835, %834 : vector<2x32xf32>
    %837 = arith.divf %835, %836 : vector<2x32xf32>
    %838 = arith.negf %824 : vector<2x32xf32>
    %839 = math.exp %838 : vector<2x32xf32>
    %cst_456 = arith.constant 1.000000e+00 : f32
    %840 = vector.broadcast %cst_456 : f32 to vector<2x32xf32>
    %841 = arith.addf %840, %839 : vector<2x32xf32>
    %842 = arith.divf %840, %841 : vector<2x32xf32>
    %843 = math.tanh %828 : vector<2x32xf32>
    %844 = arith.negf %832 : vector<2x32xf32>
    %845 = math.exp %844 : vector<2x32xf32>
    %cst_457 = arith.constant 1.000000e+00 : f32
    %846 = vector.broadcast %cst_457 : f32 to vector<2x32xf32>
    %847 = arith.addf %846, %845 : vector<2x32xf32>
    %848 = arith.divf %846, %847 : vector<2x32xf32>
    %849 = arith.mulf %842, %797 : vector<2x32xf32>
    %850 = arith.mulf %837, %843 : vector<2x32xf32>
    %851 = arith.addf %849, %850 : vector<2x32xf32>
    %852 = math.tanh %851 : vector<2x32xf32>
    %853 = arith.mulf %848, %852 : vector<2x32xf32>
    %cst_458 = arith.constant dense<0.000000e+00> : vector<2x16xf32>
    %854 = tpu.matmul %853, %253, %cst_458 {dimension_numbers = #tpu.dot_dimension_numbers<[1], [0], [0], [1], [0, 0, 1, 1], [], []>} : vector<2x32xf32>, vector<32x16xf32>, vector<2x16xf32> -> vector<2x16xf32>
    %855 = arith.addf %854, %254 : vector<2x16xf32>
    %c8_i32_459 = arith.constant 8 : i32
    %856 = arith.addi %c8_i32_459, %c1_i32_446 : i32
    %857 = arith.index_cast %856 : i32 to index
    %c0_460 = arith.constant 0 : index
    %c0_461 = arith.constant 0 : index
    %858 = vector.load %arg25[%857, %c0_460, %c0_461] : memref<16x2x16xf32, #tpu.memory_space<vmem>>, vector<1x2x16xf32>
    %859 = vector.shape_cast %858 : vector<1x2x16xf32> to vector<2x16xf32>
    %860 = vector.shape_cast %855 : vector<2x16xf32> to vector<1x2x16xf32>
    tpu.vector_store %arg25[%857, %c0_460, %c0_461], %860 {strides = array<i32>} : memref<16x2x16xf32, #tpu.memory_space<vmem>>, vector<1x2x16xf32>,
    %cst_462 = arith.constant dense<0xFF800000> : vector<2xf32>
    %861 = vector.multi_reduction <maximumf>, %855, %cst_462 [1] : vector<2x16xf32> to vector<2xf32>
    %862 = vector.shape_cast %861 : vector<2xf32> to vector<2x1xf32>
    %863 = vector.broadcast %862 : vector<2x1xf32> to vector<2x16xf32>
    %864 = arith.subf %855, %863 : vector<2x16xf32>
    %865 = math.exp %864 : vector<2x16xf32>
    %cst_463 = arith.constant dense<0.000000e+00> : vector<2xf32>
    %866 = vector.multi_reduction <add>, %865, %cst_463 [1] : vector<2x16xf32> to vector<2xf32>
    %867 = vector.shape_cast %866 : vector<2xf32> to vector<2x1xf32>
    %868 = tpu.reciprocal %867 {approx = true} : vector<2x1xf32> -> vector<2x1xf32>
    %869 = vector.broadcast %868 : vector<2x1xf32> to vector<2x16xf32>
    %870 = arith.mulf %865, %869 : vector<2x16xf32>
    %c2_i32_464 = arith.constant 2 : i32
    %cst_465 = arith.constant dense<0.000000e+00> : vector<2x32xf32>
    %871 = tpu.matmul %870, %238, %cst_465 {dimension_numbers = #tpu.dot_dimension_numbers<[1], [0], [0], [1], [0, 0, 1, 1], [], []>} : vector<2x16xf32>, vector<16x32xf32>, vector<2x32xf32> -> vector<2x32xf32>
    %872 = arith.addf %743, %871 : vector<2x32xf32>
    %cst_466 = arith.constant dense<0.000000e+00> : vector<2x32xf32>
    %873 = tpu.matmul %853, %246, %cst_466 {dimension_numbers = #tpu.dot_dimension_numbers<[1], [0], [0], [1], [0, 0, 1, 1], [], []>} : vector<2x32xf32>, vector<32x32xf32>, vector<2x32xf32> -> vector<2x32xf32>
    %874 = arith.addf %872, %873 : vector<2x32xf32>
    %cst_467 = arith.constant dense<0.000000e+00> : vector<2x32xf32>
    %875 = tpu.matmul %870, %240, %cst_467 {dimension_numbers = #tpu.dot_dimension_numbers<[1], [0], [0], [1], [0, 0, 1, 1], [], []>} : vector<2x16xf32>, vector<16x32xf32>, vector<2x32xf32> -> vector<2x32xf32>
    %876 = arith.addf %749, %875 : vector<2x32xf32>
    %cst_468 = arith.constant dense<0.000000e+00> : vector<2x32xf32>
    %877 = tpu.matmul %853, %248, %cst_468 {dimension_numbers = #tpu.dot_dimension_numbers<[1], [0], [0], [1], [0, 0, 1, 1], [], []>} : vector<2x32xf32>, vector<32x32xf32>, vector<2x32xf32> -> vector<2x32xf32>
    %878 = arith.addf %876, %877 : vector<2x32xf32>
    %cst_469 = arith.constant dense<0.000000e+00> : vector<2x32xf32>
    %879 = tpu.matmul %870, %242, %cst_469 {dimension_numbers = #tpu.dot_dimension_numbers<[1], [0], [0], [1], [0, 0, 1, 1], [], []>} : vector<2x16xf32>, vector<16x32xf32>, vector<2x32xf32> -> vector<2x32xf32>
    %880 = arith.addf %755, %879 : vector<2x32xf32>
    %cst_470 = arith.constant dense<0.000000e+00> : vector<2x32xf32>
    %881 = tpu.matmul %853, %250, %cst_470 {dimension_numbers = #tpu.dot_dimension_numbers<[1], [0], [0], [1], [0, 0, 1, 1], [], []>} : vector<2x32xf32>, vector<32x32xf32>, vector<2x32xf32> -> vector<2x32xf32>
    %882 = arith.addf %880, %881 : vector<2x32xf32>
    %cst_471 = arith.constant dense<0.000000e+00> : vector<2x32xf32>
    %883 = tpu.matmul %870, %244, %cst_471 {dimension_numbers = #tpu.dot_dimension_numbers<[1], [0], [0], [1], [0, 0, 1, 1], [], []>} : vector<2x16xf32>, vector<16x32xf32>, vector<2x32xf32> -> vector<2x32xf32>
    %884 = arith.addf %761, %883 : vector<2x32xf32>
    %cst_472 = arith.constant dense<0.000000e+00> : vector<2x32xf32>
    %885 = tpu.matmul %853, %252, %cst_472 {dimension_numbers = #tpu.dot_dimension_numbers<[1], [0], [0], [1], [0, 0, 1, 1], [], []>} : vector<2x32xf32>, vector<32x32xf32>, vector<2x32xf32> -> vector<2x32xf32>
    %886 = arith.addf %884, %885 : vector<2x32xf32>
    %887 = arith.negf %874 : vector<2x32xf32>
    %888 = math.exp %887 : vector<2x32xf32>
    %cst_473 = arith.constant 1.000000e+00 : f32
    %889 = vector.broadcast %cst_473 : f32 to vector<2x32xf32>
    %890 = arith.addf %889, %888 : vector<2x32xf32>
    %891 = arith.divf %889, %890 : vector<2x32xf32>
    %892 = arith.negf %878 : vector<2x32xf32>
    %893 = math.exp %892 : vector<2x32xf32>
    %cst_474 = arith.constant 1.000000e+00 : f32
    %894 = vector.broadcast %cst_474 : f32 to vector<2x32xf32>
    %895 = arith.addf %894, %893 : vector<2x32xf32>
    %896 = arith.divf %894, %895 : vector<2x32xf32>
    %897 = math.tanh %882 : vector<2x32xf32>
    %898 = arith.negf %886 : vector<2x32xf32>
    %899 = math.exp %898 : vector<2x32xf32>
    %cst_475 = arith.constant 1.000000e+00 : f32
    %900 = vector.broadcast %cst_475 : f32 to vector<2x32xf32>
    %901 = arith.addf %900, %899 : vector<2x32xf32>
    %902 = arith.divf %900, %901 : vector<2x32xf32>
    %903 = arith.mulf %896, %851 : vector<2x32xf32>
    %904 = arith.mulf %891, %897 : vector<2x32xf32>
    %905 = arith.addf %903, %904 : vector<2x32xf32>
    %906 = math.tanh %905 : vector<2x32xf32>
    %907 = arith.mulf %902, %906 : vector<2x32xf32>
    %cst_476 = arith.constant dense<0.000000e+00> : vector<2x16xf32>
    %908 = tpu.matmul %907, %253, %cst_476 {dimension_numbers = #tpu.dot_dimension_numbers<[1], [0], [0], [1], [0, 0, 1, 1], [], []>} : vector<2x32xf32>, vector<32x16xf32>, vector<2x16xf32> -> vector<2x16xf32>
    %909 = arith.addf %908, %254 : vector<2x16xf32>
    %c8_i32_477 = arith.constant 8 : i32
    %910 = arith.addi %c8_i32_477, %c2_i32_464 : i32
    %911 = arith.index_cast %910 : i32 to index
    %c0_478 = arith.constant 0 : index
    %c0_479 = arith.constant 0 : index
    %912 = vector.load %arg25[%911, %c0_478, %c0_479] : memref<16x2x16xf32, #tpu.memory_space<vmem>>, vector<1x2x16xf32>
    %913 = vector.shape_cast %912 : vector<1x2x16xf32> to vector<2x16xf32>
    %914 = vector.shape_cast %909 : vector<2x16xf32> to vector<1x2x16xf32>
    tpu.vector_store %arg25[%911, %c0_478, %c0_479], %914 {strides = array<i32>} : memref<16x2x16xf32, #tpu.memory_space<vmem>>, vector<1x2x16xf32>,
    %cst_480 = arith.constant dense<0xFF800000> : vector<2xf32>
    %915 = vector.multi_reduction <maximumf>, %909, %cst_480 [1] : vector<2x16xf32> to vector<2xf32>
    %916 = vector.shape_cast %915 : vector<2xf32> to vector<2x1xf32>
    %917 = vector.broadcast %916 : vector<2x1xf32> to vector<2x16xf32>
    %918 = arith.subf %909, %917 : vector<2x16xf32>
    %919 = math.exp %918 : vector<2x16xf32>
    %cst_481 = arith.constant dense<0.000000e+00> : vector<2xf32>
    %920 = vector.multi_reduction <add>, %919, %cst_481 [1] : vector<2x16xf32> to vector<2xf32>
    %921 = vector.shape_cast %920 : vector<2xf32> to vector<2x1xf32>
    %922 = tpu.reciprocal %921 {approx = true} : vector<2x1xf32> -> vector<2x1xf32>
    %923 = vector.broadcast %922 : vector<2x1xf32> to vector<2x16xf32>
    %924 = arith.mulf %919, %923 : vector<2x16xf32>
    %c3_i32_482 = arith.constant 3 : i32
    %cst_483 = arith.constant dense<0.000000e+00> : vector<2x32xf32>
    %925 = tpu.matmul %924, %238, %cst_483 {dimension_numbers = #tpu.dot_dimension_numbers<[1], [0], [0], [1], [0, 0, 1, 1], [], []>} : vector<2x16xf32>, vector<16x32xf32>, vector<2x32xf32> -> vector<2x32xf32>
    %926 = arith.addf %743, %925 : vector<2x32xf32>
    %cst_484 = arith.constant dense<0.000000e+00> : vector<2x32xf32>
    %927 = tpu.matmul %907, %246, %cst_484 {dimension_numbers = #tpu.dot_dimension_numbers<[1], [0], [0], [1], [0, 0, 1, 1], [], []>} : vector<2x32xf32>, vector<32x32xf32>, vector<2x32xf32> -> vector<2x32xf32>
    %928 = arith.addf %926, %927 : vector<2x32xf32>
    %cst_485 = arith.constant dense<0.000000e+00> : vector<2x32xf32>
    %929 = tpu.matmul %924, %240, %cst_485 {dimension_numbers = #tpu.dot_dimension_numbers<[1], [0], [0], [1], [0, 0, 1, 1], [], []>} : vector<2x16xf32>, vector<16x32xf32>, vector<2x32xf32> -> vector<2x32xf32>
    %930 = arith.addf %749, %929 : vector<2x32xf32>
    %cst_486 = arith.constant dense<0.000000e+00> : vector<2x32xf32>
    %931 = tpu.matmul %907, %248, %cst_486 {dimension_numbers = #tpu.dot_dimension_numbers<[1], [0], [0], [1], [0, 0, 1, 1], [], []>} : vector<2x32xf32>, vector<32x32xf32>, vector<2x32xf32> -> vector<2x32xf32>
    %932 = arith.addf %930, %931 : vector<2x32xf32>
    %cst_487 = arith.constant dense<0.000000e+00> : vector<2x32xf32>
    %933 = tpu.matmul %924, %242, %cst_487 {dimension_numbers = #tpu.dot_dimension_numbers<[1], [0], [0], [1], [0, 0, 1, 1], [], []>} : vector<2x16xf32>, vector<16x32xf32>, vector<2x32xf32> -> vector<2x32xf32>
    %934 = arith.addf %755, %933 : vector<2x32xf32>
    %cst_488 = arith.constant dense<0.000000e+00> : vector<2x32xf32>
    %935 = tpu.matmul %907, %250, %cst_488 {dimension_numbers = #tpu.dot_dimension_numbers<[1], [0], [0], [1], [0, 0, 1, 1], [], []>} : vector<2x32xf32>, vector<32x32xf32>, vector<2x32xf32> -> vector<2x32xf32>
    %936 = arith.addf %934, %935 : vector<2x32xf32>
    %cst_489 = arith.constant dense<0.000000e+00> : vector<2x32xf32>
    %937 = tpu.matmul %924, %244, %cst_489 {dimension_numbers = #tpu.dot_dimension_numbers<[1], [0], [0], [1], [0, 0, 1, 1], [], []>} : vector<2x16xf32>, vector<16x32xf32>, vector<2x32xf32> -> vector<2x32xf32>
    %938 = arith.addf %761, %937 : vector<2x32xf32>
    %cst_490 = arith.constant dense<0.000000e+00> : vector<2x32xf32>
    %939 = tpu.matmul %907, %252, %cst_490 {dimension_numbers = #tpu.dot_dimension_numbers<[1], [0], [0], [1], [0, 0, 1, 1], [], []>} : vector<2x32xf32>, vector<32x32xf32>, vector<2x32xf32> -> vector<2x32xf32>
    %940 = arith.addf %938, %939 : vector<2x32xf32>
    %941 = arith.negf %928 : vector<2x32xf32>
    %942 = math.exp %941 : vector<2x32xf32>
    %cst_491 = arith.constant 1.000000e+00 : f32
    %943 = vector.broadcast %cst_491 : f32 to vector<2x32xf32>
    %944 = arith.addf %943, %942 : vector<2x32xf32>
    %945 = arith.divf %943, %944 : vector<2x32xf32>
    %946 = arith.negf %932 : vector<2x32xf32>
    %947 = math.exp %946 : vector<2x32xf32>
    %cst_492 = arith.constant 1.000000e+00 : f32
    %948 = vector.broadcast %cst_492 : f32 to vector<2x32xf32>
    %949 = arith.addf %948, %947 : vector<2x32xf32>
    %950 = arith.divf %948, %949 : vector<2x32xf32>
    %951 = math.tanh %936 : vector<2x32xf32>
    %952 = arith.negf %940 : vector<2x32xf32>
    %953 = math.exp %952 : vector<2x32xf32>
    %cst_493 = arith.constant 1.000000e+00 : f32
    %954 = vector.broadcast %cst_493 : f32 to vector<2x32xf32>
    %955 = arith.addf %954, %953 : vector<2x32xf32>
    %956 = arith.divf %954, %955 : vector<2x32xf32>
    %957 = arith.mulf %950, %905 : vector<2x32xf32>
    %958 = arith.mulf %945, %951 : vector<2x32xf32>
    %959 = arith.addf %957, %958 : vector<2x32xf32>
    %960 = math.tanh %959 : vector<2x32xf32>
    %961 = arith.mulf %956, %960 : vector<2x32xf32>
    %cst_494 = arith.constant dense<0.000000e+00> : vector<2x16xf32>
    %962 = tpu.matmul %961, %253, %cst_494 {dimension_numbers = #tpu.dot_dimension_numbers<[1], [0], [0], [1], [0, 0, 1, 1], [], []>} : vector<2x32xf32>, vector<32x16xf32>, vector<2x16xf32> -> vector<2x16xf32>
    %963 = arith.addf %962, %254 : vector<2x16xf32>
    %c8_i32_495 = arith.constant 8 : i32
    %964 = arith.addi %c8_i32_495, %c3_i32_482 : i32
    %965 = arith.index_cast %964 : i32 to index
    %c0_496 = arith.constant 0 : index
    %c0_497 = arith.constant 0 : index
    %966 = vector.load %arg25[%965, %c0_496, %c0_497] : memref<16x2x16xf32, #tpu.memory_space<vmem>>, vector<1x2x16xf32>
    %967 = vector.shape_cast %966 : vector<1x2x16xf32> to vector<2x16xf32>
    %968 = vector.shape_cast %963 : vector<2x16xf32> to vector<1x2x16xf32>
    tpu.vector_store %arg25[%965, %c0_496, %c0_497], %968 {strides = array<i32>} : memref<16x2x16xf32, #tpu.memory_space<vmem>>, vector<1x2x16xf32>,
    %cst_498 = arith.constant dense<0xFF800000> : vector<2xf32>
    %969 = vector.multi_reduction <maximumf>, %963, %cst_498 [1] : vector<2x16xf32> to vector<2xf32>
    %970 = vector.shape_cast %969 : vector<2xf32> to vector<2x1xf32>
    %971 = vector.broadcast %970 : vector<2x1xf32> to vector<2x16xf32>
    %972 = arith.subf %963, %971 : vector<2x16xf32>
    %973 = math.exp %972 : vector<2x16xf32>
    %cst_499 = arith.constant dense<0.000000e+00> : vector<2xf32>
    %974 = vector.multi_reduction <add>, %973, %cst_499 [1] : vector<2x16xf32> to vector<2xf32>
    %975 = vector.shape_cast %974 : vector<2xf32> to vector<2x1xf32>
    %976 = tpu.reciprocal %975 {approx = true} : vector<2x1xf32> -> vector<2x1xf32>
    %977 = vector.broadcast %976 : vector<2x1xf32> to vector<2x16xf32>
    %978 = arith.mulf %973, %977 : vector<2x16xf32>
    %c4_i32_500 = arith.constant 4 : i32
    %c0_501 = arith.constant 0 : index
    %c0_502 = arith.constant 0 : index
    %c0_503 = arith.constant 0 : index
    %979 = vector.load %arg20[%c0_501, %c0_502, %c0_503] : memref<4x32x32xf32, #tpu.memory_space<vmem>>, vector<1x32x32xf32>
    %980 = vector.shape_cast %979 : vector<1x32x32xf32> to vector<32x32xf32>
    %cst_504 = arith.constant dense<0.000000e+00> : vector<2x32xf32>
    %981 = tpu.matmul %233, %980, %cst_504 {dimension_numbers = #tpu.dot_dimension_numbers<[1], [0], [0], [1], [0, 0, 1, 1], [], []>} : vector<2x32xf32>, vector<32x32xf32>, vector<2x32xf32> -> vector<2x32xf32>
    %c0_505 = arith.constant 0 : index
    %c0_506 = arith.constant 0 : index
    %c0_507 = arith.constant 0 : index
    %982 = vector.load %arg22[%c0_505, %c0_506, %c0_507] : memref<4x2x32xf32, #tpu.memory_space<vmem>>, vector<1x2x32xf32>
    %983 = vector.shape_cast %982 : vector<1x2x32xf32> to vector<2x32xf32>
    %984 = arith.addf %981, %983 : vector<2x32xf32>
    %c1_508 = arith.constant 1 : index
    %c0_509 = arith.constant 0 : index
    %c0_510 = arith.constant 0 : index
    %985 = vector.load %arg20[%c1_508, %c0_509, %c0_510] : memref<4x32x32xf32, #tpu.memory_space<vmem>>, vector<1x32x32xf32>
    %986 = vector.shape_cast %985 : vector<1x32x32xf32> to vector<32x32xf32>
    %cst_511 = arith.constant dense<0.000000e+00> : vector<2x32xf32>
    %987 = tpu.matmul %233, %986, %cst_511 {dimension_numbers = #tpu.dot_dimension_numbers<[1], [0], [0], [1], [0, 0, 1, 1], [], []>} : vector<2x32xf32>, vector<32x32xf32>, vector<2x32xf32> -> vector<2x32xf32>
    %c1_512 = arith.constant 1 : index
    %c0_513 = arith.constant 0 : index
    %c0_514 = arith.constant 0 : index
    %988 = vector.load %arg22[%c1_512, %c0_513, %c0_514] : memref<4x2x32xf32, #tpu.memory_space<vmem>>, vector<1x2x32xf32>
    %989 = vector.shape_cast %988 : vector<1x2x32xf32> to vector<2x32xf32>
    %990 = arith.addf %987, %989 : vector<2x32xf32>
    %c2_515 = arith.constant 2 : index
    %c0_516 = arith.constant 0 : index
    %c0_517 = arith.constant 0 : index
    %991 = vector.load %arg20[%c2_515, %c0_516, %c0_517] : memref<4x32x32xf32, #tpu.memory_space<vmem>>, vector<1x32x32xf32>
    %992 = vector.shape_cast %991 : vector<1x32x32xf32> to vector<32x32xf32>
    %cst_518 = arith.constant dense<0.000000e+00> : vector<2x32xf32>
    %993 = tpu.matmul %233, %992, %cst_518 {dimension_numbers = #tpu.dot_dimension_numbers<[1], [0], [0], [1], [0, 0, 1, 1], [], []>} : vector<2x32xf32>, vector<32x32xf32>, vector<2x32xf32> -> vector<2x32xf32>
    %c2_519 = arith.constant 2 : index
    %c0_520 = arith.constant 0 : index
    %c0_521 = arith.constant 0 : index
    %994 = vector.load %arg22[%c2_519, %c0_520, %c0_521] : memref<4x2x32xf32, #tpu.memory_space<vmem>>, vector<1x2x32xf32>
    %995 = vector.shape_cast %994 : vector<1x2x32xf32> to vector<2x32xf32>
    %996 = arith.addf %993, %995 : vector<2x32xf32>
    %c3_522 = arith.constant 3 : index
    %c0_523 = arith.constant 0 : index
    %c0_524 = arith.constant 0 : index
    %997 = vector.load %arg20[%c3_522, %c0_523, %c0_524] : memref<4x32x32xf32, #tpu.memory_space<vmem>>, vector<1x32x32xf32>
    %998 = vector.shape_cast %997 : vector<1x32x32xf32> to vector<32x32xf32>
    %cst_525 = arith.constant dense<0.000000e+00> : vector<2x32xf32>
    %999 = tpu.matmul %233, %998, %cst_525 {dimension_numbers = #tpu.dot_dimension_numbers<[1], [0], [0], [1], [0, 0, 1, 1], [], []>} : vector<2x32xf32>, vector<32x32xf32>, vector<2x32xf32> -> vector<2x32xf32>
    %c3_526 = arith.constant 3 : index
    %c0_527 = arith.constant 0 : index
    %c0_528 = arith.constant 0 : index
    %1000 = vector.load %arg22[%c3_526, %c0_527, %c0_528] : memref<4x2x32xf32, #tpu.memory_space<vmem>>, vector<1x2x32xf32>
    %1001 = vector.shape_cast %1000 : vector<1x2x32xf32> to vector<2x32xf32>
    %1002 = arith.addf %999, %1001 : vector<2x32xf32>
    %cst_529 = arith.constant 0.000000e+00 : f32
    %1003 = vector.broadcast %cst_529 : f32 to vector<2x32xf32>
    %c0_i32_530 = arith.constant 0 : i32
    %cst_531 = arith.constant dense<0.000000e+00> : vector<2x32xf32>
    %1004 = tpu.matmul %978, %238, %cst_531 {dimension_numbers = #tpu.dot_dimension_numbers<[1], [0], [0], [1], [0, 0, 1, 1], [], []>} : vector<2x16xf32>, vector<16x32xf32>, vector<2x32xf32> -> vector<2x32xf32>
    %1005 = arith.addf %984, %1004 : vector<2x32xf32>
    %cst_532 = arith.constant dense<0.000000e+00> : vector<2x32xf32>
    %1006 = tpu.matmul %236, %246, %cst_532 {dimension_numbers = #tpu.dot_dimension_numbers<[1], [0], [0], [1], [0, 0, 1, 1], [], []>} : vector<2x32xf32>, vector<32x32xf32>, vector<2x32xf32> -> vector<2x32xf32>
    %1007 = arith.addf %1005, %1006 : vector<2x32xf32>
    %cst_533 = arith.constant dense<0.000000e+00> : vector<2x32xf32>
    %1008 = tpu.matmul %978, %240, %cst_533 {dimension_numbers = #tpu.dot_dimension_numbers<[1], [0], [0], [1], [0, 0, 1, 1], [], []>} : vector<2x16xf32>, vector<16x32xf32>, vector<2x32xf32> -> vector<2x32xf32>
    %1009 = arith.addf %990, %1008 : vector<2x32xf32>
    %cst_534 = arith.constant dense<0.000000e+00> : vector<2x32xf32>
    %1010 = tpu.matmul %236, %248, %cst_534 {dimension_numbers = #tpu.dot_dimension_numbers<[1], [0], [0], [1], [0, 0, 1, 1], [], []>} : vector<2x32xf32>, vector<32x32xf32>, vector<2x32xf32> -> vector<2x32xf32>
    %1011 = arith.addf %1009, %1010 : vector<2x32xf32>
    %cst_535 = arith.constant dense<0.000000e+00> : vector<2x32xf32>
    %1012 = tpu.matmul %978, %242, %cst_535 {dimension_numbers = #tpu.dot_dimension_numbers<[1], [0], [0], [1], [0, 0, 1, 1], [], []>} : vector<2x16xf32>, vector<16x32xf32>, vector<2x32xf32> -> vector<2x32xf32>
    %1013 = arith.addf %996, %1012 : vector<2x32xf32>
    %cst_536 = arith.constant dense<0.000000e+00> : vector<2x32xf32>
    %1014 = tpu.matmul %236, %250, %cst_536 {dimension_numbers = #tpu.dot_dimension_numbers<[1], [0], [0], [1], [0, 0, 1, 1], [], []>} : vector<2x32xf32>, vector<32x32xf32>, vector<2x32xf32> -> vector<2x32xf32>
    %1015 = arith.addf %1013, %1014 : vector<2x32xf32>
    %cst_537 = arith.constant dense<0.000000e+00> : vector<2x32xf32>
    %1016 = tpu.matmul %978, %244, %cst_537 {dimension_numbers = #tpu.dot_dimension_numbers<[1], [0], [0], [1], [0, 0, 1, 1], [], []>} : vector<2x16xf32>, vector<16x32xf32>, vector<2x32xf32> -> vector<2x32xf32>
    %1017 = arith.addf %1002, %1016 : vector<2x32xf32>
    %cst_538 = arith.constant dense<0.000000e+00> : vector<2x32xf32>
    %1018 = tpu.matmul %236, %252, %cst_538 {dimension_numbers = #tpu.dot_dimension_numbers<[1], [0], [0], [1], [0, 0, 1, 1], [], []>} : vector<2x32xf32>, vector<32x32xf32>, vector<2x32xf32> -> vector<2x32xf32>
    %1019 = arith.addf %1017, %1018 : vector<2x32xf32>
    %1020 = arith.negf %1007 : vector<2x32xf32>
    %1021 = math.exp %1020 : vector<2x32xf32>
    %cst_539 = arith.constant 1.000000e+00 : f32
    %1022 = vector.broadcast %cst_539 : f32 to vector<2x32xf32>
    %1023 = arith.addf %1022, %1021 : vector<2x32xf32>
    %1024 = arith.divf %1022, %1023 : vector<2x32xf32>
    %1025 = arith.negf %1011 : vector<2x32xf32>
    %1026 = math.exp %1025 : vector<2x32xf32>
    %cst_540 = arith.constant 1.000000e+00 : f32
    %1027 = vector.broadcast %cst_540 : f32 to vector<2x32xf32>
    %1028 = arith.addf %1027, %1026 : vector<2x32xf32>
    %1029 = arith.divf %1027, %1028 : vector<2x32xf32>
    %1030 = math.tanh %1015 : vector<2x32xf32>
    %1031 = arith.negf %1019 : vector<2x32xf32>
    %1032 = math.exp %1031 : vector<2x32xf32>
    %cst_541 = arith.constant 1.000000e+00 : f32
    %1033 = vector.broadcast %cst_541 : f32 to vector<2x32xf32>
    %1034 = arith.addf %1033, %1032 : vector<2x32xf32>
    %1035 = arith.divf %1033, %1034 : vector<2x32xf32>
    %1036 = arith.mulf %1029, %1003 : vector<2x32xf32>
    %1037 = arith.mulf %1024, %1030 : vector<2x32xf32>
    %1038 = arith.addf %1036, %1037 : vector<2x32xf32>
    %1039 = math.tanh %1038 : vector<2x32xf32>
    %1040 = arith.mulf %1035, %1039 : vector<2x32xf32>
    %cst_542 = arith.constant dense<0.000000e+00> : vector<2x16xf32>
    %1041 = tpu.matmul %1040, %253, %cst_542 {dimension_numbers = #tpu.dot_dimension_numbers<[1], [0], [0], [1], [0, 0, 1, 1], [], []>} : vector<2x32xf32>, vector<32x16xf32>, vector<2x16xf32> -> vector<2x16xf32>
    %1042 = arith.addf %1041, %254 : vector<2x16xf32>
    %c12_i32 = arith.constant 12 : i32
    %1043 = arith.addi %c12_i32, %c0_i32_530 : i32
    %1044 = arith.index_cast %1043 : i32 to index
    %c0_543 = arith.constant 0 : index
    %c0_544 = arith.constant 0 : index
    %1045 = vector.load %arg25[%1044, %c0_543, %c0_544] : memref<16x2x16xf32, #tpu.memory_space<vmem>>, vector<1x2x16xf32>
    %1046 = vector.shape_cast %1045 : vector<1x2x16xf32> to vector<2x16xf32>
    %1047 = vector.shape_cast %1042 : vector<2x16xf32> to vector<1x2x16xf32>
    tpu.vector_store %arg25[%1044, %c0_543, %c0_544], %1047 {strides = array<i32>} : memref<16x2x16xf32, #tpu.memory_space<vmem>>, vector<1x2x16xf32>,
    %cst_545 = arith.constant dense<0xFF800000> : vector<2xf32>
    %1048 = vector.multi_reduction <maximumf>, %1042, %cst_545 [1] : vector<2x16xf32> to vector<2xf32>
    %1049 = vector.shape_cast %1048 : vector<2xf32> to vector<2x1xf32>
    %1050 = vector.broadcast %1049 : vector<2x1xf32> to vector<2x16xf32>
    %1051 = arith.subf %1042, %1050 : vector<2x16xf32>
    %1052 = math.exp %1051 : vector<2x16xf32>
    %cst_546 = arith.constant dense<0.000000e+00> : vector<2xf32>
    %1053 = vector.multi_reduction <add>, %1052, %cst_546 [1] : vector<2x16xf32> to vector<2xf32>
    %1054 = vector.shape_cast %1053 : vector<2xf32> to vector<2x1xf32>
    %1055 = tpu.reciprocal %1054 {approx = true} : vector<2x1xf32> -> vector<2x1xf32>
    %1056 = vector.broadcast %1055 : vector<2x1xf32> to vector<2x16xf32>
    %1057 = arith.mulf %1052, %1056 : vector<2x16xf32>
    %c1_i32_547 = arith.constant 1 : i32
    %cst_548 = arith.constant dense<0.000000e+00> : vector<2x32xf32>
    %1058 = tpu.matmul %1057, %238, %cst_548 {dimension_numbers = #tpu.dot_dimension_numbers<[1], [0], [0], [1], [0, 0, 1, 1], [], []>} : vector<2x16xf32>, vector<16x32xf32>, vector<2x32xf32> -> vector<2x32xf32>
    %1059 = arith.addf %984, %1058 : vector<2x32xf32>
    %cst_549 = arith.constant dense<0.000000e+00> : vector<2x32xf32>
    %1060 = tpu.matmul %1040, %246, %cst_549 {dimension_numbers = #tpu.dot_dimension_numbers<[1], [0], [0], [1], [0, 0, 1, 1], [], []>} : vector<2x32xf32>, vector<32x32xf32>, vector<2x32xf32> -> vector<2x32xf32>
    %1061 = arith.addf %1059, %1060 : vector<2x32xf32>
    %cst_550 = arith.constant dense<0.000000e+00> : vector<2x32xf32>
    %1062 = tpu.matmul %1057, %240, %cst_550 {dimension_numbers = #tpu.dot_dimension_numbers<[1], [0], [0], [1], [0, 0, 1, 1], [], []>} : vector<2x16xf32>, vector<16x32xf32>, vector<2x32xf32> -> vector<2x32xf32>
    %1063 = arith.addf %990, %1062 : vector<2x32xf32>
    %cst_551 = arith.constant dense<0.000000e+00> : vector<2x32xf32>
    %1064 = tpu.matmul %1040, %248, %cst_551 {dimension_numbers = #tpu.dot_dimension_numbers<[1], [0], [0], [1], [0, 0, 1, 1], [], []>} : vector<2x32xf32>, vector<32x32xf32>, vector<2x32xf32> -> vector<2x32xf32>
    %1065 = arith.addf %1063, %1064 : vector<2x32xf32>
    %cst_552 = arith.constant dense<0.000000e+00> : vector<2x32xf32>
    %1066 = tpu.matmul %1057, %242, %cst_552 {dimension_numbers = #tpu.dot_dimension_numbers<[1], [0], [0], [1], [0, 0, 1, 1], [], []>} : vector<2x16xf32>, vector<16x32xf32>, vector<2x32xf32> -> vector<2x32xf32>
    %1067 = arith.addf %996, %1066 : vector<2x32xf32>
    %cst_553 = arith.constant dense<0.000000e+00> : vector<2x32xf32>
    %1068 = tpu.matmul %1040, %250, %cst_553 {dimension_numbers = #tpu.dot_dimension_numbers<[1], [0], [0], [1], [0, 0, 1, 1], [], []>} : vector<2x32xf32>, vector<32x32xf32>, vector<2x32xf32> -> vector<2x32xf32>
    %1069 = arith.addf %1067, %1068 : vector<2x32xf32>
    %cst_554 = arith.constant dense<0.000000e+00> : vector<2x32xf32>
    %1070 = tpu.matmul %1057, %244, %cst_554 {dimension_numbers = #tpu.dot_dimension_numbers<[1], [0], [0], [1], [0, 0, 1, 1], [], []>} : vector<2x16xf32>, vector<16x32xf32>, vector<2x32xf32> -> vector<2x32xf32>
    %1071 = arith.addf %1002, %1070 : vector<2x32xf32>
    %cst_555 = arith.constant dense<0.000000e+00> : vector<2x32xf32>
    %1072 = tpu.matmul %1040, %252, %cst_555 {dimension_numbers = #tpu.dot_dimension_numbers<[1], [0], [0], [1], [0, 0, 1, 1], [], []>} : vector<2x32xf32>, vector<32x32xf32>, vector<2x32xf32> -> vector<2x32xf32>
    %1073 = arith.addf %1071, %1072 : vector<2x32xf32>
    %1074 = arith.negf %1061 : vector<2x32xf32>
    %1075 = math.exp %1074 : vector<2x32xf32>
    %cst_556 = arith.constant 1.000000e+00 : f32
    %1076 = vector.broadcast %cst_556 : f32 to vector<2x32xf32>
    %1077 = arith.addf %1076, %1075 : vector<2x32xf32>
    %1078 = arith.divf %1076, %1077 : vector<2x32xf32>
    %1079 = arith.negf %1065 : vector<2x32xf32>
    %1080 = math.exp %1079 : vector<2x32xf32>
    %cst_557 = arith.constant 1.000000e+00 : f32
    %1081 = vector.broadcast %cst_557 : f32 to vector<2x32xf32>
    %1082 = arith.addf %1081, %1080 : vector<2x32xf32>
    %1083 = arith.divf %1081, %1082 : vector<2x32xf32>
    %1084 = math.tanh %1069 : vector<2x32xf32>
    %1085 = arith.negf %1073 : vector<2x32xf32>
    %1086 = math.exp %1085 : vector<2x32xf32>
    %cst_558 = arith.constant 1.000000e+00 : f32
    %1087 = vector.broadcast %cst_558 : f32 to vector<2x32xf32>
    %1088 = arith.addf %1087, %1086 : vector<2x32xf32>
    %1089 = arith.divf %1087, %1088 : vector<2x32xf32>
    %1090 = arith.mulf %1083, %1038 : vector<2x32xf32>
    %1091 = arith.mulf %1078, %1084 : vector<2x32xf32>
    %1092 = arith.addf %1090, %1091 : vector<2x32xf32>
    %1093 = math.tanh %1092 : vector<2x32xf32>
    %1094 = arith.mulf %1089, %1093 : vector<2x32xf32>
    %cst_559 = arith.constant dense<0.000000e+00> : vector<2x16xf32>
    %1095 = tpu.matmul %1094, %253, %cst_559 {dimension_numbers = #tpu.dot_dimension_numbers<[1], [0], [0], [1], [0, 0, 1, 1], [], []>} : vector<2x32xf32>, vector<32x16xf32>, vector<2x16xf32> -> vector<2x16xf32>
    %1096 = arith.addf %1095, %254 : vector<2x16xf32>
    %c12_i32_560 = arith.constant 12 : i32
    %1097 = arith.addi %c12_i32_560, %c1_i32_547 : i32
    %1098 = arith.index_cast %1097 : i32 to index
    %c0_561 = arith.constant 0 : index
    %c0_562 = arith.constant 0 : index
    %1099 = vector.load %arg25[%1098, %c0_561, %c0_562] : memref<16x2x16xf32, #tpu.memory_space<vmem>>, vector<1x2x16xf32>
    %1100 = vector.shape_cast %1099 : vector<1x2x16xf32> to vector<2x16xf32>
    %1101 = vector.shape_cast %1096 : vector<2x16xf32> to vector<1x2x16xf32>
    tpu.vector_store %arg25[%1098, %c0_561, %c0_562], %1101 {strides = array<i32>} : memref<16x2x16xf32, #tpu.memory_space<vmem>>, vector<1x2x16xf32>,
    %cst_563 = arith.constant dense<0xFF800000> : vector<2xf32>
    %1102 = vector.multi_reduction <maximumf>, %1096, %cst_563 [1] : vector<2x16xf32> to vector<2xf32>
    %1103 = vector.shape_cast %1102 : vector<2xf32> to vector<2x1xf32>
    %1104 = vector.broadcast %1103 : vector<2x1xf32> to vector<2x16xf32>
    %1105 = arith.subf %1096, %1104 : vector<2x16xf32>
    %1106 = math.exp %1105 : vector<2x16xf32>
    %cst_564 = arith.constant dense<0.000000e+00> : vector<2xf32>
    %1107 = vector.multi_reduction <add>, %1106, %cst_564 [1] : vector<2x16xf32> to vector<2xf32>
    %1108 = vector.shape_cast %1107 : vector<2xf32> to vector<2x1xf32>
    %1109 = tpu.reciprocal %1108 {approx = true} : vector<2x1xf32> -> vector<2x1xf32>
    %1110 = vector.broadcast %1109 : vector<2x1xf32> to vector<2x16xf32>
    %1111 = arith.mulf %1106, %1110 : vector<2x16xf32>
    %c2_i32_565 = arith.constant 2 : i32
    %cst_566 = arith.constant dense<0.000000e+00> : vector<2x32xf32>
    %1112 = tpu.matmul %1111, %238, %cst_566 {dimension_numbers = #tpu.dot_dimension_numbers<[1], [0], [0], [1], [0, 0, 1, 1], [], []>} : vector<2x16xf32>, vector<16x32xf32>, vector<2x32xf32> -> vector<2x32xf32>
    %1113 = arith.addf %984, %1112 : vector<2x32xf32>
    %cst_567 = arith.constant dense<0.000000e+00> : vector<2x32xf32>
    %1114 = tpu.matmul %1094, %246, %cst_567 {dimension_numbers = #tpu.dot_dimension_numbers<[1], [0], [0], [1], [0, 0, 1, 1], [], []>} : vector<2x32xf32>, vector<32x32xf32>, vector<2x32xf32> -> vector<2x32xf32>
    %1115 = arith.addf %1113, %1114 : vector<2x32xf32>
    %cst_568 = arith.constant dense<0.000000e+00> : vector<2x32xf32>
    %1116 = tpu.matmul %1111, %240, %cst_568 {dimension_numbers = #tpu.dot_dimension_numbers<[1], [0], [0], [1], [0, 0, 1, 1], [], []>} : vector<2x16xf32>, vector<16x32xf32>, vector<2x32xf32> -> vector<2x32xf32>
    %1117 = arith.addf %990, %1116 : vector<2x32xf32>
    %cst_569 = arith.constant dense<0.000000e+00> : vector<2x32xf32>
    %1118 = tpu.matmul %1094, %248, %cst_569 {dimension_numbers = #tpu.dot_dimension_numbers<[1], [0], [0], [1], [0, 0, 1, 1], [], []>} : vector<2x32xf32>, vector<32x32xf32>, vector<2x32xf32> -> vector<2x32xf32>
    %1119 = arith.addf %1117, %1118 : vector<2x32xf32>
    %cst_570 = arith.constant dense<0.000000e+00> : vector<2x32xf32>
    %1120 = tpu.matmul %1111, %242, %cst_570 {dimension_numbers = #tpu.dot_dimension_numbers<[1], [0], [0], [1], [0, 0, 1, 1], [], []>} : vector<2x16xf32>, vector<16x32xf32>, vector<2x32xf32> -> vector<2x32xf32>
    %1121 = arith.addf %996, %1120 : vector<2x32xf32>
    %cst_571 = arith.constant dense<0.000000e+00> : vector<2x32xf32>
    %1122 = tpu.matmul %1094, %250, %cst_571 {dimension_numbers = #tpu.dot_dimension_numbers<[1], [0], [0], [1], [0, 0, 1, 1], [], []>} : vector<2x32xf32>, vector<32x32xf32>, vector<2x32xf32> -> vector<2x32xf32>
    %1123 = arith.addf %1121, %1122 : vector<2x32xf32>
    %cst_572 = arith.constant dense<0.000000e+00> : vector<2x32xf32>
    %1124 = tpu.matmul %1111, %244, %cst_572 {dimension_numbers = #tpu.dot_dimension_numbers<[1], [0], [0], [1], [0, 0, 1, 1], [], []>} : vector<2x16xf32>, vector<16x32xf32>, vector<2x32xf32> -> vector<2x32xf32>
    %1125 = arith.addf %1002, %1124 : vector<2x32xf32>
    %cst_573 = arith.constant dense<0.000000e+00> : vector<2x32xf32>
    %1126 = tpu.matmul %1094, %252, %cst_573 {dimension_numbers = #tpu.dot_dimension_numbers<[1], [0], [0], [1], [0, 0, 1, 1], [], []>} : vector<2x32xf32>, vector<32x32xf32>, vector<2x32xf32> -> vector<2x32xf32>
    %1127 = arith.addf %1125, %1126 : vector<2x32xf32>
    %1128 = arith.negf %1115 : vector<2x32xf32>
    %1129 = math.exp %1128 : vector<2x32xf32>
    %cst_574 = arith.constant 1.000000e+00 : f32
    %1130 = vector.broadcast %cst_574 : f32 to vector<2x32xf32>
    %1131 = arith.addf %1130, %1129 : vector<2x32xf32>
    %1132 = arith.divf %1130, %1131 : vector<2x32xf32>
    %1133 = arith.negf %1119 : vector<2x32xf32>
    %1134 = math.exp %1133 : vector<2x32xf32>
    %cst_575 = arith.constant 1.000000e+00 : f32
    %1135 = vector.broadcast %cst_575 : f32 to vector<2x32xf32>
    %1136 = arith.addf %1135, %1134 : vector<2x32xf32>
    %1137 = arith.divf %1135, %1136 : vector<2x32xf32>
    %1138 = math.tanh %1123 : vector<2x32xf32>
    %1139 = arith.negf %1127 : vector<2x32xf32>
    %1140 = math.exp %1139 : vector<2x32xf32>
    %cst_576 = arith.constant 1.000000e+00 : f32
    %1141 = vector.broadcast %cst_576 : f32 to vector<2x32xf32>
    %1142 = arith.addf %1141, %1140 : vector<2x32xf32>
    %1143 = arith.divf %1141, %1142 : vector<2x32xf32>
    %1144 = arith.mulf %1137, %1092 : vector<2x32xf32>
    %1145 = arith.mulf %1132, %1138 : vector<2x32xf32>
    %1146 = arith.addf %1144, %1145 : vector<2x32xf32>
    %1147 = math.tanh %1146 : vector<2x32xf32>
    %1148 = arith.mulf %1143, %1147 : vector<2x32xf32>
    %cst_577 = arith.constant dense<0.000000e+00> : vector<2x16xf32>
    %1149 = tpu.matmul %1148, %253, %cst_577 {dimension_numbers = #tpu.dot_dimension_numbers<[1], [0], [0], [1], [0, 0, 1, 1], [], []>} : vector<2x32xf32>, vector<32x16xf32>, vector<2x16xf32> -> vector<2x16xf32>
    %1150 = arith.addf %1149, %254 : vector<2x16xf32>
    %c12_i32_578 = arith.constant 12 : i32
    %1151 = arith.addi %c12_i32_578, %c2_i32_565 : i32
    %1152 = arith.index_cast %1151 : i32 to index
    %c0_579 = arith.constant 0 : index
    %c0_580 = arith.constant 0 : index
    %1153 = vector.load %arg25[%1152, %c0_579, %c0_580] : memref<16x2x16xf32, #tpu.memory_space<vmem>>, vector<1x2x16xf32>
    %1154 = vector.shape_cast %1153 : vector<1x2x16xf32> to vector<2x16xf32>
    %1155 = vector.shape_cast %1150 : vector<2x16xf32> to vector<1x2x16xf32>
    tpu.vector_store %arg25[%1152, %c0_579, %c0_580], %1155 {strides = array<i32>} : memref<16x2x16xf32, #tpu.memory_space<vmem>>, vector<1x2x16xf32>,
    %cst_581 = arith.constant dense<0xFF800000> : vector<2xf32>
    %1156 = vector.multi_reduction <maximumf>, %1150, %cst_581 [1] : vector<2x16xf32> to vector<2xf32>
    %1157 = vector.shape_cast %1156 : vector<2xf32> to vector<2x1xf32>
    %1158 = vector.broadcast %1157 : vector<2x1xf32> to vector<2x16xf32>
    %1159 = arith.subf %1150, %1158 : vector<2x16xf32>
    %1160 = math.exp %1159 : vector<2x16xf32>
    %cst_582 = arith.constant dense<0.000000e+00> : vector<2xf32>
    %1161 = vector.multi_reduction <add>, %1160, %cst_582 [1] : vector<2x16xf32> to vector<2xf32>
    %1162 = vector.shape_cast %1161 : vector<2xf32> to vector<2x1xf32>
    %1163 = tpu.reciprocal %1162 {approx = true} : vector<2x1xf32> -> vector<2x1xf32>
    %1164 = vector.broadcast %1163 : vector<2x1xf32> to vector<2x16xf32>
    %1165 = arith.mulf %1160, %1164 : vector<2x16xf32>
    %c3_i32_583 = arith.constant 3 : i32
    %cst_584 = arith.constant dense<0.000000e+00> : vector<2x32xf32>
    %1166 = tpu.matmul %1165, %238, %cst_584 {dimension_numbers = #tpu.dot_dimension_numbers<[1], [0], [0], [1], [0, 0, 1, 1], [], []>} : vector<2x16xf32>, vector<16x32xf32>, vector<2x32xf32> -> vector<2x32xf32>
    %1167 = arith.addf %984, %1166 : vector<2x32xf32>
    %cst_585 = arith.constant dense<0.000000e+00> : vector<2x32xf32>
    %1168 = tpu.matmul %1148, %246, %cst_585 {dimension_numbers = #tpu.dot_dimension_numbers<[1], [0], [0], [1], [0, 0, 1, 1], [], []>} : vector<2x32xf32>, vector<32x32xf32>, vector<2x32xf32> -> vector<2x32xf32>
    %1169 = arith.addf %1167, %1168 : vector<2x32xf32>
    %cst_586 = arith.constant dense<0.000000e+00> : vector<2x32xf32>
    %1170 = tpu.matmul %1165, %240, %cst_586 {dimension_numbers = #tpu.dot_dimension_numbers<[1], [0], [0], [1], [0, 0, 1, 1], [], []>} : vector<2x16xf32>, vector<16x32xf32>, vector<2x32xf32> -> vector<2x32xf32>
    %1171 = arith.addf %990, %1170 : vector<2x32xf32>
    %cst_587 = arith.constant dense<0.000000e+00> : vector<2x32xf32>
    %1172 = tpu.matmul %1148, %248, %cst_587 {dimension_numbers = #tpu.dot_dimension_numbers<[1], [0], [0], [1], [0, 0, 1, 1], [], []>} : vector<2x32xf32>, vector<32x32xf32>, vector<2x32xf32> -> vector<2x32xf32>
    %1173 = arith.addf %1171, %1172 : vector<2x32xf32>
    %cst_588 = arith.constant dense<0.000000e+00> : vector<2x32xf32>
    %1174 = tpu.matmul %1165, %242, %cst_588 {dimension_numbers = #tpu.dot_dimension_numbers<[1], [0], [0], [1], [0, 0, 1, 1], [], []>} : vector<2x16xf32>, vector<16x32xf32>, vector<2x32xf32> -> vector<2x32xf32>
    %1175 = arith.addf %996, %1174 : vector<2x32xf32>
    %cst_589 = arith.constant dense<0.000000e+00> : vector<2x32xf32>
    %1176 = tpu.matmul %1148, %250, %cst_589 {dimension_numbers = #tpu.dot_dimension_numbers<[1], [0], [0], [1], [0, 0, 1, 1], [], []>} : vector<2x32xf32>, vector<32x32xf32>, vector<2x32xf32> -> vector<2x32xf32>
    %1177 = arith.addf %1175, %1176 : vector<2x32xf32>
    %cst_590 = arith.constant dense<0.000000e+00> : vector<2x32xf32>
    %1178 = tpu.matmul %1165, %244, %cst_590 {dimension_numbers = #tpu.dot_dimension_numbers<[1], [0], [0], [1], [0, 0, 1, 1], [], []>} : vector<2x16xf32>, vector<16x32xf32>, vector<2x32xf32> -> vector<2x32xf32>
    %1179 = arith.addf %1002, %1178 : vector<2x32xf32>
    %cst_591 = arith.constant dense<0.000000e+00> : vector<2x32xf32>
    %1180 = tpu.matmul %1148, %252, %cst_591 {dimension_numbers = #tpu.dot_dimension_numbers<[1], [0], [0], [1], [0, 0, 1, 1], [], []>} : vector<2x32xf32>, vector<32x32xf32>, vector<2x32xf32> -> vector<2x32xf32>
    %1181 = arith.addf %1179, %1180 : vector<2x32xf32>
    %1182 = arith.negf %1169 : vector<2x32xf32>
    %1183 = math.exp %1182 : vector<2x32xf32>
    %cst_592 = arith.constant 1.000000e+00 : f32
    %1184 = vector.broadcast %cst_592 : f32 to vector<2x32xf32>
    %1185 = arith.addf %1184, %1183 : vector<2x32xf32>
    %1186 = arith.divf %1184, %1185 : vector<2x32xf32>
    %1187 = arith.negf %1173 : vector<2x32xf32>
    %1188 = math.exp %1187 : vector<2x32xf32>
    %cst_593 = arith.constant 1.000000e+00 : f32
    %1189 = vector.broadcast %cst_593 : f32 to vector<2x32xf32>
    %1190 = arith.addf %1189, %1188 : vector<2x32xf32>
    %1191 = arith.divf %1189, %1190 : vector<2x32xf32>
    %1192 = math.tanh %1177 : vector<2x32xf32>
    %1193 = arith.negf %1181 : vector<2x32xf32>
    %1194 = math.exp %1193 : vector<2x32xf32>
    %cst_594 = arith.constant 1.000000e+00 : f32
    %1195 = vector.broadcast %cst_594 : f32 to vector<2x32xf32>
    %1196 = arith.addf %1195, %1194 : vector<2x32xf32>
    %1197 = arith.divf %1195, %1196 : vector<2x32xf32>
    %1198 = arith.mulf %1191, %1146 : vector<2x32xf32>
    %1199 = arith.mulf %1186, %1192 : vector<2x32xf32>
    %1200 = arith.addf %1198, %1199 : vector<2x32xf32>
    %1201 = math.tanh %1200 : vector<2x32xf32>
    %1202 = arith.mulf %1197, %1201 : vector<2x32xf32>
    %cst_595 = arith.constant dense<0.000000e+00> : vector<2x16xf32>
    %1203 = tpu.matmul %1202, %253, %cst_595 {dimension_numbers = #tpu.dot_dimension_numbers<[1], [0], [0], [1], [0, 0, 1, 1], [], []>} : vector<2x32xf32>, vector<32x16xf32>, vector<2x16xf32> -> vector<2x16xf32>
    %1204 = arith.addf %1203, %254 : vector<2x16xf32>
    %c12_i32_596 = arith.constant 12 : i32
    %1205 = arith.addi %c12_i32_596, %c3_i32_583 : i32
    %1206 = arith.index_cast %1205 : i32 to index
    %c0_597 = arith.constant 0 : index
    %c0_598 = arith.constant 0 : index
    %1207 = vector.load %arg25[%1206, %c0_597, %c0_598] : memref<16x2x16xf32, #tpu.memory_space<vmem>>, vector<1x2x16xf32>
    %1208 = vector.shape_cast %1207 : vector<1x2x16xf32> to vector<2x16xf32>
    %1209 = vector.shape_cast %1204 : vector<2x16xf32> to vector<1x2x16xf32>
    tpu.vector_store %arg25[%1206, %c0_597, %c0_598], %1209 {strides = array<i32>} : memref<16x2x16xf32, #tpu.memory_space<vmem>>, vector<1x2x16xf32>,
    %cst_599 = arith.constant dense<0xFF800000> : vector<2xf32>
    %1210 = vector.multi_reduction <maximumf>, %1204, %cst_599 [1] : vector<2x16xf32> to vector<2xf32>
    %1211 = vector.shape_cast %1210 : vector<2xf32> to vector<2x1xf32>
    %1212 = vector.broadcast %1211 : vector<2x1xf32> to vector<2x16xf32>
    %1213 = arith.subf %1204, %1212 : vector<2x16xf32>
    %1214 = math.exp %1213 : vector<2x16xf32>
    %cst_600 = arith.constant dense<0.000000e+00> : vector<2xf32>
    %1215 = vector.multi_reduction <add>, %1214, %cst_600 [1] : vector<2x16xf32> to vector<2xf32>
    %1216 = vector.shape_cast %1215 : vector<2xf32> to vector<2x1xf32>
    %1217 = tpu.reciprocal %1216 {approx = true} : vector<2x1xf32> -> vector<2x1xf32>
    %1218 = vector.broadcast %1217 : vector<2x1xf32> to vector<2x16xf32>
    %1219 = arith.mulf %1214, %1218 : vector<2x16xf32>
    %c4_i32_601 = arith.constant 4 : i32
    return
  }
}

</mosaic_0001>

<llo_original>
// kernel: music_vae_forward.1
$region0: #{music_vae_forward.1}
  #allocation0 [shape = 'u32[]', space=smem, size = 0x4, offset = 0x4, fixed_abs, tag = 'smem constant byte address 0x4 - core index']
  #allocation1 [shape = 'u32[72,128]{1,0:T(1,128)}', space=vmem, size = 0x9000, scoped, tag = 'internal scratch']
  %s0 = inlined_call_operand.vmem [shape: f32[16,2,16], index: 0, kind: input, shape index: {}]
  %s1 = inlined_call_operand.vmem [shape: f32[2,16], index: 1, kind: input, shape index: {}]
  %s2 = inlined_call_operand.vmem [shape: f32[4,16,32], index: 2, kind: input, shape index: {}]
  %s3 = inlined_call_operand.vmem [shape: f32[4,32,32], index: 3, kind: input, shape index: {}]
  %s4 = inlined_call_operand.vmem [shape: f32[4,2,32], index: 4, kind: input, shape index: {}]
  %s5 = inlined_call_operand.vmem [shape: f32[4,16,32], index: 5, kind: input, shape index: {}]
  %s6 = inlined_call_operand.vmem [shape: f32[4,32,32], index: 6, kind: input, shape index: {}]
  %s7 = inlined_call_operand.vmem [shape: f32[4,2,32], index: 7, kind: input, shape index: {}]
  %s8 = inlined_call_operand.vmem [shape: f32[32,16], index: 8, kind: input, shape index: {}]
  %s9 = inlined_call_operand.vmem [shape: f32[32,16], index: 9, kind: input, shape index: {}]
  %s10 = inlined_call_operand.vmem [shape: f32[2,16], index: 10, kind: input, shape index: {}]
  %s11 = inlined_call_operand.vmem [shape: f32[32,16], index: 11, kind: input, shape index: {}]
  %s12 = inlined_call_operand.vmem [shape: f32[32,16], index: 12, kind: input, shape index: {}]
  %s13 = inlined_call_operand.vmem [shape: f32[2,16], index: 13, kind: input, shape index: {}]
  %s14 = inlined_call_operand.vmem [shape: f32[4,16,32], index: 14, kind: input, shape index: {}]
  %s15 = inlined_call_operand.vmem [shape: f32[4,32,32], index: 15, kind: input, shape index: {}]
  %s16 = inlined_call_operand.vmem [shape: f32[4,2,32], index: 16, kind: input, shape index: {}]
  %s17 = inlined_call_operand.vmem [shape: f32[32,32], index: 17, kind: input, shape index: {}]
  %s18 = inlined_call_operand.vmem [shape: f32[2,32], index: 18, kind: input, shape index: {}]
  %s19 = inlined_call_operand.vmem [shape: f32[4,16,32], index: 19, kind: input, shape index: {}]
  %s20 = inlined_call_operand.vmem [shape: f32[4,32,32], index: 20, kind: input, shape index: {}]
  %s21 = inlined_call_operand.vmem [shape: f32[4,32,32], index: 21, kind: input, shape index: {}]
  %s22 = inlined_call_operand.vmem [shape: f32[4,2,32], index: 22, kind: input, shape index: {}]
  %s23 = inlined_call_operand.vmem [shape: f32[32,16], index: 23, kind: input, shape index: {}]
  %s24 = inlined_call_operand.vmem [shape: f32[2,16], index: 24, kind: input, shape index: {}]
  %s25 = inlined_call_operand.vmem [shape: f32[16,2,16], index: 25, kind: output, shape index: {0}]
  %s26 = inlined_call_operand.hbm [shape: f32[2,16], index: 26, kind: output, shape index: {1}]
  %s27 = inlined_call_operand.hbm [shape: f32[2,16], index: 27, kind: output, shape index: {2}]
  %28 = xla_tuple %s25, %s26, %s27
  %s29 = sld [smem:[#allocation0]]
  $region133: #{music_vae_forward.1} parent=0
    _
  %s31 = ssub.s32 1, %s29
  %s32 = scalar_select 0, %s31, %s29
  $region1: #{music_vae_forward.1} parent=0
    #allocation2 [shape = 'u8[1024]{0}', space=vmem, size = 0x400, scoped, tag = 'output window, operand 1, single buffered']
    #allocation3 [shape = 's32[1]{0}', space=sflag, size = 0x4, scoped, tag = 'scoped memory for music_vae_forward.1']
    #allocation4 [shape = 'u8[1024]{0}', space=vmem, size = 0x400, scoped, tag = 'output window, operand 2, single buffered']
    #allocation5 [shape = 's32[1]{0}', space=sflag, size = 0x4, scoped, tag = 'scoped memory for music_vae_forward.1']
    %33 = vsyncpa [#allocation3], 0
    %34 = vsyncpa [#allocation5], 0
    // Predicated region
    $region2: #{music_vae_forward.1} parent=1 // pred_check
      _
    $region3: #{music_vae_forward.1} parent=1 // pred_check_branch
      %36 = sbr.rel (0) target = $region5
    $region4: #{music_vae_forward.1} parent=1 // pred_region
      _
    $region5: #{music_vae_forward.1} parent=1 // pred_fallthru
      _
    // Predicated region
    $region6: #{music_vae_forward.1} parent=1 // pred_check
      _
    $region7: #{music_vae_forward.1} parent=1 // pred_check_branch
      %38 = sbr.rel (0) target = $region9
    $region8: #{music_vae_forward.1} parent=1 // pred_region
      _
    $region9: #{music_vae_forward.1} parent=1 // pred_fallthru
      _
    // Predicated region
    $region10: #{music_vae_forward.1} parent=1 // pred_check
      _
    $region11: #{music_vae_forward.1} parent=1 // pred_check_branch
      %40 = sbr.rel (0) target = $region13
    $region12: #{music_vae_forward.1} parent=1 // pred_region
      _
    $region13: #{music_vae_forward.1} parent=1 // pred_fallthru
      _
    // Predicated region
    $region14: #{music_vae_forward.1} parent=1 // pred_check
      _
    $region15: #{music_vae_forward.1} parent=1 // pred_check_branch
      %42 = sbr.rel (0) target = $region17
    $region16: #{music_vae_forward.1} parent=1 // pred_region
      _
    $region17: #{music_vae_forward.1} parent=1 // pred_fallthru
      _
    // Predicated region
    $region18: #{music_vae_forward.1} parent=1 // pred_check
      _
    $region19: #{music_vae_forward.1} parent=1 // pred_check_branch
      %44 = sbr.rel (0) target = $region21
    $region20: #{music_vae_forward.1} parent=1 // pred_region
      _
    $region21: #{music_vae_forward.1} parent=1 // pred_fallthru
      _
    // Predicated region
    $region22: #{music_vae_forward.1} parent=1 // pred_check
      _
    $region23: #{music_vae_forward.1} parent=1 // pred_check_branch
      %46 = sbr.rel (0) target = $region25
    $region24: #{music_vae_forward.1} parent=1 // pred_region
      _
    $region25: #{music_vae_forward.1} parent=1 // pred_fallthru
      _
    // Predicated region
    $region26: #{music_vae_forward.1} parent=1 // pred_check
      _
    $region27: #{music_vae_forward.1} parent=1 // pred_check_branch
      %48 = sbr.rel (0) target = $region29
    $region28: #{music_vae_forward.1} parent=1 // pred_region
      _
    $region29: #{music_vae_forward.1} parent=1 // pred_fallthru
      _
    // Predicated region
    $region30: #{music_vae_forward.1} parent=1 // pred_check
      _
    $region31: #{music_vae_forward.1} parent=1 // pred_check_branch
      %50 = sbr.rel (0) target = $region33
    $region32: #{music_vae_forward.1} parent=1 // pred_region
      _
    $region33: #{music_vae_forward.1} parent=1 // pred_fallthru
      _
    // Predicated region
    $region34: #{music_vae_forward.1} parent=1 // pred_check
      _
    $region35: #{music_vae_forward.1} parent=1 // pred_check_branch
      %52 = sbr.rel (0) target = $region37
    $region36: #{music_vae_forward.1} parent=1 // pred_region
      _
    $region37: #{music_vae_forward.1} parent=1 // pred_fallthru
      _
    // Predicated region
    $region38: #{music_vae_forward.1} parent=1 // pred_check
      _
    $region39: #{music_vae_forward.1} parent=1 // pred_check_branch
      %54 = sbr.rel (0) target = $region41
    $region40: #{music_vae_forward.1} parent=1 // pred_region
      _
    $region41: #{music_vae_forward.1} parent=1 // pred_fallthru
      _
    // Predicated region
    $region42: #{music_vae_forward.1} parent=1 // pred_check
      _
    $region43: #{music_vae_forward.1} parent=1 // pred_check_branch
      %56 = sbr.rel (0) target = $region45
    $region44: #{music_vae_forward.1} parent=1 // pred_region
      _
    $region45: #{music_vae_forward.1} parent=1 // pred_fallthru
      _
    // Predicated region
    $region46: #{music_vae_forward.1} parent=1 // pred_check
      _
    $region47: #{music_vae_forward.1} parent=1 // pred_check_branch
      %58 = sbr.rel (0) target = $region49
    $region48: #{music_vae_forward.1} parent=1 // pred_region
      _
    $region49: #{music_vae_forward.1} parent=1 // pred_fallthru
      _
    // Predicated region
    $region50: #{music_vae_forward.1} parent=1 // pred_check
      _
    $region51: #{music_vae_forward.1} parent=1 // pred_check_branch
      %60 = sbr.rel (0) target = $region53
    $region52: #{music_vae_forward.1} parent=1 // pred_region
      _
    $region53: #{music_vae_forward.1} parent=1 // pred_fallthru
      _
    // Predicated region
    $region54: #{music_vae_forward.1} parent=1 // pred_check
      _
    $region55: #{music_vae_forward.1} parent=1 // pred_check_branch
      %62 = sbr.rel (0) target = $region57
    $region56: #{music_vae_forward.1} parent=1 // pred_region
      _
    $region57: #{music_vae_forward.1} parent=1 // pred_fallthru
      _
    // Predicated region
    $region58: #{music_vae_forward.1} parent=1 // pred_check
      _
    $region59: #{music_vae_forward.1} parent=1 // pred_check_branch
      %64 = sbr.rel (0) target = $region61
    $region60: #{music_vae_forward.1} parent=1 // pred_region
      _
    $region61: #{music_vae_forward.1} parent=1 // pred_fallthru
      _
    // Predicated region
    $region62: #{music_vae_forward.1} parent=1 // pred_check
      _
    $region63: #{music_vae_forward.1} parent=1 // pred_check_branch
      %66 = sbr.rel (0) target = $region65
    $region64: #{music_vae_forward.1} parent=1 // pred_region
      _
    $region65: #{music_vae_forward.1} parent=1 // pred_fallthru
      _
    // Predicated region
    $region66: #{music_vae_forward.1} parent=1 // pred_check
      _
    $region67: #{music_vae_forward.1} parent=1 // pred_check_branch
      %68 = sbr.rel (0) target = $region69
    $region68: #{music_vae_forward.1} parent=1 // pred_region
      _
    $region69: #{music_vae_forward.1} parent=1 // pred_fallthru
      _
    // Predicated region
    $region70: #{music_vae_forward.1} parent=1 // pred_check
      _
    $region71: #{music_vae_forward.1} parent=1 // pred_check_branch
      %70 = sbr.rel (0) target = $region73
    $region72: #{music_vae_forward.1} parent=1 // pred_region
      _
    $region73: #{music_vae_forward.1} parent=1 // pred_fallthru
      _
    // Predicated region
    $region74: #{music_vae_forward.1} parent=1 // pred_check
      _
    $region75: #{music_vae_forward.1} parent=1 // pred_check_branch
      %72 = sbr.rel (0) target = $region77
    $region76: #{music_vae_forward.1} parent=1 // pred_region
      _
    $region77: #{music_vae_forward.1} parent=1 // pred_fallthru
      _
    // Predicated region
    $region78: #{music_vae_forward.1} parent=1 // pred_check
      _
    $region79: #{music_vae_forward.1} parent=1 // pred_check_branch
      %74 = sbr.rel (0) target = $region81
    $region80: #{music_vae_forward.1} parent=1 // pred_region
      _
    $region81: #{music_vae_forward.1} parent=1 // pred_fallthru
      _
    // Predicated region
    $region82: #{music_vae_forward.1} parent=1 // pred_check
      _
    $region83: #{music_vae_forward.1} parent=1 // pred_check_branch
      %76 = sbr.rel (0) target = $region85
    $region84: #{music_vae_forward.1} parent=1 // pred_region
      _
    $region85: #{music_vae_forward.1} parent=1 // pred_fallthru
      _
    // Predicated region
    $region86: #{music_vae_forward.1} parent=1 // pred_check
      _
    $region87: #{music_vae_forward.1} parent=1 // pred_check_branch
      %78 = sbr.rel (0) target = $region89
    $region88: #{music_vae_forward.1} parent=1 // pred_region
      _
    $region89: #{music_vae_forward.1} parent=1 // pred_fallthru
      _
    // Predicated region
    $region90: #{music_vae_forward.1} parent=1 // pred_check
      _
    $region91: #{music_vae_forward.1} parent=1 // pred_check_branch
      %80 = sbr.rel (0) target = $region93
    $region92: #{music_vae_forward.1} parent=1 // pred_region
      _
    $region93: #{music_vae_forward.1} parent=1 // pred_fallthru
      _
    // Predicated region
    $region94: #{music_vae_forward.1} parent=1 // pred_check
      _
    $region95: #{music_vae_forward.1} parent=1 // pred_check_branch
      %82 = sbr.rel (0) target = $region97
    $region96: #{music_vae_forward.1} parent=1 // pred_region
      _
    $region97: #{music_vae_forward.1} parent=1 // pred_fallthru
      _
    // Predicated region
    $region98: #{music_vae_forward.1} parent=1 // pred_check
      _
    $region99: #{music_vae_forward.1} parent=1 // pred_check_branch
      %84 = sbr.rel (0) target = $region101
    $region100: #{music_vae_forward.1} parent=1 // pred_region
      _
    $region101: #{music_vae_forward.1} parent=1 // pred_fallthru
      _
    %v85 = vld [vmem:[%s2] sm:$0xff]
    %v86 = vld [vmem:[%s2 + $0x8] sm:$0xff]
    %s87 = scalar_lea.vmem %s2, 16
    %v88 = vld [vmem:[%s87] sm:$0xff]
    %v89 = vld [vmem:[%s87 + $0x8] sm:$0xff]
    %s90 = scalar_lea.vmem %s2, 32
    %v91 = vld [vmem:[%s90] sm:$0xff]
    %v92 = vld [vmem:[%s90 + $0x8] sm:$0xff]
    %s93 = scalar_lea.vmem %s2, 48
    %v94 = vld [vmem:[%s93] sm:$0xff]
    %v95 = vld [vmem:[%s93 + $0x8] sm:$0xff]
    %v96 = vld [vmem:[%s3] sm:$0xff]
    %v97 = vld [vmem:[%s3 + $0x8] sm:$0xff]
    %v98 = vld [vmem:[%s3 + $0x10] sm:$0xff]
    %v99 = vld [vmem:[%s3 + $0x18] sm:$0xff]
    %s100 = scalar_lea.vmem %s3, 32
    %v101 = vld [vmem:[%s100] sm:$0xff]
    %v102 = vld [vmem:[%s100 + $0x8] sm:$0xff]
    %v103 = vld [vmem:[%s100 + $0x10] sm:$0xff]
    %v104 = vld [vmem:[%s100 + $0x18] sm:$0xff]
    %s105 = scalar_lea.vmem %s3, 64
    %v106 = vld [vmem:[%s105] sm:$0xff]
    %v107 = vld [vmem:[%s105 + $0x8] sm:$0xff]
    %v108 = vld [vmem:[%s105 + $0x10] sm:$0xff]
    %v109 = vld [vmem:[%s105 + $0x18] sm:$0xff]
    %s110 = scalar_lea.vmem %s3, 96
    %v111 = vld [vmem:[%s110] sm:$0xff]
    %v112 = vld [vmem:[%s110 + $0x8] sm:$0xff]
    %v113 = vld [vmem:[%s110 + $0x10] sm:$0xff]
    %v114 = vld [vmem:[%s110 + $0x18] sm:$0xff]
    %v115 = vld [vmem:[%s4] sm:$0x3]
    %s116 = scalar_lea.vmem %s4, 2
    %v117 = vld [vmem:[%s116] sm:$0x3]
    %s118 = scalar_lea.vmem %s4, 4
    %v119 = vld [vmem:[%s118] sm:$0x3]
    %s120 = scalar_lea.vmem %s4, 6
    %v121 = vld [vmem:[%s120] sm:$0x3]
    %v122 = vld [vmem:[%s5] sm:$0xff]
    %v123 = vld [vmem:[%s5 + $0x8] sm:$0xff]
    %s124 = scalar_lea.vmem %s5, 16
    %v125 = vld [vmem:[%s124] sm:$0xff]
    %v126 = vld [vmem:[%s124 + $0x8] sm:$0xff]
    %s127 = scalar_lea.vmem %s5, 32
    %v128 = vld [vmem:[%s127] sm:$0xff]
    %v129 = vld [vmem:[%s127 + $0x8] sm:$0xff]
    %s130 = scalar_lea.vmem %s5, 48
    %v131 = vld [vmem:[%s130] sm:$0xff]
    %v132 = vld [vmem:[%s130 + $0x8] sm:$0xff]
    %v133 = vld [vmem:[%s6] sm:$0xff]
    %v134 = vld [vmem:[%s6 + $0x8] sm:$0xff]
    %v135 = vld [vmem:[%s6 + $0x10] sm:$0xff]
    %v136 = vld [vmem:[%s6 + $0x18] sm:$0xff]
    %s137 = scalar_lea.vmem %s6, 32
    %v138 = vld [vmem:[%s137] sm:$0xff]
    %v139 = vld [vmem:[%s137 + $0x8] sm:$0xff]
    %v140 = vld [vmem:[%s137 + $0x10] sm:$0xff]
    %v141 = vld [vmem:[%s137 + $0x18] sm:$0xff]
    %s142 = scalar_lea.vmem %s6, 64
    %v143 = vld [vmem:[%s142] sm:$0xff]
    %v144 = vld [vmem:[%s142 + $0x8] sm:$0xff]
    %v145 = vld [vmem:[%s142 + $0x10] sm:$0xff]
    %v146 = vld [vmem:[%s142 + $0x18] sm:$0xff]
    %s147 = scalar_lea.vmem %s6, 96
    %v148 = vld [vmem:[%s147] sm:$0xff]
    %v149 = vld [vmem:[%s147 + $0x8] sm:$0xff]
    %v150 = vld [vmem:[%s147 + $0x10] sm:$0xff]
    %v151 = vld [vmem:[%s147 + $0x18] sm:$0xff]
    %v152 = vld [vmem:[%s7] sm:$0x3]
    %s153 = scalar_lea.vmem %s7, 2
    %v154 = vld [vmem:[%s153] sm:$0x3]
    %s155 = scalar_lea.vmem %s7, 4
    %v156 = vld [vmem:[%s155] sm:$0x3]
    %s157 = scalar_lea.vmem %s7, 6
    %v158 = vld [vmem:[%s157] sm:$0x3]
    loop: start=0, step=1, limit=16
    $region102: #{music_vae_forward.1} parent=1 // loop_pre_header
      _
    $region103: #{music_vae_forward.1} parent=1 // loop_header
      %s160 = sphi 0, %s164
      %p161 = scmp.ge.s32.totalorder %s160, 16
      %v165 = vphi 0.0, %v580
      %v166 = vphi 0.0, %v578
      %v167 = vphi 0.0, %v643
      %v168 = vphi 0.0, %v641
    $region104: #{music_vae_forward.1} parent=1 // loop_header_branch
      %163 = sbr.rel (%p161) target = $region108
    $region105: #{music_vae_forward.1} parent=1 // loop_body
      %s169 = smul.u32 %s160, 2
      %s170 = scalar_lea.vmem %s0, %s169
      %v171 = vld [vmem:[%s170] sm:$0x3]
      %s172 = ssub.s32 15, %s160
      %s173 = smul.u32 %s172, 2
      %s174 = scalar_lea.vmem %s0, %s173
      %v175 = vld [vmem:[%s174] sm:$0x3]
      %vm176 = vcmask 261120
      %v178 = vsel %vm176, %v165, 0
      %180 = vmatpush.msra.mxu0 0.0
      %181 = vmatpush.msra.mxu0 0.0
      %182 = vmatpush.msra.mxu0 0.0
      %183 = vmatpush.msra.mxu0 0.0
      %184 = vmatpush.msra.mxu0 0.0
      %185 = vmatpush.msra.mxu0 0.0
      %186 = vmatpush.msra.mxu0 0.0
      %187 = vmatpush.msra.mxu0 0.0
      %188 = vmatpush.msra.mxu0 0.0
      %189 = vmatpush.msra.mxu0 0.0
      %190 = vmatpush.msra.mxu0 0.0
      %191 = vmatpush.msra.mxu0 0.0
      %192 = vmatpush.msra.mxu0 %v99
      %193 = vmatpush.msra.mxu0 %v98
      %194 = vmatpush.msra.mxu0 %v97
      %195 = vmatpush.msra.mxu0 %v96
      %196 = vmatmul.f32.gmra.mxu0 %v178
      %v197 = vpop.f32.mrf.mxu0
      %v198 = vadd.f32 0.0, %v197
      %199 = vdwg.mxu0
      %vm200 = vcmask 130048
      %v202 = vsel %vm200, %v171, 0
      %204 = vmatpush.msra.mxu0 0.0
      %205 = vmatpush.msra.mxu0 0.0
      %206 = vmatpush.msra.mxu0 0.0
      %207 = vmatpush.msra.mxu0 0.0
      %208 = vmatpush.msra.mxu0 0.0
      %209 = vmatpush.msra.mxu0 0.0
      %210 = vmatpush.msra.mxu0 0.0
      %211 = vmatpush.msra.mxu0 0.0
      %212 = vmatpush.msra.mxu0 0.0
      %213 = vmatpush.msra.mxu0 0.0
      %214 = vmatpush.msra.mxu0 0.0
      %215 = vmatpush.msra.mxu0 0.0
      %216 = vmatpush.msra.mxu0 0.0
      %217 = vmatpush.msra.mxu0 0.0
      %218 = vmatpush.msra.mxu0 %v86
      %219 = vmatpush.msra.mxu0 %v85
      %220 = vmatmul.f32.gmra.mxu0 %v202
      %v221 = vpop.f32.mrf.mxu0
      %v222 = vadd.f32 %v198, %v221
      %223 = vdwg.mxu0
      %v224 = vadd.f32 %v222, %v115
      %225 = vmatpush.msra.mxu0 0.0
      %226 = vmatpush.msra.mxu0 0.0
      %227 = vmatpush.msra.mxu0 0.0
      %228 = vmatpush.msra.mxu0 0.0
      %229 = vmatpush.msra.mxu0 0.0
      %230 = vmatpush.msra.mxu0 0.0
      %231 = vmatpush.msra.mxu0 0.0
      %232 = vmatpush.msra.mxu0 0.0
      %233 = vmatpush.msra.mxu0 0.0
      %234 = vmatpush.msra.mxu0 0.0
      %235 = vmatpush.msra.mxu0 0.0
      %236 = vmatpush.msra.mxu0 0.0
      %237 = vmatpush.msra.mxu0 %v104
      %238 = vmatpush.msra.mxu0 %v103
      %239 = vmatpush.msra.mxu0 %v102
      %240 = vmatpush.msra.mxu0 %v101
      %241 = vmatmul.f32.gmra.mxu0 %v178
      %v242 = vpop.f32.mrf.mxu0
      %v243 = vadd.f32 0.0, %v242
      %244 = vdwg.mxu0
      %245 = vmatpush.msra.mxu0 0.0
      %246 = vmatpush.msra.mxu0 0.0
      %247 = vmatpush.msra.mxu0 0.0
      %248 = vmatpush.msra.mxu0 0.0
      %249 = vmatpush.msra.mxu0 0.0
      %250 = vmatpush.msra.mxu0 0.0
      %251 = vmatpush.msra.mxu0 0.0
      %252 = vmatpush.msra.mxu0 0.0
      %253 = vmatpush.msra.mxu0 0.0
      %254 = vmatpush.msra.mxu0 0.0
      %255 = vmatpush.msra.mxu0 0.0
      %256 = vmatpush.msra.mxu0 0.0
      %257 = vmatpush.msra.mxu0 0.0
      %258 = vmatpush.msra.mxu0 0.0
      %259 = vmatpush.msra.mxu0 %v89
      %260 = vmatpush.msra.mxu0 %v88
      %261 = vmatmul.f32.gmra.mxu0 %v202
      %v262 = vpop.f32.mrf.mxu0
      %v263 = vadd.f32 %v243, %v262
      %264 = vdwg.mxu0
      %v265 = vadd.f32 %v263, %v117
      %266 = vmatpush.msra.mxu0 0.0
      %267 = vmatpush.msra.mxu0 0.0
      %268 = vmatpush.msra.mxu0 0.0
      %269 = vmatpush.msra.mxu0 0.0
      %270 = vmatpush.msra.mxu0 0.0
      %271 = vmatpush.msra.mxu0 0.0
      %272 = vmatpush.msra.mxu0 0.0
      %273 = vmatpush.msra.mxu0 0.0
      %274 = vmatpush.msra.mxu0 0.0
      %275 = vmatpush.msra.mxu0 0.0
      %276 = vmatpush.msra.mxu0 0.0
      %277 = vmatpush.msra.mxu0 0.0
      %278 = vmatpush.msra.mxu0 %v109
      %279 = vmatpush.msra.mxu0 %v108
      %280 = vmatpush.msra.mxu0 %v107
      %281 = vmatpush.msra.mxu0 %v106
      %282 = vmatmul.f32.gmra.mxu0 %v178
      %v283 = vpop.f32.mrf.mxu0
      %v284 = vadd.f32 0.0, %v283
      %285 = vdwg.mxu0
      %286 = vmatpush.msra.mxu0 0.0
      %287 = vmatpush.msra.mxu0 0.0
      %288 = vmatpush.msra.mxu0 0.0
      %289 = vmatpush.msra.mxu0 0.0
      %290 = vmatpush.msra.mxu0 0.0
      %291 = vmatpush.msra.mxu0 0.0
      %292 = vmatpush.msra.mxu0 0.0
      %293 = vmatpush.msra.mxu0 0.0
      %294 = vmatpush.msra.mxu0 0.0
      %295 = vmatpush.msra.mxu0 0.0
      %296 = vmatpush.msra.mxu0 0.0
      %297 = vmatpush.msra.mxu0 0.0
      %298 = vmatpush.msra.mxu0 0.0
      %299 = vmatpush.msra.mxu0 0.0
      %300 = vmatpush.msra.mxu0 %v92
      %301 = vmatpush.msra.mxu0 %v91
      %302 = vmatmul.f32.gmra.mxu0 %v202
      %v303 = vpop.f32.mrf.mxu0
      %v304 = vadd.f32 %v284, %v303
      %305 = vdwg.mxu0
      %v306 = vadd.f32 %v304, %v119
      %307 = vmatpush.msra.mxu0 0.0
      %308 = vmatpush.msra.mxu0 0.0
      %309 = vmatpush.msra.mxu0 0.0
      %310 = vmatpush.msra.mxu0 0.0
      %311 = vmatpush.msra.mxu0 0.0
      %312 = vmatpush.msra.mxu0 0.0
      %313 = vmatpush.msra.mxu0 0.0
      %314 = vmatpush.msra.mxu0 0.0
      %315 = vmatpush.msra.mxu0 0.0
      %316 = vmatpush.msra.mxu0 0.0
      %317 = vmatpush.msra.mxu0 0.0
      %318 = vmatpush.msra.mxu0 0.0
      %319 = vmatpush.msra.mxu0 %v114
      %320 = vmatpush.msra.mxu0 %v113
      %321 = vmatpush.msra.mxu0 %v112
      %322 = vmatpush.msra.mxu0 %v111
      %323 = vmatmul.f32.gmra.mxu0 %v178
      %v324 = vpop.f32.mrf.mxu0
      %v325 = vadd.f32 0.0, %v324
      %326 = vdwg.mxu0
      %327 = vmatpush.msra.mxu0 0.0
      %328 = vmatpush.msra.mxu0 0.0
      %329 = vmatpush.msra.mxu0 0.0
      %330 = vmatpush.msra.mxu0 0.0
      %331 = vmatpush.msra.mxu0 0.0
      %332 = vmatpush.msra.mxu0 0.0
      %333 = vmatpush.msra.mxu0 0.0
      %334 = vmatpush.msra.mxu0 0.0
      %335 = vmatpush.msra.mxu0 0.0
      %336 = vmatpush.msra.mxu0 0.0
      %337 = vmatpush.msra.mxu0 0.0
      %338 = vmatpush.msra.mxu0 0.0
      %339 = vmatpush.msra.mxu0 0.0
      %340 = vmatpush.msra.mxu0 0.0
      %341 = vmatpush.msra.mxu0 %v95
      %342 = vmatpush.msra.mxu0 %v94
      %343 = vmatmul.f32.gmra.mxu0 %v202
      %v344 = vpop.f32.mrf.mxu0
      %v345 = vadd.f32 %v325, %v344
      %346 = vdwg.mxu0
      %v347 = vadd.f32 %v345, %v121
      %v349 = vsel %vm176, %v167, 0
      %351 = vmatpush.msra.mxu0 0.0
      %352 = vmatpush.msra.mxu0 0.0
      %353 = vmatpush.msra.mxu0 0.0
      %354 = vmatpush.msra.mxu0 0.0
      %355 = vmatpush.msra.mxu0 0.0
      %356 = vmatpush.msra.mxu0 0.0
      %357 = vmatpush.msra.mxu0 0.0
      %358 = vmatpush.msra.mxu0 0.0
      %359 = vmatpush.msra.mxu0 0.0
      %360 = vmatpush.msra.mxu0 0.0
      %361 = vmatpush.msra.mxu0 0.0
      %362 = vmatpush.msra.mxu0 0.0
      %363 = vmatpush.msra.mxu0 %v136
      %364 = vmatpush.msra.mxu0 %v135
      %365 = vmatpush.msra.mxu0 %v134
      %366 = vmatpush.msra.mxu0 %v133
      %367 = vmatmul.f32.gmra.mxu0 %v349
      %v368 = vpop.f32.mrf.mxu0
      %v369 = vadd.f32 0.0, %v368
      %370 = vdwg.mxu0
      %v372 = vsel %vm200, %v175, 0
      %374 = vmatpush.msra.mxu0 0.0
      %375 = vmatpush.msra.mxu0 0.0
      %376 = vmatpush.msra.mxu0 0.0
      %377 = vmatpush.msra.mxu0 0.0
      %378 = vmatpush.msra.mxu0 0.0
      %379 = vmatpush.msra.mxu0 0.0
      %380 = vmatpush.msra.mxu0 0.0
      %381 = vmatpush.msra.mxu0 0.0
      %382 = vmatpush.msra.mxu0 0.0
      %383 = vmatpush.msra.mxu0 0.0
      %384 = vmatpush.msra.mxu0 0.0
      %385 = vmatpush.msra.mxu0 0.0
      %386 = vmatpush.msra.mxu0 0.0
      %387 = vmatpush.msra.mxu0 0.0
      %388 = vmatpush.msra.mxu0 %v123
      %389 = vmatpush.msra.mxu0 %v122
      %390 = vmatmul.f32.gmra.mxu0 %v372
      %v391 = vpop.f32.mrf.mxu0
      %v392 = vadd.f32 %v369, %v391
      %393 = vdwg.mxu0
      %v394 = vadd.f32 %v392, %v152
      %395 = vmatpush.msra.mxu0 0.0
      %396 = vmatpush.msra.mxu0 0.0
      %397 = vmatpush.msra.mxu0 0.0
      %398 = vmatpush.msra.mxu0 0.0
      %399 = vmatpush.msra.mxu0 0.0
      %400 = vmatpush.msra.mxu0 0.0
      %401 = vmatpush.msra.mxu0 0.0
      %402 = vmatpush.msra.mxu0 0.0
      %403 = vmatpush.msra.mxu0 0.0
      %404 = vmatpush.msra.mxu0 0.0
      %405 = vmatpush.msra.mxu0 0.0
      %406 = vmatpush.msra.mxu0 0.0
      %407 = vmatpush.msra.mxu0 %v141
      %408 = vmatpush.msra.mxu0 %v140
      %409 = vmatpush.msra.mxu0 %v139
      %410 = vmatpush.msra.mxu0 %v138
      %411 = vmatmul.f32.gmra.mxu0 %v349
      %v412 = vpop.f32.mrf.mxu0
      %v413 = vadd.f32 0.0, %v412
      %414 = vdwg.mxu0
      %415 = vmatpush.msra.mxu0 0.0
      %416 = vmatpush.msra.mxu0 0.0
      %417 = vmatpush.msra.mxu0 0.0
      %418 = vmatpush.msra.mxu0 0.0
      %419 = vmatpush.msra.mxu0 0.0
      %420 = vmatpush.msra.mxu0 0.0
      %421 = vmatpush.msra.mxu0 0.0
      %422 = vmatpush.msra.mxu0 0.0
      %423 = vmatpush.msra.mxu0 0.0
      %424 = vmatpush.msra.mxu0 0.0
      %425 = vmatpush.msra.mxu0 0.0
      %426 = vmatpush.msra.mxu0 0.0
      %427 = vmatpush.msra.mxu0 0.0
      %428 = vmatpush.msra.mxu0 0.0
      %429 = vmatpush.msra.mxu0 %v126
      %430 = vmatpush.msra.mxu0 %v125
      %431 = vmatmul.f32.gmra.mxu0 %v372
      %v432 = vpop.f32.mrf.mxu0
      %v433 = vadd.f32 %v413, %v432
      %434 = vdwg.mxu0
      %v435 = vadd.f32 %v433, %v154
      %436 = vmatpush.msra.mxu0 0.0
      %437 = vmatpush.msra.mxu0 0.0
      %438 = vmatpush.msra.mxu0 0.0
      %439 = vmatpush.msra.mxu0 0.0
      %440 = vmatpush.msra.mxu0 0.0
      %441 = vmatpush.msra.mxu0 0.0
      %442 = vmatpush.msra.mxu0 0.0
      %443 = vmatpush.msra.mxu0 0.0
      %444 = vmatpush.msra.mxu0 0.0
      %445 = vmatpush.msra.mxu0 0.0
      %446 = vmatpush.msra.mxu0 0.0
      %447 = vmatpush.msra.mxu0 0.0
      %448 = vmatpush.msra.mxu0 %v146
      %449 = vmatpush.msra.mxu0 %v145
      %450 = vmatpush.msra.mxu0 %v144
      %451 = vmatpush.msra.mxu0 %v143
      %452 = vmatmul.f32.gmra.mxu0 %v349
      %v453 = vpop.f32.mrf.mxu0
      %v454 = vadd.f32 0.0, %v453
      %455 = vdwg.mxu0
      %456 = vmatpush.msra.mxu0 0.0
      %457 = vmatpush.msra.mxu0 0.0
      %458 = vmatpush.msra.mxu0 0.0
      %459 = vmatpush.msra.mxu0 0.0
      %460 = vmatpush.msra.mxu0 0.0
      %461 = vmatpush.msra.mxu0 0.0
      %462 = vmatpush.msra.mxu0 0.0
      %463 = vmatpush.msra.mxu0 0.0
      %464 = vmatpush.msra.mxu0 0.0
      %465 = vmatpush.msra.mxu0 0.0
      %466 = vmatpush.msra.mxu0 0.0
      %467 = vmatpush.msra.mxu0 0.0
      %468 = vmatpush.msra.mxu0 0.0
      %469 = vmatpush.msra.mxu0 0.0
      %470 = vmatpush.msra.mxu0 %v129
      %471 = vmatpush.msra.mxu0 %v128
      %472 = vmatmul.f32.gmra.mxu0 %v372
      %v473 = vpop.f32.mrf.mxu0
      %v474 = vadd.f32 %v454, %v473
      %475 = vdwg.mxu0
      %v476 = vadd.f32 %v474, %v156
      %477 = vmatpush.msra.mxu0 0.0
      %478 = vmatpush.msra.mxu0 0.0
      %479 = vmatpush.msra.mxu0 0.0
      %480 = vmatpush.msra.mxu0 0.0
      %481 = vmatpush.msra.mxu0 0.0
      %482 = vmatpush.msra.mxu0 0.0
      %483 = vmatpush.msra.mxu0 0.0
      %484 = vmatpush.msra.mxu0 0.0
      %485 = vmatpush.msra.mxu0 0.0
      %486 = vmatpush.msra.mxu0 0.0
      %487 = vmatpush.msra.mxu0 0.0
      %488 = vmatpush.msra.mxu0 0.0
      %489 = vmatpush.msra.mxu0 %v151
      %490 = vmatpush.msra.mxu0 %v150
      %491 = vmatpush.msra.mxu0 %v149
      %492 = vmatpush.msra.mxu0 %v148
      %493 = vmatmul.f32.gmra.mxu0 %v349
      %v494 = vpop.f32.mrf.mxu0
      %v495 = vadd.f32 0.0, %v494
      %496 = vdwg.mxu0
      %497 = vmatpush.msra.mxu0 0.0
      %498 = vmatpush.msra.mxu0 0.0
      %499 = vmatpush.msra.mxu0 0.0
      %500 = vmatpush.msra.mxu0 0.0
      %501 = vmatpush.msra.mxu0 0.0
      %502 = vmatpush.msra.mxu0 0.0
      %503 = vmatpush.msra.mxu0 0.0
      %504 = vmatpush.msra.mxu0 0.0
      %505 = vmatpush.msra.mxu0 0.0
      %506 = vmatpush.msra.mxu0 0.0
      %507 = vmatpush.msra.mxu0 0.0
      %508 = vmatpush.msra.mxu0 0.0
      %509 = vmatpush.msra.mxu0 0.0
      %510 = vmatpush.msra.mxu0 0.0
      %511 = vmatpush.msra.mxu0 %v132
      %512 = vmatpush.msra.mxu0 %v131
      %513 = vmatmul.f32.gmra.mxu0 %v372
      %v514 = vpop.f32.mrf.mxu0
      %v515 = vadd.f32 %v495, %v514
      %516 = vdwg.mxu0
      %v517 = vadd.f32 %v515, %v158
      %v518 = vxor.u32 %v224, 2147483648
      %v519 = vmul.f32 %v518, 1.442695
      %v520 = vpow.pop %v519
      %v521 = vadd.f32 %v520, 1.0
      %v522 = vrcp.pop %v521
      %v523 = vmul.f32 %v521, %v522
      %v524 = vsub.f32 1.0, %v523
      %v525 = vmul.f32 %v522, %v524
      %v526 = vadd.f32 %v522, %v525
      %vm527 = vweird.f32 %v521
      %vm528 = vweird.f32 %v522
      %vm529 = vmor %vm527, %vm528
      %v530 = vsel %vm529, %v522, %v526
      %v531 = vand.u32 2147483647, %v521
      %vm532 = vcmp.eq.f32.partialorder %v531, 8.507059e+37
      %v533 = vand.u32 %v521, 2147483648
      %v534 = vor.u32 1.1754944e-38, %v533
      %v535 = vsel %vm532, %v534, %v530
      %v536 = vmul.f32 1.0, %v535
      %v537 = vxor.u32 %v265, 2147483648
      %v538 = vmul.f32 %v537, 1.442695
      %v539 = vpow.pop %v538
      %v540 = vadd.f32 %v539, 1.0
      %v541 = vrcp.pop %v540
      %v542 = vmul.f32 %v540, %v541
      %v543 = vsub.f32 1.0, %v542
      %v544 = vmul.f32 %v541, %v543
      %v545 = vadd.f32 %v541, %v544
      %vm546 = vweird.f32 %v540
      %vm547 = vweird.f32 %v541
      %vm548 = vmor %vm546, %vm547
      %v549 = vsel %vm548, %v541, %v545
      %v550 = vand.u32 2147483647, %v540
      %vm551 = vcmp.eq.f32.partialorder %v550, 8.507059e+37
      %v552 = vand.u32 %v540, 2147483648
      %v553 = vor.u32 1.1754944e-38, %v552
      %v554 = vsel %vm551, %v553, %v549
      %v555 = vmul.f32 1.0, %v554
      %v556 = vtanh.pop %v306
      %v557 = vxor.u32 %v347, 2147483648
      %v558 = vmul.f32 %v557, 1.442695
      %v559 = vpow.pop %v558
      %v560 = vadd.f32 %v559, 1.0
      %v561 = vrcp.pop %v560
      %v562 = vmul.f32 %v560, %v561
      %v563 = vsub.f32 1.0, %v562
      %v564 = vmul.f32 %v561, %v563
      %v565 = vadd.f32 %v561, %v564
      %vm566 = vweird.f32 %v560
      %vm567 = vweird.f32 %v561
      %vm568 = vmor %vm566, %vm567
      %v569 = vsel %vm568, %v561, %v565
      %v570 = vand.u32 2147483647, %v560
      %vm571 = vcmp.eq.f32.partialorder %v570, 8.507059e+37
      %v572 = vand.u32 %v560, 2147483648
      %v573 = vor.u32 1.1754944e-38, %v572
      %v574 = vsel %vm571, %v573, %v569
      %v575 = vmul.f32 1.0, %v574
      %v576 = vmul.f32 %v555, %v166
      %v577 = vmul.f32 %v536, %v556
      %v578 = vadd.f32 %v576, %v577
      %v579 = vtanh.pop %v578
      %v580 = vmul.f32 %v575, %v579
      %v581 = vxor.u32 %v394, 2147483648
      %v582 = vmul.f32 %v581, 1.442695
      %v583 = vpow.pop %v582
      %v584 = vadd.f32 %v583, 1.0
      %v585 = vrcp.pop %v584
      %v586 = vmul.f32 %v584, %v585
      %v587 = vsub.f32 1.0, %v586
      %v588 = vmul.f32 %v585, %v587
      %v589 = vadd.f32 %v585, %v588
      %vm590 = vweird.f32 %v584
      %vm591 = vweird.f32 %v585
      %vm592 = vmor %vm590, %vm591
      %v593 = vsel %vm592, %v585, %v589
      %v594 = vand.u32 2147483647, %v584
      %vm595 = vcmp.eq.f32.partialorder %v594, 8.507059e+37
      %v596 = vand.u32 %v584, 2147483648
      %v597 = vor.u32 1.1754944e-38, %v596
      %v598 = vsel %vm595, %v597, %v593
      %v599 = vmul.f32 1.0, %v598
      %v600 = vxor.u32 %v435, 2147483648
      %v601 = vmul.f32 %v600, 1.442695
      %v602 = vpow.pop %v601
      %v603 = vadd.f32 %v602, 1.0
      %v604 = vrcp.pop %v603
      %v605 = vmul.f32 %v603, %v604
      %v606 = vsub.f32 1.0, %v605
      %v607 = vmul.f32 %v604, %v606
      %v608 = vadd.f32 %v604, %v607
      %vm609 = vweird.f32 %v603
      %vm610 = vweird.f32 %v604
      %vm611 = vmor %vm609, %vm610
      %v612 = vsel %vm611, %v604, %v608
      %v613 = vand.u32 2147483647, %v603
      %vm614 = vcmp.eq.f32.partialorder %v613, 8.507059e+37
      %v615 = vand.u32 %v603, 2147483648
      %v616 = vor.u32 1.1754944e-38, %v615
      %v617 = vsel %vm614, %v616, %v612
      %v618 = vmul.f32 1.0, %v617
      %v619 = vtanh.pop %v476
      %v620 = vxor.u32 %v517, 2147483648
      %v621 = vmul.f32 %v620, 1.442695
      %v622 = vpow.pop %v621
      %v623 = vadd.f32 %v622, 1.0
      %v624 = vrcp.pop %v623
      %v625 = vmul.f32 %v623, %v624
      %v626 = vsub.f32 1.0, %v625
      %v627 = vmul.f32 %v624, %v626
      %v628 = vadd.f32 %v624, %v627
      %vm629 = vweird.f32 %v623
      %vm630 = vweird.f32 %v624
      %vm631 = vmor %vm629, %vm630
      %v632 = vsel %vm631, %v624, %v628
      %v633 = vand.u32 2147483647, %v623
      %vm634 = vcmp.eq.f32.partialorder %v633, 8.507059e+37
      %v635 = vand.u32 %v623, 2147483648
      %v636 = vor.u32 1.1754944e-38, %v635
      %v637 = vsel %vm634, %v636, %v632
      %v638 = vmul.f32 1.0, %v637
      %v639 = vmul.f32 %v618, %v168
      %v640 = vmul.f32 %v599, %v619
      %v641 = vadd.f32 %v639, %v640
      %v642 = vtanh.pop %v641
      %v643 = vmul.f32 %v638, %v642
    $region106: #{music_vae_forward.1} parent=1 // loop_footer
      %s164 = sadd.s32 1, %s160
    $region107: #{music_vae_forward.1} parent=1 // loop_footer_branch
      %159 = sbr.rel target = $region103
    $region108: #{music_vae_forward.1} parent=1 // loop_exit
      _
    %v644 = vld [vmem:[%s8] sm:$0xff]
    %v645 = vld [vmem:[%s8 + $0x8] sm:$0xff]
    %v646 = vld [vmem:[%s8 + $0x10] sm:$0xff]
    %v647 = vld [vmem:[%s8 + $0x18] sm:$0xff]
    %v648 = vld [vmem:[%s9] sm:$0xff]
    %v649 = vld [vmem:[%s9 + $0x8] sm:$0xff]
    %v650 = vld [vmem:[%s9 + $0x10] sm:$0xff]
    %v651 = vld [vmem:[%s9 + $0x18] sm:$0xff]
    %vm652 = vcmask 261120
    %v654 = vsel %vm652, %v167, 0
    %656 = vmatpush.msra.mxu0 0.0
    %657 = vmatpush.msra.mxu0 0.0
    %658 = vmatpush.msra.mxu0 0.0
    %659 = vmatpush.msra.mxu0 0.0
    %660 = vmatpush.msra.mxu0 0.0
    %661 = vmatpush.msra.mxu0 0.0
    %662 = vmatpush.msra.mxu0 0.0
    %663 = vmatpush.msra.mxu0 0.0
    %664 = vmatpush.msra.mxu0 0.0
    %665 = vmatpush.msra.mxu0 0.0
    %666 = vmatpush.msra.mxu0 0.0
    %667 = vmatpush.msra.mxu0 0.0
    %668 = vmatpush.msra.mxu0 %v651
    %669 = vmatpush.msra.mxu0 %v650
    %670 = vmatpush.msra.mxu0 %v649
    %671 = vmatpush.msra.mxu0 %v648
    %672 = vmatmul.f32.gmra.mxu0 %v654
    %v673 = vpop.f32.mrf.mxu0
    %v674 = vadd.f32 0.0, %v673
    %675 = vdwg.mxu0
    %v677 = vsel %vm652, %v165, 0
    %679 = vmatpush.msra.mxu0 0.0
    %680 = vmatpush.msra.mxu0 0.0
    %681 = vmatpush.msra.mxu0 0.0
    %682 = vmatpush.msra.mxu0 0.0
    %683 = vmatpush.msra.mxu0 0.0
    %684 = vmatpush.msra.mxu0 0.0
    %685 = vmatpush.msra.mxu0 0.0
    %686 = vmatpush.msra.mxu0 0.0
    %687 = vmatpush.msra.mxu0 0.0
    %688 = vmatpush.msra.mxu0 0.0
    %689 = vmatpush.msra.mxu0 0.0
    %690 = vmatpush.msra.mxu0 0.0
    %691 = vmatpush.msra.mxu0 %v647
    %692 = vmatpush.msra.mxu0 %v646
    %693 = vmatpush.msra.mxu0 %v645
    %694 = vmatpush.msra.mxu0 %v644
    %695 = vmatmul.f32.gmra.mxu0 %v677
    %v696 = vpop.f32.mrf.mxu0
    %v697 = vadd.f32 %v674, %v696
    %698 = vdwg.mxu0
    %v699 = vld [vmem:[%s10] sm:$0x3]
    %v700 = vadd.f32 %v697, %v699
    %v701 = vld [vmem:[%s11] sm:$0xff]
    %v702 = vld [vmem:[%s11 + $0x8] sm:$0xff]
    %v703 = vld [vmem:[%s11 + $0x10] sm:$0xff]
    %v704 = vld [vmem:[%s11 + $0x18] sm:$0xff]
    %v705 = vld [vmem:[%s12] sm:$0xff]
    %v706 = vld [vmem:[%s12 + $0x8] sm:$0xff]
    %v707 = vld [vmem:[%s12 + $0x10] sm:$0xff]
    %v708 = vld [vmem:[%s12 + $0x18] sm:$0xff]
    %709 = vmatpush.msra.mxu0 0.0
    %710 = vmatpush.msra.mxu0 0.0
    %711 = vmatpush.msra.mxu0 0.0
    %712 = vmatpush.msra.mxu0 0.0
    %713 = vmatpush.msra.mxu0 0.0
    %714 = vmatpush.msra.mxu0 0.0
    %715 = vmatpush.msra.mxu0 0.0
    %716 = vmatpush.msra.mxu0 0.0
    %717 = vmatpush.msra.mxu0 0.0
    %718 = vmatpush.msra.mxu0 0.0
    %719 = vmatpush.msra.mxu0 0.0
    %720 = vmatpush.msra.mxu0 0.0
    %721 = vmatpush.msra.mxu0 %v708
    %722 = vmatpush.msra.mxu0 %v707
    %723 = vmatpush.msra.mxu0 %v706
    %724 = vmatpush.msra.mxu0 %v705
    %725 = vmatmul.f32.gmra.mxu0 %v654
    %v726 = vpop.f32.mrf.mxu0
    %v727 = vadd.f32 0.0, %v726
    %728 = vdwg.mxu0
    %729 = vmatpush.msra.mxu0 0.0
    %730 = vmatpush.msra.mxu0 0.0
    %731 = vmatpush.msra.mxu0 0.0
    %732 = vmatpush.msra.mxu0 0.0
    %733 = vmatpush.msra.mxu0 0.0
    %734 = vmatpush.msra.mxu0 0.0
    %735 = vmatpush.msra.mxu0 0.0
    %736 = vmatpush.msra.mxu0 0.0
    %737 = vmatpush.msra.mxu0 0.0
    %738 = vmatpush.msra.mxu0 0.0
    %739 = vmatpush.msra.mxu0 0.0
    %740 = vmatpush.msra.mxu0 0.0
    %741 = vmatpush.msra.mxu0 %v704
    %742 = vmatpush.msra.mxu0 %v703
    %743 = vmatpush.msra.mxu0 %v702
    %744 = vmatpush.msra.mxu0 %v701
    %745 = vmatmul.f32.gmra.mxu0 %v677
    %v746 = vpop.f32.mrf.mxu0
    %v747 = vadd.f32 %v727, %v746
    %748 = vdwg.mxu0
    %v749 = vld [vmem:[%s13] sm:$0x3]
    %v750 = vadd.f32 %v747, %v749
    %vm751 = vcmask 123904
    %752 = vst.msk [vmem:[#allocation2] sm:$0x3] %vm751, %v700
    %753 = vst.msk [vmem:[#allocation4] sm:$0x3] %vm751, %v750
    %v754 = vmul.f32 %v750, 2.0
    %v755 = vmul.f32 %v754, 1.442695
    %v756 = vpow.pop %v755
    %v757 = vld [vmem:[%s1] sm:$0x3]
    %v758 = vmul.f32 %v756, %v757
    %v759 = vadd.f32 %v700, %v758
    %v760 = vld [vmem:[%s15] sm:$0xff]
    %v761 = vld [vmem:[%s15 + $0x8] sm:$0xff]
    %v762 = vld [vmem:[%s15 + $0x10] sm:$0xff]
    %v763 = vld [vmem:[%s15 + $0x18] sm:$0xff]
    %s764 = scalar_lea.vmem %s15, 32
    %v765 = vld [vmem:[%s764] sm:$0xff]
    %v766 = vld [vmem:[%s764 + $0x8] sm:$0xff]
    %v767 = vld [vmem:[%s764 + $0x10] sm:$0xff]
    %v768 = vld [vmem:[%s764 + $0x18] sm:$0xff]
    %s769 = scalar_lea.vmem %s15, 64
    %v770 = vld [vmem:[%s769] sm:$0xff]
    %v771 = vld [vmem:[%s769 + $0x8] sm:$0xff]
    %v772 = vld [vmem:[%s769 + $0x10] sm:$0xff]
    %v773 = vld [vmem:[%s769 + $0x18] sm:$0xff]
    %s774 = scalar_lea.vmem %s15, 96
    %v775 = vld [vmem:[%s774] sm:$0xff]
    %v776 = vld [vmem:[%s774 + $0x8] sm:$0xff]
    %v777 = vld [vmem:[%s774 + $0x10] sm:$0xff]
    %v778 = vld [vmem:[%s774 + $0x18] sm:$0xff]
    %v779 = vld [vmem:[%s14] sm:$0xff]
    %v780 = vld [vmem:[%s14 + $0x8] sm:$0xff]
    %v781 = vld [vmem:[%s16] sm:$0x3]
    %vm782 = vcmask 130048
    %v784 = vsel %vm782, %v759, 0
    %786 = vmatpush.msra.mxu0 0.0
    %787 = vmatpush.msra.mxu0 0.0
    %788 = vmatpush.msra.mxu0 0.0
    %789 = vmatpush.msra.mxu0 0.0
    %790 = vmatpush.msra.mxu0 0.0
    %791 = vmatpush.msra.mxu0 0.0
    %792 = vmatpush.msra.mxu0 0.0
    %793 = vmatpush.msra.mxu0 0.0
    %794 = vmatpush.msra.mxu0 0.0
    %795 = vmatpush.msra.mxu0 0.0
    %796 = vmatpush.msra.mxu0 0.0
    %797 = vmatpush.msra.mxu0 0.0
    %798 = vmatpush.msra.mxu0 0.0
    %799 = vmatpush.msra.mxu0 0.0
    %800 = vmatpush.msra.mxu0 %v780
    %801 = vmatpush.msra.mxu0 %v779
    %802 = vmatmul.f32.gmra.mxu0 %v784
    %v803 = vpop.f32.mrf.mxu0
    %v804 = vadd.f32 %v781, %v803
    %805 = vdwg.mxu0
    %s806 = scalar_lea.vmem %s14, 16
    %v807 = vld [vmem:[%s806] sm:$0xff]
    %v808 = vld [vmem:[%s806 + $0x8] sm:$0xff]
    %s809 = scalar_lea.vmem %s16, 2
    %v810 = vld [vmem:[%s809] sm:$0x3]
    %811 = vmatpush.msra.mxu0 0.0
    %812 = vmatpush.msra.mxu0 0.0
    %813 = vmatpush.msra.mxu0 0.0
    %814 = vmatpush.msra.mxu0 0.0
    %815 = vmatpush.msra.mxu0 0.0
    %816 = vmatpush.msra.mxu0 0.0
    %817 = vmatpush.msra.mxu0 0.0
    %818 = vmatpush.msra.mxu0 0.0
    %819 = vmatpush.msra.mxu0 0.0
    %820 = vmatpush.msra.mxu0 0.0
    %821 = vmatpush.msra.mxu0 0.0
    %822 = vmatpush.msra.mxu0 0.0
    %823 = vmatpush.msra.mxu0 0.0
    %824 = vmatpush.msra.mxu0 0.0
    %825 = vmatpush.msra.mxu0 %v808
    %826 = vmatpush.msra.mxu0 %v807
    %827 = vmatmul.f32.gmra.mxu0 %v784
    %v828 = vpop.f32.mrf.mxu0
    %v829 = vadd.f32 %v810, %v828
    %830 = vdwg.mxu0
    %s831 = scalar_lea.vmem %s14, 32
    %v832 = vld [vmem:[%s831] sm:$0xff]
    %v833 = vld [vmem:[%s831 + $0x8] sm:$0xff]
    %s834 = scalar_lea.vmem %s16, 4
    %v835 = vld [vmem:[%s834] sm:$0x3]
    %836 = vmatpush.msra.mxu0 0.0
    %837 = vmatpush.msra.mxu0 0.0
    %838 = vmatpush.msra.mxu0 0.0
    %839 = vmatpush.msra.mxu0 0.0
    %840 = vmatpush.msra.mxu0 0.0
    %841 = vmatpush.msra.mxu0 0.0
    %842 = vmatpush.msra.mxu0 0.0
    %843 = vmatpush.msra.mxu0 0.0
    %844 = vmatpush.msra.mxu0 0.0
    %845 = vmatpush.msra.mxu0 0.0
    %846 = vmatpush.msra.mxu0 0.0
    %847 = vmatpush.msra.mxu0 0.0
    %848 = vmatpush.msra.mxu0 0.0
    %849 = vmatpush.msra.mxu0 0.0
    %850 = vmatpush.msra.mxu0 %v833
    %851 = vmatpush.msra.mxu0 %v832
    %852 = vmatmul.f32.gmra.mxu0 %v784
    %v853 = vpop.f32.mrf.mxu0
    %v854 = vadd.f32 %v835, %v853
    %855 = vdwg.mxu0
    %s856 = scalar_lea.vmem %s14, 48
    %v857 = vld [vmem:[%s856] sm:$0xff]
    %v858 = vld [vmem:[%s856 + $0x8] sm:$0xff]
    %s859 = scalar_lea.vmem %s16, 6
    %v860 = vld [vmem:[%s859] sm:$0x3]
    %861 = vmatpush.msra.mxu0 0.0
    %862 = vmatpush.msra.mxu0 0.0
    %863 = vmatpush.msra.mxu0 0.0
    %864 = vmatpush.msra.mxu0 0.0
    %865 = vmatpush.msra.mxu0 0.0
    %866 = vmatpush.msra.mxu0 0.0
    %867 = vmatpush.msra.mxu0 0.0
    %868 = vmatpush.msra.mxu0 0.0
    %869 = vmatpush.msra.mxu0 0.0
    %870 = vmatpush.msra.mxu0 0.0
    %871 = vmatpush.msra.mxu0 0.0
    %872 = vmatpush.msra.mxu0 0.0
    %873 = vmatpush.msra.mxu0 0.0
    %874 = vmatpush.msra.mxu0 0.0
    %875 = vmatpush.msra.mxu0 %v858
    %876 = vmatpush.msra.mxu0 %v857
    %877 = vmatmul.f32.gmra.mxu0 %v784
    %v878 = vpop.f32.mrf.mxu0
    %v879 = vadd.f32 %v860, %v878
    %880 = vdwg.mxu0
    %v881 = vld [vmem:[%s17] sm:$0xff]
    %v882 = vld [vmem:[%s17 + $0x8] sm:$0xff]
    %v883 = vld [vmem:[%s17 + $0x10] sm:$0xff]
    %v884 = vld [vmem:[%s17 + $0x18] sm:$0xff]
    %v885 = vld [vmem:[%s18] sm:$0x3]
    %v887 = vsel %vm652, 0.0, 0
    %889 = vmatpush.msra.mxu0 0.0
    %890 = vmatpush.msra.mxu0 0.0
    %891 = vmatpush.msra.mxu0 0.0
    %892 = vmatpush.msra.mxu0 0.0
    %893 = vmatpush.msra.mxu0 0.0
    %894 = vmatpush.msra.mxu0 0.0
    %895 = vmatpush.msra.mxu0 0.0
    %896 = vmatpush.msra.mxu0 0.0
    %897 = vmatpush.msra.mxu0 0.0
    %898 = vmatpush.msra.mxu0 0.0
    %899 = vmatpush.msra.mxu0 0.0
    %900 = vmatpush.msra.mxu0 0.0
    %901 = vmatpush.msra.mxu0 %v763
    %902 = vmatpush.msra.mxu0 %v762
    %903 = vmatpush.msra.mxu0 %v761
    %904 = vmatpush.msra.mxu0 %v760
    %905 = vmatmul.f32.gmra.mxu0 %v887
    %v906 = vpop.f32.mrf.mxu0
    %v907 = vadd.f32 0.0, %v906
    %908 = vdwg.mxu0
    %v909 = vadd.f32 %v804, %v907
    %910 = vmatpush.msra.mxu0 0.0
    %911 = vmatpush.msra.mxu0 0.0
    %912 = vmatpush.msra.mxu0 0.0
    %913 = vmatpush.msra.mxu0 0.0
    %914 = vmatpush.msra.mxu0 0.0
    %915 = vmatpush.msra.mxu0 0.0
    %916 = vmatpush.msra.mxu0 0.0
    %917 = vmatpush.msra.mxu0 0.0
    %918 = vmatpush.msra.mxu0 0.0
    %919 = vmatpush.msra.mxu0 0.0
    %920 = vmatpush.msra.mxu0 0.0
    %921 = vmatpush.msra.mxu0 0.0
    %922 = vmatpush.msra.mxu0 %v768
    %923 = vmatpush.msra.mxu0 %v767
    %924 = vmatpush.msra.mxu0 %v766
    %925 = vmatpush.msra.mxu0 %v765
    %926 = vmatmul.f32.gmra.mxu0 %v887
    %v927 = vpop.f32.mrf.mxu0
    %v928 = vadd.f32 0.0, %v927
    %929 = vdwg.mxu0
    %v930 = vadd.f32 %v829, %v928
    %931 = vmatpush.msra.mxu0 0.0
    %932 = vmatpush.msra.mxu0 0.0
    %933 = vmatpush.msra.mxu0 0.0
    %934 = vmatpush.msra.mxu0 0.0
    %935 = vmatpush.msra.mxu0 0.0
    %936 = vmatpush.msra.mxu0 0.0
    %937 = vmatpush.msra.mxu0 0.0
    %938 = vmatpush.msra.mxu0 0.0
    %939 = vmatpush.msra.mxu0 0.0
    %940 = vmatpush.msra.mxu0 0.0
    %941 = vmatpush.msra.mxu0 0.0
    %942 = vmatpush.msra.mxu0 0.0
    %943 = vmatpush.msra.mxu0 %v773
    %944 = vmatpush.msra.mxu0 %v772
    %945 = vmatpush.msra.mxu0 %v771
    %946 = vmatpush.msra.mxu0 %v770
    %947 = vmatmul.f32.gmra.mxu0 %v887
    %v948 = vpop.f32.mrf.mxu0
    %v949 = vadd.f32 0.0, %v948
    %950 = vdwg.mxu0
    %v951 = vadd.f32 %v854, %v949
    %952 = vmatpush.msra.mxu0 0.0
    %953 = vmatpush.msra.mxu0 0.0
    %954 = vmatpush.msra.mxu0 0.0
    %955 = vmatpush.msra.mxu0 0.0
    %956 = vmatpush.msra.mxu0 0.0
    %957 = vmatpush.msra.mxu0 0.0
    %958 = vmatpush.msra.mxu0 0.0
    %959 = vmatpush.msra.mxu0 0.0
    %960 = vmatpush.msra.mxu0 0.0
    %961 = vmatpush.msra.mxu0 0.0
    %962 = vmatpush.msra.mxu0 0.0
    %963 = vmatpush.msra.mxu0 0.0
    %964 = vmatpush.msra.mxu0 %v778
    %965 = vmatpush.msra.mxu0 %v777
    %966 = vmatpush.msra.mxu0 %v776
    %967 = vmatpush.msra.mxu0 %v775
    %968 = vmatmul.f32.gmra.mxu0 %v887
    %v969 = vpop.f32.mrf.mxu0
    %v970 = vadd.f32 0.0, %v969
    %971 = vdwg.mxu0
    %v972 = vadd.f32 %v879, %v970
    %v973 = vxor.u32 %v909, 2147483648
    %v974 = vmul.f32 %v973, 1.442695
    %v975 = vpow.pop %v974
    %v976 = vadd.f32 %v975, 1.0
    %v977 = vrcp.pop %v976
    %v978 = vmul.f32 %v976, %v977
    %v979 = vsub.f32 1.0, %v978
    %v980 = vmul.f32 %v977, %v979
    %v981 = vadd.f32 %v977, %v980
    %vm982 = vweird.f32 %v976
    %vm983 = vweird.f32 %v977
    %vm984 = vmor %vm982, %vm983
    %v985 = vsel %vm984, %v977, %v981
    %v986 = vand.u32 2147483647, %v976
    %vm987 = vcmp.eq.f32.partialorder %v986, 8.507059e+37
    %v988 = vand.u32 %v976, 2147483648
    %v989 = vor.u32 1.1754944e-38, %v988
    %v990 = vsel %vm987, %v989, %v985
    %v991 = vmul.f32 1.0, %v990
    %v992 = vxor.u32 %v930, 2147483648
    %v993 = vmul.f32 %v992, 1.442695
    %v994 = vpow.pop %v993
    %v995 = vadd.f32 %v994, 1.0
    %v996 = vrcp.pop %v995
    %v997 = vmul.f32 %v995, %v996
    %v998 = vsub.f32 1.0, %v997
    %v999 = vmul.f32 %v996, %v998
    %v1000 = vadd.f32 %v996, %v999
    %vm1001 = vweird.f32 %v995
    %vm1002 = vweird.f32 %v996
    %vm1003 = vmor %vm1001, %vm1002
    %v1004 = vsel %vm1003, %v996, %v1000
    %v1005 = vand.u32 2147483647, %v995
    %vm1006 = vcmp.eq.f32.partialorder %v1005, 8.507059e+37
    %v1007 = vand.u32 %v995, 2147483648
    %v1008 = vor.u32 1.1754944e-38, %v1007
    %v1009 = vsel %vm1006, %v1008, %v1004
    %v1010 = vmul.f32 1.0, %v1009
    %v1011 = vtanh.pop %v951
    %v1012 = vxor.u32 %v972, 2147483648
    %v1013 = vmul.f32 %v1012, 1.442695
    %v1014 = vpow.pop %v1013
    %v1015 = vadd.f32 %v1014, 1.0
    %v1016 = vrcp.pop %v1015
    %v1017 = vmul.f32 %v1015, %v1016
    %v1018 = vsub.f32 1.0, %v1017
    %v1019 = vmul.f32 %v1016, %v1018
    %v1020 = vadd.f32 %v1016, %v1019
    %vm1021 = vweird.f32 %v1015
    %vm1022 = vweird.f32 %v1016
    %vm1023 = vmor %vm1021, %vm1022
    %v1024 = vsel %vm1023, %v1016, %v1020
    %v1025 = vand.u32 2147483647, %v1015
    %vm1026 = vcmp.eq.f32.partialorder %v1025, 8.507059e+37
    %v1027 = vand.u32 %v1015, 2147483648
    %v1028 = vor.u32 1.1754944e-38, %v1027
    %v1029 = vsel %vm1026, %v1028, %v1024
    %v1030 = vmul.f32 1.0, %v1029
    %v1031 = vmul.f32 %v1010, 0.0
    %v1032 = vmul.f32 %v991, %v1011
    %v1033 = vadd.f32 %v1031, %v1032
    %v1034 = vtanh.pop %v1033
    %v1035 = vmul.f32 %v1030, %v1034
    %v1037 = vsel %vm652, %v1035, 0
    %1039 = vmatpush.msra.mxu0 0.0
    %1040 = vmatpush.msra.mxu0 0.0
    %1041 = vmatpush.msra.mxu0 0.0
    %1042 = vmatpush.msra.mxu0 0.0
    %1043 = vmatpush.msra.mxu0 0.0
    %1044 = vmatpush.msra.mxu0 0.0
    %1045 = vmatpush.msra.mxu0 0.0
    %1046 = vmatpush.msra.mxu0 0.0
    %1047 = vmatpush.msra.mxu0 0.0
    %1048 = vmatpush.msra.mxu0 0.0
    %1049 = vmatpush.msra.mxu0 0.0
    %1050 = vmatpush.msra.mxu0 0.0
    %1051 = vmatpush.msra.mxu0 %v884
    %1052 = vmatpush.msra.mxu0 %v883
    %1053 = vmatpush.msra.mxu0 %v882
    %1054 = vmatpush.msra.mxu0 %v881
    %1055 = vmatmul.f32.gmra.mxu0 %v1037
    %v1056 = vpop.f32.mrf.mxu0
    %v1057 = vadd.f32 %v885, %v1056
    %1058 = vdwg.mxu0
    %v1059 = vtanh.pop %v1057
    %1060 = vmatpush.msra.mxu0 0.0
    %1061 = vmatpush.msra.mxu0 0.0
    %1062 = vmatpush.msra.mxu0 0.0
    %1063 = vmatpush.msra.mxu0 0.0
    %1064 = vmatpush.msra.mxu0 0.0
    %1065 = vmatpush.msra.mxu0 0.0
    %1066 = vmatpush.msra.mxu0 0.0
    %1067 = vmatpush.msra.mxu0 0.0
    %1068 = vmatpush.msra.mxu0 0.0
    %1069 = vmatpush.msra.mxu0 0.0
    %1070 = vmatpush.msra.mxu0 0.0
    %1071 = vmatpush.msra.mxu0 0.0
    %1072 = vmatpush.msra.mxu0 %v763
    %1073 = vmatpush.msra.mxu0 %v762
    %1074 = vmatpush.msra.mxu0 %v761
    %1075 = vmatpush.msra.mxu0 %v760
    %1076 = vmatmul.f32.gmra.mxu0 %v1037
    %v1077 = vpop.f32.mrf.mxu0
    %v1078 = vadd.f32 0.0, %v1077
    %1079 = vdwg.mxu0
    %v1080 = vadd.f32 %v804, %v1078
    %1081 = vmatpush.msra.mxu0 0.0
    %1082 = vmatpush.msra.mxu0 0.0
    %1083 = vmatpush.msra.mxu0 0.0
    %1084 = vmatpush.msra.mxu0 0.0
    %1085 = vmatpush.msra.mxu0 0.0
    %1086 = vmatpush.msra.mxu0 0.0
    %1087 = vmatpush.msra.mxu0 0.0
    %1088 = vmatpush.msra.mxu0 0.0
    %1089 = vmatpush.msra.mxu0 0.0
    %1090 = vmatpush.msra.mxu0 0.0
    %1091 = vmatpush.msra.mxu0 0.0
    %1092 = vmatpush.msra.mxu0 0.0
    %1093 = vmatpush.msra.mxu0 %v768
    %1094 = vmatpush.msra.mxu0 %v767
    %1095 = vmatpush.msra.mxu0 %v766
    %1096 = vmatpush.msra.mxu0 %v765
    %1097 = vmatmul.f32.gmra.mxu0 %v1037
    %v1098 = vpop.f32.mrf.mxu0
    %v1099 = vadd.f32 0.0, %v1098
    %1100 = vdwg.mxu0
    %v1101 = vadd.f32 %v829, %v1099
    %1102 = vmatpush.msra.mxu0 0.0
    %1103 = vmatpush.msra.mxu0 0.0
    %1104 = vmatpush.msra.mxu0 0.0
    %1105 = vmatpush.msra.mxu0 0.0
    %1106 = vmatpush.msra.mxu0 0.0
    %1107 = vmatpush.msra.mxu0 0.0
    %1108 = vmatpush.msra.mxu0 0.0
    %1109 = vmatpush.msra.mxu0 0.0
    %1110 = vmatpush.msra.mxu0 0.0
    %1111 = vmatpush.msra.mxu0 0.0
    %1112 = vmatpush.msra.mxu0 0.0
    %1113 = vmatpush.msra.mxu0 0.0
    %1114 = vmatpush.msra.mxu0 %v773
    %1115 = vmatpush.msra.mxu0 %v772
    %1116 = vmatpush.msra.mxu0 %v771
    %1117 = vmatpush.msra.mxu0 %v770
    %1118 = vmatmul.f32.gmra.mxu0 %v1037
    %v1119 = vpop.f32.mrf.mxu0
    %v1120 = vadd.f32 0.0, %v1119
    %1121 = vdwg.mxu0
    %v1122 = vadd.f32 %v854, %v1120
    %1123 = vmatpush.msra.mxu0 0.0
    %1124 = vmatpush.msra.mxu0 0.0
    %1125 = vmatpush.msra.mxu0 0.0
    %1126 = vmatpush.msra.mxu0 0.0
    %1127 = vmatpush.msra.mxu0 0.0
    %1128 = vmatpush.msra.mxu0 0.0
    %1129 = vmatpush.msra.mxu0 0.0
    %1130 = vmatpush.msra.mxu0 0.0
    %1131 = vmatpush.msra.mxu0 0.0
    %1132 = vmatpush.msra.mxu0 0.0
    %1133 = vmatpush.msra.mxu0 0.0
    %1134 = vmatpush.msra.mxu0 0.0
    %1135 = vmatpush.msra.mxu0 %v778
    %1136 = vmatpush.msra.mxu0 %v777
    %1137 = vmatpush.msra.mxu0 %v776
    %1138 = vmatpush.msra.mxu0 %v775
    %1139 = vmatmul.f32.gmra.mxu0 %v1037
    %v1140 = vpop.f32.mrf.mxu0
    %v1141 = vadd.f32 0.0, %v1140
    %1142 = vdwg.mxu0
    %v1143 = vadd.f32 %v879, %v1141
    %v1144 = vxor.u32 %v1080, 2147483648
    %v1145 = vmul.f32 %v1144, 1.442695
    %v1146 = vpow.pop %v1145
    %v1147 = vadd.f32 %v1146, 1.0
    %v1148 = vrcp.pop %v1147
    %v1149 = vmul.f32 %v1147, %v1148
    %v1150 = vsub.f32 1.0, %v1149
    %v1151 = vmul.f32 %v1148, %v1150
    %v1152 = vadd.f32 %v1148, %v1151
    %vm1153 = vweird.f32 %v1147
    %vm1154 = vweird.f32 %v1148
    %vm1155 = vmor %vm1153, %vm1154
    %v1156 = vsel %vm1155, %v1148, %v1152
    %v1157 = vand.u32 2147483647, %v1147
    %vm1158 = vcmp.eq.f32.partialorder %v1157, 8.507059e+37
    %v1159 = vand.u32 %v1147, 2147483648
    %v1160 = vor.u32 1.1754944e-38, %v1159
    %v1161 = vsel %vm1158, %v1160, %v1156
    %v1162 = vmul.f32 1.0, %v1161
    %v1163 = vxor.u32 %v1101, 2147483648
    %v1164 = vmul.f32 %v1163, 1.442695
    %v1165 = vpow.pop %v1164
    %v1166 = vadd.f32 %v1165, 1.0
    %v1167 = vrcp.pop %v1166
    %v1168 = vmul.f32 %v1166, %v1167
    %v1169 = vsub.f32 1.0, %v1168
    %v1170 = vmul.f32 %v1167, %v1169
    %v1171 = vadd.f32 %v1167, %v1170
    %vm1172 = vweird.f32 %v1166
    %vm1173 = vweird.f32 %v1167
    %vm1174 = vmor %vm1172, %vm1173
    %v1175 = vsel %vm1174, %v1167, %v1171
    %v1176 = vand.u32 2147483647, %v1166
    %vm1177 = vcmp.eq.f32.partialorder %v1176, 8.507059e+37
    %v1178 = vand.u32 %v1166, 2147483648
    %v1179 = vor.u32 1.1754944e-38, %v1178
    %v1180 = vsel %vm1177, %v1179, %v1175
    %v1181 = vmul.f32 1.0, %v1180
    %v1182 = vtanh.pop %v1122
    %v1183 = vxor.u32 %v1143, 2147483648
    %v1184 = vmul.f32 %v1183, 1.442695
    %v1185 = vpow.pop %v1184
    %v1186 = vadd.f32 %v1185, 1.0
    %v1187 = vrcp.pop %v1186
    %v1188 = vmul.f32 %v1186, %v1187
    %v1189 = vsub.f32 1.0, %v1188
    %v1190 = vmul.f32 %v1187, %v1189
    %v1191 = vadd.f32 %v1187, %v1190
    %vm1192 = vweird.f32 %v1186
    %vm1193 = vweird.f32 %v1187
    %vm1194 = vmor %vm1192, %vm1193
    %v1195 = vsel %vm1194, %v1187, %v1191
    %v1196 = vand.u32 2147483647, %v1186
    %vm1197 = vcmp.eq.f32.partialorder %v1196, 8.507059e+37
    %v1198 = vand.u32 %v1186, 2147483648
    %v1199 = vor.u32 1.1754944e-38, %v1198
    %v1200 = vsel %vm1197, %v1199, %v1195
    %v1201 = vmul.f32 1.0, %v1200
    %v1202 = vmul.f32 %v1181, %v1033
    %v1203 = vmul.f32 %v1162, %v1182
    %v1204 = vadd.f32 %v1202, %v1203
    %v1205 = vtanh.pop %v1204
    %v1206 = vmul.f32 %v1201, %v1205
    %v1208 = vsel %vm652, %v1206, 0
    %1210 = vmatpush.msra.mxu0 0.0
    %1211 = vmatpush.msra.mxu0 0.0
    %1212 = vmatpush.msra.mxu0 0.0
    %1213 = vmatpush.msra.mxu0 0.0
    %1214 = vmatpush.msra.mxu0 0.0
    %1215 = vmatpush.msra.mxu0 0.0
    %1216 = vmatpush.msra.mxu0 0.0
    %1217 = vmatpush.msra.mxu0 0.0
    %1218 = vmatpush.msra.mxu0 0.0
    %1219 = vmatpush.msra.mxu0 0.0
    %1220 = vmatpush.msra.mxu0 0.0
    %1221 = vmatpush.msra.mxu0 0.0
    %1222 = vmatpush.msra.mxu0 %v884
    %1223 = vmatpush.msra.mxu0 %v883
    %1224 = vmatpush.msra.mxu0 %v882
    %1225 = vmatpush.msra.mxu0 %v881
    %1226 = vmatmul.f32.gmra.mxu0 %v1208
    %v1227 = vpop.f32.mrf.mxu0
    %v1228 = vadd.f32 %v885, %v1227
    %1229 = vdwg.mxu0
    %v1230 = vtanh.pop %v1228
    %1231 = vmatpush.msra.mxu0 0.0
    %1232 = vmatpush.msra.mxu0 0.0
    %1233 = vmatpush.msra.mxu0 0.0
    %1234 = vmatpush.msra.mxu0 0.0
    %1235 = vmatpush.msra.mxu0 0.0
    %1236 = vmatpush.msra.mxu0 0.0
    %1237 = vmatpush.msra.mxu0 0.0
    %1238 = vmatpush.msra.mxu0 0.0
    %1239 = vmatpush.msra.mxu0 0.0
    %1240 = vmatpush.msra.mxu0 0.0
    %1241 = vmatpush.msra.mxu0 0.0
    %1242 = vmatpush.msra.mxu0 0.0
    %1243 = vmatpush.msra.mxu0 %v763
    %1244 = vmatpush.msra.mxu0 %v762
    %1245 = vmatpush.msra.mxu0 %v761
    %1246 = vmatpush.msra.mxu0 %v760
    %1247 = vmatmul.f32.gmra.mxu0 %v1208
    %v1248 = vpop.f32.mrf.mxu0
    %v1249 = vadd.f32 0.0, %v1248
    %1250 = vdwg.mxu0
    %v1251 = vadd.f32 %v804, %v1249
    %1252 = vmatpush.msra.mxu0 0.0
    %1253 = vmatpush.msra.mxu0 0.0
    %1254 = vmatpush.msra.mxu0 0.0
    %1255 = vmatpush.msra.mxu0 0.0
    %1256 = vmatpush.msra.mxu0 0.0
    %1257 = vmatpush.msra.mxu0 0.0
    %1258 = vmatpush.msra.mxu0 0.0
    %1259 = vmatpush.msra.mxu0 0.0
    %1260 = vmatpush.msra.mxu0 0.0
    %1261 = vmatpush.msra.mxu0 0.0
    %1262 = vmatpush.msra.mxu0 0.0
    %1263 = vmatpush.msra.mxu0 0.0
    %1264 = vmatpush.msra.mxu0 %v768
    %1265 = vmatpush.msra.mxu0 %v767
    %1266 = vmatpush.msra.mxu0 %v766
    %1267 = vmatpush.msra.mxu0 %v765
    %1268 = vmatmul.f32.gmra.mxu0 %v1208
    %v1269 = vpop.f32.mrf.mxu0
    %v1270 = vadd.f32 0.0, %v1269
    %1271 = vdwg.mxu0
    %v1272 = vadd.f32 %v829, %v1270
    %1273 = vmatpush.msra.mxu0 0.0
    %1274 = vmatpush.msra.mxu0 0.0
    %1275 = vmatpush.msra.mxu0 0.0
    %1276 = vmatpush.msra.mxu0 0.0
    %1277 = vmatpush.msra.mxu0 0.0
    %1278 = vmatpush.msra.mxu0 0.0
    %1279 = vmatpush.msra.mxu0 0.0
    %1280 = vmatpush.msra.mxu0 0.0
    %1281 = vmatpush.msra.mxu0 0.0
    %1282 = vmatpush.msra.mxu0 0.0
    %1283 = vmatpush.msra.mxu0 0.0
    %1284 = vmatpush.msra.mxu0 0.0
    %1285 = vmatpush.msra.mxu0 %v773
    %1286 = vmatpush.msra.mxu0 %v772
    %1287 = vmatpush.msra.mxu0 %v771
    %1288 = vmatpush.msra.mxu0 %v770
    %1289 = vmatmul.f32.gmra.mxu0 %v1208
    %v1290 = vpop.f32.mrf.mxu0
    %v1291 = vadd.f32 0.0, %v1290
    %1292 = vdwg.mxu0
    %v1293 = vadd.f32 %v854, %v1291
    %1294 = vmatpush.msra.mxu0 0.0
    %1295 = vmatpush.msra.mxu0 0.0
    %1296 = vmatpush.msra.mxu0 0.0
    %1297 = vmatpush.msra.mxu0 0.0
    %1298 = vmatpush.msra.mxu0 0.0
    %1299 = vmatpush.msra.mxu0 0.0
    %1300 = vmatpush.msra.mxu0 0.0
    %1301 = vmatpush.msra.mxu0 0.0
    %1302 = vmatpush.msra.mxu0 0.0
    %1303 = vmatpush.msra.mxu0 0.0
    %1304 = vmatpush.msra.mxu0 0.0
    %1305 = vmatpush.msra.mxu0 0.0
    %1306 = vmatpush.msra.mxu0 %v778
    %1307 = vmatpush.msra.mxu0 %v777
    %1308 = vmatpush.msra.mxu0 %v776
    %1309 = vmatpush.msra.mxu0 %v775
    %1310 = vmatmul.f32.gmra.mxu0 %v1208
    %v1311 = vpop.f32.mrf.mxu0
    %v1312 = vadd.f32 0.0, %v1311
    %1313 = vdwg.mxu0
    %v1314 = vadd.f32 %v879, %v1312
    %v1315 = vxor.u32 %v1251, 2147483648
    %v1316 = vmul.f32 %v1315, 1.442695
    %v1317 = vpow.pop %v1316
    %v1318 = vadd.f32 %v1317, 1.0
    %v1319 = vrcp.pop %v1318
    %v1320 = vmul.f32 %v1318, %v1319
    %v1321 = vsub.f32 1.0, %v1320
    %v1322 = vmul.f32 %v1319, %v1321
    %v1323 = vadd.f32 %v1319, %v1322
    %vm1324 = vweird.f32 %v1318
    %vm1325 = vweird.f32 %v1319
    %vm1326 = vmor %vm1324, %vm1325
    %v1327 = vsel %vm1326, %v1319, %v1323
    %v1328 = vand.u32 2147483647, %v1318
    %vm1329 = vcmp.eq.f32.partialorder %v1328, 8.507059e+37
    %v1330 = vand.u32 %v1318, 2147483648
    %v1331 = vor.u32 1.1754944e-38, %v1330
    %v1332 = vsel %vm1329, %v1331, %v1327
    %v1333 = vmul.f32 1.0, %v1332
    %v1334 = vxor.u32 %v1272, 2147483648
    %v1335 = vmul.f32 %v1334, 1.442695
    %v1336 = vpow.pop %v1335
    %v1337 = vadd.f32 %v1336, 1.0
    %v1338 = vrcp.pop %v1337
    %v1339 = vmul.f32 %v1337, %v1338
    %v1340 = vsub.f32 1.0, %v1339
    %v1341 = vmul.f32 %v1338, %v1340
    %v1342 = vadd.f32 %v1338, %v1341
    %vm1343 = vweird.f32 %v1337
    %vm1344 = vweird.f32 %v1338
    %vm1345 = vmor %vm1343, %vm1344
    %v1346 = vsel %vm1345, %v1338, %v1342
    %v1347 = vand.u32 2147483647, %v1337
    %vm1348 = vcmp.eq.f32.partialorder %v1347, 8.507059e+37
    %v1349 = vand.u32 %v1337, 2147483648
    %v1350 = vor.u32 1.1754944e-38, %v1349
    %v1351 = vsel %vm1348, %v1350, %v1346
    %v1352 = vmul.f32 1.0, %v1351
    %v1353 = vtanh.pop %v1293
    %v1354 = vxor.u32 %v1314, 2147483648
    %v1355 = vmul.f32 %v1354, 1.442695
    %v1356 = vpow.pop %v1355
    %v1357 = vadd.f32 %v1356, 1.0
    %v1358 = vrcp.pop %v1357
    %v1359 = vmul.f32 %v1357, %v1358
    %v1360 = vsub.f32 1.0, %v1359
    %v1361 = vmul.f32 %v1358, %v1360
    %v1362 = vadd.f32 %v1358, %v1361
    %vm1363 = vweird.f32 %v1357
    %vm1364 = vweird.f32 %v1358
    %vm1365 = vmor %vm1363, %vm1364
    %v1366 = vsel %vm1365, %v1358, %v1362
    %v1367 = vand.u32 2147483647, %v1357
    %vm1368 = vcmp.eq.f32.partialorder %v1367, 8.507059e+37
    %v1369 = vand.u32 %v1357, 2147483648
    %v1370 = vor.u32 1.1754944e-38, %v1369
    %v1371 = vsel %vm1368, %v1370, %v1366
    %v1372 = vmul.f32 1.0, %v1371
    %v1373 = vmul.f32 %v1352, %v1204
    %v1374 = vmul.f32 %v1333, %v1353
    %v1375 = vadd.f32 %v1373, %v1374
    %v1376 = vtanh.pop %v1375
    %v1377 = vmul.f32 %v1372, %v1376
    %v1379 = vsel %vm652, %v1377, 0
    %1381 = vmatpush.msra.mxu0 0.0
    %1382 = vmatpush.msra.mxu0 0.0
    %1383 = vmatpush.msra.mxu0 0.0
    %1384 = vmatpush.msra.mxu0 0.0
    %1385 = vmatpush.msra.mxu0 0.0
    %1386 = vmatpush.msra.mxu0 0.0
    %1387 = vmatpush.msra.mxu0 0.0
    %1388 = vmatpush.msra.mxu0 0.0
    %1389 = vmatpush.msra.mxu0 0.0
    %1390 = vmatpush.msra.mxu0 0.0
    %1391 = vmatpush.msra.mxu0 0.0
    %1392 = vmatpush.msra.mxu0 0.0
    %1393 = vmatpush.msra.mxu0 %v884
    %1394 = vmatpush.msra.mxu0 %v883
    %1395 = vmatpush.msra.mxu0 %v882
    %1396 = vmatpush.msra.mxu0 %v881
    %1397 = vmatmul.f32.gmra.mxu0 %v1379
    %v1398 = vpop.f32.mrf.mxu0
    %v1399 = vadd.f32 %v885, %v1398
    %1400 = vdwg.mxu0
    %v1401 = vtanh.pop %v1399
    %1402 = vmatpush.msra.mxu0 0.0
    %1403 = vmatpush.msra.mxu0 0.0
    %1404 = vmatpush.msra.mxu0 0.0
    %1405 = vmatpush.msra.mxu0 0.0
    %1406 = vmatpush.msra.mxu0 0.0
    %1407 = vmatpush.msra.mxu0 0.0
    %1408 = vmatpush.msra.mxu0 0.0
    %1409 = vmatpush.msra.mxu0 0.0
    %1410 = vmatpush.msra.mxu0 0.0
    %1411 = vmatpush.msra.mxu0 0.0
    %1412 = vmatpush.msra.mxu0 0.0
    %1413 = vmatpush.msra.mxu0 0.0
    %1414 = vmatpush.msra.mxu0 %v763
    %1415 = vmatpush.msra.mxu0 %v762
    %1416 = vmatpush.msra.mxu0 %v761
    %1417 = vmatpush.msra.mxu0 %v760
    %1418 = vmatmul.f32.gmra.mxu0 %v1379
    %v1419 = vpop.f32.mrf.mxu0
    %v1420 = vadd.f32 0.0, %v1419
    %1421 = vdwg.mxu0
    %v1422 = vadd.f32 %v804, %v1420
    %1423 = vmatpush.msra.mxu0 0.0
    %1424 = vmatpush.msra.mxu0 0.0
    %1425 = vmatpush.msra.mxu0 0.0
    %1426 = vmatpush.msra.mxu0 0.0
    %1427 = vmatpush.msra.mxu0 0.0
    %1428 = vmatpush.msra.mxu0 0.0
    %1429 = vmatpush.msra.mxu0 0.0
    %1430 = vmatpush.msra.mxu0 0.0
    %1431 = vmatpush.msra.mxu0 0.0
    %1432 = vmatpush.msra.mxu0 0.0
    %1433 = vmatpush.msra.mxu0 0.0
    %1434 = vmatpush.msra.mxu0 0.0
    %1435 = vmatpush.msra.mxu0 %v768
    %1436 = vmatpush.msra.mxu0 %v767
    %1437 = vmatpush.msra.mxu0 %v766
    %1438 = vmatpush.msra.mxu0 %v765
    %1439 = vmatmul.f32.gmra.mxu0 %v1379
    %v1440 = vpop.f32.mrf.mxu0
    %v1441 = vadd.f32 0.0, %v1440
    %1442 = vdwg.mxu0
    %v1443 = vadd.f32 %v829, %v1441
    %1444 = vmatpush.msra.mxu0 0.0
    %1445 = vmatpush.msra.mxu0 0.0
    %1446 = vmatpush.msra.mxu0 0.0
    %1447 = vmatpush.msra.mxu0 0.0
    %1448 = vmatpush.msra.mxu0 0.0
    %1449 = vmatpush.msra.mxu0 0.0
    %1450 = vmatpush.msra.mxu0 0.0
    %1451 = vmatpush.msra.mxu0 0.0
    %1452 = vmatpush.msra.mxu0 0.0
    %1453 = vmatpush.msra.mxu0 0.0
    %1454 = vmatpush.msra.mxu0 0.0
    %1455 = vmatpush.msra.mxu0 0.0
    %1456 = vmatpush.msra.mxu0 %v773
    %1457 = vmatpush.msra.mxu0 %v772
    %1458 = vmatpush.msra.mxu0 %v771
    %1459 = vmatpush.msra.mxu0 %v770
    %1460 = vmatmul.f32.gmra.mxu0 %v1379
    %v1461 = vpop.f32.mrf.mxu0
    %v1462 = vadd.f32 0.0, %v1461
    %1463 = vdwg.mxu0
    %v1464 = vadd.f32 %v854, %v1462
    %1465 = vmatpush.msra.mxu0 0.0
    %1466 = vmatpush.msra.mxu0 0.0
    %1467 = vmatpush.msra.mxu0 0.0
    %1468 = vmatpush.msra.mxu0 0.0
    %1469 = vmatpush.msra.mxu0 0.0
    %1470 = vmatpush.msra.mxu0 0.0
    %1471 = vmatpush.msra.mxu0 0.0
    %1472 = vmatpush.msra.mxu0 0.0
    %1473 = vmatpush.msra.mxu0 0.0
    %1474 = vmatpush.msra.mxu0 0.0
    %1475 = vmatpush.msra.mxu0 0.0
    %1476 = vmatpush.msra.mxu0 0.0
    %1477 = vmatpush.msra.mxu0 %v778
    %1478 = vmatpush.msra.mxu0 %v777
    %1479 = vmatpush.msra.mxu0 %v776
    %1480 = vmatpush.msra.mxu0 %v775
    %1481 = vmatmul.f32.gmra.mxu0 %v1379
    %v1482 = vpop.f32.mrf.mxu0
    %v1483 = vadd.f32 0.0, %v1482
    %1484 = vdwg.mxu0
    %v1485 = vadd.f32 %v879, %v1483
    %v1486 = vxor.u32 %v1422, 2147483648
    %v1487 = vmul.f32 %v1486, 1.442695
    %v1488 = vpow.pop %v1487
    %v1489 = vadd.f32 %v1488, 1.0
    %v1490 = vrcp.pop %v1489
    %v1491 = vmul.f32 %v1489, %v1490
    %v1492 = vsub.f32 1.0, %v1491
    %v1493 = vmul.f32 %v1490, %v1492
    %v1494 = vadd.f32 %v1490, %v1493
    %vm1495 = vweird.f32 %v1489
    %vm1496 = vweird.f32 %v1490
    %vm1497 = vmor %vm1495, %vm1496
    %v1498 = vsel %vm1497, %v1490, %v1494
    %v1499 = vand.u32 2147483647, %v1489
    %vm1500 = vcmp.eq.f32.partialorder %v1499, 8.507059e+37
    %v1501 = vand.u32 %v1489, 2147483648
    %v1502 = vor.u32 1.1754944e-38, %v1501
    %v1503 = vsel %vm1500, %v1502, %v1498
    %v1504 = vmul.f32 1.0, %v1503
    %v1505 = vxor.u32 %v1443, 2147483648
    %v1506 = vmul.f32 %v1505, 1.442695
    %v1507 = vpow.pop %v1506
    %v1508 = vadd.f32 %v1507, 1.0
    %v1509 = vrcp.pop %v1508
    %v1510 = vmul.f32 %v1508, %v1509
    %v1511 = vsub.f32 1.0, %v1510
    %v1512 = vmul.f32 %v1509, %v1511
    %v1513 = vadd.f32 %v1509, %v1512
    %vm1514 = vweird.f32 %v1508
    %vm1515 = vweird.f32 %v1509
    %vm1516 = vmor %vm1514, %vm1515
    %v1517 = vsel %vm1516, %v1509, %v1513
    %v1518 = vand.u32 2147483647, %v1508
    %vm1519 = vcmp.eq.f32.partialorder %v1518, 8.507059e+37
    %v1520 = vand.u32 %v1508, 2147483648
    %v1521 = vor.u32 1.1754944e-38, %v1520
    %v1522 = vsel %vm1519, %v1521, %v1517
    %v1523 = vmul.f32 1.0, %v1522
    %v1524 = vtanh.pop %v1464
    %v1525 = vxor.u32 %v1485, 2147483648
    %v1526 = vmul.f32 %v1525, 1.442695
    %v1527 = vpow.pop %v1526
    %v1528 = vadd.f32 %v1527, 1.0
    %v1529 = vrcp.pop %v1528
    %v1530 = vmul.f32 %v1528, %v1529
    %v1531 = vsub.f32 1.0, %v1530
    %v1532 = vmul.f32 %v1529, %v1531
    %v1533 = vadd.f32 %v1529, %v1532
    %vm1534 = vweird.f32 %v1528
    %vm1535 = vweird.f32 %v1529
    %vm1536 = vmor %vm1534, %vm1535
    %v1537 = vsel %vm1536, %v1529, %v1533
    %v1538 = vand.u32 2147483647, %v1528
    %vm1539 = vcmp.eq.f32.partialorder %v1538, 8.507059e+37
    %v1540 = vand.u32 %v1528, 2147483648
    %v1541 = vor.u32 1.1754944e-38, %v1540
    %v1542 = vsel %vm1539, %v1541, %v1537
    %v1543 = vmul.f32 1.0, %v1542
    %v1544 = vmul.f32 %v1523, %v1375
    %v1545 = vmul.f32 %v1504, %v1524
    %v1546 = vadd.f32 %v1544, %v1545
    %v1547 = vtanh.pop %v1546
    %v1548 = vmul.f32 %v1543, %v1547
    %v1550 = vsel %vm652, %v1548, 0
    %1552 = vmatpush.msra.mxu0 0.0
    %1553 = vmatpush.msra.mxu0 0.0
    %1554 = vmatpush.msra.mxu0 0.0
    %1555 = vmatpush.msra.mxu0 0.0
    %1556 = vmatpush.msra.mxu0 0.0
    %1557 = vmatpush.msra.mxu0 0.0
    %1558 = vmatpush.msra.mxu0 0.0
    %1559 = vmatpush.msra.mxu0 0.0
    %1560 = vmatpush.msra.mxu0 0.0
    %1561 = vmatpush.msra.mxu0 0.0
    %1562 = vmatpush.msra.mxu0 0.0
    %1563 = vmatpush.msra.mxu0 0.0
    %1564 = vmatpush.msra.mxu0 %v884
    %1565 = vmatpush.msra.mxu0 %v883
    %1566 = vmatpush.msra.mxu0 %v882
    %1567 = vmatpush.msra.mxu0 %v881
    %1568 = vmatmul.f32.gmra.mxu0 %v1550
    %v1569 = vpop.f32.mrf.mxu0
    %v1570 = vadd.f32 %v885, %v1569
    %1571 = vdwg.mxu0
    %v1572 = vtanh.pop %v1570
    %v1573 = vld [vmem:[%s19] sm:$0xff]
    %v1574 = vld [vmem:[%s19 + $0x8] sm:$0xff]
    %s1575 = scalar_lea.vmem %s19, 16
    %v1576 = vld [vmem:[%s1575] sm:$0xff]
    %v1577 = vld [vmem:[%s1575 + $0x8] sm:$0xff]
    %s1578 = scalar_lea.vmem %s19, 32
    %v1579 = vld [vmem:[%s1578] sm:$0xff]
    %v1580 = vld [vmem:[%s1578 + $0x8] sm:$0xff]
    %s1581 = scalar_lea.vmem %s19, 48
    %v1582 = vld [vmem:[%s1581] sm:$0xff]
    %v1583 = vld [vmem:[%s1581 + $0x8] sm:$0xff]
    %v1584 = vld [vmem:[%s21] sm:$0xff]
    %v1585 = vld [vmem:[%s21 + $0x8] sm:$0xff]
    %v1586 = vld [vmem:[%s21 + $0x10] sm:$0xff]
    %v1587 = vld [vmem:[%s21 + $0x18] sm:$0xff]
    %s1588 = scalar_lea.vmem %s21, 32
    %v1589 = vld [vmem:[%s1588] sm:$0xff]
    %v1590 = vld [vmem:[%s1588 + $0x8] sm:$0xff]
    %v1591 = vld [vmem:[%s1588 + $0x10] sm:$0xff]
    %v1592 = vld [vmem:[%s1588 + $0x18] sm:$0xff]
    %s1593 = scalar_lea.vmem %s21, 64
    %v1594 = vld [vmem:[%s1593] sm:$0xff]
    %v1595 = vld [vmem:[%s1593 + $0x8] sm:$0xff]
    %v1596 = vld [vmem:[%s1593 + $0x10] sm:$0xff]
    %v1597 = vld [vmem:[%s1593 + $0x18] sm:$0xff]
    %s1598 = scalar_lea.vmem %s21, 96
    %v1599 = vld [vmem:[%s1598] sm:$0xff]
    %v1600 = vld [vmem:[%s1598 + $0x8] sm:$0xff]
    %v1601 = vld [vmem:[%s1598 + $0x10] sm:$0xff]
    %v1602 = vld [vmem:[%s1598 + $0x18] sm:$0xff]
    %v1603 = vld [vmem:[%s23] sm:$0xff]
    %v1604 = vld [vmem:[%s23 + $0x8] sm:$0xff]
    %v1605 = vld [vmem:[%s23 + $0x10] sm:$0xff]
    %v1606 = vld [vmem:[%s23 + $0x18] sm:$0xff]
    %v1607 = vld [vmem:[%s24] sm:$0x3]
    %v1608 = vld [vmem:[%s20] sm:$0xff]
    %v1609 = vld [vmem:[%s20 + $0x8] sm:$0xff]
    %v1610 = vld [vmem:[%s20 + $0x10] sm:$0xff]
    %v1611 = vld [vmem:[%s20 + $0x18] sm:$0xff]
    %v1612 = vld [vmem:[%s22] sm:$0x3]
    %1613 = vmatpush.msra.mxu0 0.0
    %1614 = vmatpush.msra.mxu0 0.0
    %1615 = vmatpush.msra.mxu0 0.0
    %1616 = vmatpush.msra.mxu0 0.0
    %1617 = vmatpush.msra.mxu0 0.0
    %1618 = vmatpush.msra.mxu0 0.0
    %1619 = vmatpush.msra.mxu0 0.0
    %1620 = vmatpush.msra.mxu0 0.0
    %1621 = vmatpush.msra.mxu0 0.0
    %1622 = vmatpush.msra.mxu0 0.0
    %1623 = vmatpush.msra.mxu0 0.0
    %1624 = vmatpush.msra.mxu0 0.0
    %1625 = vmatpush.msra.mxu0 %v1611
    %1626 = vmatpush.msra.mxu0 %v1610
    %1627 = vmatpush.msra.mxu0 %v1609
    %1628 = vmatpush.msra.mxu0 %v1608
    %1629 = vmatmul.f32.gmra.mxu0 %v1037
    %v1630 = vpop.f32.mrf.mxu0
    %v1631 = vadd.f32 %v1612, %v1630
    %1632 = vdwg.mxu0
    %s1633 = scalar_lea.vmem %s20, 32
    %v1634 = vld [vmem:[%s1633] sm:$0xff]
    %v1635 = vld [vmem:[%s1633 + $0x8] sm:$0xff]
    %v1636 = vld [vmem:[%s1633 + $0x10] sm:$0xff]
    %v1637 = vld [vmem:[%s1633 + $0x18] sm:$0xff]
    %s1638 = scalar_lea.vmem %s22, 2
    %v1639 = vld [vmem:[%s1638] sm:$0x3]
    %1640 = vmatpush.msra.mxu0 0.0
    %1641 = vmatpush.msra.mxu0 0.0
    %1642 = vmatpush.msra.mxu0 0.0
    %1643 = vmatpush.msra.mxu0 0.0
    %1644 = vmatpush.msra.mxu0 0.0
    %1645 = vmatpush.msra.mxu0 0.0
    %1646 = vmatpush.msra.mxu0 0.0
    %1647 = vmatpush.msra.mxu0 0.0
    %1648 = vmatpush.msra.mxu0 0.0
    %1649 = vmatpush.msra.mxu0 0.0
    %1650 = vmatpush.msra.mxu0 0.0
    %1651 = vmatpush.msra.mxu0 0.0
    %1652 = vmatpush.msra.mxu0 %v1637
    %1653 = vmatpush.msra.mxu0 %v1636
    %1654 = vmatpush.msra.mxu0 %v1635
    %1655 = vmatpush.msra.mxu0 %v1634
    %1656 = vmatmul.f32.gmra.mxu0 %v1037
    %v1657 = vpop.f32.mrf.mxu0
    %v1658 = vadd.f32 %v1639, %v1657
    %1659 = vdwg.mxu0
    %s1660 = scalar_lea.vmem %s20, 64
    %v1661 = vld [vmem:[%s1660] sm:$0xff]
    %v1662 = vld [vmem:[%s1660 + $0x8] sm:$0xff]
    %v1663 = vld [vmem:[%s1660 + $0x10] sm:$0xff]
    %v1664 = vld [vmem:[%s1660 + $0x18] sm:$0xff]
    %s1665 = scalar_lea.vmem %s22, 4
    %v1666 = vld [vmem:[%s1665] sm:$0x3]
    %1667 = vmatpush.msra.mxu0 0.0
    %1668 = vmatpush.msra.mxu0 0.0
    %1669 = vmatpush.msra.mxu0 0.0
    %1670 = vmatpush.msra.mxu0 0.0
    %1671 = vmatpush.msra.mxu0 0.0
    %1672 = vmatpush.msra.mxu0 0.0
    %1673 = vmatpush.msra.mxu0 0.0
    %1674 = vmatpush.msra.mxu0 0.0
    %1675 = vmatpush.msra.mxu0 0.0
    %1676 = vmatpush.msra.mxu0 0.0
    %1677 = vmatpush.msra.mxu0 0.0
    %1678 = vmatpush.msra.mxu0 0.0
    %1679 = vmatpush.msra.mxu0 %v1664
    %1680 = vmatpush.msra.mxu0 %v1663
    %1681 = vmatpush.msra.mxu0 %v1662
    %1682 = vmatpush.msra.mxu0 %v1661
    %1683 = vmatmul.f32.gmra.mxu0 %v1037
    %v1684 = vpop.f32.mrf.mxu0
    %v1685 = vadd.f32 %v1666, %v1684
    %1686 = vdwg.mxu0
    %s1687 = scalar_lea.vmem %s20, 96
    %v1688 = vld [vmem:[%s1687] sm:$0xff]
    %v1689 = vld [vmem:[%s1687 + $0x8] sm:$0xff]
    %v1690 = vld [vmem:[%s1687 + $0x10] sm:$0xff]
    %v1691 = vld [vmem:[%s1687 + $0x18] sm:$0xff]
    %s1692 = scalar_lea.vmem %s22, 6
    %v1693 = vld [vmem:[%s1692] sm:$0x3]
    %1694 = vmatpush.msra.mxu0 0.0
    %1695 = vmatpush.msra.mxu0 0.0
    %1696 = vmatpush.msra.mxu0 0.0
    %1697 = vmatpush.msra.mxu0 0.0
    %1698 = vmatpush.msra.mxu0 0.0
    %1699 = vmatpush.msra.mxu0 0.0
    %1700 = vmatpush.msra.mxu0 0.0
    %1701 = vmatpush.msra.mxu0 0.0
    %1702 = vmatpush.msra.mxu0 0.0
    %1703 = vmatpush.msra.mxu0 0.0
    %1704 = vmatpush.msra.mxu0 0.0
    %1705 = vmatpush.msra.mxu0 0.0
    %1706 = vmatpush.msra.mxu0 %v1691
    %1707 = vmatpush.msra.mxu0 %v1690
    %1708 = vmatpush.msra.mxu0 %v1689
    %1709 = vmatpush.msra.mxu0 %v1688
    %1710 = vmatmul.f32.gmra.mxu0 %v1037
    %v1711 = vpop.f32.mrf.mxu0
    %v1712 = vadd.f32 %v1693, %v1711
    %1713 = vdwg.mxu0
    %v1714 = vsel %vm782, 0.0, 0
    %1716 = vmatpush.msra.mxu0 0.0
    %1717 = vmatpush.msra.mxu0 0.0
    %1718 = vmatpush.msra.mxu0 0.0
    %1719 = vmatpush.msra.mxu0 0.0
    %1720 = vmatpush.msra.mxu0 0.0
    %1721 = vmatpush.msra.mxu0 0.0
    %1722 = vmatpush.msra.mxu0 0.0
    %1723 = vmatpush.msra.mxu0 0.0
    %1724 = vmatpush.msra.mxu0 0.0
    %1725 = vmatpush.msra.mxu0 0.0
    %1726 = vmatpush.msra.mxu0 0.0
    %1727 = vmatpush.msra.mxu0 0.0
    %1728 = vmatpush.msra.mxu0 0.0
    %1729 = vmatpush.msra.mxu0 0.0
    %1730 = vmatpush.msra.mxu0 %v1574
    %1731 = vmatpush.msra.mxu0 %v1573
    %1732 = vmatmul.f32.gmra.mxu0 %v1714
    %v1733 = vpop.f32.mrf.mxu0
    %v1734 = vadd.f32 0.0, %v1733
    %1735 = vdwg.mxu0
    %v1736 = vadd.f32 %v1631, %v1734
    %v1738 = vsel %vm652, %v1059, 0
    %1740 = vmatpush.msra.mxu0 0.0
    %1741 = vmatpush.msra.mxu0 0.0
    %1742 = vmatpush.msra.mxu0 0.0
    %1743 = vmatpush.msra.mxu0 0.0
    %1744 = vmatpush.msra.mxu0 0.0
    %1745 = vmatpush.msra.mxu0 0.0
    %1746 = vmatpush.msra.mxu0 0.0
    %1747 = vmatpush.msra.mxu0 0.0
    %1748 = vmatpush.msra.mxu0 0.0
    %1749 = vmatpush.msra.mxu0 0.0
    %1750 = vmatpush.msra.mxu0 0.0
    %1751 = vmatpush.msra.mxu0 0.0
    %1752 = vmatpush.msra.mxu0 %v1587
    %1753 = vmatpush.msra.mxu0 %v1586
    %1754 = vmatpush.msra.mxu0 %v1585
    %1755 = vmatpush.msra.mxu0 %v1584
    %1756 = vmatmul.f32.gmra.mxu0 %v1738
    %v1757 = vpop.f32.mrf.mxu0
    %v1758 = vadd.f32 0.0, %v1757
    %1759 = vdwg.mxu0
    %v1760 = vadd.f32 %v1736, %v1758
    %1761 = vmatpush.msra.mxu0 0.0
    %1762 = vmatpush.msra.mxu0 0.0
    %1763 = vmatpush.msra.mxu0 0.0
    %1764 = vmatpush.msra.mxu0 0.0
    %1765 = vmatpush.msra.mxu0 0.0
    %1766 = vmatpush.msra.mxu0 0.0
    %1767 = vmatpush.msra.mxu0 0.0
    %1768 = vmatpush.msra.mxu0 0.0
    %1769 = vmatpush.msra.mxu0 0.0
    %1770 = vmatpush.msra.mxu0 0.0
    %1771 = vmatpush.msra.mxu0 0.0
    %1772 = vmatpush.msra.mxu0 0.0
    %1773 = vmatpush.msra.mxu0 0.0
    %1774 = vmatpush.msra.mxu0 0.0
    %1775 = vmatpush.msra.mxu0 %v1577
    %1776 = vmatpush.msra.mxu0 %v1576
    %1777 = vmatmul.f32.gmra.mxu0 %v1714
    %v1778 = vpop.f32.mrf.mxu0
    %v1779 = vadd.f32 0.0, %v1778
    %1780 = vdwg.mxu0
    %v1781 = vadd.f32 %v1658, %v1779
    %1782 = vmatpush.msra.mxu0 0.0
    %1783 = vmatpush.msra.mxu0 0.0
    %1784 = vmatpush.msra.mxu0 0.0
    %1785 = vmatpush.msra.mxu0 0.0
    %1786 = vmatpush.msra.mxu0 0.0
    %1787 = vmatpush.msra.mxu0 0.0
    %1788 = vmatpush.msra.mxu0 0.0
    %1789 = vmatpush.msra.mxu0 0.0
    %1790 = vmatpush.msra.mxu0 0.0
    %1791 = vmatpush.msra.mxu0 0.0
    %1792 = vmatpush.msra.mxu0 0.0
    %1793 = vmatpush.msra.mxu0 0.0
    %1794 = vmatpush.msra.mxu0 %v1592
    %1795 = vmatpush.msra.mxu0 %v1591
    %1796 = vmatpush.msra.mxu0 %v1590
    %1797 = vmatpush.msra.mxu0 %v1589
    %1798 = vmatmul.f32.gmra.mxu0 %v1738
    %v1799 = vpop.f32.mrf.mxu0
    %v1800 = vadd.f32 0.0, %v1799
    %1801 = vdwg.mxu0
    %v1802 = vadd.f32 %v1781, %v1800
    %1803 = vmatpush.msra.mxu0 0.0
    %1804 = vmatpush.msra.mxu0 0.0
    %1805 = vmatpush.msra.mxu0 0.0
    %1806 = vmatpush.msra.mxu0 0.0
    %1807 = vmatpush.msra.mxu0 0.0
    %1808 = vmatpush.msra.mxu0 0.0
    %1809 = vmatpush.msra.mxu0 0.0
    %1810 = vmatpush.msra.mxu0 0.0
    %1811 = vmatpush.msra.mxu0 0.0
    %1812 = vmatpush.msra.mxu0 0.0
    %1813 = vmatpush.msra.mxu0 0.0
    %1814 = vmatpush.msra.mxu0 0.0
    %1815 = vmatpush.msra.mxu0 0.0
    %1816 = vmatpush.msra.mxu0 0.0
    %1817 = vmatpush.msra.mxu0 %v1580
    %1818 = vmatpush.msra.mxu0 %v1579
    %1819 = vmatmul.f32.gmra.mxu0 %v1714
    %v1820 = vpop.f32.mrf.mxu0
    %v1821 = vadd.f32 0.0, %v1820
    %1822 = vdwg.mxu0
    %v1823 = vadd.f32 %v1685, %v1821
    %1824 = vmatpush.msra.mxu0 0.0
    %1825 = vmatpush.msra.mxu0 0.0
    %1826 = vmatpush.msra.mxu0 0.0
    %1827 = vmatpush.msra.mxu0 0.0
    %1828 = vmatpush.msra.mxu0 0.0
    %1829 = vmatpush.msra.mxu0 0.0
    %1830 = vmatpush.msra.mxu0 0.0
    %1831 = vmatpush.msra.mxu0 0.0
    %1832 = vmatpush.msra.mxu0 0.0
    %1833 = vmatpush.msra.mxu0 0.0
    %1834 = vmatpush.msra.mxu0 0.0
    %1835 = vmatpush.msra.mxu0 0.0
    %1836 = vmatpush.msra.mxu0 %v1597
    %1837 = vmatpush.msra.mxu0 %v1596
    %1838 = vmatpush.msra.mxu0 %v1595
    %1839 = vmatpush.msra.mxu0 %v1594
    %1840 = vmatmul.f32.gmra.mxu0 %v1738
    %v1841 = vpop.f32.mrf.mxu0
    %v1842 = vadd.f32 0.0, %v1841
    %1843 = vdwg.mxu0
    %v1844 = vadd.f32 %v1823, %v1842
    %1845 = vmatpush.msra.mxu0 0.0
    %1846 = vmatpush.msra.mxu0 0.0
    %1847 = vmatpush.msra.mxu0 0.0
    %1848 = vmatpush.msra.mxu0 0.0
    %1849 = vmatpush.msra.mxu0 0.0
    %1850 = vmatpush.msra.mxu0 0.0
    %1851 = vmatpush.msra.mxu0 0.0
    %1852 = vmatpush.msra.mxu0 0.0
    %1853 = vmatpush.msra.mxu0 0.0
    %1854 = vmatpush.msra.mxu0 0.0
    %1855 = vmatpush.msra.mxu0 0.0
    %1856 = vmatpush.msra.mxu0 0.0
    %1857 = vmatpush.msra.mxu0 0.0
    %1858 = vmatpush.msra.mxu0 0.0
    %1859 = vmatpush.msra.mxu0 %v1583
    %1860 = vmatpush.msra.mxu0 %v1582
    %1861 = vmatmul.f32.gmra.mxu0 %v1714
    %v1862 = vpop.f32.mrf.mxu0
    %v1863 = vadd.f32 0.0, %v1862
    %1864 = vdwg.mxu0
    %v1865 = vadd.f32 %v1712, %v1863
    %1866 = vmatpush.msra.mxu0 0.0
    %1867 = vmatpush.msra.mxu0 0.0
    %1868 = vmatpush.msra.mxu0 0.0
    %1869 = vmatpush.msra.mxu0 0.0
    %1870 = vmatpush.msra.mxu0 0.0
    %1871 = vmatpush.msra.mxu0 0.0
    %1872 = vmatpush.msra.mxu0 0.0
    %1873 = vmatpush.msra.mxu0 0.0
    %1874 = vmatpush.msra.mxu0 0.0
    %1875 = vmatpush.msra.mxu0 0.0
    %1876 = vmatpush.msra.mxu0 0.0
    %1877 = vmatpush.msra.mxu0 0.0
    %1878 = vmatpush.msra.mxu0 %v1602
    %1879 = vmatpush.msra.mxu0 %v1601
    %1880 = vmatpush.msra.mxu0 %v1600
    %1881 = vmatpush.msra.mxu0 %v1599
    %1882 = vmatmul.f32.gmra.mxu0 %v1738
    %v1883 = vpop.f32.mrf.mxu0
    %v1884 = vadd.f32 0.0, %v1883
    %1885 = vdwg.mxu0
    %v1886 = vadd.f32 %v1865, %v1884
    %v1887 = vxor.u32 %v1760, 2147483648
    %v1888 = vmul.f32 %v1887, 1.442695
    %v1889 = vpow.pop %v1888
    %v1890 = vadd.f32 %v1889, 1.0
    %v1891 = vrcp.pop %v1890
    %v1892 = vmul.f32 %v1890, %v1891
    %v1893 = vsub.f32 1.0, %v1892
    %v1894 = vmul.f32 %v1891, %v1893
    %v1895 = vadd.f32 %v1891, %v1894
    %vm1896 = vweird.f32 %v1890
    %vm1897 = vweird.f32 %v1891
    %vm1898 = vmor %vm1896, %vm1897
    %v1899 = vsel %vm1898, %v1891, %v1895
    %v1900 = vand.u32 2147483647, %v1890
    %vm1901 = vcmp.eq.f32.partialorder %v1900, 8.507059e+37
    %v1902 = vand.u32 %v1890, 2147483648
    %v1903 = vor.u32 1.1754944e-38, %v1902
    %v1904 = vsel %vm1901, %v1903, %v1899
    %v1905 = vmul.f32 1.0, %v1904
    %v1906 = vxor.u32 %v1802, 2147483648
    %v1907 = vmul.f32 %v1906, 1.442695
    %v1908 = vpow.pop %v1907
    %v1909 = vadd.f32 %v1908, 1.0
    %v1910 = vrcp.pop %v1909
    %v1911 = vmul.f32 %v1909, %v1910
    %v1912 = vsub.f32 1.0, %v1911
    %v1913 = vmul.f32 %v1910, %v1912
    %v1914 = vadd.f32 %v1910, %v1913
    %vm1915 = vweird.f32 %v1909
    %vm1916 = vweird.f32 %v1910
    %vm1917 = vmor %vm1915, %vm1916
    %v1918 = vsel %vm1917, %v1910, %v1914
    %v1919 = vand.u32 2147483647, %v1909
    %vm1920 = vcmp.eq.f32.partialorder %v1919, 8.507059e+37
    %v1921 = vand.u32 %v1909, 2147483648
    %v1922 = vor.u32 1.1754944e-38, %v1921
    %v1923 = vsel %vm1920, %v1922, %v1918
    %v1924 = vmul.f32 1.0, %v1923
    %v1925 = vtanh.pop %v1844
    %v1926 = vxor.u32 %v1886, 2147483648
    %v1927 = vmul.f32 %v1926, 1.442695
    %v1928 = vpow.pop %v1927
    %v1929 = vadd.f32 %v1928, 1.0
    %v1930 = vrcp.pop %v1929
    %v1931 = vmul.f32 %v1929, %v1930
    %v1932 = vsub.f32 1.0, %v1931
    %v1933 = vmul.f32 %v1930, %v1932
    %v1934 = vadd.f32 %v1930, %v1933
    %vm1935 = vweird.f32 %v1929
    %vm1936 = vweird.f32 %v1930
    %vm1937 = vmor %vm1935, %vm1936
    %v1938 = vsel %vm1937, %v1930, %v1934
    %v1939 = vand.u32 2147483647, %v1929
    %vm1940 = vcmp.eq.f32.partialorder %v1939, 8.507059e+37
    %v1941 = vand.u32 %v1929, 2147483648
    %v1942 = vor.u32 1.1754944e-38, %v1941
    %v1943 = vsel %vm1940, %v1942, %v1938
    %v1944 = vmul.f32 1.0, %v1943
    %v1945 = vmul.f32 %v1924, 0.0
    %v1946 = vmul.f32 %v1905, %v1925
    %v1947 = vadd.f32 %v1945, %v1946
    %v1948 = vtanh.pop %v1947
    %v1949 = vmul.f32 %v1944, %v1948
    %v1951 = vsel %vm652, %v1949, 0
    %1953 = vmatpush.msra.mxu0 0.0
    %1954 = vmatpush.msra.mxu0 0.0
    %1955 = vmatpush.msra.mxu0 0.0
    %1956 = vmatpush.msra.mxu0 0.0
    %1957 = vmatpush.msra.mxu0 0.0
    %1958 = vmatpush.msra.mxu0 0.0
    %1959 = vmatpush.msra.mxu0 0.0
    %1960 = vmatpush.msra.mxu0 0.0
    %1961 = vmatpush.msra.mxu0 0.0
    %1962 = vmatpush.msra.mxu0 0.0
    %1963 = vmatpush.msra.mxu0 0.0
    %1964 = vmatpush.msra.mxu0 0.0
    %1965 = vmatpush.msra.mxu0 %v1606
    %1966 = vmatpush.msra.mxu0 %v1605
    %1967 = vmatpush.msra.mxu0 %v1604
    %1968 = vmatpush.msra.mxu0 %v1603
    %1969 = vmatmul.f32.gmra.mxu0 %v1951
    %v1970 = vpop.f32.mrf.mxu0
    %v1971 = vadd.f32 %v1607, %v1970
    %1972 = vdwg.mxu0
    %1973 = vst.msk [vmem:[%s25] sm:$0x3] %vm751, %v1971
    %v1974 = vsel %vm751, %v1971, -inf
    %1975 = vmax.xlane.f32.xlu0 %v1974
    %v1976 = vpop.xlane.xlu0 %1975
    %v1977 = vsub.f32 %v1971, %v1976
    %v1978 = vmul.f32 %v1977, 1.442695
    %v1979 = vpow.pop %v1978
    %v1980 = vsel %vm751, %v1979, 0.0
    %1981 = vadd.xlane.f32.xlu0 %v1980
    %v1982 = vpop.xlane.xlu0 %1981
    %v1983 = vrcp.pop %v1982
    %v1984 = vmul.f32 %v1979, %v1983
    %v1986 = vsel %vm782, %v1984, 0
    %1988 = vmatpush.msra.mxu0 0.0
    %1989 = vmatpush.msra.mxu0 0.0
    %1990 = vmatpush.msra.mxu0 0.0
    %1991 = vmatpush.msra.mxu0 0.0
    %1992 = vmatpush.msra.mxu0 0.0
    %1993 = vmatpush.msra.mxu0 0.0
    %1994 = vmatpush.msra.mxu0 0.0
    %1995 = vmatpush.msra.mxu0 0.0
    %1996 = vmatpush.msra.mxu0 0.0
    %1997 = vmatpush.msra.mxu0 0.0
    %1998 = vmatpush.msra.mxu0 0.0
    %1999 = vmatpush.msra.mxu0 0.0
    %2000 = vmatpush.msra.mxu0 0.0
    %2001 = vmatpush.msra.mxu0 0.0
    %2002 = vmatpush.msra.mxu0 %v1574
    %2003 = vmatpush.msra.mxu0 %v1573
    %2004 = vmatmul.f32.gmra.mxu0 %v1986
    %v2005 = vpop.f32.mrf.mxu0
    %v2006 = vadd.f32 0.0, %v2005
    %2007 = vdwg.mxu0
    %v2008 = vadd.f32 %v1631, %v2006
    %2009 = vmatpush.msra.mxu0 0.0
    %2010 = vmatpush.msra.mxu0 0.0
    %2011 = vmatpush.msra.mxu0 0.0
    %2012 = vmatpush.msra.mxu0 0.0
    %2013 = vmatpush.msra.mxu0 0.0
    %2014 = vmatpush.msra.mxu0 0.0
    %2015 = vmatpush.msra.mxu0 0.0
    %2016 = vmatpush.msra.mxu0 0.0
    %2017 = vmatpush.msra.mxu0 0.0
    %2018 = vmatpush.msra.mxu0 0.0
    %2019 = vmatpush.msra.mxu0 0.0
    %2020 = vmatpush.msra.mxu0 0.0
    %2021 = vmatpush.msra.mxu0 %v1587
    %2022 = vmatpush.msra.mxu0 %v1586
    %2023 = vmatpush.msra.mxu0 %v1585
    %2024 = vmatpush.msra.mxu0 %v1584
    %2025 = vmatmul.f32.gmra.mxu0 %v1951
    %v2026 = vpop.f32.mrf.mxu0
    %v2027 = vadd.f32 0.0, %v2026
    %2028 = vdwg.mxu0
    %v2029 = vadd.f32 %v2008, %v2027
    %2030 = vmatpush.msra.mxu0 0.0
    %2031 = vmatpush.msra.mxu0 0.0
    %2032 = vmatpush.msra.mxu0 0.0
    %2033 = vmatpush.msra.mxu0 0.0
    %2034 = vmatpush.msra.mxu0 0.0
    %2035 = vmatpush.msra.mxu0 0.0
    %2036 = vmatpush.msra.mxu0 0.0
    %2037 = vmatpush.msra.mxu0 0.0
    %2038 = vmatpush.msra.mxu0 0.0
    %2039 = vmatpush.msra.mxu0 0.0
    %2040 = vmatpush.msra.mxu0 0.0
    %2041 = vmatpush.msra.mxu0 0.0
    %2042 = vmatpush.msra.mxu0 0.0
    %2043 = vmatpush.msra.mxu0 0.0
    %2044 = vmatpush.msra.mxu0 %v1577
    %2045 = vmatpush.msra.mxu0 %v1576
    %2046 = vmatmul.f32.gmra.mxu0 %v1986
    %v2047 = vpop.f32.mrf.mxu0
    %v2048 = vadd.f32 0.0, %v2047
    %2049 = vdwg.mxu0
    %v2050 = vadd.f32 %v1658, %v2048
    %2051 = vmatpush.msra.mxu0 0.0
    %2052 = vmatpush.msra.mxu0 0.0
    %2053 = vmatpush.msra.mxu0 0.0
    %2054 = vmatpush.msra.mxu0 0.0
    %2055 = vmatpush.msra.mxu0 0.0
    %2056 = vmatpush.msra.mxu0 0.0
    %2057 = vmatpush.msra.mxu0 0.0
    %2058 = vmatpush.msra.mxu0 0.0
    %2059 = vmatpush.msra.mxu0 0.0
    %2060 = vmatpush.msra.mxu0 0.0
    %2061 = vmatpush.msra.mxu0 0.0
    %2062 = vmatpush.msra.mxu0 0.0
    %2063 = vmatpush.msra.mxu0 %v1592
    %2064 = vmatpush.msra.mxu0 %v1591
    %2065 = vmatpush.msra.mxu0 %v1590
    %2066 = vmatpush.msra.mxu0 %v1589
    %2067 = vmatmul.f32.gmra.mxu0 %v1951
    %v2068 = vpop.f32.mrf.mxu0
    %v2069 = vadd.f32 0.0, %v2068
    %2070 = vdwg.mxu0
    %v2071 = vadd.f32 %v2050, %v2069
    %2072 = vmatpush.msra.mxu0 0.0
    %2073 = vmatpush.msra.mxu0 0.0
    %2074 = vmatpush.msra.mxu0 0.0
    %2075 = vmatpush.msra.mxu0 0.0
    %2076 = vmatpush.msra.mxu0 0.0
    %2077 = vmatpush.msra.mxu0 0.0
    %2078 = vmatpush.msra.mxu0 0.0
    %2079 = vmatpush.msra.mxu0 0.0
    %2080 = vmatpush.msra.mxu0 0.0
    %2081 = vmatpush.msra.mxu0 0.0
    %2082 = vmatpush.msra.mxu0 0.0
    %2083 = vmatpush.msra.mxu0 0.0
    %2084 = vmatpush.msra.mxu0 0.0
    %2085 = vmatpush.msra.mxu0 0.0
    %2086 = vmatpush.msra.mxu0 %v1580
    %2087 = vmatpush.msra.mxu0 %v1579
    %2088 = vmatmul.f32.gmra.mxu0 %v1986
    %v2089 = vpop.f32.mrf.mxu0
    %v2090 = vadd.f32 0.0, %v2089
    %2091 = vdwg.mxu0
    %v2092 = vadd.f32 %v1685, %v2090
    %2093 = vmatpush.msra.mxu0 0.0
    %2094 = vmatpush.msra.mxu0 0.0
    %2095 = vmatpush.msra.mxu0 0.0
    %2096 = vmatpush.msra.mxu0 0.0
    %2097 = vmatpush.msra.mxu0 0.0
    %2098 = vmatpush.msra.mxu0 0.0
    %2099 = vmatpush.msra.mxu0 0.0
    %2100 = vmatpush.msra.mxu0 0.0
    %2101 = vmatpush.msra.mxu0 0.0
    %2102 = vmatpush.msra.mxu0 0.0
    %2103 = vmatpush.msra.mxu0 0.0
    %2104 = vmatpush.msra.mxu0 0.0
    %2105 = vmatpush.msra.mxu0 %v1597
    %2106 = vmatpush.msra.mxu0 %v1596
    %2107 = vmatpush.msra.mxu0 %v1595
    %2108 = vmatpush.msra.mxu0 %v1594
    %2109 = vmatmul.f32.gmra.mxu0 %v1951
    %v2110 = vpop.f32.mrf.mxu0
    %v2111 = vadd.f32 0.0, %v2110
    %2112 = vdwg.mxu0
    %v2113 = vadd.f32 %v2092, %v2111
    %2114 = vmatpush.msra.mxu0 0.0
    %2115 = vmatpush.msra.mxu0 0.0
    %2116 = vmatpush.msra.mxu0 0.0
    %2117 = vmatpush.msra.mxu0 0.0
    %2118 = vmatpush.msra.mxu0 0.0
    %2119 = vmatpush.msra.mxu0 0.0
    %2120 = vmatpush.msra.mxu0 0.0
    %2121 = vmatpush.msra.mxu0 0.0
    %2122 = vmatpush.msra.mxu0 0.0
    %2123 = vmatpush.msra.mxu0 0.0
    %2124 = vmatpush.msra.mxu0 0.0
    %2125 = vmatpush.msra.mxu0 0.0
    %2126 = vmatpush.msra.mxu0 0.0
    %2127 = vmatpush.msra.mxu0 0.0
    %2128 = vmatpush.msra.mxu0 %v1583
    %2129 = vmatpush.msra.mxu0 %v1582
    %2130 = vmatmul.f32.gmra.mxu0 %v1986
    %v2131 = vpop.f32.mrf.mxu0
    %v2132 = vadd.f32 0.0, %v2131
    %2133 = vdwg.mxu0
    %v2134 = vadd.f32 %v1712, %v2132
    %2135 = vmatpush.msra.mxu0 0.0
    %2136 = vmatpush.msra.mxu0 0.0
    %2137 = vmatpush.msra.mxu0 0.0
    %2138 = vmatpush.msra.mxu0 0.0
    %2139 = vmatpush.msra.mxu0 0.0
    %2140 = vmatpush.msra.mxu0 0.0
    %2141 = vmatpush.msra.mxu0 0.0
    %2142 = vmatpush.msra.mxu0 0.0
    %2143 = vmatpush.msra.mxu0 0.0
    %2144 = vmatpush.msra.mxu0 0.0
    %2145 = vmatpush.msra.mxu0 0.0
    %2146 = vmatpush.msra.mxu0 0.0
    %2147 = vmatpush.msra.mxu0 %v1602
    %2148 = vmatpush.msra.mxu0 %v1601
    %2149 = vmatpush.msra.mxu0 %v1600
    %2150 = vmatpush.msra.mxu0 %v1599
    %2151 = vmatmul.f32.gmra.mxu0 %v1951
    %v2152 = vpop.f32.mrf.mxu0
    %v2153 = vadd.f32 0.0, %v2152
    %2154 = vdwg.mxu0
    %v2155 = vadd.f32 %v2134, %v2153
    %v2156 = vxor.u32 %v2029, 2147483648
    %v2157 = vmul.f32 %v2156, 1.442695
    %v2158 = vpow.pop %v2157
    %v2159 = vadd.f32 %v2158, 1.0
    %v2160 = vrcp.pop %v2159
    %v2161 = vmul.f32 %v2159, %v2160
    %v2162 = vsub.f32 1.0, %v2161
    %v2163 = vmul.f32 %v2160, %v2162
    %v2164 = vadd.f32 %v2160, %v2163
    %vm2165 = vweird.f32 %v2159
    %vm2166 = vweird.f32 %v2160
    %vm2167 = vmor %vm2165, %vm2166
    %v2168 = vsel %vm2167, %v2160, %v2164
    %v2169 = vand.u32 2147483647, %v2159
    %vm2170 = vcmp.eq.f32.partialorder %v2169, 8.507059e+37
    %v2171 = vand.u32 %v2159, 2147483648
    %v2172 = vor.u32 1.1754944e-38, %v2171
    %v2173 = vsel %vm2170, %v2172, %v2168
    %v2174 = vmul.f32 1.0, %v2173
    %v2175 = vxor.u32 %v2071, 2147483648
    %v2176 = vmul.f32 %v2175, 1.442695
    %v2177 = vpow.pop %v2176
    %v2178 = vadd.f32 %v2177, 1.0
    %v2179 = vrcp.pop %v2178
    %v2180 = vmul.f32 %v2178, %v2179
    %v2181 = vsub.f32 1.0, %v2180
    %v2182 = vmul.f32 %v2179, %v2181
    %v2183 = vadd.f32 %v2179, %v2182
    %vm2184 = vweird.f32 %v2178
    %vm2185 = vweird.f32 %v2179
    %vm2186 = vmor %vm2184, %vm2185
    %v2187 = vsel %vm2186, %v2179, %v2183
    %v2188 = vand.u32 2147483647, %v2178
    %vm2189 = vcmp.eq.f32.partialorder %v2188, 8.507059e+37
    %v2190 = vand.u32 %v2178, 2147483648
    %v2191 = vor.u32 1.1754944e-38, %v2190
    %v2192 = vsel %vm2189, %v2191, %v2187
    %v2193 = vmul.f32 1.0, %v2192
    %v2194 = vtanh.pop %v2113
    %v2195 = vxor.u32 %v2155, 2147483648
    %v2196 = vmul.f32 %v2195, 1.442695
    %v2197 = vpow.pop %v2196
    %v2198 = vadd.f32 %v2197, 1.0
    %v2199 = vrcp.pop %v2198
    %v2200 = vmul.f32 %v2198, %v2199
    %v2201 = vsub.f32 1.0, %v2200
    %v2202 = vmul.f32 %v2199, %v2201
    %v2203 = vadd.f32 %v2199, %v2202
    %vm2204 = vweird.f32 %v2198
    %vm2205 = vweird.f32 %v2199
    %vm2206 = vmor %vm2204, %vm2205
    %v2207 = vsel %vm2206, %v2199, %v2203
    %v2208 = vand.u32 2147483647, %v2198
    %vm2209 = vcmp.eq.f32.partialorder %v2208, 8.507059e+37
    %v2210 = vand.u32 %v2198, 2147483648
    %v2211 = vor.u32 1.1754944e-38, %v2210
    %v2212 = vsel %vm2209, %v2211, %v2207
    %v2213 = vmul.f32 1.0, %v2212
    %v2214 = vmul.f32 %v2193, %v1947
    %v2215 = vmul.f32 %v2174, %v2194
    %v2216 = vadd.f32 %v2214, %v2215
    %v2217 = vtanh.pop %v2216
    %v2218 = vmul.f32 %v2213, %v2217
    %v2220 = vsel %vm652, %v2218, 0
    %2222 = vmatpush.msra.mxu0 0.0
    %2223 = vmatpush.msra.mxu0 0.0
    %2224 = vmatpush.msra.mxu0 0.0
    %2225 = vmatpush.msra.mxu0 0.0
    %2226 = vmatpush.msra.mxu0 0.0
    %2227 = vmatpush.msra.mxu0 0.0
    %2228 = vmatpush.msra.mxu0 0.0
    %2229 = vmatpush.msra.mxu0 0.0
    %2230 = vmatpush.msra.mxu0 0.0
    %2231 = vmatpush.msra.mxu0 0.0
    %2232 = vmatpush.msra.mxu0 0.0
    %2233 = vmatpush.msra.mxu0 0.0
    %2234 = vmatpush.msra.mxu0 %v1606
    %2235 = vmatpush.msra.mxu0 %v1605
    %2236 = vmatpush.msra.mxu0 %v1604
    %2237 = vmatpush.msra.mxu0 %v1603
    %2238 = vmatmul.f32.gmra.mxu0 %v2220
    %v2239 = vpop.f32.mrf.mxu0
    %v2240 = vadd.f32 %v1607, %v2239
    %2241 = vdwg.mxu0
    %s2242 = scalar_lea.vmem %s25, 2
    %2243 = vst.msk [vmem:[%s2242] sm:$0x3] %vm751, %v2240
    %v2244 = vsel %vm751, %v2240, -inf
    %2245 = vmax.xlane.f32.xlu0 %v2244
    %v2246 = vpop.xlane.xlu0 %2245
    %v2247 = vsub.f32 %v2240, %v2246
    %v2248 = vmul.f32 %v2247, 1.442695
    %v2249 = vpow.pop %v2248
    %v2250 = vsel %vm751, %v2249, 0.0
    %2251 = vadd.xlane.f32.xlu0 %v2250
    %v2252 = vpop.xlane.xlu0 %2251
    %v2253 = vrcp.pop %v2252
    %v2254 = vmul.f32 %v2249, %v2253
    %v2256 = vsel %vm782, %v2254, 0
    %2258 = vmatpush.msra.mxu0 0.0
    %2259 = vmatpush.msra.mxu0 0.0
    %2260 = vmatpush.msra.mxu0 0.0
    %2261 = vmatpush.msra.mxu0 0.0
    %2262 = vmatpush.msra.mxu0 0.0
    %2263 = vmatpush.msra.mxu0 0.0
    %2264 = vmatpush.msra.mxu0 0.0
    %2265 = vmatpush.msra.mxu0 0.0
    %2266 = vmatpush.msra.mxu0 0.0
    %2267 = vmatpush.msra.mxu0 0.0
    %2268 = vmatpush.msra.mxu0 0.0
    %2269 = vmatpush.msra.mxu0 0.0
    %2270 = vmatpush.msra.mxu0 0.0
    %2271 = vmatpush.msra.mxu0 0.0
    %2272 = vmatpush.msra.mxu0 %v1574
    %2273 = vmatpush.msra.mxu0 %v1573
    %2274 = vmatmul.f32.gmra.mxu0 %v2256
    %v2275 = vpop.f32.mrf.mxu0
    %v2276 = vadd.f32 0.0, %v2275
    %2277 = vdwg.mxu0
    %v2278 = vadd.f32 %v1631, %v2276
    %2279 = vmatpush.msra.mxu0 0.0
    %2280 = vmatpush.msra.mxu0 0.0
    %2281 = vmatpush.msra.mxu0 0.0
    %2282 = vmatpush.msra.mxu0 0.0
    %2283 = vmatpush.msra.mxu0 0.0
    %2284 = vmatpush.msra.mxu0 0.0
    %2285 = vmatpush.msra.mxu0 0.0
    %2286 = vmatpush.msra.mxu0 0.0
    %2287 = vmatpush.msra.mxu0 0.0
    %2288 = vmatpush.msra.mxu0 0.0
    %2289 = vmatpush.msra.mxu0 0.0
    %2290 = vmatpush.msra.mxu0 0.0
    %2291 = vmatpush.msra.mxu0 %v1587
    %2292 = vmatpush.msra.mxu0 %v1586
    %2293 = vmatpush.msra.mxu0 %v1585
    %2294 = vmatpush.msra.mxu0 %v1584
    %2295 = vmatmul.f32.gmra.mxu0 %v2220
    %v2296 = vpop.f32.mrf.mxu0
    %v2297 = vadd.f32 0.0, %v2296
    %2298 = vdwg.mxu0
    %v2299 = vadd.f32 %v2278, %v2297
    %2300 = vmatpush.msra.mxu0 0.0
    %2301 = vmatpush.msra.mxu0 0.0
    %2302 = vmatpush.msra.mxu0 0.0
    %2303 = vmatpush.msra.mxu0 0.0
    %2304 = vmatpush.msra.mxu0 0.0
    %2305 = vmatpush.msra.mxu0 0.0
    %2306 = vmatpush.msra.mxu0 0.0
    %2307 = vmatpush.msra.mxu0 0.0
    %2308 = vmatpush.msra.mxu0 0.0
    %2309 = vmatpush.msra.mxu0 0.0
    %2310 = vmatpush.msra.mxu0 0.0
    %2311 = vmatpush.msra.mxu0 0.0
    %2312 = vmatpush.msra.mxu0 0.0
    %2313 = vmatpush.msra.mxu0 0.0
    %2314 = vmatpush.msra.mxu0 %v1577
    %2315 = vmatpush.msra.mxu0 %v1576
    %2316 = vmatmul.f32.gmra.mxu0 %v2256
    %v2317 = vpop.f32.mrf.mxu0
    %v2318 = vadd.f32 0.0, %v2317
    %2319 = vdwg.mxu0
    %v2320 = vadd.f32 %v1658, %v2318
    %2321 = vmatpush.msra.mxu0 0.0
    %2322 = vmatpush.msra.mxu0 0.0
    %2323 = vmatpush.msra.mxu0 0.0
    %2324 = vmatpush.msra.mxu0 0.0
    %2325 = vmatpush.msra.mxu0 0.0
    %2326 = vmatpush.msra.mxu0 0.0
    %2327 = vmatpush.msra.mxu0 0.0
    %2328 = vmatpush.msra.mxu0 0.0
    %2329 = vmatpush.msra.mxu0 0.0
    %2330 = vmatpush.msra.mxu0 0.0
    %2331 = vmatpush.msra.mxu0 0.0
    %2332 = vmatpush.msra.mxu0 0.0
    %2333 = vmatpush.msra.mxu0 %v1592
    %2334 = vmatpush.msra.mxu0 %v1591
    %2335 = vmatpush.msra.mxu0 %v1590
    %2336 = vmatpush.msra.mxu0 %v1589
    %2337 = vmatmul.f32.gmra.mxu0 %v2220
    %v2338 = vpop.f32.mrf.mxu0
    %v2339 = vadd.f32 0.0, %v2338
    %2340 = vdwg.mxu0
    %v2341 = vadd.f32 %v2320, %v2339
    %2342 = vmatpush.msra.mxu0 0.0
    %2343 = vmatpush.msra.mxu0 0.0
    %2344 = vmatpush.msra.mxu0 0.0
    %2345 = vmatpush.msra.mxu0 0.0
    %2346 = vmatpush.msra.mxu0 0.0
    %2347 = vmatpush.msra.mxu0 0.0
    %2348 = vmatpush.msra.mxu0 0.0
    %2349 = vmatpush.msra.mxu0 0.0
    %2350 = vmatpush.msra.mxu0 0.0
    %2351 = vmatpush.msra.mxu0 0.0
    %2352 = vmatpush.msra.mxu0 0.0
    %2353 = vmatpush.msra.mxu0 0.0
    %2354 = vmatpush.msra.mxu0 0.0
    %2355 = vmatpush.msra.mxu0 0.0
    %2356 = vmatpush.msra.mxu0 %v1580
    %2357 = vmatpush.msra.mxu0 %v1579
    %2358 = vmatmul.f32.gmra.mxu0 %v2256
    %v2359 = vpop.f32.mrf.mxu0
    %v2360 = vadd.f32 0.0, %v2359
    %2361 = vdwg.mxu0
    %v2362 = vadd.f32 %v1685, %v2360
    %2363 = vmatpush.msra.mxu0 0.0
    %2364 = vmatpush.msra.mxu0 0.0
    %2365 = vmatpush.msra.mxu0 0.0
    %2366 = vmatpush.msra.mxu0 0.0
    %2367 = vmatpush.msra.mxu0 0.0
    %2368 = vmatpush.msra.mxu0 0.0
    %2369 = vmatpush.msra.mxu0 0.0
    %2370 = vmatpush.msra.mxu0 0.0
    %2371 = vmatpush.msra.mxu0 0.0
    %2372 = vmatpush.msra.mxu0 0.0
    %2373 = vmatpush.msra.mxu0 0.0
    %2374 = vmatpush.msra.mxu0 0.0
    %2375 = vmatpush.msra.mxu0 %v1597
    %2376 = vmatpush.msra.mxu0 %v1596
    %2377 = vmatpush.msra.mxu0 %v1595
    %2378 = vmatpush.msra.mxu0 %v1594
    %2379 = vmatmul.f32.gmra.mxu0 %v2220
    %v2380 = vpop.f32.mrf.mxu0
    %v2381 = vadd.f32 0.0, %v2380
    %2382 = vdwg.mxu0
    %v2383 = vadd.f32 %v2362, %v2381
    %2384 = vmatpush.msra.mxu0 0.0
    %2385 = vmatpush.msra.mxu0 0.0
    %2386 = vmatpush.msra.mxu0 0.0
    %2387 = vmatpush.msra.mxu0 0.0
    %2388 = vmatpush.msra.mxu0 0.0
    %2389 = vmatpush.msra.mxu0 0.0
    %2390 = vmatpush.msra.mxu0 0.0
    %2391 = vmatpush.msra.mxu0 0.0
    %2392 = vmatpush.msra.mxu0 0.0
    %2393 = vmatpush.msra.mxu0 0.0
    %2394 = vmatpush.msra.mxu0 0.0
    %2395 = vmatpush.msra.mxu0 0.0
    %2396 = vmatpush.msra.mxu0 0.0
    %2397 = vmatpush.msra.mxu0 0.0
    %2398 = vmatpush.msra.mxu0 %v1583
    %2399 = vmatpush.msra.mxu0 %v1582
    %2400 = vmatmul.f32.gmra.mxu0 %v2256
    %v2401 = vpop.f32.mrf.mxu0
    %v2402 = vadd.f32 0.0, %v2401
    %2403 = vdwg.mxu0
    %v2404 = vadd.f32 %v1712, %v2402
    %2405 = vmatpush.msra.mxu0 0.0
    %2406 = vmatpush.msra.mxu0 0.0
    %2407 = vmatpush.msra.mxu0 0.0
    %2408 = vmatpush.msra.mxu0 0.0
    %2409 = vmatpush.msra.mxu0 0.0
    %2410 = vmatpush.msra.mxu0 0.0
    %2411 = vmatpush.msra.mxu0 0.0
    %2412 = vmatpush.msra.mxu0 0.0
    %2413 = vmatpush.msra.mxu0 0.0
    %2414 = vmatpush.msra.mxu0 0.0
    %2415 = vmatpush.msra.mxu0 0.0
    %2416 = vmatpush.msra.mxu0 0.0
    %2417 = vmatpush.msra.mxu0 %v1602
    %2418 = vmatpush.msra.mxu0 %v1601
    %2419 = vmatpush.msra.mxu0 %v1600
    %2420 = vmatpush.msra.mxu0 %v1599
    %2421 = vmatmul.f32.gmra.mxu0 %v2220
    %v2422 = vpop.f32.mrf.mxu0
    %v2423 = vadd.f32 0.0, %v2422
    %2424 = vdwg.mxu0
    %v2425 = vadd.f32 %v2404, %v2423
    %v2426 = vxor.u32 %v2299, 2147483648
    %v2427 = vmul.f32 %v2426, 1.442695
    %v2428 = vpow.pop %v2427
    %v2429 = vadd.f32 %v2428, 1.0
    %v2430 = vrcp.pop %v2429
    %v2431 = vmul.f32 %v2429, %v2430
    %v2432 = vsub.f32 1.0, %v2431
    %v2433 = vmul.f32 %v2430, %v2432
    %v2434 = vadd.f32 %v2430, %v2433
    %vm2435 = vweird.f32 %v2429
    %vm2436 = vweird.f32 %v2430
    %vm2437 = vmor %vm2435, %vm2436
    %v2438 = vsel %vm2437, %v2430, %v2434
    %v2439 = vand.u32 2147483647, %v2429
    %vm2440 = vcmp.eq.f32.partialorder %v2439, 8.507059e+37
    %v2441 = vand.u32 %v2429, 2147483648
    %v2442 = vor.u32 1.1754944e-38, %v2441
    %v2443 = vsel %vm2440, %v2442, %v2438
    %v2444 = vmul.f32 1.0, %v2443
    %v2445 = vxor.u32 %v2341, 2147483648
    %v2446 = vmul.f32 %v2445, 1.442695
    %v2447 = vpow.pop %v2446
    %v2448 = vadd.f32 %v2447, 1.0
    %v2449 = vrcp.pop %v2448
    %v2450 = vmul.f32 %v2448, %v2449
    %v2451 = vsub.f32 1.0, %v2450
    %v2452 = vmul.f32 %v2449, %v2451
    %v2453 = vadd.f32 %v2449, %v2452
    %vm2454 = vweird.f32 %v2448
    %vm2455 = vweird.f32 %v2449
    %vm2456 = vmor %vm2454, %vm2455
    %v2457 = vsel %vm2456, %v2449, %v2453
    %v2458 = vand.u32 2147483647, %v2448
    %vm2459 = vcmp.eq.f32.partialorder %v2458, 8.507059e+37
    %v2460 = vand.u32 %v2448, 2147483648
    %v2461 = vor.u32 1.1754944e-38, %v2460
    %v2462 = vsel %vm2459, %v2461, %v2457
    %v2463 = vmul.f32 1.0, %v2462
    %v2464 = vtanh.pop %v2383
    %v2465 = vxor.u32 %v2425, 2147483648
    %v2466 = vmul.f32 %v2465, 1.442695
    %v2467 = vpow.pop %v2466
    %v2468 = vadd.f32 %v2467, 1.0
    %v2469 = vrcp.pop %v2468
    %v2470 = vmul.f32 %v2468, %v2469
    %v2471 = vsub.f32 1.0, %v2470
    %v2472 = vmul.f32 %v2469, %v2471
    %v2473 = vadd.f32 %v2469, %v2472
    %vm2474 = vweird.f32 %v2468
    %vm2475 = vweird.f32 %v2469
    %vm2476 = vmor %vm2474, %vm2475
    %v2477 = vsel %vm2476, %v2469, %v2473
    %v2478 = vand.u32 2147483647, %v2468
    %vm2479 = vcmp.eq.f32.partialorder %v2478, 8.507059e+37
    %v2480 = vand.u32 %v2468, 2147483648
    %v2481 = vor.u32 1.1754944e-38, %v2480
    %v2482 = vsel %vm2479, %v2481, %v2477
    %v2483 = vmul.f32 1.0, %v2482
    %v2484 = vmul.f32 %v2463, %v2216
    %v2485 = vmul.f32 %v2444, %v2464
    %v2486 = vadd.f32 %v2484, %v2485
    %v2487 = vtanh.pop %v2486
    %v2488 = vmul.f32 %v2483, %v2487
    %v2490 = vsel %vm652, %v2488, 0
    %2492 = vmatpush.msra.mxu0 0.0
    %2493 = vmatpush.msra.mxu0 0.0
    %2494 = vmatpush.msra.mxu0 0.0
    %2495 = vmatpush.msra.mxu0 0.0
    %2496 = vmatpush.msra.mxu0 0.0
    %2497 = vmatpush.msra.mxu0 0.0
    %2498 = vmatpush.msra.mxu0 0.0
    %2499 = vmatpush.msra.mxu0 0.0
    %2500 = vmatpush.msra.mxu0 0.0
    %2501 = vmatpush.msra.mxu0 0.0
    %2502 = vmatpush.msra.mxu0 0.0
    %2503 = vmatpush.msra.mxu0 0.0
    %2504 = vmatpush.msra.mxu0 %v1606
    %2505 = vmatpush.msra.mxu0 %v1605
    %2506 = vmatpush.msra.mxu0 %v1604
    %2507 = vmatpush.msra.mxu0 %v1603
    %2508 = vmatmul.f32.gmra.mxu0 %v2490
    %v2509 = vpop.f32.mrf.mxu0
    %v2510 = vadd.f32 %v1607, %v2509
    %2511 = vdwg.mxu0
    %s2512 = scalar_lea.vmem %s25, 4
    %2513 = vst.msk [vmem:[%s2512] sm:$0x3] %vm751, %v2510
    %v2514 = vsel %vm751, %v2510, -inf
    %2515 = vmax.xlane.f32.xlu0 %v2514
    %v2516 = vpop.xlane.xlu0 %2515
    %v2517 = vsub.f32 %v2510, %v2516
    %v2518 = vmul.f32 %v2517, 1.442695
    %v2519 = vpow.pop %v2518
    %v2520 = vsel %vm751, %v2519, 0.0
    %2521 = vadd.xlane.f32.xlu0 %v2520
    %v2522 = vpop.xlane.xlu0 %2521
    %v2523 = vrcp.pop %v2522
    %v2524 = vmul.f32 %v2519, %v2523
    %v2526 = vsel %vm782, %v2524, 0
    %2528 = vmatpush.msra.mxu0 0.0
    %2529 = vmatpush.msra.mxu0 0.0
    %2530 = vmatpush.msra.mxu0 0.0
    %2531 = vmatpush.msra.mxu0 0.0
    %2532 = vmatpush.msra.mxu0 0.0
    %2533 = vmatpush.msra.mxu0 0.0
    %2534 = vmatpush.msra.mxu0 0.0
    %2535 = vmatpush.msra.mxu0 0.0
    %2536 = vmatpush.msra.mxu0 0.0
    %2537 = vmatpush.msra.mxu0 0.0
    %2538 = vmatpush.msra.mxu0 0.0
    %2539 = vmatpush.msra.mxu0 0.0
    %2540 = vmatpush.msra.mxu0 0.0
    %2541 = vmatpush.msra.mxu0 0.0
    %2542 = vmatpush.msra.mxu0 %v1574
    %2543 = vmatpush.msra.mxu0 %v1573
    %2544 = vmatmul.f32.gmra.mxu0 %v2526
    %v2545 = vpop.f32.mrf.mxu0
    %v2546 = vadd.f32 0.0, %v2545
    %2547 = vdwg.mxu0
    %v2548 = vadd.f32 %v1631, %v2546
    %2549 = vmatpush.msra.mxu0 0.0
    %2550 = vmatpush.msra.mxu0 0.0
    %2551 = vmatpush.msra.mxu0 0.0
    %2552 = vmatpush.msra.mxu0 0.0
    %2553 = vmatpush.msra.mxu0 0.0
    %2554 = vmatpush.msra.mxu0 0.0
    %2555 = vmatpush.msra.mxu0 0.0
    %2556 = vmatpush.msra.mxu0 0.0
    %2557 = vmatpush.msra.mxu0 0.0
    %2558 = vmatpush.msra.mxu0 0.0
    %2559 = vmatpush.msra.mxu0 0.0
    %2560 = vmatpush.msra.mxu0 0.0
    %2561 = vmatpush.msra.mxu0 %v1587
    %2562 = vmatpush.msra.mxu0 %v1586
    %2563 = vmatpush.msra.mxu0 %v1585
    %2564 = vmatpush.msra.mxu0 %v1584
    %2565 = vmatmul.f32.gmra.mxu0 %v2490
    %v2566 = vpop.f32.mrf.mxu0
    %v2567 = vadd.f32 0.0, %v2566
    %2568 = vdwg.mxu0
    %v2569 = vadd.f32 %v2548, %v2567
    %2570 = vmatpush.msra.mxu0 0.0
    %2571 = vmatpush.msra.mxu0 0.0
    %2572 = vmatpush.msra.mxu0 0.0
    %2573 = vmatpush.msra.mxu0 0.0
    %2574 = vmatpush.msra.mxu0 0.0
    %2575 = vmatpush.msra.mxu0 0.0
    %2576 = vmatpush.msra.mxu0 0.0
    %2577 = vmatpush.msra.mxu0 0.0
    %2578 = vmatpush.msra.mxu0 0.0
    %2579 = vmatpush.msra.mxu0 0.0
    %2580 = vmatpush.msra.mxu0 0.0
    %2581 = vmatpush.msra.mxu0 0.0
    %2582 = vmatpush.msra.mxu0 0.0
    %2583 = vmatpush.msra.mxu0 0.0
    %2584 = vmatpush.msra.mxu0 %v1577
    %2585 = vmatpush.msra.mxu0 %v1576
    %2586 = vmatmul.f32.gmra.mxu0 %v2526
    %v2587 = vpop.f32.mrf.mxu0
    %v2588 = vadd.f32 0.0, %v2587
    %2589 = vdwg.mxu0
    %v2590 = vadd.f32 %v1658, %v2588
    %2591 = vmatpush.msra.mxu0 0.0
    %2592 = vmatpush.msra.mxu0 0.0
    %2593 = vmatpush.msra.mxu0 0.0
    %2594 = vmatpush.msra.mxu0 0.0
    %2595 = vmatpush.msra.mxu0 0.0
    %2596 = vmatpush.msra.mxu0 0.0
    %2597 = vmatpush.msra.mxu0 0.0
    %2598 = vmatpush.msra.mxu0 0.0
    %2599 = vmatpush.msra.mxu0 0.0
    %2600 = vmatpush.msra.mxu0 0.0
    %2601 = vmatpush.msra.mxu0 0.0
    %2602 = vmatpush.msra.mxu0 0.0
    %2603 = vmatpush.msra.mxu0 %v1592
    %2604 = vmatpush.msra.mxu0 %v1591
    %2605 = vmatpush.msra.mxu0 %v1590
    %2606 = vmatpush.msra.mxu0 %v1589
    %2607 = vmatmul.f32.gmra.mxu0 %v2490
    %v2608 = vpop.f32.mrf.mxu0
    %v2609 = vadd.f32 0.0, %v2608
    %2610 = vdwg.mxu0
    %v2611 = vadd.f32 %v2590, %v2609
    %2612 = vmatpush.msra.mxu0 0.0
    %2613 = vmatpush.msra.mxu0 0.0
    %2614 = vmatpush.msra.mxu0 0.0
    %2615 = vmatpush.msra.mxu0 0.0
    %2616 = vmatpush.msra.mxu0 0.0
    %2617 = vmatpush.msra.mxu0 0.0
    %2618 = vmatpush.msra.mxu0 0.0
    %2619 = vmatpush.msra.mxu0 0.0
    %2620 = vmatpush.msra.mxu0 0.0
    %2621 = vmatpush.msra.mxu0 0.0
    %2622 = vmatpush.msra.mxu0 0.0
    %2623 = vmatpush.msra.mxu0 0.0
    %2624 = vmatpush.msra.mxu0 0.0
    %2625 = vmatpush.msra.mxu0 0.0
    %2626 = vmatpush.msra.mxu0 %v1580
    %2627 = vmatpush.msra.mxu0 %v1579
    %2628 = vmatmul.f32.gmra.mxu0 %v2526
    %v2629 = vpop.f32.mrf.mxu0
    %v2630 = vadd.f32 0.0, %v2629
    %2631 = vdwg.mxu0
    %v2632 = vadd.f32 %v1685, %v2630
    %2633 = vmatpush.msra.mxu0 0.0
    %2634 = vmatpush.msra.mxu0 0.0
    %2635 = vmatpush.msra.mxu0 0.0
    %2636 = vmatpush.msra.mxu0 0.0
    %2637 = vmatpush.msra.mxu0 0.0
    %2638 = vmatpush.msra.mxu0 0.0
    %2639 = vmatpush.msra.mxu0 0.0
    %2640 = vmatpush.msra.mxu0 0.0
    %2641 = vmatpush.msra.mxu0 0.0
    %2642 = vmatpush.msra.mxu0 0.0
    %2643 = vmatpush.msra.mxu0 0.0
    %2644 = vmatpush.msra.mxu0 0.0
    %2645 = vmatpush.msra.mxu0 %v1597
    %2646 = vmatpush.msra.mxu0 %v1596
    %2647 = vmatpush.msra.mxu0 %v1595
    %2648 = vmatpush.msra.mxu0 %v1594
    %2649 = vmatmul.f32.gmra.mxu0 %v2490
    %v2650 = vpop.f32.mrf.mxu0
    %v2651 = vadd.f32 0.0, %v2650
    %2652 = vdwg.mxu0
    %v2653 = vadd.f32 %v2632, %v2651
    %2654 = vmatpush.msra.mxu0 0.0
    %2655 = vmatpush.msra.mxu0 0.0
    %2656 = vmatpush.msra.mxu0 0.0
    %2657 = vmatpush.msra.mxu0 0.0
    %2658 = vmatpush.msra.mxu0 0.0
    %2659 = vmatpush.msra.mxu0 0.0
    %2660 = vmatpush.msra.mxu0 0.0
    %2661 = vmatpush.msra.mxu0 0.0
    %2662 = vmatpush.msra.mxu0 0.0
    %2663 = vmatpush.msra.mxu0 0.0
    %2664 = vmatpush.msra.mxu0 0.0
    %2665 = vmatpush.msra.mxu0 0.0
    %2666 = vmatpush.msra.mxu0 0.0
    %2667 = vmatpush.msra.mxu0 0.0
    %2668 = vmatpush.msra.mxu0 %v1583
    %2669 = vmatpush.msra.mxu0 %v1582
    %2670 = vmatmul.f32.gmra.mxu0 %v2526
    %v2671 = vpop.f32.mrf.mxu0
    %v2672 = vadd.f32 0.0, %v2671
    %2673 = vdwg.mxu0
    %v2674 = vadd.f32 %v1712, %v2672
    %2675 = vmatpush.msra.mxu0 0.0
    %2676 = vmatpush.msra.mxu0 0.0
    %2677 = vmatpush.msra.mxu0 0.0
    %2678 = vmatpush.msra.mxu0 0.0
    %2679 = vmatpush.msra.mxu0 0.0
    %2680 = vmatpush.msra.mxu0 0.0
    %2681 = vmatpush.msra.mxu0 0.0
    %2682 = vmatpush.msra.mxu0 0.0
    %2683 = vmatpush.msra.mxu0 0.0
    %2684 = vmatpush.msra.mxu0 0.0
    %2685 = vmatpush.msra.mxu0 0.0
    %2686 = vmatpush.msra.mxu0 0.0
    %2687 = vmatpush.msra.mxu0 %v1602
    %2688 = vmatpush.msra.mxu0 %v1601
    %2689 = vmatpush.msra.mxu0 %v1600
    %2690 = vmatpush.msra.mxu0 %v1599
    %2691 = vmatmul.f32.gmra.mxu0 %v2490
    %v2692 = vpop.f32.mrf.mxu0
    %v2693 = vadd.f32 0.0, %v2692
    %2694 = vdwg.mxu0
    %v2695 = vadd.f32 %v2674, %v2693
    %v2696 = vxor.u32 %v2569, 2147483648
    %v2697 = vmul.f32 %v2696, 1.442695
    %v2698 = vpow.pop %v2697
    %v2699 = vadd.f32 %v2698, 1.0
    %v2700 = vrcp.pop %v2699
    %v2701 = vmul.f32 %v2699, %v2700
    %v2702 = vsub.f32 1.0, %v2701
    %v2703 = vmul.f32 %v2700, %v2702
    %v2704 = vadd.f32 %v2700, %v2703
    %vm2705 = vweird.f32 %v2699
    %vm2706 = vweird.f32 %v2700
    %vm2707 = vmor %vm2705, %vm2706
    %v2708 = vsel %vm2707, %v2700, %v2704
    %v2709 = vand.u32 2147483647, %v2699
    %vm2710 = vcmp.eq.f32.partialorder %v2709, 8.507059e+37
    %v2711 = vand.u32 %v2699, 2147483648
    %v2712 = vor.u32 1.1754944e-38, %v2711
    %v2713 = vsel %vm2710, %v2712, %v2708
    %v2714 = vmul.f32 1.0, %v2713
    %v2715 = vxor.u32 %v2611, 2147483648
    %v2716 = vmul.f32 %v2715, 1.442695
    %v2717 = vpow.pop %v2716
    %v2718 = vadd.f32 %v2717, 1.0
    %v2719 = vrcp.pop %v2718
    %v2720 = vmul.f32 %v2718, %v2719
    %v2721 = vsub.f32 1.0, %v2720
    %v2722 = vmul.f32 %v2719, %v2721
    %v2723 = vadd.f32 %v2719, %v2722
    %vm2724 = vweird.f32 %v2718
    %vm2725 = vweird.f32 %v2719
    %vm2726 = vmor %vm2724, %vm2725
    %v2727 = vsel %vm2726, %v2719, %v2723
    %v2728 = vand.u32 2147483647, %v2718
    %vm2729 = vcmp.eq.f32.partialorder %v2728, 8.507059e+37
    %v2730 = vand.u32 %v2718, 2147483648
    %v2731 = vor.u32 1.1754944e-38, %v2730
    %v2732 = vsel %vm2729, %v2731, %v2727
    %v2733 = vmul.f32 1.0, %v2732
    %v2734 = vtanh.pop %v2653
    %v2735 = vxor.u32 %v2695, 2147483648
    %v2736 = vmul.f32 %v2735, 1.442695
    %v2737 = vpow.pop %v2736
    %v2738 = vadd.f32 %v2737, 1.0
    %v2739 = vrcp.pop %v2738
    %v2740 = vmul.f32 %v2738, %v2739
    %v2741 = vsub.f32 1.0, %v2740
    %v2742 = vmul.f32 %v2739, %v2741
    %v2743 = vadd.f32 %v2739, %v2742
    %vm2744 = vweird.f32 %v2738
    %vm2745 = vweird.f32 %v2739
    %vm2746 = vmor %vm2744, %vm2745
    %v2747 = vsel %vm2746, %v2739, %v2743
    %v2748 = vand.u32 2147483647, %v2738
    %vm2749 = vcmp.eq.f32.partialorder %v2748, 8.507059e+37
    %v2750 = vand.u32 %v2738, 2147483648
    %v2751 = vor.u32 1.1754944e-38, %v2750
    %v2752 = vsel %vm2749, %v2751, %v2747
    %v2753 = vmul.f32 1.0, %v2752
    %v2754 = vmul.f32 %v2733, %v2486
    %v2755 = vmul.f32 %v2714, %v2734
    %v2756 = vadd.f32 %v2754, %v2755
    %v2757 = vtanh.pop %v2756
    %v2758 = vmul.f32 %v2753, %v2757
    %v2760 = vsel %vm652, %v2758, 0
    %2762 = vmatpush.msra.mxu0 0.0
    %2763 = vmatpush.msra.mxu0 0.0
    %2764 = vmatpush.msra.mxu0 0.0
    %2765 = vmatpush.msra.mxu0 0.0
    %2766 = vmatpush.msra.mxu0 0.0
    %2767 = vmatpush.msra.mxu0 0.0
    %2768 = vmatpush.msra.mxu0 0.0
    %2769 = vmatpush.msra.mxu0 0.0
    %2770 = vmatpush.msra.mxu0 0.0
    %2771 = vmatpush.msra.mxu0 0.0
    %2772 = vmatpush.msra.mxu0 0.0
    %2773 = vmatpush.msra.mxu0 0.0
    %2774 = vmatpush.msra.mxu0 %v1606
    %2775 = vmatpush.msra.mxu0 %v1605
    %2776 = vmatpush.msra.mxu0 %v1604
    %2777 = vmatpush.msra.mxu0 %v1603
    %2778 = vmatmul.f32.gmra.mxu0 %v2760
    %v2779 = vpop.f32.mrf.mxu0
    %v2780 = vadd.f32 %v1607, %v2779
    %2781 = vdwg.mxu0
    %s2782 = scalar_lea.vmem %s25, 6
    %2783 = vst.msk [vmem:[%s2782] sm:$0x3] %vm751, %v2780
    %v2784 = vsel %vm751, %v2780, -inf
    %2785 = vmax.xlane.f32.xlu0 %v2784
    %v2786 = vpop.xlane.xlu0 %2785
    %v2787 = vsub.f32 %v2780, %v2786
    %v2788 = vmul.f32 %v2787, 1.442695
    %v2789 = vpow.pop %v2788
    %v2790 = vsel %vm751, %v2789, 0.0
    %2791 = vadd.xlane.f32.xlu0 %v2790
    %v2792 = vpop.xlane.xlu0 %2791
    %v2793 = vrcp.pop %v2792
    %v2794 = vmul.f32 %v2789, %v2793
    %v2795 = vld [vmem:[%s20] sm:$0xff]
    %v2796 = vld [vmem:[%s20 + $0x8] sm:$0xff]
    %v2797 = vld [vmem:[%s20 + $0x10] sm:$0xff]
    %v2798 = vld [vmem:[%s20 + $0x18] sm:$0xff]
    %v2799 = vld [vmem:[%s22] sm:$0x3]
    %2800 = vmatpush.msra.mxu0 0.0
    %2801 = vmatpush.msra.mxu0 0.0
    %2802 = vmatpush.msra.mxu0 0.0
    %2803 = vmatpush.msra.mxu0 0.0
    %2804 = vmatpush.msra.mxu0 0.0
    %2805 = vmatpush.msra.mxu0 0.0
    %2806 = vmatpush.msra.mxu0 0.0
    %2807 = vmatpush.msra.mxu0 0.0
    %2808 = vmatpush.msra.mxu0 0.0
    %2809 = vmatpush.msra.mxu0 0.0
    %2810 = vmatpush.msra.mxu0 0.0
    %2811 = vmatpush.msra.mxu0 0.0
    %2812 = vmatpush.msra.mxu0 %v2798
    %2813 = vmatpush.msra.mxu0 %v2797
    %2814 = vmatpush.msra.mxu0 %v2796
    %2815 = vmatpush.msra.mxu0 %v2795
    %2816 = vmatmul.f32.gmra.mxu0 %v1208
    %v2817 = vpop.f32.mrf.mxu0
    %v2818 = vadd.f32 %v2799, %v2817
    %2819 = vdwg.mxu0
    %v2820 = vld [vmem:[%s1633] sm:$0xff]
    %v2821 = vld [vmem:[%s1633 + $0x8] sm:$0xff]
    %v2822 = vld [vmem:[%s1633 + $0x10] sm:$0xff]
    %v2823 = vld [vmem:[%s1633 + $0x18] sm:$0xff]
    %v2824 = vld [vmem:[%s1638] sm:$0x3]
    %2825 = vmatpush.msra.mxu0 0.0
    %2826 = vmatpush.msra.mxu0 0.0
    %2827 = vmatpush.msra.mxu0 0.0
    %2828 = vmatpush.msra.mxu0 0.0
    %2829 = vmatpush.msra.mxu0 0.0
    %2830 = vmatpush.msra.mxu0 0.0
    %2831 = vmatpush.msra.mxu0 0.0
    %2832 = vmatpush.msra.mxu0 0.0
    %2833 = vmatpush.msra.mxu0 0.0
    %2834 = vmatpush.msra.mxu0 0.0
    %2835 = vmatpush.msra.mxu0 0.0
    %2836 = vmatpush.msra.mxu0 0.0
    %2837 = vmatpush.msra.mxu0 %v2823
    %2838 = vmatpush.msra.mxu0 %v2822
    %2839 = vmatpush.msra.mxu0 %v2821
    %2840 = vmatpush.msra.mxu0 %v2820
    %2841 = vmatmul.f32.gmra.mxu0 %v1208
    %v2842 = vpop.f32.mrf.mxu0
    %v2843 = vadd.f32 %v2824, %v2842
    %2844 = vdwg.mxu0
    %v2845 = vld [vmem:[%s1660] sm:$0xff]
    %v2846 = vld [vmem:[%s1660 + $0x8] sm:$0xff]
    %v2847 = vld [vmem:[%s1660 + $0x10] sm:$0xff]
    %v2848 = vld [vmem:[%s1660 + $0x18] sm:$0xff]
    %v2849 = vld [vmem:[%s1665] sm:$0x3]
    %2850 = vmatpush.msra.mxu0 0.0
    %2851 = vmatpush.msra.mxu0 0.0
    %2852 = vmatpush.msra.mxu0 0.0
    %2853 = vmatpush.msra.mxu0 0.0
    %2854 = vmatpush.msra.mxu0 0.0
    %2855 = vmatpush.msra.mxu0 0.0
    %2856 = vmatpush.msra.mxu0 0.0
    %2857 = vmatpush.msra.mxu0 0.0
    %2858 = vmatpush.msra.mxu0 0.0
    %2859 = vmatpush.msra.mxu0 0.0
    %2860 = vmatpush.msra.mxu0 0.0
    %2861 = vmatpush.msra.mxu0 0.0
    %2862 = vmatpush.msra.mxu0 %v2848
    %2863 = vmatpush.msra.mxu0 %v2847
    %2864 = vmatpush.msra.mxu0 %v2846
    %2865 = vmatpush.msra.mxu0 %v2845
    %2866 = vmatmul.f32.gmra.mxu0 %v1208
    %v2867 = vpop.f32.mrf.mxu0
    %v2868 = vadd.f32 %v2849, %v2867
    %2869 = vdwg.mxu0
    %v2870 = vld [vmem:[%s1687] sm:$0xff]
    %v2871 = vld [vmem:[%s1687 + $0x8] sm:$0xff]
    %v2872 = vld [vmem:[%s1687 + $0x10] sm:$0xff]
    %v2873 = vld [vmem:[%s1687 + $0x18] sm:$0xff]
    %v2874 = vld [vmem:[%s1692] sm:$0x3]
    %2875 = vmatpush.msra.mxu0 0.0
    %2876 = vmatpush.msra.mxu0 0.0
    %2877 = vmatpush.msra.mxu0 0.0
    %2878 = vmatpush.msra.mxu0 0.0
    %2879 = vmatpush.msra.mxu0 0.0
    %2880 = vmatpush.msra.mxu0 0.0
    %2881 = vmatpush.msra.mxu0 0.0
    %2882 = vmatpush.msra.mxu0 0.0
    %2883 = vmatpush.msra.mxu0 0.0
    %2884 = vmatpush.msra.mxu0 0.0
    %2885 = vmatpush.msra.mxu0 0.0
    %2886 = vmatpush.msra.mxu0 0.0
    %2887 = vmatpush.msra.mxu0 %v2873
    %2888 = vmatpush.msra.mxu0 %v2872
    %2889 = vmatpush.msra.mxu0 %v2871
    %2890 = vmatpush.msra.mxu0 %v2870
    %2891 = vmatmul.f32.gmra.mxu0 %v1208
    %v2892 = vpop.f32.mrf.mxu0
    %v2893 = vadd.f32 %v2874, %v2892
    %2894 = vdwg.mxu0
    %v2896 = vsel %vm782, %v2794, 0
    %2898 = vmatpush.msra.mxu0 0.0
    %2899 = vmatpush.msra.mxu0 0.0
    %2900 = vmatpush.msra.mxu0 0.0
    %2901 = vmatpush.msra.mxu0 0.0
    %2902 = vmatpush.msra.mxu0 0.0
    %2903 = vmatpush.msra.mxu0 0.0
    %2904 = vmatpush.msra.mxu0 0.0
    %2905 = vmatpush.msra.mxu0 0.0
    %2906 = vmatpush.msra.mxu0 0.0
    %2907 = vmatpush.msra.mxu0 0.0
    %2908 = vmatpush.msra.mxu0 0.0
    %2909 = vmatpush.msra.mxu0 0.0
    %2910 = vmatpush.msra.mxu0 0.0
    %2911 = vmatpush.msra.mxu0 0.0
    %2912 = vmatpush.msra.mxu0 %v1574
    %2913 = vmatpush.msra.mxu0 %v1573
    %2914 = vmatmul.f32.gmra.mxu0 %v2896
    %v2915 = vpop.f32.mrf.mxu0
    %v2916 = vadd.f32 0.0, %v2915
    %2917 = vdwg.mxu0
    %v2918 = vadd.f32 %v2818, %v2916
    %v2920 = vsel %vm652, %v1230, 0
    %2922 = vmatpush.msra.mxu0 0.0
    %2923 = vmatpush.msra.mxu0 0.0
    %2924 = vmatpush.msra.mxu0 0.0
    %2925 = vmatpush.msra.mxu0 0.0
    %2926 = vmatpush.msra.mxu0 0.0
    %2927 = vmatpush.msra.mxu0 0.0
    %2928 = vmatpush.msra.mxu0 0.0
    %2929 = vmatpush.msra.mxu0 0.0
    %2930 = vmatpush.msra.mxu0 0.0
    %2931 = vmatpush.msra.mxu0 0.0
    %2932 = vmatpush.msra.mxu0 0.0
    %2933 = vmatpush.msra.mxu0 0.0
    %2934 = vmatpush.msra.mxu0 %v1587
    %2935 = vmatpush.msra.mxu0 %v1586
    %2936 = vmatpush.msra.mxu0 %v1585
    %2937 = vmatpush.msra.mxu0 %v1584
    %2938 = vmatmul.f32.gmra.mxu0 %v2920
    %v2939 = vpop.f32.mrf.mxu0
    %v2940 = vadd.f32 0.0, %v2939
    %2941 = vdwg.mxu0
    %v2942 = vadd.f32 %v2918, %v2940
    %2943 = vmatpush.msra.mxu0 0.0
    %2944 = vmatpush.msra.mxu0 0.0
    %2945 = vmatpush.msra.mxu0 0.0
    %2946 = vmatpush.msra.mxu0 0.0
    %2947 = vmatpush.msra.mxu0 0.0
    %2948 = vmatpush.msra.mxu0 0.0
    %2949 = vmatpush.msra.mxu0 0.0
    %2950 = vmatpush.msra.mxu0 0.0
    %2951 = vmatpush.msra.mxu0 0.0
    %2952 = vmatpush.msra.mxu0 0.0
    %2953 = vmatpush.msra.mxu0 0.0
    %2954 = vmatpush.msra.mxu0 0.0
    %2955 = vmatpush.msra.mxu0 0.0
    %2956 = vmatpush.msra.mxu0 0.0
    %2957 = vmatpush.msra.mxu0 %v1577
    %2958 = vmatpush.msra.mxu0 %v1576
    %2959 = vmatmul.f32.gmra.mxu0 %v2896
    %v2960 = vpop.f32.mrf.mxu0
    %v2961 = vadd.f32 0.0, %v2960
    %2962 = vdwg.mxu0
    %v2963 = vadd.f32 %v2843, %v2961
    %2964 = vmatpush.msra.mxu0 0.0
    %2965 = vmatpush.msra.mxu0 0.0
    %2966 = vmatpush.msra.mxu0 0.0
    %2967 = vmatpush.msra.mxu0 0.0
    %2968 = vmatpush.msra.mxu0 0.0
    %2969 = vmatpush.msra.mxu0 0.0
    %2970 = vmatpush.msra.mxu0 0.0
    %2971 = vmatpush.msra.mxu0 0.0
    %2972 = vmatpush.msra.mxu0 0.0
    %2973 = vmatpush.msra.mxu0 0.0
    %2974 = vmatpush.msra.mxu0 0.0
    %2975 = vmatpush.msra.mxu0 0.0
    %2976 = vmatpush.msra.mxu0 %v1592
    %2977 = vmatpush.msra.mxu0 %v1591
    %2978 = vmatpush.msra.mxu0 %v1590
    %2979 = vmatpush.msra.mxu0 %v1589
    %2980 = vmatmul.f32.gmra.mxu0 %v2920
    %v2981 = vpop.f32.mrf.mxu0
    %v2982 = vadd.f32 0.0, %v2981
    %2983 = vdwg.mxu0
    %v2984 = vadd.f32 %v2963, %v2982
    %2985 = vmatpush.msra.mxu0 0.0
    %2986 = vmatpush.msra.mxu0 0.0
    %2987 = vmatpush.msra.mxu0 0.0
    %2988 = vmatpush.msra.mxu0 0.0
    %2989 = vmatpush.msra.mxu0 0.0
    %2990 = vmatpush.msra.mxu0 0.0
    %2991 = vmatpush.msra.mxu0 0.0
    %2992 = vmatpush.msra.mxu0 0.0
    %2993 = vmatpush.msra.mxu0 0.0
    %2994 = vmatpush.msra.mxu0 0.0
    %2995 = vmatpush.msra.mxu0 0.0
    %2996 = vmatpush.msra.mxu0 0.0
    %2997 = vmatpush.msra.mxu0 0.0
    %2998 = vmatpush.msra.mxu0 0.0
    %2999 = vmatpush.msra.mxu0 %v1580
    %3000 = vmatpush.msra.mxu0 %v1579
    %3001 = vmatmul.f32.gmra.mxu0 %v2896
    %v3002 = vpop.f32.mrf.mxu0
    %v3003 = vadd.f32 0.0, %v3002
    %3004 = vdwg.mxu0
    %v3005 = vadd.f32 %v2868, %v3003
    %3006 = vmatpush.msra.mxu0 0.0
    %3007 = vmatpush.msra.mxu0 0.0
    %3008 = vmatpush.msra.mxu0 0.0
    %3009 = vmatpush.msra.mxu0 0.0
    %3010 = vmatpush.msra.mxu0 0.0
    %3011 = vmatpush.msra.mxu0 0.0
    %3012 = vmatpush.msra.mxu0 0.0
    %3013 = vmatpush.msra.mxu0 0.0
    %3014 = vmatpush.msra.mxu0 0.0
    %3015 = vmatpush.msra.mxu0 0.0
    %3016 = vmatpush.msra.mxu0 0.0
    %3017 = vmatpush.msra.mxu0 0.0
    %3018 = vmatpush.msra.mxu0 %v1597
    %3019 = vmatpush.msra.mxu0 %v1596
    %3020 = vmatpush.msra.mxu0 %v1595
    %3021 = vmatpush.msra.mxu0 %v1594
    %3022 = vmatmul.f32.gmra.mxu0 %v2920
    %v3023 = vpop.f32.mrf.mxu0
    %v3024 = vadd.f32 0.0, %v3023
    %3025 = vdwg.mxu0
    %v3026 = vadd.f32 %v3005, %v3024
    %3027 = vmatpush.msra.mxu0 0.0
    %3028 = vmatpush.msra.mxu0 0.0
    %3029 = vmatpush.msra.mxu0 0.0
    %3030 = vmatpush.msra.mxu0 0.0
    %3031 = vmatpush.msra.mxu0 0.0
    %3032 = vmatpush.msra.mxu0 0.0
    %3033 = vmatpush.msra.mxu0 0.0
    %3034 = vmatpush.msra.mxu0 0.0
    %3035 = vmatpush.msra.mxu0 0.0
    %3036 = vmatpush.msra.mxu0 0.0
    %3037 = vmatpush.msra.mxu0 0.0
    %3038 = vmatpush.msra.mxu0 0.0
    %3039 = vmatpush.msra.mxu0 0.0
    %3040 = vmatpush.msra.mxu0 0.0
    %3041 = vmatpush.msra.mxu0 %v1583
    %3042 = vmatpush.msra.mxu0 %v1582
    %3043 = vmatmul.f32.gmra.mxu0 %v2896
    %v3044 = vpop.f32.mrf.mxu0
    %v3045 = vadd.f32 0.0, %v3044
    %3046 = vdwg.mxu0
    %v3047 = vadd.f32 %v2893, %v3045
    %3048 = vmatpush.msra.mxu0 0.0
    %3049 = vmatpush.msra.mxu0 0.0
    %3050 = vmatpush.msra.mxu0 0.0
    %3051 = vmatpush.msra.mxu0 0.0
    %3052 = vmatpush.msra.mxu0 0.0
    %3053 = vmatpush.msra.mxu0 0.0
    %3054 = vmatpush.msra.mxu0 0.0
    %3055 = vmatpush.msra.mxu0 0.0
    %3056 = vmatpush.msra.mxu0 0.0
    %3057 = vmatpush.msra.mxu0 0.0
    %3058 = vmatpush.msra.mxu0 0.0
    %3059 = vmatpush.msra.mxu0 0.0
    %3060 = vmatpush.msra.mxu0 %v1602
    %3061 = vmatpush.msra.mxu0 %v1601
    %3062 = vmatpush.msra.mxu0 %v1600
    %3063 = vmatpush.msra.mxu0 %v1599
    %3064 = vmatmul.f32.gmra.mxu0 %v2920
    %v3065 = vpop.f32.mrf.mxu0
    %v3066 = vadd.f32 0.0, %v3065
    %3067 = vdwg.mxu0
    %v3068 = vadd.f32 %v3047, %v3066
    %v3069 = vxor.u32 %v2942, 2147483648
    %v3070 = vmul.f32 %v3069, 1.442695
    %v3071 = vpow.pop %v3070
    %v3072 = vadd.f32 %v3071, 1.0
    %v3073 = vrcp.pop %v3072
    %v3074 = vmul.f32 %v3072, %v3073
    %v3075 = vsub.f32 1.0, %v3074
    %v3076 = vmul.f32 %v3073, %v3075
    %v3077 = vadd.f32 %v3073, %v3076
    %vm3078 = vweird.f32 %v3072
    %vm3079 = vweird.f32 %v3073
    %vm3080 = vmor %vm3078, %vm3079
    %v3081 = vsel %vm3080, %v3073, %v3077
    %v3082 = vand.u32 2147483647, %v3072
    %vm3083 = vcmp.eq.f32.partialorder %v3082, 8.507059e+37
    %v3084 = vand.u32 %v3072, 2147483648
    %v3085 = vor.u32 1.1754944e-38, %v3084
    %v3086 = vsel %vm3083, %v3085, %v3081
    %v3087 = vmul.f32 1.0, %v3086
    %v3088 = vxor.u32 %v2984, 2147483648
    %v3089 = vmul.f32 %v3088, 1.442695
    %v3090 = vpow.pop %v3089
    %v3091 = vadd.f32 %v3090, 1.0
    %v3092 = vrcp.pop %v3091
    %v3093 = vmul.f32 %v3091, %v3092
    %v3094 = vsub.f32 1.0, %v3093
    %v3095 = vmul.f32 %v3092, %v3094
    %v3096 = vadd.f32 %v3092, %v3095
    %vm3097 = vweird.f32 %v3091
    %vm3098 = vweird.f32 %v3092
    %vm3099 = vmor %vm3097, %vm3098
    %v3100 = vsel %vm3099, %v3092, %v3096
    %v3101 = vand.u32 2147483647, %v3091
    %vm3102 = vcmp.eq.f32.partialorder %v3101, 8.507059e+37
    %v3103 = vand.u32 %v3091, 2147483648
    %v3104 = vor.u32 1.1754944e-38, %v3103
    %v3105 = vsel %vm3102, %v3104, %v3100
    %v3106 = vmul.f32 1.0, %v3105
    %v3107 = vtanh.pop %v3026
    %v3108 = vxor.u32 %v3068, 2147483648
    %v3109 = vmul.f32 %v3108, 1.442695
    %v3110 = vpow.pop %v3109
    %v3111 = vadd.f32 %v3110, 1.0
    %v3112 = vrcp.pop %v3111
    %v3113 = vmul.f32 %v3111, %v3112
    %v3114 = vsub.f32 1.0, %v3113
    %v3115 = vmul.f32 %v3112, %v3114
    %v3116 = vadd.f32 %v3112, %v3115
    %vm3117 = vweird.f32 %v3111
    %vm3118 = vweird.f32 %v3112
    %vm3119 = vmor %vm3117, %vm3118
    %v3120 = vsel %vm3119, %v3112, %v3116
    %v3121 = vand.u32 2147483647, %v3111
    %vm3122 = vcmp.eq.f32.partialorder %v3121, 8.507059e+37
    %v3123 = vand.u32 %v3111, 2147483648
    %v3124 = vor.u32 1.1754944e-38, %v3123
    %v3125 = vsel %vm3122, %v3124, %v3120
    %v3126 = vmul.f32 1.0, %v3125
    %v3127 = vmul.f32 %v3106, 0.0
    %v3128 = vmul.f32 %v3087, %v3107
    %v3129 = vadd.f32 %v3127, %v3128
    %v3130 = vtanh.pop %v3129
    %v3131 = vmul.f32 %v3126, %v3130
    %v3133 = vsel %vm652, %v3131, 0
    %3135 = vmatpush.msra.mxu0 0.0
    %3136 = vmatpush.msra.mxu0 0.0
    %3137 = vmatpush.msra.mxu0 0.0
    %3138 = vmatpush.msra.mxu0 0.0
    %3139 = vmatpush.msra.mxu0 0.0
    %3140 = vmatpush.msra.mxu0 0.0
    %3141 = vmatpush.msra.mxu0 0.0
    %3142 = vmatpush.msra.mxu0 0.0
    %3143 = vmatpush.msra.mxu0 0.0
    %3144 = vmatpush.msra.mxu0 0.0
    %3145 = vmatpush.msra.mxu0 0.0
    %3146 = vmatpush.msra.mxu0 0.0
    %3147 = vmatpush.msra.mxu0 %v1606
    %3148 = vmatpush.msra.mxu0 %v1605
    %3149 = vmatpush.msra.mxu0 %v1604
    %3150 = vmatpush.msra.mxu0 %v1603
    %3151 = vmatmul.f32.gmra.mxu0 %v3133
    %v3152 = vpop.f32.mrf.mxu0
    %v3153 = vadd.f32 %v1607, %v3152
    %3154 = vdwg.mxu0
    %s3155 = scalar_lea.vmem %s25, 8
    %3156 = vst.msk [vmem:[%s3155] sm:$0x3] %vm751, %v3153
    %v3157 = vsel %vm751, %v3153, -inf
    %3158 = vmax.xlane.f32.xlu0 %v3157
    %v3159 = vpop.xlane.xlu0 %3158
    %v3160 = vsub.f32 %v3153, %v3159
    %v3161 = vmul.f32 %v3160, 1.442695
    %v3162 = vpow.pop %v3161
    %v3163 = vsel %vm751, %v3162, 0.0
    %3164 = vadd.xlane.f32.xlu0 %v3163
    %v3165 = vpop.xlane.xlu0 %3164
    %v3166 = vrcp.pop %v3165
    %v3167 = vmul.f32 %v3162, %v3166
    %v3169 = vsel %vm782, %v3167, 0
    %3171 = vmatpush.msra.mxu0 0.0
    %3172 = vmatpush.msra.mxu0 0.0
    %3173 = vmatpush.msra.mxu0 0.0
    %3174 = vmatpush.msra.mxu0 0.0
    %3175 = vmatpush.msra.mxu0 0.0
    %3176 = vmatpush.msra.mxu0 0.0
    %3177 = vmatpush.msra.mxu0 0.0
    %3178 = vmatpush.msra.mxu0 0.0
    %3179 = vmatpush.msra.mxu0 0.0
    %3180 = vmatpush.msra.mxu0 0.0
    %3181 = vmatpush.msra.mxu0 0.0
    %3182 = vmatpush.msra.mxu0 0.0
    %3183 = vmatpush.msra.mxu0 0.0
    %3184 = vmatpush.msra.mxu0 0.0
    %3185 = vmatpush.msra.mxu0 %v1574
    %3186 = vmatpush.msra.mxu0 %v1573
    %3187 = vmatmul.f32.gmra.mxu0 %v3169
    %v3188 = vpop.f32.mrf.mxu0
    %v3189 = vadd.f32 0.0, %v3188
    %3190 = vdwg.mxu0
    %v3191 = vadd.f32 %v2818, %v3189
    %3192 = vmatpush.msra.mxu0 0.0
    %3193 = vmatpush.msra.mxu0 0.0
    %3194 = vmatpush.msra.mxu0 0.0
    %3195 = vmatpush.msra.mxu0 0.0
    %3196 = vmatpush.msra.mxu0 0.0
    %3197 = vmatpush.msra.mxu0 0.0
    %3198 = vmatpush.msra.mxu0 0.0
    %3199 = vmatpush.msra.mxu0 0.0
    %3200 = vmatpush.msra.mxu0 0.0
    %3201 = vmatpush.msra.mxu0 0.0
    %3202 = vmatpush.msra.mxu0 0.0
    %3203 = vmatpush.msra.mxu0 0.0
    %3204 = vmatpush.msra.mxu0 %v1587
    %3205 = vmatpush.msra.mxu0 %v1586
    %3206 = vmatpush.msra.mxu0 %v1585
    %3207 = vmatpush.msra.mxu0 %v1584
    %3208 = vmatmul.f32.gmra.mxu0 %v3133
    %v3209 = vpop.f32.mrf.mxu0
    %v3210 = vadd.f32 0.0, %v3209
    %3211 = vdwg.mxu0
    %v3212 = vadd.f32 %v3191, %v3210
    %3213 = vmatpush.msra.mxu0 0.0
    %3214 = vmatpush.msra.mxu0 0.0
    %3215 = vmatpush.msra.mxu0 0.0
    %3216 = vmatpush.msra.mxu0 0.0
    %3217 = vmatpush.msra.mxu0 0.0
    %3218 = vmatpush.msra.mxu0 0.0
    %3219 = vmatpush.msra.mxu0 0.0
    %3220 = vmatpush.msra.mxu0 0.0
    %3221 = vmatpush.msra.mxu0 0.0
    %3222 = vmatpush.msra.mxu0 0.0
    %3223 = vmatpush.msra.mxu0 0.0
    %3224 = vmatpush.msra.mxu0 0.0
    %3225 = vmatpush.msra.mxu0 0.0
    %3226 = vmatpush.msra.mxu0 0.0
    %3227 = vmatpush.msra.mxu0 %v1577
    %3228 = vmatpush.msra.mxu0 %v1576
    %3229 = vmatmul.f32.gmra.mxu0 %v3169
    %v3230 = vpop.f32.mrf.mxu0
    %v3231 = vadd.f32 0.0, %v3230
    %3232 = vdwg.mxu0
    %v3233 = vadd.f32 %v2843, %v3231
    %3234 = vmatpush.msra.mxu0 0.0
    %3235 = vmatpush.msra.mxu0 0.0
    %3236 = vmatpush.msra.mxu0 0.0
    %3237 = vmatpush.msra.mxu0 0.0
    %3238 = vmatpush.msra.mxu0 0.0
    %3239 = vmatpush.msra.mxu0 0.0
    %3240 = vmatpush.msra.mxu0 0.0
    %3241 = vmatpush.msra.mxu0 0.0
    %3242 = vmatpush.msra.mxu0 0.0
    %3243 = vmatpush.msra.mxu0 0.0
    %3244 = vmatpush.msra.mxu0 0.0
    %3245 = vmatpush.msra.mxu0 0.0
    %3246 = vmatpush.msra.mxu0 %v1592
    %3247 = vmatpush.msra.mxu0 %v1591
    %3248 = vmatpush.msra.mxu0 %v1590
    %3249 = vmatpush.msra.mxu0 %v1589
    %3250 = vmatmul.f32.gmra.mxu0 %v3133
    %v3251 = vpop.f32.mrf.mxu0
    %v3252 = vadd.f32 0.0, %v3251
    %3253 = vdwg.mxu0
    %v3254 = vadd.f32 %v3233, %v3252
    %3255 = vmatpush.msra.mxu0 0.0
    %3256 = vmatpush.msra.mxu0 0.0
    %3257 = vmatpush.msra.mxu0 0.0
    %3258 = vmatpush.msra.mxu0 0.0
    %3259 = vmatpush.msra.mxu0 0.0
    %3260 = vmatpush.msra.mxu0 0.0
    %3261 = vmatpush.msra.mxu0 0.0
    %3262 = vmatpush.msra.mxu0 0.0
    %3263 = vmatpush.msra.mxu0 0.0
    %3264 = vmatpush.msra.mxu0 0.0
    %3265 = vmatpush.msra.mxu0 0.0
    %3266 = vmatpush.msra.mxu0 0.0
    %3267 = vmatpush.msra.mxu0 0.0
    %3268 = vmatpush.msra.mxu0 0.0
    %3269 = vmatpush.msra.mxu0 %v1580
    %3270 = vmatpush.msra.mxu0 %v1579
    %3271 = vmatmul.f32.gmra.mxu0 %v3169
    %v3272 = vpop.f32.mrf.mxu0
    %v3273 = vadd.f32 0.0, %v3272
    %3274 = vdwg.mxu0
    %v3275 = vadd.f32 %v2868, %v3273
    %3276 = vmatpush.msra.mxu0 0.0
    %3277 = vmatpush.msra.mxu0 0.0
    %3278 = vmatpush.msra.mxu0 0.0
    %3279 = vmatpush.msra.mxu0 0.0
    %3280 = vmatpush.msra.mxu0 0.0
    %3281 = vmatpush.msra.mxu0 0.0
    %3282 = vmatpush.msra.mxu0 0.0
    %3283 = vmatpush.msra.mxu0 0.0
    %3284 = vmatpush.msra.mxu0 0.0
    %3285 = vmatpush.msra.mxu0 0.0
    %3286 = vmatpush.msra.mxu0 0.0
    %3287 = vmatpush.msra.mxu0 0.0
    %3288 = vmatpush.msra.mxu0 %v1597
    %3289 = vmatpush.msra.mxu0 %v1596
    %3290 = vmatpush.msra.mxu0 %v1595
    %3291 = vmatpush.msra.mxu0 %v1594
    %3292 = vmatmul.f32.gmra.mxu0 %v3133
    %v3293 = vpop.f32.mrf.mxu0
    %v3294 = vadd.f32 0.0, %v3293
    %3295 = vdwg.mxu0
    %v3296 = vadd.f32 %v3275, %v3294
    %3297 = vmatpush.msra.mxu0 0.0
    %3298 = vmatpush.msra.mxu0 0.0
    %3299 = vmatpush.msra.mxu0 0.0
    %3300 = vmatpush.msra.mxu0 0.0
    %3301 = vmatpush.msra.mxu0 0.0
    %3302 = vmatpush.msra.mxu0 0.0
    %3303 = vmatpush.msra.mxu0 0.0
    %3304 = vmatpush.msra.mxu0 0.0
    %3305 = vmatpush.msra.mxu0 0.0
    %3306 = vmatpush.msra.mxu0 0.0
    %3307 = vmatpush.msra.mxu0 0.0
    %3308 = vmatpush.msra.mxu0 0.0
    %3309 = vmatpush.msra.mxu0 0.0
    %3310 = vmatpush.msra.mxu0 0.0
    %3311 = vmatpush.msra.mxu0 %v1583
    %3312 = vmatpush.msra.mxu0 %v1582
    %3313 = vmatmul.f32.gmra.mxu0 %v3169
    %v3314 = vpop.f32.mrf.mxu0
    %v3315 = vadd.f32 0.0, %v3314
    %3316 = vdwg.mxu0
    %v3317 = vadd.f32 %v2893, %v3315
    %3318 = vmatpush.msra.mxu0 0.0
    %3319 = vmatpush.msra.mxu0 0.0
    %3320 = vmatpush.msra.mxu0 0.0
    %3321 = vmatpush.msra.mxu0 0.0
    %3322 = vmatpush.msra.mxu0 0.0
    %3323 = vmatpush.msra.mxu0 0.0
    %3324 = vmatpush.msra.mxu0 0.0
    %3325 = vmatpush.msra.mxu0 0.0
    %3326 = vmatpush.msra.mxu0 0.0
    %3327 = vmatpush.msra.mxu0 0.0
    %3328 = vmatpush.msra.mxu0 0.0
    %3329 = vmatpush.msra.mxu0 0.0
    %3330 = vmatpush.msra.mxu0 %v1602
    %3331 = vmatpush.msra.mxu0 %v1601
    %3332 = vmatpush.msra.mxu0 %v1600
    %3333 = vmatpush.msra.mxu0 %v1599
    %3334 = vmatmul.f32.gmra.mxu0 %v3133
    %v3335 = vpop.f32.mrf.mxu0
    %v3336 = vadd.f32 0.0, %v3335
    %3337 = vdwg.mxu0
    %v3338 = vadd.f32 %v3317, %v3336
    %v3339 = vxor.u32 %v3212, 2147483648
    %v3340 = vmul.f32 %v3339, 1.442695
    %v3341 = vpow.pop %v3340
    %v3342 = vadd.f32 %v3341, 1.0
    %v3343 = vrcp.pop %v3342
    %v3344 = vmul.f32 %v3342, %v3343
    %v3345 = vsub.f32 1.0, %v3344
    %v3346 = vmul.f32 %v3343, %v3345
    %v3347 = vadd.f32 %v3343, %v3346
    %vm3348 = vweird.f32 %v3342
    %vm3349 = vweird.f32 %v3343
    %vm3350 = vmor %vm3348, %vm3349
    %v3351 = vsel %vm3350, %v3343, %v3347
    %v3352 = vand.u32 2147483647, %v3342
    %vm3353 = vcmp.eq.f32.partialorder %v3352, 8.507059e+37
    %v3354 = vand.u32 %v3342, 2147483648
    %v3355 = vor.u32 1.1754944e-38, %v3354
    %v3356 = vsel %vm3353, %v3355, %v3351
    %v3357 = vmul.f32 1.0, %v3356
    %v3358 = vxor.u32 %v3254, 2147483648
    %v3359 = vmul.f32 %v3358, 1.442695
    %v3360 = vpow.pop %v3359
    %v3361 = vadd.f32 %v3360, 1.0
    %v3362 = vrcp.pop %v3361
    %v3363 = vmul.f32 %v3361, %v3362
    %v3364 = vsub.f32 1.0, %v3363
    %v3365 = vmul.f32 %v3362, %v3364
    %v3366 = vadd.f32 %v3362, %v3365
    %vm3367 = vweird.f32 %v3361
    %vm3368 = vweird.f32 %v3362
    %vm3369 = vmor %vm3367, %vm3368
    %v3370 = vsel %vm3369, %v3362, %v3366
    %v3371 = vand.u32 2147483647, %v3361
    %vm3372 = vcmp.eq.f32.partialorder %v3371, 8.507059e+37
    %v3373 = vand.u32 %v3361, 2147483648
    %v3374 = vor.u32 1.1754944e-38, %v3373
    %v3375 = vsel %vm3372, %v3374, %v3370
    %v3376 = vmul.f32 1.0, %v3375
    %v3377 = vtanh.pop %v3296
    %v3378 = vxor.u32 %v3338, 2147483648
    %v3379 = vmul.f32 %v3378, 1.442695
    %v3380 = vpow.pop %v3379
    %v3381 = vadd.f32 %v3380, 1.0
    %v3382 = vrcp.pop %v3381
    %v3383 = vmul.f32 %v3381, %v3382
    %v3384 = vsub.f32 1.0, %v3383
    %v3385 = vmul.f32 %v3382, %v3384
    %v3386 = vadd.f32 %v3382, %v3385
    %vm3387 = vweird.f32 %v3381
    %vm3388 = vweird.f32 %v3382
    %vm3389 = vmor %vm3387, %vm3388
    %v3390 = vsel %vm3389, %v3382, %v3386
    %v3391 = vand.u32 2147483647, %v3381
    %vm3392 = vcmp.eq.f32.partialorder %v3391, 8.507059e+37
    %v3393 = vand.u32 %v3381, 2147483648
    %v3394 = vor.u32 1.1754944e-38, %v3393
    %v3395 = vsel %vm3392, %v3394, %v3390
    %v3396 = vmul.f32 1.0, %v3395
    %v3397 = vmul.f32 %v3376, %v3129
    %v3398 = vmul.f32 %v3357, %v3377
    %v3399 = vadd.f32 %v3397, %v3398
    %v3400 = vtanh.pop %v3399
    %v3401 = vmul.f32 %v3396, %v3400
    %v3403 = vsel %vm652, %v3401, 0
    %3405 = vmatpush.msra.mxu0 0.0
    %3406 = vmatpush.msra.mxu0 0.0
    %3407 = vmatpush.msra.mxu0 0.0
    %3408 = vmatpush.msra.mxu0 0.0
    %3409 = vmatpush.msra.mxu0 0.0
    %3410 = vmatpush.msra.mxu0 0.0
    %3411 = vmatpush.msra.mxu0 0.0
    %3412 = vmatpush.msra.mxu0 0.0
    %3413 = vmatpush.msra.mxu0 0.0
    %3414 = vmatpush.msra.mxu0 0.0
    %3415 = vmatpush.msra.mxu0 0.0
    %3416 = vmatpush.msra.mxu0 0.0
    %3417 = vmatpush.msra.mxu0 %v1606
    %3418 = vmatpush.msra.mxu0 %v1605
    %3419 = vmatpush.msra.mxu0 %v1604
    %3420 = vmatpush.msra.mxu0 %v1603
    %3421 = vmatmul.f32.gmra.mxu0 %v3403
    %v3422 = vpop.f32.mrf.mxu0
    %v3423 = vadd.f32 %v1607, %v3422
    %3424 = vdwg.mxu0
    %s3425 = scalar_lea.vmem %s25, 10
    %3426 = vst.msk [vmem:[%s3425] sm:$0x3] %vm751, %v3423
    %v3427 = vsel %vm751, %v3423, -inf
    %3428 = vmax.xlane.f32.xlu0 %v3427
    %v3429 = vpop.xlane.xlu0 %3428
    %v3430 = vsub.f32 %v3423, %v3429
    %v3431 = vmul.f32 %v3430, 1.442695
    %v3432 = vpow.pop %v3431
    %v3433 = vsel %vm751, %v3432, 0.0
    %3434 = vadd.xlane.f32.xlu0 %v3433
    %v3435 = vpop.xlane.xlu0 %3434
    %v3436 = vrcp.pop %v3435
    %v3437 = vmul.f32 %v3432, %v3436
    %v3439 = vsel %vm782, %v3437, 0
    %3441 = vmatpush.msra.mxu0 0.0
    %3442 = vmatpush.msra.mxu0 0.0
    %3443 = vmatpush.msra.mxu0 0.0
    %3444 = vmatpush.msra.mxu0 0.0
    %3445 = vmatpush.msra.mxu0 0.0
    %3446 = vmatpush.msra.mxu0 0.0
    %3447 = vmatpush.msra.mxu0 0.0
    %3448 = vmatpush.msra.mxu0 0.0
    %3449 = vmatpush.msra.mxu0 0.0
    %3450 = vmatpush.msra.mxu0 0.0
    %3451 = vmatpush.msra.mxu0 0.0
    %3452 = vmatpush.msra.mxu0 0.0
    %3453 = vmatpush.msra.mxu0 0.0
    %3454 = vmatpush.msra.mxu0 0.0
    %3455 = vmatpush.msra.mxu0 %v1574
    %3456 = vmatpush.msra.mxu0 %v1573
    %3457 = vmatmul.f32.gmra.mxu0 %v3439
    %v3458 = vpop.f32.mrf.mxu0
    %v3459 = vadd.f32 0.0, %v3458
    %3460 = vdwg.mxu0
    %v3461 = vadd.f32 %v2818, %v3459
    %3462 = vmatpush.msra.mxu0 0.0
    %3463 = vmatpush.msra.mxu0 0.0
    %3464 = vmatpush.msra.mxu0 0.0
    %3465 = vmatpush.msra.mxu0 0.0
    %3466 = vmatpush.msra.mxu0 0.0
    %3467 = vmatpush.msra.mxu0 0.0
    %3468 = vmatpush.msra.mxu0 0.0
    %3469 = vmatpush.msra.mxu0 0.0
    %3470 = vmatpush.msra.mxu0 0.0
    %3471 = vmatpush.msra.mxu0 0.0
    %3472 = vmatpush.msra.mxu0 0.0
    %3473 = vmatpush.msra.mxu0 0.0
    %3474 = vmatpush.msra.mxu0 %v1587
    %3475 = vmatpush.msra.mxu0 %v1586
    %3476 = vmatpush.msra.mxu0 %v1585
    %3477 = vmatpush.msra.mxu0 %v1584
    %3478 = vmatmul.f32.gmra.mxu0 %v3403
    %v3479 = vpop.f32.mrf.mxu0
    %v3480 = vadd.f32 0.0, %v3479
    %3481 = vdwg.mxu0
    %v3482 = vadd.f32 %v3461, %v3480
    %3483 = vmatpush.msra.mxu0 0.0
    %3484 = vmatpush.msra.mxu0 0.0
    %3485 = vmatpush.msra.mxu0 0.0
    %3486 = vmatpush.msra.mxu0 0.0
    %3487 = vmatpush.msra.mxu0 0.0
    %3488 = vmatpush.msra.mxu0 0.0
    %3489 = vmatpush.msra.mxu0 0.0
    %3490 = vmatpush.msra.mxu0 0.0
    %3491 = vmatpush.msra.mxu0 0.0
    %3492 = vmatpush.msra.mxu0 0.0
    %3493 = vmatpush.msra.mxu0 0.0
    %3494 = vmatpush.msra.mxu0 0.0
    %3495 = vmatpush.msra.mxu0 0.0
    %3496 = vmatpush.msra.mxu0 0.0
    %3497 = vmatpush.msra.mxu0 %v1577
    %3498 = vmatpush.msra.mxu0 %v1576
    %3499 = vmatmul.f32.gmra.mxu0 %v3439
    %v3500 = vpop.f32.mrf.mxu0
    %v3501 = vadd.f32 0.0, %v3500
    %3502 = vdwg.mxu0
    %v3503 = vadd.f32 %v2843, %v3501
    %3504 = vmatpush.msra.mxu0 0.0
    %3505 = vmatpush.msra.mxu0 0.0
    %3506 = vmatpush.msra.mxu0 0.0
    %3507 = vmatpush.msra.mxu0 0.0
    %3508 = vmatpush.msra.mxu0 0.0
    %3509 = vmatpush.msra.mxu0 0.0
    %3510 = vmatpush.msra.mxu0 0.0
    %3511 = vmatpush.msra.mxu0 0.0
    %3512 = vmatpush.msra.mxu0 0.0
    %3513 = vmatpush.msra.mxu0 0.0
    %3514 = vmatpush.msra.mxu0 0.0
    %3515 = vmatpush.msra.mxu0 0.0
    %3516 = vmatpush.msra.mxu0 %v1592
    %3517 = vmatpush.msra.mxu0 %v1591
    %3518 = vmatpush.msra.mxu0 %v1590
    %3519 = vmatpush.msra.mxu0 %v1589
    %3520 = vmatmul.f32.gmra.mxu0 %v3403
    %v3521 = vpop.f32.mrf.mxu0
    %v3522 = vadd.f32 0.0, %v3521
    %3523 = vdwg.mxu0
    %v3524 = vadd.f32 %v3503, %v3522
    %3525 = vmatpush.msra.mxu0 0.0
    %3526 = vmatpush.msra.mxu0 0.0
    %3527 = vmatpush.msra.mxu0 0.0
    %3528 = vmatpush.msra.mxu0 0.0
    %3529 = vmatpush.msra.mxu0 0.0
    %3530 = vmatpush.msra.mxu0 0.0
    %3531 = vmatpush.msra.mxu0 0.0
    %3532 = vmatpush.msra.mxu0 0.0
    %3533 = vmatpush.msra.mxu0 0.0
    %3534 = vmatpush.msra.mxu0 0.0
    %3535 = vmatpush.msra.mxu0 0.0
    %3536 = vmatpush.msra.mxu0 0.0
    %3537 = vmatpush.msra.mxu0 0.0
    %3538 = vmatpush.msra.mxu0 0.0
    %3539 = vmatpush.msra.mxu0 %v1580
    %3540 = vmatpush.msra.mxu0 %v1579
    %3541 = vmatmul.f32.gmra.mxu0 %v3439
    %v3542 = vpop.f32.mrf.mxu0
    %v3543 = vadd.f32 0.0, %v3542
    %3544 = vdwg.mxu0
    %v3545 = vadd.f32 %v2868, %v3543
    %3546 = vmatpush.msra.mxu0 0.0
    %3547 = vmatpush.msra.mxu0 0.0
    %3548 = vmatpush.msra.mxu0 0.0
    %3549 = vmatpush.msra.mxu0 0.0
    %3550 = vmatpush.msra.mxu0 0.0
    %3551 = vmatpush.msra.mxu0 0.0
    %3552 = vmatpush.msra.mxu0 0.0
    %3553 = vmatpush.msra.mxu0 0.0
    %3554 = vmatpush.msra.mxu0 0.0
    %3555 = vmatpush.msra.mxu0 0.0
    %3556 = vmatpush.msra.mxu0 0.0
    %3557 = vmatpush.msra.mxu0 0.0
    %3558 = vmatpush.msra.mxu0 %v1597
    %3559 = vmatpush.msra.mxu0 %v1596
    %3560 = vmatpush.msra.mxu0 %v1595
    %3561 = vmatpush.msra.mxu0 %v1594
    %3562 = vmatmul.f32.gmra.mxu0 %v3403
    %v3563 = vpop.f32.mrf.mxu0
    %v3564 = vadd.f32 0.0, %v3563
    %3565 = vdwg.mxu0
    %v3566 = vadd.f32 %v3545, %v3564
    %3567 = vmatpush.msra.mxu0 0.0
    %3568 = vmatpush.msra.mxu0 0.0
    %3569 = vmatpush.msra.mxu0 0.0
    %3570 = vmatpush.msra.mxu0 0.0
    %3571 = vmatpush.msra.mxu0 0.0
    %3572 = vmatpush.msra.mxu0 0.0
    %3573 = vmatpush.msra.mxu0 0.0
    %3574 = vmatpush.msra.mxu0 0.0
    %3575 = vmatpush.msra.mxu0 0.0
    %3576 = vmatpush.msra.mxu0 0.0
    %3577 = vmatpush.msra.mxu0 0.0
    %3578 = vmatpush.msra.mxu0 0.0
    %3579 = vmatpush.msra.mxu0 0.0
    %3580 = vmatpush.msra.mxu0 0.0
    %3581 = vmatpush.msra.mxu0 %v1583
    %3582 = vmatpush.msra.mxu0 %v1582
    %3583 = vmatmul.f32.gmra.mxu0 %v3439
    %v3584 = vpop.f32.mrf.mxu0
    %v3585 = vadd.f32 0.0, %v3584
    %3586 = vdwg.mxu0
    %v3587 = vadd.f32 %v2893, %v3585
    %3588 = vmatpush.msra.mxu0 0.0
    %3589 = vmatpush.msra.mxu0 0.0
    %3590 = vmatpush.msra.mxu0 0.0
    %3591 = vmatpush.msra.mxu0 0.0
    %3592 = vmatpush.msra.mxu0 0.0
    %3593 = vmatpush.msra.mxu0 0.0
    %3594 = vmatpush.msra.mxu0 0.0
    %3595 = vmatpush.msra.mxu0 0.0
    %3596 = vmatpush.msra.mxu0 0.0
    %3597 = vmatpush.msra.mxu0 0.0
    %3598 = vmatpush.msra.mxu0 0.0
    %3599 = vmatpush.msra.mxu0 0.0
    %3600 = vmatpush.msra.mxu0 %v1602
    %3601 = vmatpush.msra.mxu0 %v1601
    %3602 = vmatpush.msra.mxu0 %v1600
    %3603 = vmatpush.msra.mxu0 %v1599
    %3604 = vmatmul.f32.gmra.mxu0 %v3403
    %v3605 = vpop.f32.mrf.mxu0
    %v3606 = vadd.f32 0.0, %v3605
    %3607 = vdwg.mxu0
    %v3608 = vadd.f32 %v3587, %v3606
    %v3609 = vxor.u32 %v3482, 2147483648
    %v3610 = vmul.f32 %v3609, 1.442695
    %v3611 = vpow.pop %v3610
    %v3612 = vadd.f32 %v3611, 1.0
    %v3613 = vrcp.pop %v3612
    %v3614 = vmul.f32 %v3612, %v3613
    %v3615 = vsub.f32 1.0, %v3614
    %v3616 = vmul.f32 %v3613, %v3615
    %v3617 = vadd.f32 %v3613, %v3616
    %vm3618 = vweird.f32 %v3612
    %vm3619 = vweird.f32 %v3613
    %vm3620 = vmor %vm3618, %vm3619
    %v3621 = vsel %vm3620, %v3613, %v3617
    %v3622 = vand.u32 2147483647, %v3612
    %vm3623 = vcmp.eq.f32.partialorder %v3622, 8.507059e+37
    %v3624 = vand.u32 %v3612, 2147483648
    %v3625 = vor.u32 1.1754944e-38, %v3624
    %v3626 = vsel %vm3623, %v3625, %v3621
    %v3627 = vmul.f32 1.0, %v3626
    %v3628 = vxor.u32 %v3524, 2147483648
    %v3629 = vmul.f32 %v3628, 1.442695
    %v3630 = vpow.pop %v3629
    %v3631 = vadd.f32 %v3630, 1.0
    %v3632 = vrcp.pop %v3631
    %v3633 = vmul.f32 %v3631, %v3632
    %v3634 = vsub.f32 1.0, %v3633
    %v3635 = vmul.f32 %v3632, %v3634
    %v3636 = vadd.f32 %v3632, %v3635
    %vm3637 = vweird.f32 %v3631
    %vm3638 = vweird.f32 %v3632
    %vm3639 = vmor %vm3637, %vm3638
    %v3640 = vsel %vm3639, %v3632, %v3636
    %v3641 = vand.u32 2147483647, %v3631
    %vm3642 = vcmp.eq.f32.partialorder %v3641, 8.507059e+37
    %v3643 = vand.u32 %v3631, 2147483648
    %v3644 = vor.u32 1.1754944e-38, %v3643
    %v3645 = vsel %vm3642, %v3644, %v3640
    %v3646 = vmul.f32 1.0, %v3645
    %v3647 = vtanh.pop %v3566
    %v3648 = vxor.u32 %v3608, 2147483648
    %v3649 = vmul.f32 %v3648, 1.442695
    %v3650 = vpow.pop %v3649
    %v3651 = vadd.f32 %v3650, 1.0
    %v3652 = vrcp.pop %v3651
    %v3653 = vmul.f32 %v3651, %v3652
    %v3654 = vsub.f32 1.0, %v3653
    %v3655 = vmul.f32 %v3652, %v3654
    %v3656 = vadd.f32 %v3652, %v3655
    %vm3657 = vweird.f32 %v3651
    %vm3658 = vweird.f32 %v3652
    %vm3659 = vmor %vm3657, %vm3658
    %v3660 = vsel %vm3659, %v3652, %v3656
    %v3661 = vand.u32 2147483647, %v3651
    %vm3662 = vcmp.eq.f32.partialorder %v3661, 8.507059e+37
    %v3663 = vand.u32 %v3651, 2147483648
    %v3664 = vor.u32 1.1754944e-38, %v3663
    %v3665 = vsel %vm3662, %v3664, %v3660
    %v3666 = vmul.f32 1.0, %v3665
    %v3667 = vmul.f32 %v3646, %v3399
    %v3668 = vmul.f32 %v3627, %v3647
    %v3669 = vadd.f32 %v3667, %v3668
    %v3670 = vtanh.pop %v3669
    %v3671 = vmul.f32 %v3666, %v3670
    %v3673 = vsel %vm652, %v3671, 0
    %3675 = vmatpush.msra.mxu0 0.0
    %3676 = vmatpush.msra.mxu0 0.0
    %3677 = vmatpush.msra.mxu0 0.0
    %3678 = vmatpush.msra.mxu0 0.0
    %3679 = vmatpush.msra.mxu0 0.0
    %3680 = vmatpush.msra.mxu0 0.0
    %3681 = vmatpush.msra.mxu0 0.0
    %3682 = vmatpush.msra.mxu0 0.0
    %3683 = vmatpush.msra.mxu0 0.0
    %3684 = vmatpush.msra.mxu0 0.0
    %3685 = vmatpush.msra.mxu0 0.0
    %3686 = vmatpush.msra.mxu0 0.0
    %3687 = vmatpush.msra.mxu0 %v1606
    %3688 = vmatpush.msra.mxu0 %v1605
    %3689 = vmatpush.msra.mxu0 %v1604
    %3690 = vmatpush.msra.mxu0 %v1603
    %3691 = vmatmul.f32.gmra.mxu0 %v3673
    %v3692 = vpop.f32.mrf.mxu0
    %v3693 = vadd.f32 %v1607, %v3692
    %3694 = vdwg.mxu0
    %s3695 = scalar_lea.vmem %s25, 12
    %3696 = vst.msk [vmem:[%s3695] sm:$0x3] %vm751, %v3693
    %v3697 = vsel %vm751, %v3693, -inf
    %3698 = vmax.xlane.f32.xlu0 %v3697
    %v3699 = vpop.xlane.xlu0 %3698
    %v3700 = vsub.f32 %v3693, %v3699
    %v3701 = vmul.f32 %v3700, 1.442695
    %v3702 = vpow.pop %v3701
    %v3703 = vsel %vm751, %v3702, 0.0
    %3704 = vadd.xlane.f32.xlu0 %v3703
    %v3705 = vpop.xlane.xlu0 %3704
    %v3706 = vrcp.pop %v3705
    %v3707 = vmul.f32 %v3702, %v3706
    %v3709 = vsel %vm782, %v3707, 0
    %3711 = vmatpush.msra.mxu0 0.0
    %3712 = vmatpush.msra.mxu0 0.0
    %3713 = vmatpush.msra.mxu0 0.0
    %3714 = vmatpush.msra.mxu0 0.0
    %3715 = vmatpush.msra.mxu0 0.0
    %3716 = vmatpush.msra.mxu0 0.0
    %3717 = vmatpush.msra.mxu0 0.0
    %3718 = vmatpush.msra.mxu0 0.0
    %3719 = vmatpush.msra.mxu0 0.0
    %3720 = vmatpush.msra.mxu0 0.0
    %3721 = vmatpush.msra.mxu0 0.0
    %3722 = vmatpush.msra.mxu0 0.0
    %3723 = vmatpush.msra.mxu0 0.0
    %3724 = vmatpush.msra.mxu0 0.0
    %3725 = vmatpush.msra.mxu0 %v1574
    %3726 = vmatpush.msra.mxu0 %v1573
    %3727 = vmatmul.f32.gmra.mxu0 %v3709
    %v3728 = vpop.f32.mrf.mxu0
    %v3729 = vadd.f32 0.0, %v3728
    %3730 = vdwg.mxu0
    %v3731 = vadd.f32 %v2818, %v3729
    %3732 = vmatpush.msra.mxu0 0.0
    %3733 = vmatpush.msra.mxu0 0.0
    %3734 = vmatpush.msra.mxu0 0.0
    %3735 = vmatpush.msra.mxu0 0.0
    %3736 = vmatpush.msra.mxu0 0.0
    %3737 = vmatpush.msra.mxu0 0.0
    %3738 = vmatpush.msra.mxu0 0.0
    %3739 = vmatpush.msra.mxu0 0.0
    %3740 = vmatpush.msra.mxu0 0.0
    %3741 = vmatpush.msra.mxu0 0.0
    %3742 = vmatpush.msra.mxu0 0.0
    %3743 = vmatpush.msra.mxu0 0.0
    %3744 = vmatpush.msra.mxu0 %v1587
    %3745 = vmatpush.msra.mxu0 %v1586
    %3746 = vmatpush.msra.mxu0 %v1585
    %3747 = vmatpush.msra.mxu0 %v1584
    %3748 = vmatmul.f32.gmra.mxu0 %v3673
    %v3749 = vpop.f32.mrf.mxu0
    %v3750 = vadd.f32 0.0, %v3749
    %3751 = vdwg.mxu0
    %v3752 = vadd.f32 %v3731, %v3750
    %3753 = vmatpush.msra.mxu0 0.0
    %3754 = vmatpush.msra.mxu0 0.0
    %3755 = vmatpush.msra.mxu0 0.0
    %3756 = vmatpush.msra.mxu0 0.0
    %3757 = vmatpush.msra.mxu0 0.0
    %3758 = vmatpush.msra.mxu0 0.0
    %3759 = vmatpush.msra.mxu0 0.0
    %3760 = vmatpush.msra.mxu0 0.0
    %3761 = vmatpush.msra.mxu0 0.0
    %3762 = vmatpush.msra.mxu0 0.0
    %3763 = vmatpush.msra.mxu0 0.0
    %3764 = vmatpush.msra.mxu0 0.0
    %3765 = vmatpush.msra.mxu0 0.0
    %3766 = vmatpush.msra.mxu0 0.0
    %3767 = vmatpush.msra.mxu0 %v1577
    %3768 = vmatpush.msra.mxu0 %v1576
    %3769 = vmatmul.f32.gmra.mxu0 %v3709
    %v3770 = vpop.f32.mrf.mxu0
    %v3771 = vadd.f32 0.0, %v3770
    %3772 = vdwg.mxu0
    %v3773 = vadd.f32 %v2843, %v3771
    %3774 = vmatpush.msra.mxu0 0.0
    %3775 = vmatpush.msra.mxu0 0.0
    %3776 = vmatpush.msra.mxu0 0.0
    %3777 = vmatpush.msra.mxu0 0.0
    %3778 = vmatpush.msra.mxu0 0.0
    %3779 = vmatpush.msra.mxu0 0.0
    %3780 = vmatpush.msra.mxu0 0.0
    %3781 = vmatpush.msra.mxu0 0.0
    %3782 = vmatpush.msra.mxu0 0.0
    %3783 = vmatpush.msra.mxu0 0.0
    %3784 = vmatpush.msra.mxu0 0.0
    %3785 = vmatpush.msra.mxu0 0.0
    %3786 = vmatpush.msra.mxu0 %v1592
    %3787 = vmatpush.msra.mxu0 %v1591
    %3788 = vmatpush.msra.mxu0 %v1590
    %3789 = vmatpush.msra.mxu0 %v1589
    %3790 = vmatmul.f32.gmra.mxu0 %v3673
    %v3791 = vpop.f32.mrf.mxu0
    %v3792 = vadd.f32 0.0, %v3791
    %3793 = vdwg.mxu0
    %v3794 = vadd.f32 %v3773, %v3792
    %3795 = vmatpush.msra.mxu0 0.0
    %3796 = vmatpush.msra.mxu0 0.0
    %3797 = vmatpush.msra.mxu0 0.0
    %3798 = vmatpush.msra.mxu0 0.0
    %3799 = vmatpush.msra.mxu0 0.0
    %3800 = vmatpush.msra.mxu0 0.0
    %3801 = vmatpush.msra.mxu0 0.0
    %3802 = vmatpush.msra.mxu0 0.0
    %3803 = vmatpush.msra.mxu0 0.0
    %3804 = vmatpush.msra.mxu0 0.0
    %3805 = vmatpush.msra.mxu0 0.0
    %3806 = vmatpush.msra.mxu0 0.0
    %3807 = vmatpush.msra.mxu0 0.0
    %3808 = vmatpush.msra.mxu0 0.0
    %3809 = vmatpush.msra.mxu0 %v1580
    %3810 = vmatpush.msra.mxu0 %v1579
    %3811 = vmatmul.f32.gmra.mxu0 %v3709
    %v3812 = vpop.f32.mrf.mxu0
    %v3813 = vadd.f32 0.0, %v3812
    %3814 = vdwg.mxu0
    %v3815 = vadd.f32 %v2868, %v3813
    %3816 = vmatpush.msra.mxu0 0.0
    %3817 = vmatpush.msra.mxu0 0.0
    %3818 = vmatpush.msra.mxu0 0.0
    %3819 = vmatpush.msra.mxu0 0.0
    %3820 = vmatpush.msra.mxu0 0.0
    %3821 = vmatpush.msra.mxu0 0.0
    %3822 = vmatpush.msra.mxu0 0.0
    %3823 = vmatpush.msra.mxu0 0.0
    %3824 = vmatpush.msra.mxu0 0.0
    %3825 = vmatpush.msra.mxu0 0.0
    %3826 = vmatpush.msra.mxu0 0.0
    %3827 = vmatpush.msra.mxu0 0.0
    %3828 = vmatpush.msra.mxu0 %v1597
    %3829 = vmatpush.msra.mxu0 %v1596
    %3830 = vmatpush.msra.mxu0 %v1595
    %3831 = vmatpush.msra.mxu0 %v1594
    %3832 = vmatmul.f32.gmra.mxu0 %v3673
    %v3833 = vpop.f32.mrf.mxu0
    %v3834 = vadd.f32 0.0, %v3833
    %3835 = vdwg.mxu0
    %v3836 = vadd.f32 %v3815, %v3834
    %3837 = vmatpush.msra.mxu0 0.0
    %3838 = vmatpush.msra.mxu0 0.0
    %3839 = vmatpush.msra.mxu0 0.0
    %3840 = vmatpush.msra.mxu0 0.0
    %3841 = vmatpush.msra.mxu0 0.0
    %3842 = vmatpush.msra.mxu0 0.0
    %3843 = vmatpush.msra.mxu0 0.0
    %3844 = vmatpush.msra.mxu0 0.0
    %3845 = vmatpush.msra.mxu0 0.0
    %3846 = vmatpush.msra.mxu0 0.0
    %3847 = vmatpush.msra.mxu0 0.0
    %3848 = vmatpush.msra.mxu0 0.0
    %3849 = vmatpush.msra.mxu0 0.0
    %3850 = vmatpush.msra.mxu0 0.0
    %3851 = vmatpush.msra.mxu0 %v1583
    %3852 = vmatpush.msra.mxu0 %v1582
    %3853 = vmatmul.f32.gmra.mxu0 %v3709
    %v3854 = vpop.f32.mrf.mxu0
    %v3855 = vadd.f32 0.0, %v3854
    %3856 = vdwg.mxu0
    %v3857 = vadd.f32 %v2893, %v3855
    %3858 = vmatpush.msra.mxu0 0.0
    %3859 = vmatpush.msra.mxu0 0.0
    %3860 = vmatpush.msra.mxu0 0.0
    %3861 = vmatpush.msra.mxu0 0.0
    %3862 = vmatpush.msra.mxu0 0.0
    %3863 = vmatpush.msra.mxu0 0.0
    %3864 = vmatpush.msra.mxu0 0.0
    %3865 = vmatpush.msra.mxu0 0.0
    %3866 = vmatpush.msra.mxu0 0.0
    %3867 = vmatpush.msra.mxu0 0.0
    %3868 = vmatpush.msra.mxu0 0.0
    %3869 = vmatpush.msra.mxu0 0.0
    %3870 = vmatpush.msra.mxu0 %v1602
    %3871 = vmatpush.msra.mxu0 %v1601
    %3872 = vmatpush.msra.mxu0 %v1600
    %3873 = vmatpush.msra.mxu0 %v1599
    %3874 = vmatmul.f32.gmra.mxu0 %v3673
    %v3875 = vpop.f32.mrf.mxu0
    %v3876 = vadd.f32 0.0, %v3875
    %3877 = vdwg.mxu0
    %v3878 = vadd.f32 %v3857, %v3876
    %v3879 = vxor.u32 %v3752, 2147483648
    %v3880 = vmul.f32 %v3879, 1.442695
    %v3881 = vpow.pop %v3880
    %v3882 = vadd.f32 %v3881, 1.0
    %v3883 = vrcp.pop %v3882
    %v3884 = vmul.f32 %v3882, %v3883
    %v3885 = vsub.f32 1.0, %v3884
    %v3886 = vmul.f32 %v3883, %v3885
    %v3887 = vadd.f32 %v3883, %v3886
    %vm3888 = vweird.f32 %v3882
    %vm3889 = vweird.f32 %v3883
    %vm3890 = vmor %vm3888, %vm3889
    %v3891 = vsel %vm3890, %v3883, %v3887
    %v3892 = vand.u32 2147483647, %v3882
    %vm3893 = vcmp.eq.f32.partialorder %v3892, 8.507059e+37
    %v3894 = vand.u32 %v3882, 2147483648
    %v3895 = vor.u32 1.1754944e-38, %v3894
    %v3896 = vsel %vm3893, %v3895, %v3891
    %v3897 = vmul.f32 1.0, %v3896
    %v3898 = vxor.u32 %v3794, 2147483648
    %v3899 = vmul.f32 %v3898, 1.442695
    %v3900 = vpow.pop %v3899
    %v3901 = vadd.f32 %v3900, 1.0
    %v3902 = vrcp.pop %v3901
    %v3903 = vmul.f32 %v3901, %v3902
    %v3904 = vsub.f32 1.0, %v3903
    %v3905 = vmul.f32 %v3902, %v3904
    %v3906 = vadd.f32 %v3902, %v3905
    %vm3907 = vweird.f32 %v3901
    %vm3908 = vweird.f32 %v3902
    %vm3909 = vmor %vm3907, %vm3908
    %v3910 = vsel %vm3909, %v3902, %v3906
    %v3911 = vand.u32 2147483647, %v3901
    %vm3912 = vcmp.eq.f32.partialorder %v3911, 8.507059e+37
    %v3913 = vand.u32 %v3901, 2147483648
    %v3914 = vor.u32 1.1754944e-38, %v3913
    %v3915 = vsel %vm3912, %v3914, %v3910
    %v3916 = vmul.f32 1.0, %v3915
    %v3917 = vtanh.pop %v3836
    %v3918 = vxor.u32 %v3878, 2147483648
    %v3919 = vmul.f32 %v3918, 1.442695
    %v3920 = vpow.pop %v3919
    %v3921 = vadd.f32 %v3920, 1.0
    %v3922 = vrcp.pop %v3921
    %v3923 = vmul.f32 %v3921, %v3922
    %v3924 = vsub.f32 1.0, %v3923
    %v3925 = vmul.f32 %v3922, %v3924
    %v3926 = vadd.f32 %v3922, %v3925
    %vm3927 = vweird.f32 %v3921
    %vm3928 = vweird.f32 %v3922
    %vm3929 = vmor %vm3927, %vm3928
    %v3930 = vsel %vm3929, %v3922, %v3926
    %v3931 = vand.u32 2147483647, %v3921
    %vm3932 = vcmp.eq.f32.partialorder %v3931, 8.507059e+37
    %v3933 = vand.u32 %v3921, 2147483648
    %v3934 = vor.u32 1.1754944e-38, %v3933
    %v3935 = vsel %vm3932, %v3934, %v3930
    %v3936 = vmul.f32 1.0, %v3935
    %v3937 = vmul.f32 %v3916, %v3669
    %v3938 = vmul.f32 %v3897, %v3917
    %v3939 = vadd.f32 %v3937, %v3938
    %v3940 = vtanh.pop %v3939
    %v3941 = vmul.f32 %v3936, %v3940
    %v3943 = vsel %vm652, %v3941, 0
    %3945 = vmatpush.msra.mxu0 0.0
    %3946 = vmatpush.msra.mxu0 0.0
    %3947 = vmatpush.msra.mxu0 0.0
    %3948 = vmatpush.msra.mxu0 0.0
    %3949 = vmatpush.msra.mxu0 0.0
    %3950 = vmatpush.msra.mxu0 0.0
    %3951 = vmatpush.msra.mxu0 0.0
    %3952 = vmatpush.msra.mxu0 0.0
    %3953 = vmatpush.msra.mxu0 0.0
    %3954 = vmatpush.msra.mxu0 0.0
    %3955 = vmatpush.msra.mxu0 0.0
    %3956 = vmatpush.msra.mxu0 0.0
    %3957 = vmatpush.msra.mxu0 %v1606
    %3958 = vmatpush.msra.mxu0 %v1605
    %3959 = vmatpush.msra.mxu0 %v1604
    %3960 = vmatpush.msra.mxu0 %v1603
    %3961 = vmatmul.f32.gmra.mxu0 %v3943
    %v3962 = vpop.f32.mrf.mxu0
    %v3963 = vadd.f32 %v1607, %v3962
    %3964 = vdwg.mxu0
    %s3965 = scalar_lea.vmem %s25, 14
    %3966 = vst.msk [vmem:[%s3965] sm:$0x3] %vm751, %v3963
    %v3967 = vsel %vm751, %v3963, -inf
    %3968 = vmax.xlane.f32.xlu0 %v3967
    %v3969 = vpop.xlane.xlu0 %3968
    %v3970 = vsub.f32 %v3963, %v3969
    %v3971 = vmul.f32 %v3970, 1.442695
    %v3972 = vpow.pop %v3971
    %v3973 = vsel %vm751, %v3972, 0.0
    %3974 = vadd.xlane.f32.xlu0 %v3973
    %v3975 = vpop.xlane.xlu0 %3974
    %v3976 = vrcp.pop %v3975
    %v3977 = vmul.f32 %v3972, %v3976
    %v3978 = vld [vmem:[%s20] sm:$0xff]
    %v3979 = vld [vmem:[%s20 + $0x8] sm:$0xff]
    %v3980 = vld [vmem:[%s20 + $0x10] sm:$0xff]
    %v3981 = vld [vmem:[%s20 + $0x18] sm:$0xff]
    %v3982 = vld [vmem:[%s22] sm:$0x3]
    %3983 = vmatpush.msra.mxu0 0.0
    %3984 = vmatpush.msra.mxu0 0.0
    %3985 = vmatpush.msra.mxu0 0.0
    %3986 = vmatpush.msra.mxu0 0.0
    %3987 = vmatpush.msra.mxu0 0.0
    %3988 = vmatpush.msra.mxu0 0.0
    %3989 = vmatpush.msra.mxu0 0.0
    %3990 = vmatpush.msra.mxu0 0.0
    %3991 = vmatpush.msra.mxu0 0.0
    %3992 = vmatpush.msra.mxu0 0.0
    %3993 = vmatpush.msra.mxu0 0.0
    %3994 = vmatpush.msra.mxu0 0.0
    %3995 = vmatpush.msra.mxu0 %v3981
    %3996 = vmatpush.msra.mxu0 %v3980
    %3997 = vmatpush.msra.mxu0 %v3979
    %3998 = vmatpush.msra.mxu0 %v3978
    %3999 = vmatmul.f32.gmra.mxu0 %v1379
    %v4000 = vpop.f32.mrf.mxu0
    %v4001 = vadd.f32 %v3982, %v4000
    %4002 = vdwg.mxu0
    %v4003 = vld [vmem:[%s1633] sm:$0xff]
    %v4004 = vld [vmem:[%s1633 + $0x8] sm:$0xff]
    %v4005 = vld [vmem:[%s1633 + $0x10] sm:$0xff]
    %v4006 = vld [vmem:[%s1633 + $0x18] sm:$0xff]
    %v4007 = vld [vmem:[%s1638] sm:$0x3]
    %4008 = vmatpush.msra.mxu0 0.0
    %4009 = vmatpush.msra.mxu0 0.0
    %4010 = vmatpush.msra.mxu0 0.0
    %4011 = vmatpush.msra.mxu0 0.0
    %4012 = vmatpush.msra.mxu0 0.0
    %4013 = vmatpush.msra.mxu0 0.0
    %4014 = vmatpush.msra.mxu0 0.0
    %4015 = vmatpush.msra.mxu0 0.0
    %4016 = vmatpush.msra.mxu0 0.0
    %4017 = vmatpush.msra.mxu0 0.0
    %4018 = vmatpush.msra.mxu0 0.0
    %4019 = vmatpush.msra.mxu0 0.0
    %4020 = vmatpush.msra.mxu0 %v4006
    %4021 = vmatpush.msra.mxu0 %v4005
    %4022 = vmatpush.msra.mxu0 %v4004
    %4023 = vmatpush.msra.mxu0 %v4003
    %4024 = vmatmul.f32.gmra.mxu0 %v1379
    %v4025 = vpop.f32.mrf.mxu0
    %v4026 = vadd.f32 %v4007, %v4025
    %4027 = vdwg.mxu0
    %v4028 = vld [vmem:[%s1660] sm:$0xff]
    %v4029 = vld [vmem:[%s1660 + $0x8] sm:$0xff]
    %v4030 = vld [vmem:[%s1660 + $0x10] sm:$0xff]
    %v4031 = vld [vmem:[%s1660 + $0x18] sm:$0xff]
    %v4032 = vld [vmem:[%s1665] sm:$0x3]
    %4033 = vmatpush.msra.mxu0 0.0
    %4034 = vmatpush.msra.mxu0 0.0
    %4035 = vmatpush.msra.mxu0 0.0
    %4036 = vmatpush.msra.mxu0 0.0
    %4037 = vmatpush.msra.mxu0 0.0
    %4038 = vmatpush.msra.mxu0 0.0
    %4039 = vmatpush.msra.mxu0 0.0
    %4040 = vmatpush.msra.mxu0 0.0
    %4041 = vmatpush.msra.mxu0 0.0
    %4042 = vmatpush.msra.mxu0 0.0
    %4043 = vmatpush.msra.mxu0 0.0
    %4044 = vmatpush.msra.mxu0 0.0
    %4045 = vmatpush.msra.mxu0 %v4031
    %4046 = vmatpush.msra.mxu0 %v4030
    %4047 = vmatpush.msra.mxu0 %v4029
    %4048 = vmatpush.msra.mxu0 %v4028
    %4049 = vmatmul.f32.gmra.mxu0 %v1379
    %v4050 = vpop.f32.mrf.mxu0
    %v4051 = vadd.f32 %v4032, %v4050
    %4052 = vdwg.mxu0
    %v4053 = vld [vmem:[%s1687] sm:$0xff]
    %v4054 = vld [vmem:[%s1687 + $0x8] sm:$0xff]
    %v4055 = vld [vmem:[%s1687 + $0x10] sm:$0xff]
    %v4056 = vld [vmem:[%s1687 + $0x18] sm:$0xff]
    %v4057 = vld [vmem:[%s1692] sm:$0x3]
    %4058 = vmatpush.msra.mxu0 0.0
    %4059 = vmatpush.msra.mxu0 0.0
    %4060 = vmatpush.msra.mxu0 0.0
    %4061 = vmatpush.msra.mxu0 0.0
    %4062 = vmatpush.msra.mxu0 0.0
    %4063 = vmatpush.msra.mxu0 0.0
    %4064 = vmatpush.msra.mxu0 0.0
    %4065 = vmatpush.msra.mxu0 0.0
    %4066 = vmatpush.msra.mxu0 0.0
    %4067 = vmatpush.msra.mxu0 0.0
    %4068 = vmatpush.msra.mxu0 0.0
    %4069 = vmatpush.msra.mxu0 0.0
    %4070 = vmatpush.msra.mxu0 %v4056
    %4071 = vmatpush.msra.mxu0 %v4055
    %4072 = vmatpush.msra.mxu0 %v4054
    %4073 = vmatpush.msra.mxu0 %v4053
    %4074 = vmatmul.f32.gmra.mxu0 %v1379
    %v4075 = vpop.f32.mrf.mxu0
    %v4076 = vadd.f32 %v4057, %v4075
    %4077 = vdwg.mxu0
    %v4079 = vsel %vm782, %v3977, 0
    %4081 = vmatpush.msra.mxu0 0.0
    %4082 = vmatpush.msra.mxu0 0.0
    %4083 = vmatpush.msra.mxu0 0.0
    %4084 = vmatpush.msra.mxu0 0.0
    %4085 = vmatpush.msra.mxu0 0.0
    %4086 = vmatpush.msra.mxu0 0.0
    %4087 = vmatpush.msra.mxu0 0.0
    %4088 = vmatpush.msra.mxu0 0.0
    %4089 = vmatpush.msra.mxu0 0.0
    %4090 = vmatpush.msra.mxu0 0.0
    %4091 = vmatpush.msra.mxu0 0.0
    %4092 = vmatpush.msra.mxu0 0.0
    %4093 = vmatpush.msra.mxu0 0.0
    %4094 = vmatpush.msra.mxu0 0.0
    %4095 = vmatpush.msra.mxu0 %v1574
    %4096 = vmatpush.msra.mxu0 %v1573
    %4097 = vmatmul.f32.gmra.mxu0 %v4079
    %v4098 = vpop.f32.mrf.mxu0
    %v4099 = vadd.f32 0.0, %v4098
    %4100 = vdwg.mxu0
    %v4101 = vadd.f32 %v4001, %v4099
    %v4103 = vsel %vm652, %v1401, 0
    %4105 = vmatpush.msra.mxu0 0.0
    %4106 = vmatpush.msra.mxu0 0.0
    %4107 = vmatpush.msra.mxu0 0.0
    %4108 = vmatpush.msra.mxu0 0.0
    %4109 = vmatpush.msra.mxu0 0.0
    %4110 = vmatpush.msra.mxu0 0.0
    %4111 = vmatpush.msra.mxu0 0.0
    %4112 = vmatpush.msra.mxu0 0.0
    %4113 = vmatpush.msra.mxu0 0.0
    %4114 = vmatpush.msra.mxu0 0.0
    %4115 = vmatpush.msra.mxu0 0.0
    %4116 = vmatpush.msra.mxu0 0.0
    %4117 = vmatpush.msra.mxu0 %v1587
    %4118 = vmatpush.msra.mxu0 %v1586
    %4119 = vmatpush.msra.mxu0 %v1585
    %4120 = vmatpush.msra.mxu0 %v1584
    %4121 = vmatmul.f32.gmra.mxu0 %v4103
    %v4122 = vpop.f32.mrf.mxu0
    %v4123 = vadd.f32 0.0, %v4122
    %4124 = vdwg.mxu0
    %v4125 = vadd.f32 %v4101, %v4123
    %4126 = vmatpush.msra.mxu0 0.0
    %4127 = vmatpush.msra.mxu0 0.0
    %4128 = vmatpush.msra.mxu0 0.0
    %4129 = vmatpush.msra.mxu0 0.0
    %4130 = vmatpush.msra.mxu0 0.0
    %4131 = vmatpush.msra.mxu0 0.0
    %4132 = vmatpush.msra.mxu0 0.0
    %4133 = vmatpush.msra.mxu0 0.0
    %4134 = vmatpush.msra.mxu0 0.0
    %4135 = vmatpush.msra.mxu0 0.0
    %4136 = vmatpush.msra.mxu0 0.0
    %4137 = vmatpush.msra.mxu0 0.0
    %4138 = vmatpush.msra.mxu0 0.0
    %4139 = vmatpush.msra.mxu0 0.0
    %4140 = vmatpush.msra.mxu0 %v1577
    %4141 = vmatpush.msra.mxu0 %v1576
    %4142 = vmatmul.f32.gmra.mxu0 %v4079
    %v4143 = vpop.f32.mrf.mxu0
    %v4144 = vadd.f32 0.0, %v4143
    %4145 = vdwg.mxu0
    %v4146 = vadd.f32 %v4026, %v4144
    %4147 = vmatpush.msra.mxu0 0.0
    %4148 = vmatpush.msra.mxu0 0.0
    %4149 = vmatpush.msra.mxu0 0.0
    %4150 = vmatpush.msra.mxu0 0.0
    %4151 = vmatpush.msra.mxu0 0.0
    %4152 = vmatpush.msra.mxu0 0.0
    %4153 = vmatpush.msra.mxu0 0.0
    %4154 = vmatpush.msra.mxu0 0.0
    %4155 = vmatpush.msra.mxu0 0.0
    %4156 = vmatpush.msra.mxu0 0.0
    %4157 = vmatpush.msra.mxu0 0.0
    %4158 = vmatpush.msra.mxu0 0.0
    %4159 = vmatpush.msra.mxu0 %v1592
    %4160 = vmatpush.msra.mxu0 %v1591
    %4161 = vmatpush.msra.mxu0 %v1590
    %4162 = vmatpush.msra.mxu0 %v1589
    %4163 = vmatmul.f32.gmra.mxu0 %v4103
    %v4164 = vpop.f32.mrf.mxu0
    %v4165 = vadd.f32 0.0, %v4164
    %4166 = vdwg.mxu0
    %v4167 = vadd.f32 %v4146, %v4165
    %4168 = vmatpush.msra.mxu0 0.0
    %4169 = vmatpush.msra.mxu0 0.0
    %4170 = vmatpush.msra.mxu0 0.0
    %4171 = vmatpush.msra.mxu0 0.0
    %4172 = vmatpush.msra.mxu0 0.0
    %4173 = vmatpush.msra.mxu0 0.0
    %4174 = vmatpush.msra.mxu0 0.0
    %4175 = vmatpush.msra.mxu0 0.0
    %4176 = vmatpush.msra.mxu0 0.0
    %4177 = vmatpush.msra.mxu0 0.0
    %4178 = vmatpush.msra.mxu0 0.0
    %4179 = vmatpush.msra.mxu0 0.0
    %4180 = vmatpush.msra.mxu0 0.0
    %4181 = vmatpush.msra.mxu0 0.0
    %4182 = vmatpush.msra.mxu0 %v1580
    %4183 = vmatpush.msra.mxu0 %v1579
    %4184 = vmatmul.f32.gmra.mxu0 %v4079
    %v4185 = vpop.f32.mrf.mxu0
    %v4186 = vadd.f32 0.0, %v4185
    %4187 = vdwg.mxu0
    %v4188 = vadd.f32 %v4051, %v4186
    %4189 = vmatpush.msra.mxu0 0.0
    %4190 = vmatpush.msra.mxu0 0.0
    %4191 = vmatpush.msra.mxu0 0.0
    %4192 = vmatpush.msra.mxu0 0.0
    %4193 = vmatpush.msra.mxu0 0.0
    %4194 = vmatpush.msra.mxu0 0.0
    %4195 = vmatpush.msra.mxu0 0.0
    %4196 = vmatpush.msra.mxu0 0.0
    %4197 = vmatpush.msra.mxu0 0.0
    %4198 = vmatpush.msra.mxu0 0.0
    %4199 = vmatpush.msra.mxu0 0.0
    %4200 = vmatpush.msra.mxu0 0.0
    %4201 = vmatpush.msra.mxu0 %v1597
    %4202 = vmatpush.msra.mxu0 %v1596
    %4203 = vmatpush.msra.mxu0 %v1595
    %4204 = vmatpush.msra.mxu0 %v1594
    %4205 = vmatmul.f32.gmra.mxu0 %v4103
    %v4206 = vpop.f32.mrf.mxu0
    %v4207 = vadd.f32 0.0, %v4206
    %4208 = vdwg.mxu0
    %v4209 = vadd.f32 %v4188, %v4207
    %4210 = vmatpush.msra.mxu0 0.0
    %4211 = vmatpush.msra.mxu0 0.0
    %4212 = vmatpush.msra.mxu0 0.0
    %4213 = vmatpush.msra.mxu0 0.0
    %4214 = vmatpush.msra.mxu0 0.0
    %4215 = vmatpush.msra.mxu0 0.0
    %4216 = vmatpush.msra.mxu0 0.0
    %4217 = vmatpush.msra.mxu0 0.0
    %4218 = vmatpush.msra.mxu0 0.0
    %4219 = vmatpush.msra.mxu0 0.0
    %4220 = vmatpush.msra.mxu0 0.0
    %4221 = vmatpush.msra.mxu0 0.0
    %4222 = vmatpush.msra.mxu0 0.0
    %4223 = vmatpush.msra.mxu0 0.0
    %4224 = vmatpush.msra.mxu0 %v1583
    %4225 = vmatpush.msra.mxu0 %v1582
    %4226 = vmatmul.f32.gmra.mxu0 %v4079
    %v4227 = vpop.f32.mrf.mxu0
    %v4228 = vadd.f32 0.0, %v4227
    %4229 = vdwg.mxu0
    %v4230 = vadd.f32 %v4076, %v4228
    %4231 = vmatpush.msra.mxu0 0.0
    %4232 = vmatpush.msra.mxu0 0.0
    %4233 = vmatpush.msra.mxu0 0.0
    %4234 = vmatpush.msra.mxu0 0.0
    %4235 = vmatpush.msra.mxu0 0.0
    %4236 = vmatpush.msra.mxu0 0.0
    %4237 = vmatpush.msra.mxu0 0.0
    %4238 = vmatpush.msra.mxu0 0.0
    %4239 = vmatpush.msra.mxu0 0.0
    %4240 = vmatpush.msra.mxu0 0.0
    %4241 = vmatpush.msra.mxu0 0.0
    %4242 = vmatpush.msra.mxu0 0.0
    %4243 = vmatpush.msra.mxu0 %v1602
    %4244 = vmatpush.msra.mxu0 %v1601
    %4245 = vmatpush.msra.mxu0 %v1600
    %4246 = vmatpush.msra.mxu0 %v1599
    %4247 = vmatmul.f32.gmra.mxu0 %v4103
    %v4248 = vpop.f32.mrf.mxu0
    %v4249 = vadd.f32 0.0, %v4248
    %4250 = vdwg.mxu0
    %v4251 = vadd.f32 %v4230, %v4249
    %v4252 = vxor.u32 %v4125, 2147483648
    %v4253 = vmul.f32 %v4252, 1.442695
    %v4254 = vpow.pop %v4253
    %v4255 = vadd.f32 %v4254, 1.0
    %v4256 = vrcp.pop %v4255
    %v4257 = vmul.f32 %v4255, %v4256
    %v4258 = vsub.f32 1.0, %v4257
    %v4259 = vmul.f32 %v4256, %v4258
    %v4260 = vadd.f32 %v4256, %v4259
    %vm4261 = vweird.f32 %v4255
    %vm4262 = vweird.f32 %v4256
    %vm4263 = vmor %vm4261, %vm4262
    %v4264 = vsel %vm4263, %v4256, %v4260
    %v4265 = vand.u32 2147483647, %v4255
    %vm4266 = vcmp.eq.f32.partialorder %v4265, 8.507059e+37
    %v4267 = vand.u32 %v4255, 2147483648
    %v4268 = vor.u32 1.1754944e-38, %v4267
    %v4269 = vsel %vm4266, %v4268, %v4264
    %v4270 = vmul.f32 1.0, %v4269
    %v4271 = vxor.u32 %v4167, 2147483648
    %v4272 = vmul.f32 %v4271, 1.442695
    %v4273 = vpow.pop %v4272
    %v4274 = vadd.f32 %v4273, 1.0
    %v4275 = vrcp.pop %v4274
    %v4276 = vmul.f32 %v4274, %v4275
    %v4277 = vsub.f32 1.0, %v4276
    %v4278 = vmul.f32 %v4275, %v4277
    %v4279 = vadd.f32 %v4275, %v4278
    %vm4280 = vweird.f32 %v4274
    %vm4281 = vweird.f32 %v4275
    %vm4282 = vmor %vm4280, %vm4281
    %v4283 = vsel %vm4282, %v4275, %v4279
    %v4284 = vand.u32 2147483647, %v4274
    %vm4285 = vcmp.eq.f32.partialorder %v4284, 8.507059e+37
    %v4286 = vand.u32 %v4274, 2147483648
    %v4287 = vor.u32 1.1754944e-38, %v4286
    %v4288 = vsel %vm4285, %v4287, %v4283
    %v4289 = vmul.f32 1.0, %v4288
    %v4290 = vtanh.pop %v4209
    %v4291 = vxor.u32 %v4251, 2147483648
    %v4292 = vmul.f32 %v4291, 1.442695
    %v4293 = vpow.pop %v4292
    %v4294 = vadd.f32 %v4293, 1.0
    %v4295 = vrcp.pop %v4294
    %v4296 = vmul.f32 %v4294, %v4295
    %v4297 = vsub.f32 1.0, %v4296
    %v4298 = vmul.f32 %v4295, %v4297
    %v4299 = vadd.f32 %v4295, %v4298
    %vm4300 = vweird.f32 %v4294
    %vm4301 = vweird.f32 %v4295
    %vm4302 = vmor %vm4300, %vm4301
    %v4303 = vsel %vm4302, %v4295, %v4299
    %v4304 = vand.u32 2147483647, %v4294
    %vm4305 = vcmp.eq.f32.partialorder %v4304, 8.507059e+37
    %v4306 = vand.u32 %v4294, 2147483648
    %v4307 = vor.u32 1.1754944e-38, %v4306
    %v4308 = vsel %vm4305, %v4307, %v4303
    %v4309 = vmul.f32 1.0, %v4308
    %v4310 = vmul.f32 %v4289, 0.0
    %v4311 = vmul.f32 %v4270, %v4290
    %v4312 = vadd.f32 %v4310, %v4311
    %v4313 = vtanh.pop %v4312
    %v4314 = vmul.f32 %v4309, %v4313
    %v4316 = vsel %vm652, %v4314, 0
    %4318 = vmatpush.msra.mxu0 0.0
    %4319 = vmatpush.msra.mxu0 0.0
    %4320 = vmatpush.msra.mxu0 0.0
    %4321 = vmatpush.msra.mxu0 0.0
    %4322 = vmatpush.msra.mxu0 0.0
    %4323 = vmatpush.msra.mxu0 0.0
    %4324 = vmatpush.msra.mxu0 0.0
    %4325 = vmatpush.msra.mxu0 0.0
    %4326 = vmatpush.msra.mxu0 0.0
    %4327 = vmatpush.msra.mxu0 0.0
    %4328 = vmatpush.msra.mxu0 0.0
    %4329 = vmatpush.msra.mxu0 0.0
    %4330 = vmatpush.msra.mxu0 %v1606
    %4331 = vmatpush.msra.mxu0 %v1605
    %4332 = vmatpush.msra.mxu0 %v1604
    %4333 = vmatpush.msra.mxu0 %v1603
    %4334 = vmatmul.f32.gmra.mxu0 %v4316
    %v4335 = vpop.f32.mrf.mxu0
    %v4336 = vadd.f32 %v1607, %v4335
    %4337 = vdwg.mxu0
    %s4338 = scalar_lea.vmem %s25, 16
    %4339 = vst.msk [vmem:[%s4338] sm:$0x3] %vm751, %v4336
    %v4340 = vsel %vm751, %v4336, -inf
    %4341 = vmax.xlane.f32.xlu0 %v4340
    %v4342 = vpop.xlane.xlu0 %4341
    %v4343 = vsub.f32 %v4336, %v4342
    %v4344 = vmul.f32 %v4343, 1.442695
    %v4345 = vpow.pop %v4344
    %v4346 = vsel %vm751, %v4345, 0.0
    %4347 = vadd.xlane.f32.xlu0 %v4346
    %v4348 = vpop.xlane.xlu0 %4347
    %v4349 = vrcp.pop %v4348
    %v4350 = vmul.f32 %v4345, %v4349
    %v4352 = vsel %vm782, %v4350, 0
    %4354 = vmatpush.msra.mxu0 0.0
    %4355 = vmatpush.msra.mxu0 0.0
    %4356 = vmatpush.msra.mxu0 0.0
    %4357 = vmatpush.msra.mxu0 0.0
    %4358 = vmatpush.msra.mxu0 0.0
    %4359 = vmatpush.msra.mxu0 0.0
    %4360 = vmatpush.msra.mxu0 0.0
    %4361 = vmatpush.msra.mxu0 0.0
    %4362 = vmatpush.msra.mxu0 0.0
    %4363 = vmatpush.msra.mxu0 0.0
    %4364 = vmatpush.msra.mxu0 0.0
    %4365 = vmatpush.msra.mxu0 0.0
    %4366 = vmatpush.msra.mxu0 0.0
    %4367 = vmatpush.msra.mxu0 0.0
    %4368 = vmatpush.msra.mxu0 %v1574
    %4369 = vmatpush.msra.mxu0 %v1573
    %4370 = vmatmul.f32.gmra.mxu0 %v4352
    %v4371 = vpop.f32.mrf.mxu0
    %v4372 = vadd.f32 0.0, %v4371
    %4373 = vdwg.mxu0
    %v4374 = vadd.f32 %v4001, %v4372
    %4375 = vmatpush.msra.mxu0 0.0
    %4376 = vmatpush.msra.mxu0 0.0
    %4377 = vmatpush.msra.mxu0 0.0
    %4378 = vmatpush.msra.mxu0 0.0
    %4379 = vmatpush.msra.mxu0 0.0
    %4380 = vmatpush.msra.mxu0 0.0
    %4381 = vmatpush.msra.mxu0 0.0
    %4382 = vmatpush.msra.mxu0 0.0
    %4383 = vmatpush.msra.mxu0 0.0
    %4384 = vmatpush.msra.mxu0 0.0
    %4385 = vmatpush.msra.mxu0 0.0
    %4386 = vmatpush.msra.mxu0 0.0
    %4387 = vmatpush.msra.mxu0 %v1587
    %4388 = vmatpush.msra.mxu0 %v1586
    %4389 = vmatpush.msra.mxu0 %v1585
    %4390 = vmatpush.msra.mxu0 %v1584
    %4391 = vmatmul.f32.gmra.mxu0 %v4316
    %v4392 = vpop.f32.mrf.mxu0
    %v4393 = vadd.f32 0.0, %v4392
    %4394 = vdwg.mxu0
    %v4395 = vadd.f32 %v4374, %v4393
    %4396 = vmatpush.msra.mxu0 0.0
    %4397 = vmatpush.msra.mxu0 0.0
    %4398 = vmatpush.msra.mxu0 0.0
    %4399 = vmatpush.msra.mxu0 0.0
    %4400 = vmatpush.msra.mxu0 0.0
    %4401 = vmatpush.msra.mxu0 0.0
    %4402 = vmatpush.msra.mxu0 0.0
    %4403 = vmatpush.msra.mxu0 0.0
    %4404 = vmatpush.msra.mxu0 0.0
    %4405 = vmatpush.msra.mxu0 0.0
    %4406 = vmatpush.msra.mxu0 0.0
    %4407 = vmatpush.msra.mxu0 0.0
    %4408 = vmatpush.msra.mxu0 0.0
    %4409 = vmatpush.msra.mxu0 0.0
    %4410 = vmatpush.msra.mxu0 %v1577
    %4411 = vmatpush.msra.mxu0 %v1576
    %4412 = vmatmul.f32.gmra.mxu0 %v4352
    %v4413 = vpop.f32.mrf.mxu0
    %v4414 = vadd.f32 0.0, %v4413
    %4415 = vdwg.mxu0
    %v4416 = vadd.f32 %v4026, %v4414
    %4417 = vmatpush.msra.mxu0 0.0
    %4418 = vmatpush.msra.mxu0 0.0
    %4419 = vmatpush.msra.mxu0 0.0
    %4420 = vmatpush.msra.mxu0 0.0
    %4421 = vmatpush.msra.mxu0 0.0
    %4422 = vmatpush.msra.mxu0 0.0
    %4423 = vmatpush.msra.mxu0 0.0
    %4424 = vmatpush.msra.mxu0 0.0
    %4425 = vmatpush.msra.mxu0 0.0
    %4426 = vmatpush.msra.mxu0 0.0
    %4427 = vmatpush.msra.mxu0 0.0
    %4428 = vmatpush.msra.mxu0 0.0
    %4429 = vmatpush.msra.mxu0 %v1592
    %4430 = vmatpush.msra.mxu0 %v1591
    %4431 = vmatpush.msra.mxu0 %v1590
    %4432 = vmatpush.msra.mxu0 %v1589
    %4433 = vmatmul.f32.gmra.mxu0 %v4316
    %v4434 = vpop.f32.mrf.mxu0
    %v4435 = vadd.f32 0.0, %v4434
    %4436 = vdwg.mxu0
    %v4437 = vadd.f32 %v4416, %v4435
    %4438 = vmatpush.msra.mxu0 0.0
    %4439 = vmatpush.msra.mxu0 0.0
    %4440 = vmatpush.msra.mxu0 0.0
    %4441 = vmatpush.msra.mxu0 0.0
    %4442 = vmatpush.msra.mxu0 0.0
    %4443 = vmatpush.msra.mxu0 0.0
    %4444 = vmatpush.msra.mxu0 0.0
    %4445 = vmatpush.msra.mxu0 0.0
    %4446 = vmatpush.msra.mxu0 0.0
    %4447 = vmatpush.msra.mxu0 0.0
    %4448 = vmatpush.msra.mxu0 0.0
    %4449 = vmatpush.msra.mxu0 0.0
    %4450 = vmatpush.msra.mxu0 0.0
    %4451 = vmatpush.msra.mxu0 0.0
    %4452 = vmatpush.msra.mxu0 %v1580
    %4453 = vmatpush.msra.mxu0 %v1579
    %4454 = vmatmul.f32.gmra.mxu0 %v4352
    %v4455 = vpop.f32.mrf.mxu0
    %v4456 = vadd.f32 0.0, %v4455
    %4457 = vdwg.mxu0
    %v4458 = vadd.f32 %v4051, %v4456
    %4459 = vmatpush.msra.mxu0 0.0
    %4460 = vmatpush.msra.mxu0 0.0
    %4461 = vmatpush.msra.mxu0 0.0
    %4462 = vmatpush.msra.mxu0 0.0
    %4463 = vmatpush.msra.mxu0 0.0
    %4464 = vmatpush.msra.mxu0 0.0
    %4465 = vmatpush.msra.mxu0 0.0
    %4466 = vmatpush.msra.mxu0 0.0
    %4467 = vmatpush.msra.mxu0 0.0
    %4468 = vmatpush.msra.mxu0 0.0
    %4469 = vmatpush.msra.mxu0 0.0
    %4470 = vmatpush.msra.mxu0 0.0
    %4471 = vmatpush.msra.mxu0 %v1597
    %4472 = vmatpush.msra.mxu0 %v1596
    %4473 = vmatpush.msra.mxu0 %v1595
    %4474 = vmatpush.msra.mxu0 %v1594
    %4475 = vmatmul.f32.gmra.mxu0 %v4316
    %v4476 = vpop.f32.mrf.mxu0
    %v4477 = vadd.f32 0.0, %v4476
    %4478 = vdwg.mxu0
    %v4479 = vadd.f32 %v4458, %v4477
    %4480 = vmatpush.msra.mxu0 0.0
    %4481 = vmatpush.msra.mxu0 0.0
    %4482 = vmatpush.msra.mxu0 0.0
    %4483 = vmatpush.msra.mxu0 0.0
    %4484 = vmatpush.msra.mxu0 0.0
    %4485 = vmatpush.msra.mxu0 0.0
    %4486 = vmatpush.msra.mxu0 0.0
    %4487 = vmatpush.msra.mxu0 0.0
    %4488 = vmatpush.msra.mxu0 0.0
    %4489 = vmatpush.msra.mxu0 0.0
    %4490 = vmatpush.msra.mxu0 0.0
    %4491 = vmatpush.msra.mxu0 0.0
    %4492 = vmatpush.msra.mxu0 0.0
    %4493 = vmatpush.msra.mxu0 0.0
    %4494 = vmatpush.msra.mxu0 %v1583
    %4495 = vmatpush.msra.mxu0 %v1582
    %4496 = vmatmul.f32.gmra.mxu0 %v4352
    %v4497 = vpop.f32.mrf.mxu0
    %v4498 = vadd.f32 0.0, %v4497
    %4499 = vdwg.mxu0
    %v4500 = vadd.f32 %v4076, %v4498
    %4501 = vmatpush.msra.mxu0 0.0
    %4502 = vmatpush.msra.mxu0 0.0
    %4503 = vmatpush.msra.mxu0 0.0
    %4504 = vmatpush.msra.mxu0 0.0
    %4505 = vmatpush.msra.mxu0 0.0
    %4506 = vmatpush.msra.mxu0 0.0
    %4507 = vmatpush.msra.mxu0 0.0
    %4508 = vmatpush.msra.mxu0 0.0
    %4509 = vmatpush.msra.mxu0 0.0
    %4510 = vmatpush.msra.mxu0 0.0
    %4511 = vmatpush.msra.mxu0 0.0
    %4512 = vmatpush.msra.mxu0 0.0
    %4513 = vmatpush.msra.mxu0 %v1602
    %4514 = vmatpush.msra.mxu0 %v1601
    %4515 = vmatpush.msra.mxu0 %v1600
    %4516 = vmatpush.msra.mxu0 %v1599
    %4517 = vmatmul.f32.gmra.mxu0 %v4316
    %v4518 = vpop.f32.mrf.mxu0
    %v4519 = vadd.f32 0.0, %v4518
    %4520 = vdwg.mxu0
    %v4521 = vadd.f32 %v4500, %v4519
    %v4522 = vxor.u32 %v4395, 2147483648
    %v4523 = vmul.f32 %v4522, 1.442695
    %v4524 = vpow.pop %v4523
    %v4525 = vadd.f32 %v4524, 1.0
    %v4526 = vrcp.pop %v4525
    %v4527 = vmul.f32 %v4525, %v4526
    %v4528 = vsub.f32 1.0, %v4527
    %v4529 = vmul.f32 %v4526, %v4528
    %v4530 = vadd.f32 %v4526, %v4529
    %vm4531 = vweird.f32 %v4525
    %vm4532 = vweird.f32 %v4526
    %vm4533 = vmor %vm4531, %vm4532
    %v4534 = vsel %vm4533, %v4526, %v4530
    %v4535 = vand.u32 2147483647, %v4525
    %vm4536 = vcmp.eq.f32.partialorder %v4535, 8.507059e+37
    %v4537 = vand.u32 %v4525, 2147483648
    %v4538 = vor.u32 1.1754944e-38, %v4537
    %v4539 = vsel %vm4536, %v4538, %v4534
    %v4540 = vmul.f32 1.0, %v4539
    %v4541 = vxor.u32 %v4437, 2147483648
    %v4542 = vmul.f32 %v4541, 1.442695
    %v4543 = vpow.pop %v4542
    %v4544 = vadd.f32 %v4543, 1.0
    %v4545 = vrcp.pop %v4544
    %v4546 = vmul.f32 %v4544, %v4545
    %v4547 = vsub.f32 1.0, %v4546
    %v4548 = vmul.f32 %v4545, %v4547
    %v4549 = vadd.f32 %v4545, %v4548
    %vm4550 = vweird.f32 %v4544
    %vm4551 = vweird.f32 %v4545
    %vm4552 = vmor %vm4550, %vm4551
    %v4553 = vsel %vm4552, %v4545, %v4549
    %v4554 = vand.u32 2147483647, %v4544
    %vm4555 = vcmp.eq.f32.partialorder %v4554, 8.507059e+37
    %v4556 = vand.u32 %v4544, 2147483648
    %v4557 = vor.u32 1.1754944e-38, %v4556
    %v4558 = vsel %vm4555, %v4557, %v4553
    %v4559 = vmul.f32 1.0, %v4558
    %v4560 = vtanh.pop %v4479
    %v4561 = vxor.u32 %v4521, 2147483648
    %v4562 = vmul.f32 %v4561, 1.442695
    %v4563 = vpow.pop %v4562
    %v4564 = vadd.f32 %v4563, 1.0
    %v4565 = vrcp.pop %v4564
    %v4566 = vmul.f32 %v4564, %v4565
    %v4567 = vsub.f32 1.0, %v4566
    %v4568 = vmul.f32 %v4565, %v4567
    %v4569 = vadd.f32 %v4565, %v4568
    %vm4570 = vweird.f32 %v4564
    %vm4571 = vweird.f32 %v4565
    %vm4572 = vmor %vm4570, %vm4571
    %v4573 = vsel %vm4572, %v4565, %v4569
    %v4574 = vand.u32 2147483647, %v4564
    %vm4575 = vcmp.eq.f32.partialorder %v4574, 8.507059e+37
    %v4576 = vand.u32 %v4564, 2147483648
    %v4577 = vor.u32 1.1754944e-38, %v4576
    %v4578 = vsel %vm4575, %v4577, %v4573
    %v4579 = vmul.f32 1.0, %v4578
    %v4580 = vmul.f32 %v4559, %v4312
    %v4581 = vmul.f32 %v4540, %v4560
    %v4582 = vadd.f32 %v4580, %v4581
    %v4583 = vtanh.pop %v4582
    %v4584 = vmul.f32 %v4579, %v4583
    %v4586 = vsel %vm652, %v4584, 0
    %4588 = vmatpush.msra.mxu0 0.0
    %4589 = vmatpush.msra.mxu0 0.0
    %4590 = vmatpush.msra.mxu0 0.0
    %4591 = vmatpush.msra.mxu0 0.0
    %4592 = vmatpush.msra.mxu0 0.0
    %4593 = vmatpush.msra.mxu0 0.0
    %4594 = vmatpush.msra.mxu0 0.0
    %4595 = vmatpush.msra.mxu0 0.0
    %4596 = vmatpush.msra.mxu0 0.0
    %4597 = vmatpush.msra.mxu0 0.0
    %4598 = vmatpush.msra.mxu0 0.0
    %4599 = vmatpush.msra.mxu0 0.0
    %4600 = vmatpush.msra.mxu0 %v1606
    %4601 = vmatpush.msra.mxu0 %v1605
    %4602 = vmatpush.msra.mxu0 %v1604
    %4603 = vmatpush.msra.mxu0 %v1603
    %4604 = vmatmul.f32.gmra.mxu0 %v4586
    %v4605 = vpop.f32.mrf.mxu0
    %v4606 = vadd.f32 %v1607, %v4605
    %4607 = vdwg.mxu0
    %s4608 = scalar_lea.vmem %s25, 18
    %4609 = vst.msk [vmem:[%s4608] sm:$0x3] %vm751, %v4606
    %v4610 = vsel %vm751, %v4606, -inf
    %4611 = vmax.xlane.f32.xlu0 %v4610
    %v4612 = vpop.xlane.xlu0 %4611
    %v4613 = vsub.f32 %v4606, %v4612
    %v4614 = vmul.f32 %v4613, 1.442695
    %v4615 = vpow.pop %v4614
    %v4616 = vsel %vm751, %v4615, 0.0
    %4617 = vadd.xlane.f32.xlu0 %v4616
    %v4618 = vpop.xlane.xlu0 %4617
    %v4619 = vrcp.pop %v4618
    %v4620 = vmul.f32 %v4615, %v4619
    %v4622 = vsel %vm782, %v4620, 0
    %4624 = vmatpush.msra.mxu0 0.0
    %4625 = vmatpush.msra.mxu0 0.0
    %4626 = vmatpush.msra.mxu0 0.0
    %4627 = vmatpush.msra.mxu0 0.0
    %4628 = vmatpush.msra.mxu0 0.0
    %4629 = vmatpush.msra.mxu0 0.0
    %4630 = vmatpush.msra.mxu0 0.0
    %4631 = vmatpush.msra.mxu0 0.0
    %4632 = vmatpush.msra.mxu0 0.0
    %4633 = vmatpush.msra.mxu0 0.0
    %4634 = vmatpush.msra.mxu0 0.0
    %4635 = vmatpush.msra.mxu0 0.0
    %4636 = vmatpush.msra.mxu0 0.0
    %4637 = vmatpush.msra.mxu0 0.0
    %4638 = vmatpush.msra.mxu0 %v1574
    %4639 = vmatpush.msra.mxu0 %v1573
    %4640 = vmatmul.f32.gmra.mxu0 %v4622
    %v4641 = vpop.f32.mrf.mxu0
    %v4642 = vadd.f32 0.0, %v4641
    %4643 = vdwg.mxu0
    %v4644 = vadd.f32 %v4001, %v4642
    %4645 = vmatpush.msra.mxu0 0.0
    %4646 = vmatpush.msra.mxu0 0.0
    %4647 = vmatpush.msra.mxu0 0.0
    %4648 = vmatpush.msra.mxu0 0.0
    %4649 = vmatpush.msra.mxu0 0.0
    %4650 = vmatpush.msra.mxu0 0.0
    %4651 = vmatpush.msra.mxu0 0.0
    %4652 = vmatpush.msra.mxu0 0.0
    %4653 = vmatpush.msra.mxu0 0.0
    %4654 = vmatpush.msra.mxu0 0.0
    %4655 = vmatpush.msra.mxu0 0.0
    %4656 = vmatpush.msra.mxu0 0.0
    %4657 = vmatpush.msra.mxu0 %v1587
    %4658 = vmatpush.msra.mxu0 %v1586
    %4659 = vmatpush.msra.mxu0 %v1585
    %4660 = vmatpush.msra.mxu0 %v1584
    %4661 = vmatmul.f32.gmra.mxu0 %v4586
    %v4662 = vpop.f32.mrf.mxu0
    %v4663 = vadd.f32 0.0, %v4662
    %4664 = vdwg.mxu0
    %v4665 = vadd.f32 %v4644, %v4663
    %4666 = vmatpush.msra.mxu0 0.0
    %4667 = vmatpush.msra.mxu0 0.0
    %4668 = vmatpush.msra.mxu0 0.0
    %4669 = vmatpush.msra.mxu0 0.0
    %4670 = vmatpush.msra.mxu0 0.0
    %4671 = vmatpush.msra.mxu0 0.0
    %4672 = vmatpush.msra.mxu0 0.0
    %4673 = vmatpush.msra.mxu0 0.0
    %4674 = vmatpush.msra.mxu0 0.0
    %4675 = vmatpush.msra.mxu0 0.0
    %4676 = vmatpush.msra.mxu0 0.0
    %4677 = vmatpush.msra.mxu0 0.0
    %4678 = vmatpush.msra.mxu0 0.0
    %4679 = vmatpush.msra.mxu0 0.0
    %4680 = vmatpush.msra.mxu0 %v1577
    %4681 = vmatpush.msra.mxu0 %v1576
    %4682 = vmatmul.f32.gmra.mxu0 %v4622
    %v4683 = vpop.f32.mrf.mxu0
    %v4684 = vadd.f32 0.0, %v4683
    %4685 = vdwg.mxu0
    %v4686 = vadd.f32 %v4026, %v4684
    %4687 = vmatpush.msra.mxu0 0.0
    %4688 = vmatpush.msra.mxu0 0.0
    %4689 = vmatpush.msra.mxu0 0.0
    %4690 = vmatpush.msra.mxu0 0.0
    %4691 = vmatpush.msra.mxu0 0.0
    %4692 = vmatpush.msra.mxu0 0.0
    %4693 = vmatpush.msra.mxu0 0.0
    %4694 = vmatpush.msra.mxu0 0.0
    %4695 = vmatpush.msra.mxu0 0.0
    %4696 = vmatpush.msra.mxu0 0.0
    %4697 = vmatpush.msra.mxu0 0.0
    %4698 = vmatpush.msra.mxu0 0.0
    %4699 = vmatpush.msra.mxu0 %v1592
    %4700 = vmatpush.msra.mxu0 %v1591
    %4701 = vmatpush.msra.mxu0 %v1590
    %4702 = vmatpush.msra.mxu0 %v1589
    %4703 = vmatmul.f32.gmra.mxu0 %v4586
    %v4704 = vpop.f32.mrf.mxu0
    %v4705 = vadd.f32 0.0, %v4704
    %4706 = vdwg.mxu0
    %v4707 = vadd.f32 %v4686, %v4705
    %4708 = vmatpush.msra.mxu0 0.0
    %4709 = vmatpush.msra.mxu0 0.0
    %4710 = vmatpush.msra.mxu0 0.0
    %4711 = vmatpush.msra.mxu0 0.0
    %4712 = vmatpush.msra.mxu0 0.0
    %4713 = vmatpush.msra.mxu0 0.0
    %4714 = vmatpush.msra.mxu0 0.0
    %4715 = vmatpush.msra.mxu0 0.0
    %4716 = vmatpush.msra.mxu0 0.0
    %4717 = vmatpush.msra.mxu0 0.0
    %4718 = vmatpush.msra.mxu0 0.0
    %4719 = vmatpush.msra.mxu0 0.0
    %4720 = vmatpush.msra.mxu0 0.0
    %4721 = vmatpush.msra.mxu0 0.0
    %4722 = vmatpush.msra.mxu0 %v1580
    %4723 = vmatpush.msra.mxu0 %v1579
    %4724 = vmatmul.f32.gmra.mxu0 %v4622
    %v4725 = vpop.f32.mrf.mxu0
    %v4726 = vadd.f32 0.0, %v4725
    %4727 = vdwg.mxu0
    %v4728 = vadd.f32 %v4051, %v4726
    %4729 = vmatpush.msra.mxu0 0.0
    %4730 = vmatpush.msra.mxu0 0.0
    %4731 = vmatpush.msra.mxu0 0.0
    %4732 = vmatpush.msra.mxu0 0.0
    %4733 = vmatpush.msra.mxu0 0.0
    %4734 = vmatpush.msra.mxu0 0.0
    %4735 = vmatpush.msra.mxu0 0.0
    %4736 = vmatpush.msra.mxu0 0.0
    %4737 = vmatpush.msra.mxu0 0.0
    %4738 = vmatpush.msra.mxu0 0.0
    %4739 = vmatpush.msra.mxu0 0.0
    %4740 = vmatpush.msra.mxu0 0.0
    %4741 = vmatpush.msra.mxu0 %v1597
    %4742 = vmatpush.msra.mxu0 %v1596
    %4743 = vmatpush.msra.mxu0 %v1595
    %4744 = vmatpush.msra.mxu0 %v1594
    %4745 = vmatmul.f32.gmra.mxu0 %v4586
    %v4746 = vpop.f32.mrf.mxu0
    %v4747 = vadd.f32 0.0, %v4746
    %4748 = vdwg.mxu0
    %v4749 = vadd.f32 %v4728, %v4747
    %4750 = vmatpush.msra.mxu0 0.0
    %4751 = vmatpush.msra.mxu0 0.0
    %4752 = vmatpush.msra.mxu0 0.0
    %4753 = vmatpush.msra.mxu0 0.0
    %4754 = vmatpush.msra.mxu0 0.0
    %4755 = vmatpush.msra.mxu0 0.0
    %4756 = vmatpush.msra.mxu0 0.0
    %4757 = vmatpush.msra.mxu0 0.0
    %4758 = vmatpush.msra.mxu0 0.0
    %4759 = vmatpush.msra.mxu0 0.0
    %4760 = vmatpush.msra.mxu0 0.0
    %4761 = vmatpush.msra.mxu0 0.0
    %4762 = vmatpush.msra.mxu0 0.0
    %4763 = vmatpush.msra.mxu0 0.0
    %4764 = vmatpush.msra.mxu0 %v1583
    %4765 = vmatpush.msra.mxu0 %v1582
    %4766 = vmatmul.f32.gmra.mxu0 %v4622
    %v4767 = vpop.f32.mrf.mxu0
    %v4768 = vadd.f32 0.0, %v4767
    %4769 = vdwg.mxu0
    %v4770 = vadd.f32 %v4076, %v4768
    %4771 = vmatpush.msra.mxu0 0.0
    %4772 = vmatpush.msra.mxu0 0.0
    %4773 = vmatpush.msra.mxu0 0.0
    %4774 = vmatpush.msra.mxu0 0.0
    %4775 = vmatpush.msra.mxu0 0.0
    %4776 = vmatpush.msra.mxu0 0.0
    %4777 = vmatpush.msra.mxu0 0.0
    %4778 = vmatpush.msra.mxu0 0.0
    %4779 = vmatpush.msra.mxu0 0.0
    %4780 = vmatpush.msra.mxu0 0.0
    %4781 = vmatpush.msra.mxu0 0.0
    %4782 = vmatpush.msra.mxu0 0.0
    %4783 = vmatpush.msra.mxu0 %v1602
    %4784 = vmatpush.msra.mxu0 %v1601
    %4785 = vmatpush.msra.mxu0 %v1600
    %4786 = vmatpush.msra.mxu0 %v1599
    %4787 = vmatmul.f32.gmra.mxu0 %v4586
    %v4788 = vpop.f32.mrf.mxu0
    %v4789 = vadd.f32 0.0, %v4788
    %4790 = vdwg.mxu0
    %v4791 = vadd.f32 %v4770, %v4789
    %v4792 = vxor.u32 %v4665, 2147483648
    %v4793 = vmul.f32 %v4792, 1.442695
    %v4794 = vpow.pop %v4793
    %v4795 = vadd.f32 %v4794, 1.0
    %v4796 = vrcp.pop %v4795
    %v4797 = vmul.f32 %v4795, %v4796
    %v4798 = vsub.f32 1.0, %v4797
    %v4799 = vmul.f32 %v4796, %v4798
    %v4800 = vadd.f32 %v4796, %v4799
    %vm4801 = vweird.f32 %v4795
    %vm4802 = vweird.f32 %v4796
    %vm4803 = vmor %vm4801, %vm4802
    %v4804 = vsel %vm4803, %v4796, %v4800
    %v4805 = vand.u32 2147483647, %v4795
    %vm4806 = vcmp.eq.f32.partialorder %v4805, 8.507059e+37
    %v4807 = vand.u32 %v4795, 2147483648
    %v4808 = vor.u32 1.1754944e-38, %v4807
    %v4809 = vsel %vm4806, %v4808, %v4804
    %v4810 = vmul.f32 1.0, %v4809
    %v4811 = vxor.u32 %v4707, 2147483648
    %v4812 = vmul.f32 %v4811, 1.442695
    %v4813 = vpow.pop %v4812
    %v4814 = vadd.f32 %v4813, 1.0
    %v4815 = vrcp.pop %v4814
    %v4816 = vmul.f32 %v4814, %v4815
    %v4817 = vsub.f32 1.0, %v4816
    %v4818 = vmul.f32 %v4815, %v4817
    %v4819 = vadd.f32 %v4815, %v4818
    %vm4820 = vweird.f32 %v4814
    %vm4821 = vweird.f32 %v4815
    %vm4822 = vmor %vm4820, %vm4821
    %v4823 = vsel %vm4822, %v4815, %v4819
    %v4824 = vand.u32 2147483647, %v4814
    %vm4825 = vcmp.eq.f32.partialorder %v4824, 8.507059e+37
    %v4826 = vand.u32 %v4814, 2147483648
    %v4827 = vor.u32 1.1754944e-38, %v4826
    %v4828 = vsel %vm4825, %v4827, %v4823
    %v4829 = vmul.f32 1.0, %v4828
    %v4830 = vtanh.pop %v4749
    %v4831 = vxor.u32 %v4791, 2147483648
    %v4832 = vmul.f32 %v4831, 1.442695
    %v4833 = vpow.pop %v4832
    %v4834 = vadd.f32 %v4833, 1.0
    %v4835 = vrcp.pop %v4834
    %v4836 = vmul.f32 %v4834, %v4835
    %v4837 = vsub.f32 1.0, %v4836
    %v4838 = vmul.f32 %v4835, %v4837
    %v4839 = vadd.f32 %v4835, %v4838
    %vm4840 = vweird.f32 %v4834
    %vm4841 = vweird.f32 %v4835
    %vm4842 = vmor %vm4840, %vm4841
    %v4843 = vsel %vm4842, %v4835, %v4839
    %v4844 = vand.u32 2147483647, %v4834
    %vm4845 = vcmp.eq.f32.partialorder %v4844, 8.507059e+37
    %v4846 = vand.u32 %v4834, 2147483648
    %v4847 = vor.u32 1.1754944e-38, %v4846
    %v4848 = vsel %vm4845, %v4847, %v4843
    %v4849 = vmul.f32 1.0, %v4848
    %v4850 = vmul.f32 %v4829, %v4582
    %v4851 = vmul.f32 %v4810, %v4830
    %v4852 = vadd.f32 %v4850, %v4851
    %v4853 = vtanh.pop %v4852
    %v4854 = vmul.f32 %v4849, %v4853
    %v4856 = vsel %vm652, %v4854, 0
    %4858 = vmatpush.msra.mxu0 0.0
    %4859 = vmatpush.msra.mxu0 0.0
    %4860 = vmatpush.msra.mxu0 0.0
    %4861 = vmatpush.msra.mxu0 0.0
    %4862 = vmatpush.msra.mxu0 0.0
    %4863 = vmatpush.msra.mxu0 0.0
    %4864 = vmatpush.msra.mxu0 0.0
    %4865 = vmatpush.msra.mxu0 0.0
    %4866 = vmatpush.msra.mxu0 0.0
    %4867 = vmatpush.msra.mxu0 0.0
    %4868 = vmatpush.msra.mxu0 0.0
    %4869 = vmatpush.msra.mxu0 0.0
    %4870 = vmatpush.msra.mxu0 %v1606
    %4871 = vmatpush.msra.mxu0 %v1605
    %4872 = vmatpush.msra.mxu0 %v1604
    %4873 = vmatpush.msra.mxu0 %v1603
    %4874 = vmatmul.f32.gmra.mxu0 %v4856
    %v4875 = vpop.f32.mrf.mxu0
    %v4876 = vadd.f32 %v1607, %v4875
    %4877 = vdwg.mxu0
    %s4878 = scalar_lea.vmem %s25, 20
    %4879 = vst.msk [vmem:[%s4878] sm:$0x3] %vm751, %v4876
    %v4880 = vsel %vm751, %v4876, -inf
    %4881 = vmax.xlane.f32.xlu0 %v4880
    %v4882 = vpop.xlane.xlu0 %4881
    %v4883 = vsub.f32 %v4876, %v4882
    %v4884 = vmul.f32 %v4883, 1.442695
    %v4885 = vpow.pop %v4884
    %v4886 = vsel %vm751, %v4885, 0.0
    %4887 = vadd.xlane.f32.xlu0 %v4886
    %v4888 = vpop.xlane.xlu0 %4887
    %v4889 = vrcp.pop %v4888
    %v4890 = vmul.f32 %v4885, %v4889
    %v4892 = vsel %vm782, %v4890, 0
    %4894 = vmatpush.msra.mxu0 0.0
    %4895 = vmatpush.msra.mxu0 0.0
    %4896 = vmatpush.msra.mxu0 0.0
    %4897 = vmatpush.msra.mxu0 0.0
    %4898 = vmatpush.msra.mxu0 0.0
    %4899 = vmatpush.msra.mxu0 0.0
    %4900 = vmatpush.msra.mxu0 0.0
    %4901 = vmatpush.msra.mxu0 0.0
    %4902 = vmatpush.msra.mxu0 0.0
    %4903 = vmatpush.msra.mxu0 0.0
    %4904 = vmatpush.msra.mxu0 0.0
    %4905 = vmatpush.msra.mxu0 0.0
    %4906 = vmatpush.msra.mxu0 0.0
    %4907 = vmatpush.msra.mxu0 0.0
    %4908 = vmatpush.msra.mxu0 %v1574
    %4909 = vmatpush.msra.mxu0 %v1573
    %4910 = vmatmul.f32.gmra.mxu0 %v4892
    %v4911 = vpop.f32.mrf.mxu0
    %v4912 = vadd.f32 0.0, %v4911
    %4913 = vdwg.mxu0
    %v4914 = vadd.f32 %v4001, %v4912
    %4915 = vmatpush.msra.mxu0 0.0
    %4916 = vmatpush.msra.mxu0 0.0
    %4917 = vmatpush.msra.mxu0 0.0
    %4918 = vmatpush.msra.mxu0 0.0
    %4919 = vmatpush.msra.mxu0 0.0
    %4920 = vmatpush.msra.mxu0 0.0
    %4921 = vmatpush.msra.mxu0 0.0
    %4922 = vmatpush.msra.mxu0 0.0
    %4923 = vmatpush.msra.mxu0 0.0
    %4924 = vmatpush.msra.mxu0 0.0
    %4925 = vmatpush.msra.mxu0 0.0
    %4926 = vmatpush.msra.mxu0 0.0
    %4927 = vmatpush.msra.mxu0 %v1587
    %4928 = vmatpush.msra.mxu0 %v1586
    %4929 = vmatpush.msra.mxu0 %v1585
    %4930 = vmatpush.msra.mxu0 %v1584
    %4931 = vmatmul.f32.gmra.mxu0 %v4856
    %v4932 = vpop.f32.mrf.mxu0
    %v4933 = vadd.f32 0.0, %v4932
    %4934 = vdwg.mxu0
    %v4935 = vadd.f32 %v4914, %v4933
    %4936 = vmatpush.msra.mxu0 0.0
    %4937 = vmatpush.msra.mxu0 0.0
    %4938 = vmatpush.msra.mxu0 0.0
    %4939 = vmatpush.msra.mxu0 0.0
    %4940 = vmatpush.msra.mxu0 0.0
    %4941 = vmatpush.msra.mxu0 0.0
    %4942 = vmatpush.msra.mxu0 0.0
    %4943 = vmatpush.msra.mxu0 0.0
    %4944 = vmatpush.msra.mxu0 0.0
    %4945 = vmatpush.msra.mxu0 0.0
    %4946 = vmatpush.msra.mxu0 0.0
    %4947 = vmatpush.msra.mxu0 0.0
    %4948 = vmatpush.msra.mxu0 0.0
    %4949 = vmatpush.msra.mxu0 0.0
    %4950 = vmatpush.msra.mxu0 %v1577
    %4951 = vmatpush.msra.mxu0 %v1576
    %4952 = vmatmul.f32.gmra.mxu0 %v4892
    %v4953 = vpop.f32.mrf.mxu0
    %v4954 = vadd.f32 0.0, %v4953
    %4955 = vdwg.mxu0
    %v4956 = vadd.f32 %v4026, %v4954
    %4957 = vmatpush.msra.mxu0 0.0
    %4958 = vmatpush.msra.mxu0 0.0
    %4959 = vmatpush.msra.mxu0 0.0
    %4960 = vmatpush.msra.mxu0 0.0
    %4961 = vmatpush.msra.mxu0 0.0
    %4962 = vmatpush.msra.mxu0 0.0
    %4963 = vmatpush.msra.mxu0 0.0
    %4964 = vmatpush.msra.mxu0 0.0
    %4965 = vmatpush.msra.mxu0 0.0
    %4966 = vmatpush.msra.mxu0 0.0
    %4967 = vmatpush.msra.mxu0 0.0
    %4968 = vmatpush.msra.mxu0 0.0
    %4969 = vmatpush.msra.mxu0 %v1592
    %4970 = vmatpush.msra.mxu0 %v1591
    %4971 = vmatpush.msra.mxu0 %v1590
    %4972 = vmatpush.msra.mxu0 %v1589
    %4973 = vmatmul.f32.gmra.mxu0 %v4856
    %v4974 = vpop.f32.mrf.mxu0
    %v4975 = vadd.f32 0.0, %v4974
    %4976 = vdwg.mxu0
    %v4977 = vadd.f32 %v4956, %v4975
    %4978 = vmatpush.msra.mxu0 0.0
    %4979 = vmatpush.msra.mxu0 0.0
    %4980 = vmatpush.msra.mxu0 0.0
    %4981 = vmatpush.msra.mxu0 0.0
    %4982 = vmatpush.msra.mxu0 0.0
    %4983 = vmatpush.msra.mxu0 0.0
    %4984 = vmatpush.msra.mxu0 0.0
    %4985 = vmatpush.msra.mxu0 0.0
    %4986 = vmatpush.msra.mxu0 0.0
    %4987 = vmatpush.msra.mxu0 0.0
    %4988 = vmatpush.msra.mxu0 0.0
    %4989 = vmatpush.msra.mxu0 0.0
    %4990 = vmatpush.msra.mxu0 0.0
    %4991 = vmatpush.msra.mxu0 0.0
    %4992 = vmatpush.msra.mxu0 %v1580
    %4993 = vmatpush.msra.mxu0 %v1579
    %4994 = vmatmul.f32.gmra.mxu0 %v4892
    %v4995 = vpop.f32.mrf.mxu0
    %v4996 = vadd.f32 0.0, %v4995
    %4997 = vdwg.mxu0
    %v4998 = vadd.f32 %v4051, %v4996
    %4999 = vmatpush.msra.mxu0 0.0
    %5000 = vmatpush.msra.mxu0 0.0
    %5001 = vmatpush.msra.mxu0 0.0
    %5002 = vmatpush.msra.mxu0 0.0
    %5003 = vmatpush.msra.mxu0 0.0
    %5004 = vmatpush.msra.mxu0 0.0
    %5005 = vmatpush.msra.mxu0 0.0
    %5006 = vmatpush.msra.mxu0 0.0
    %5007 = vmatpush.msra.mxu0 0.0
    %5008 = vmatpush.msra.mxu0 0.0
    %5009 = vmatpush.msra.mxu0 0.0
    %5010 = vmatpush.msra.mxu0 0.0
    %5011 = vmatpush.msra.mxu0 %v1597
    %5012 = vmatpush.msra.mxu0 %v1596
    %5013 = vmatpush.msra.mxu0 %v1595
    %5014 = vmatpush.msra.mxu0 %v1594
    %5015 = vmatmul.f32.gmra.mxu0 %v4856
    %v5016 = vpop.f32.mrf.mxu0
    %v5017 = vadd.f32 0.0, %v5016
    %5018 = vdwg.mxu0
    %v5019 = vadd.f32 %v4998, %v5017
    %5020 = vmatpush.msra.mxu0 0.0
    %5021 = vmatpush.msra.mxu0 0.0
    %5022 = vmatpush.msra.mxu0 0.0
    %5023 = vmatpush.msra.mxu0 0.0
    %5024 = vmatpush.msra.mxu0 0.0
    %5025 = vmatpush.msra.mxu0 0.0
    %5026 = vmatpush.msra.mxu0 0.0
    %5027 = vmatpush.msra.mxu0 0.0
    %5028 = vmatpush.msra.mxu0 0.0
    %5029 = vmatpush.msra.mxu0 0.0
    %5030 = vmatpush.msra.mxu0 0.0
    %5031 = vmatpush.msra.mxu0 0.0
    %5032 = vmatpush.msra.mxu0 0.0
    %5033 = vmatpush.msra.mxu0 0.0
    %5034 = vmatpush.msra.mxu0 %v1583
    %5035 = vmatpush.msra.mxu0 %v1582
    %5036 = vmatmul.f32.gmra.mxu0 %v4892
    %v5037 = vpop.f32.mrf.mxu0
    %v5038 = vadd.f32 0.0, %v5037
    %5039 = vdwg.mxu0
    %v5040 = vadd.f32 %v4076, %v5038
    %5041 = vmatpush.msra.mxu0 0.0
    %5042 = vmatpush.msra.mxu0 0.0
    %5043 = vmatpush.msra.mxu0 0.0
    %5044 = vmatpush.msra.mxu0 0.0
    %5045 = vmatpush.msra.mxu0 0.0
    %5046 = vmatpush.msra.mxu0 0.0
    %5047 = vmatpush.msra.mxu0 0.0
    %5048 = vmatpush.msra.mxu0 0.0
    %5049 = vmatpush.msra.mxu0 0.0
    %5050 = vmatpush.msra.mxu0 0.0
    %5051 = vmatpush.msra.mxu0 0.0
    %5052 = vmatpush.msra.mxu0 0.0
    %5053 = vmatpush.msra.mxu0 %v1602
    %5054 = vmatpush.msra.mxu0 %v1601
    %5055 = vmatpush.msra.mxu0 %v1600
    %5056 = vmatpush.msra.mxu0 %v1599
    %5057 = vmatmul.f32.gmra.mxu0 %v4856
    %v5058 = vpop.f32.mrf.mxu0
    %v5059 = vadd.f32 0.0, %v5058
    %5060 = vdwg.mxu0
    %v5061 = vadd.f32 %v5040, %v5059
    %v5062 = vxor.u32 %v4935, 2147483648
    %v5063 = vmul.f32 %v5062, 1.442695
    %v5064 = vpow.pop %v5063
    %v5065 = vadd.f32 %v5064, 1.0
    %v5066 = vrcp.pop %v5065
    %v5067 = vmul.f32 %v5065, %v5066
    %v5068 = vsub.f32 1.0, %v5067
    %v5069 = vmul.f32 %v5066, %v5068
    %v5070 = vadd.f32 %v5066, %v5069
    %vm5071 = vweird.f32 %v5065
    %vm5072 = vweird.f32 %v5066
    %vm5073 = vmor %vm5071, %vm5072
    %v5074 = vsel %vm5073, %v5066, %v5070
    %v5075 = vand.u32 2147483647, %v5065
    %vm5076 = vcmp.eq.f32.partialorder %v5075, 8.507059e+37
    %v5077 = vand.u32 %v5065, 2147483648
    %v5078 = vor.u32 1.1754944e-38, %v5077
    %v5079 = vsel %vm5076, %v5078, %v5074
    %v5080 = vmul.f32 1.0, %v5079
    %v5081 = vxor.u32 %v4977, 2147483648
    %v5082 = vmul.f32 %v5081, 1.442695
    %v5083 = vpow.pop %v5082
    %v5084 = vadd.f32 %v5083, 1.0
    %v5085 = vrcp.pop %v5084
    %v5086 = vmul.f32 %v5084, %v5085
    %v5087 = vsub.f32 1.0, %v5086
    %v5088 = vmul.f32 %v5085, %v5087
    %v5089 = vadd.f32 %v5085, %v5088
    %vm5090 = vweird.f32 %v5084
    %vm5091 = vweird.f32 %v5085
    %vm5092 = vmor %vm5090, %vm5091
    %v5093 = vsel %vm5092, %v5085, %v5089
    %v5094 = vand.u32 2147483647, %v5084
    %vm5095 = vcmp.eq.f32.partialorder %v5094, 8.507059e+37
    %v5096 = vand.u32 %v5084, 2147483648
    %v5097 = vor.u32 1.1754944e-38, %v5096
    %v5098 = vsel %vm5095, %v5097, %v5093
    %v5099 = vmul.f32 1.0, %v5098
    %v5100 = vtanh.pop %v5019
    %v5101 = vxor.u32 %v5061, 2147483648
    %v5102 = vmul.f32 %v5101, 1.442695
    %v5103 = vpow.pop %v5102
    %v5104 = vadd.f32 %v5103, 1.0
    %v5105 = vrcp.pop %v5104
    %v5106 = vmul.f32 %v5104, %v5105
    %v5107 = vsub.f32 1.0, %v5106
    %v5108 = vmul.f32 %v5105, %v5107
    %v5109 = vadd.f32 %v5105, %v5108
    %vm5110 = vweird.f32 %v5104
    %vm5111 = vweird.f32 %v5105
    %vm5112 = vmor %vm5110, %vm5111
    %v5113 = vsel %vm5112, %v5105, %v5109
    %v5114 = vand.u32 2147483647, %v5104
    %vm5115 = vcmp.eq.f32.partialorder %v5114, 8.507059e+37
    %v5116 = vand.u32 %v5104, 2147483648
    %v5117 = vor.u32 1.1754944e-38, %v5116
    %v5118 = vsel %vm5115, %v5117, %v5113
    %v5119 = vmul.f32 1.0, %v5118
    %v5120 = vmul.f32 %v5099, %v4852
    %v5121 = vmul.f32 %v5080, %v5100
    %v5122 = vadd.f32 %v5120, %v5121
    %v5123 = vtanh.pop %v5122
    %v5124 = vmul.f32 %v5119, %v5123
    %v5126 = vsel %vm652, %v5124, 0
    %5128 = vmatpush.msra.mxu0 0.0
    %5129 = vmatpush.msra.mxu0 0.0
    %5130 = vmatpush.msra.mxu0 0.0
    %5131 = vmatpush.msra.mxu0 0.0
    %5132 = vmatpush.msra.mxu0 0.0
    %5133 = vmatpush.msra.mxu0 0.0
    %5134 = vmatpush.msra.mxu0 0.0
    %5135 = vmatpush.msra.mxu0 0.0
    %5136 = vmatpush.msra.mxu0 0.0
    %5137 = vmatpush.msra.mxu0 0.0
    %5138 = vmatpush.msra.mxu0 0.0
    %5139 = vmatpush.msra.mxu0 0.0
    %5140 = vmatpush.msra.mxu0 %v1606
    %5141 = vmatpush.msra.mxu0 %v1605
    %5142 = vmatpush.msra.mxu0 %v1604
    %5143 = vmatpush.msra.mxu0 %v1603
    %5144 = vmatmul.f32.gmra.mxu0 %v5126
    %v5145 = vpop.f32.mrf.mxu0
    %v5146 = vadd.f32 %v1607, %v5145
    %5147 = vdwg.mxu0
    %s5148 = scalar_lea.vmem %s25, 22
    %5149 = vst.msk [vmem:[%s5148] sm:$0x3] %vm751, %v5146
    %v5150 = vsel %vm751, %v5146, -inf
    %5151 = vmax.xlane.f32.xlu0 %v5150
    %v5152 = vpop.xlane.xlu0 %5151
    %v5153 = vsub.f32 %v5146, %v5152
    %v5154 = vmul.f32 %v5153, 1.442695
    %v5155 = vpow.pop %v5154
    %v5156 = vsel %vm751, %v5155, 0.0
    %5157 = vadd.xlane.f32.xlu0 %v5156
    %v5158 = vpop.xlane.xlu0 %5157
    %v5159 = vrcp.pop %v5158
    %v5160 = vmul.f32 %v5155, %v5159
    %v5161 = vld [vmem:[%s20] sm:$0xff]
    %v5162 = vld [vmem:[%s20 + $0x8] sm:$0xff]
    %v5163 = vld [vmem:[%s20 + $0x10] sm:$0xff]
    %v5164 = vld [vmem:[%s20 + $0x18] sm:$0xff]
    %v5165 = vld [vmem:[%s22] sm:$0x3]
    %5166 = vmatpush.msra.mxu0 0.0
    %5167 = vmatpush.msra.mxu0 0.0
    %5168 = vmatpush.msra.mxu0 0.0
    %5169 = vmatpush.msra.mxu0 0.0
    %5170 = vmatpush.msra.mxu0 0.0
    %5171 = vmatpush.msra.mxu0 0.0
    %5172 = vmatpush.msra.mxu0 0.0
    %5173 = vmatpush.msra.mxu0 0.0
    %5174 = vmatpush.msra.mxu0 0.0
    %5175 = vmatpush.msra.mxu0 0.0
    %5176 = vmatpush.msra.mxu0 0.0
    %5177 = vmatpush.msra.mxu0 0.0
    %5178 = vmatpush.msra.mxu0 %v5164
    %5179 = vmatpush.msra.mxu0 %v5163
    %5180 = vmatpush.msra.mxu0 %v5162
    %5181 = vmatpush.msra.mxu0 %v5161
    %5182 = vmatmul.f32.gmra.mxu0 %v1550
    %v5183 = vpop.f32.mrf.mxu0
    %v5184 = vadd.f32 %v5165, %v5183
    %5185 = vdwg.mxu0
    %v5186 = vld [vmem:[%s1633] sm:$0xff]
    %v5187 = vld [vmem:[%s1633 + $0x8] sm:$0xff]
    %v5188 = vld [vmem:[%s1633 + $0x10] sm:$0xff]
    %v5189 = vld [vmem:[%s1633 + $0x18] sm:$0xff]
    %v5190 = vld [vmem:[%s1638] sm:$0x3]
    %5191 = vmatpush.msra.mxu0 0.0
    %5192 = vmatpush.msra.mxu0 0.0
    %5193 = vmatpush.msra.mxu0 0.0
    %5194 = vmatpush.msra.mxu0 0.0
    %5195 = vmatpush.msra.mxu0 0.0
    %5196 = vmatpush.msra.mxu0 0.0
    %5197 = vmatpush.msra.mxu0 0.0
    %5198 = vmatpush.msra.mxu0 0.0
    %5199 = vmatpush.msra.mxu0 0.0
    %5200 = vmatpush.msra.mxu0 0.0
    %5201 = vmatpush.msra.mxu0 0.0
    %5202 = vmatpush.msra.mxu0 0.0
    %5203 = vmatpush.msra.mxu0 %v5189
    %5204 = vmatpush.msra.mxu0 %v5188
    %5205 = vmatpush.msra.mxu0 %v5187
    %5206 = vmatpush.msra.mxu0 %v5186
    %5207 = vmatmul.f32.gmra.mxu0 %v1550
    %v5208 = vpop.f32.mrf.mxu0
    %v5209 = vadd.f32 %v5190, %v5208
    %5210 = vdwg.mxu0
    %v5211 = vld [vmem:[%s1660] sm:$0xff]
    %v5212 = vld [vmem:[%s1660 + $0x8] sm:$0xff]
    %v5213 = vld [vmem:[%s1660 + $0x10] sm:$0xff]
    %v5214 = vld [vmem:[%s1660 + $0x18] sm:$0xff]
    %v5215 = vld [vmem:[%s1665] sm:$0x3]
    %5216 = vmatpush.msra.mxu0 0.0
    %5217 = vmatpush.msra.mxu0 0.0
    %5218 = vmatpush.msra.mxu0 0.0
    %5219 = vmatpush.msra.mxu0 0.0
    %5220 = vmatpush.msra.mxu0 0.0
    %5221 = vmatpush.msra.mxu0 0.0
    %5222 = vmatpush.msra.mxu0 0.0
    %5223 = vmatpush.msra.mxu0 0.0
    %5224 = vmatpush.msra.mxu0 0.0
    %5225 = vmatpush.msra.mxu0 0.0
    %5226 = vmatpush.msra.mxu0 0.0
    %5227 = vmatpush.msra.mxu0 0.0
    %5228 = vmatpush.msra.mxu0 %v5214
    %5229 = vmatpush.msra.mxu0 %v5213
    %5230 = vmatpush.msra.mxu0 %v5212
    %5231 = vmatpush.msra.mxu0 %v5211
    %5232 = vmatmul.f32.gmra.mxu0 %v1550
    %v5233 = vpop.f32.mrf.mxu0
    %v5234 = vadd.f32 %v5215, %v5233
    %5235 = vdwg.mxu0
    %v5236 = vld [vmem:[%s1687] sm:$0xff]
    %v5237 = vld [vmem:[%s1687 + $0x8] sm:$0xff]
    %v5238 = vld [vmem:[%s1687 + $0x10] sm:$0xff]
    %v5239 = vld [vmem:[%s1687 + $0x18] sm:$0xff]
    %v5240 = vld [vmem:[%s1692] sm:$0x3]
    %5241 = vmatpush.msra.mxu0 0.0
    %5242 = vmatpush.msra.mxu0 0.0
    %5243 = vmatpush.msra.mxu0 0.0
    %5244 = vmatpush.msra.mxu0 0.0
    %5245 = vmatpush.msra.mxu0 0.0
    %5246 = vmatpush.msra.mxu0 0.0
    %5247 = vmatpush.msra.mxu0 0.0
    %5248 = vmatpush.msra.mxu0 0.0
    %5249 = vmatpush.msra.mxu0 0.0
    %5250 = vmatpush.msra.mxu0 0.0
    %5251 = vmatpush.msra.mxu0 0.0
    %5252 = vmatpush.msra.mxu0 0.0
    %5253 = vmatpush.msra.mxu0 %v5239
    %5254 = vmatpush.msra.mxu0 %v5238
    %5255 = vmatpush.msra.mxu0 %v5237
    %5256 = vmatpush.msra.mxu0 %v5236
    %5257 = vmatmul.f32.gmra.mxu0 %v1550
    %v5258 = vpop.f32.mrf.mxu0
    %v5259 = vadd.f32 %v5240, %v5258
    %5260 = vdwg.mxu0
    %v5262 = vsel %vm782, %v5160, 0
    %5264 = vmatpush.msra.mxu0 0.0
    %5265 = vmatpush.msra.mxu0 0.0
    %5266 = vmatpush.msra.mxu0 0.0
    %5267 = vmatpush.msra.mxu0 0.0
    %5268 = vmatpush.msra.mxu0 0.0
    %5269 = vmatpush.msra.mxu0 0.0
    %5270 = vmatpush.msra.mxu0 0.0
    %5271 = vmatpush.msra.mxu0 0.0
    %5272 = vmatpush.msra.mxu0 0.0
    %5273 = vmatpush.msra.mxu0 0.0
    %5274 = vmatpush.msra.mxu0 0.0
    %5275 = vmatpush.msra.mxu0 0.0
    %5276 = vmatpush.msra.mxu0 0.0
    %5277 = vmatpush.msra.mxu0 0.0
    %5278 = vmatpush.msra.mxu0 %v1574
    %5279 = vmatpush.msra.mxu0 %v1573
    %5280 = vmatmul.f32.gmra.mxu0 %v5262
    %v5281 = vpop.f32.mrf.mxu0
    %v5282 = vadd.f32 0.0, %v5281
    %5283 = vdwg.mxu0
    %v5284 = vadd.f32 %v5184, %v5282
    %v5286 = vsel %vm652, %v1572, 0
    %5288 = vmatpush.msra.mxu0 0.0
    %5289 = vmatpush.msra.mxu0 0.0
    %5290 = vmatpush.msra.mxu0 0.0
    %5291 = vmatpush.msra.mxu0 0.0
    %5292 = vmatpush.msra.mxu0 0.0
    %5293 = vmatpush.msra.mxu0 0.0
    %5294 = vmatpush.msra.mxu0 0.0
    %5295 = vmatpush.msra.mxu0 0.0
    %5296 = vmatpush.msra.mxu0 0.0
    %5297 = vmatpush.msra.mxu0 0.0
    %5298 = vmatpush.msra.mxu0 0.0
    %5299 = vmatpush.msra.mxu0 0.0
    %5300 = vmatpush.msra.mxu0 %v1587
    %5301 = vmatpush.msra.mxu0 %v1586
    %5302 = vmatpush.msra.mxu0 %v1585
    %5303 = vmatpush.msra.mxu0 %v1584
    %5304 = vmatmul.f32.gmra.mxu0 %v5286
    %v5305 = vpop.f32.mrf.mxu0
    %v5306 = vadd.f32 0.0, %v5305
    %5307 = vdwg.mxu0
    %v5308 = vadd.f32 %v5284, %v5306
    %5309 = vmatpush.msra.mxu0 0.0
    %5310 = vmatpush.msra.mxu0 0.0
    %5311 = vmatpush.msra.mxu0 0.0
    %5312 = vmatpush.msra.mxu0 0.0
    %5313 = vmatpush.msra.mxu0 0.0
    %5314 = vmatpush.msra.mxu0 0.0
    %5315 = vmatpush.msra.mxu0 0.0
    %5316 = vmatpush.msra.mxu0 0.0
    %5317 = vmatpush.msra.mxu0 0.0
    %5318 = vmatpush.msra.mxu0 0.0
    %5319 = vmatpush.msra.mxu0 0.0
    %5320 = vmatpush.msra.mxu0 0.0
    %5321 = vmatpush.msra.mxu0 0.0
    %5322 = vmatpush.msra.mxu0 0.0
    %5323 = vmatpush.msra.mxu0 %v1577
    %5324 = vmatpush.msra.mxu0 %v1576
    %5325 = vmatmul.f32.gmra.mxu0 %v5262
    %v5326 = vpop.f32.mrf.mxu0
    %v5327 = vadd.f32 0.0, %v5326
    %5328 = vdwg.mxu0
    %v5329 = vadd.f32 %v5209, %v5327
    %5330 = vmatpush.msra.mxu0 0.0
    %5331 = vmatpush.msra.mxu0 0.0
    %5332 = vmatpush.msra.mxu0 0.0
    %5333 = vmatpush.msra.mxu0 0.0
    %5334 = vmatpush.msra.mxu0 0.0
    %5335 = vmatpush.msra.mxu0 0.0
    %5336 = vmatpush.msra.mxu0 0.0
    %5337 = vmatpush.msra.mxu0 0.0
    %5338 = vmatpush.msra.mxu0 0.0
    %5339 = vmatpush.msra.mxu0 0.0
    %5340 = vmatpush.msra.mxu0 0.0
    %5341 = vmatpush.msra.mxu0 0.0
    %5342 = vmatpush.msra.mxu0 %v1592
    %5343 = vmatpush.msra.mxu0 %v1591
    %5344 = vmatpush.msra.mxu0 %v1590
    %5345 = vmatpush.msra.mxu0 %v1589
    %5346 = vmatmul.f32.gmra.mxu0 %v5286
    %v5347 = vpop.f32.mrf.mxu0
    %v5348 = vadd.f32 0.0, %v5347
    %5349 = vdwg.mxu0
    %v5350 = vadd.f32 %v5329, %v5348
    %5351 = vmatpush.msra.mxu0 0.0
    %5352 = vmatpush.msra.mxu0 0.0
    %5353 = vmatpush.msra.mxu0 0.0
    %5354 = vmatpush.msra.mxu0 0.0
    %5355 = vmatpush.msra.mxu0 0.0
    %5356 = vmatpush.msra.mxu0 0.0
    %5357 = vmatpush.msra.mxu0 0.0
    %5358 = vmatpush.msra.mxu0 0.0
    %5359 = vmatpush.msra.mxu0 0.0
    %5360 = vmatpush.msra.mxu0 0.0
    %5361 = vmatpush.msra.mxu0 0.0
    %5362 = vmatpush.msra.mxu0 0.0
    %5363 = vmatpush.msra.mxu0 0.0
    %5364 = vmatpush.msra.mxu0 0.0
    %5365 = vmatpush.msra.mxu0 %v1580
    %5366 = vmatpush.msra.mxu0 %v1579
    %5367 = vmatmul.f32.gmra.mxu0 %v5262
    %v5368 = vpop.f32.mrf.mxu0
    %v5369 = vadd.f32 0.0, %v5368
    %5370 = vdwg.mxu0
    %v5371 = vadd.f32 %v5234, %v5369
    %5372 = vmatpush.msra.mxu0 0.0
    %5373 = vmatpush.msra.mxu0 0.0
    %5374 = vmatpush.msra.mxu0 0.0
    %5375 = vmatpush.msra.mxu0 0.0
    %5376 = vmatpush.msra.mxu0 0.0
    %5377 = vmatpush.msra.mxu0 0.0
    %5378 = vmatpush.msra.mxu0 0.0
    %5379 = vmatpush.msra.mxu0 0.0
    %5380 = vmatpush.msra.mxu0 0.0
    %5381 = vmatpush.msra.mxu0 0.0
    %5382 = vmatpush.msra.mxu0 0.0
    %5383 = vmatpush.msra.mxu0 0.0
    %5384 = vmatpush.msra.mxu0 %v1597
    %5385 = vmatpush.msra.mxu0 %v1596
    %5386 = vmatpush.msra.mxu0 %v1595
    %5387 = vmatpush.msra.mxu0 %v1594
    %5388 = vmatmul.f32.gmra.mxu0 %v5286
    %v5389 = vpop.f32.mrf.mxu0
    %v5390 = vadd.f32 0.0, %v5389
    %5391 = vdwg.mxu0
    %v5392 = vadd.f32 %v5371, %v5390
    %5393 = vmatpush.msra.mxu0 0.0
    %5394 = vmatpush.msra.mxu0 0.0
    %5395 = vmatpush.msra.mxu0 0.0
    %5396 = vmatpush.msra.mxu0 0.0
    %5397 = vmatpush.msra.mxu0 0.0
    %5398 = vmatpush.msra.mxu0 0.0
    %5399 = vmatpush.msra.mxu0 0.0
    %5400 = vmatpush.msra.mxu0 0.0
    %5401 = vmatpush.msra.mxu0 0.0
    %5402 = vmatpush.msra.mxu0 0.0
    %5403 = vmatpush.msra.mxu0 0.0
    %5404 = vmatpush.msra.mxu0 0.0
    %5405 = vmatpush.msra.mxu0 0.0
    %5406 = vmatpush.msra.mxu0 0.0
    %5407 = vmatpush.msra.mxu0 %v1583
    %5408 = vmatpush.msra.mxu0 %v1582
    %5409 = vmatmul.f32.gmra.mxu0 %v5262
    %v5410 = vpop.f32.mrf.mxu0
    %v5411 = vadd.f32 0.0, %v5410
    %5412 = vdwg.mxu0
    %v5413 = vadd.f32 %v5259, %v5411
    %5414 = vmatpush.msra.mxu0 0.0
    %5415 = vmatpush.msra.mxu0 0.0
    %5416 = vmatpush.msra.mxu0 0.0
    %5417 = vmatpush.msra.mxu0 0.0
    %5418 = vmatpush.msra.mxu0 0.0
    %5419 = vmatpush.msra.mxu0 0.0
    %5420 = vmatpush.msra.mxu0 0.0
    %5421 = vmatpush.msra.mxu0 0.0
    %5422 = vmatpush.msra.mxu0 0.0
    %5423 = vmatpush.msra.mxu0 0.0
    %5424 = vmatpush.msra.mxu0 0.0
    %5425 = vmatpush.msra.mxu0 0.0
    %5426 = vmatpush.msra.mxu0 %v1602
    %5427 = vmatpush.msra.mxu0 %v1601
    %5428 = vmatpush.msra.mxu0 %v1600
    %5429 = vmatpush.msra.mxu0 %v1599
    %5430 = vmatmul.f32.gmra.mxu0 %v5286
    %v5431 = vpop.f32.mrf.mxu0
    %v5432 = vadd.f32 0.0, %v5431
    %5433 = vdwg.mxu0
    %v5434 = vadd.f32 %v5413, %v5432
    %v5435 = vxor.u32 %v5308, 2147483648
    %v5436 = vmul.f32 %v5435, 1.442695
    %v5437 = vpow.pop %v5436
    %v5438 = vadd.f32 %v5437, 1.0
    %v5439 = vrcp.pop %v5438
    %v5440 = vmul.f32 %v5438, %v5439
    %v5441 = vsub.f32 1.0, %v5440
    %v5442 = vmul.f32 %v5439, %v5441
    %v5443 = vadd.f32 %v5439, %v5442
    %vm5444 = vweird.f32 %v5438
    %vm5445 = vweird.f32 %v5439
    %vm5446 = vmor %vm5444, %vm5445
    %v5447 = vsel %vm5446, %v5439, %v5443
    %v5448 = vand.u32 2147483647, %v5438
    %vm5449 = vcmp.eq.f32.partialorder %v5448, 8.507059e+37
    %v5450 = vand.u32 %v5438, 2147483648
    %v5451 = vor.u32 1.1754944e-38, %v5450
    %v5452 = vsel %vm5449, %v5451, %v5447
    %v5453 = vmul.f32 1.0, %v5452
    %v5454 = vxor.u32 %v5350, 2147483648
    %v5455 = vmul.f32 %v5454, 1.442695
    %v5456 = vpow.pop %v5455
    %v5457 = vadd.f32 %v5456, 1.0
    %v5458 = vrcp.pop %v5457
    %v5459 = vmul.f32 %v5457, %v5458
    %v5460 = vsub.f32 1.0, %v5459
    %v5461 = vmul.f32 %v5458, %v5460
    %v5462 = vadd.f32 %v5458, %v5461
    %vm5463 = vweird.f32 %v5457
    %vm5464 = vweird.f32 %v5458
    %vm5465 = vmor %vm5463, %vm5464
    %v5466 = vsel %vm5465, %v5458, %v5462
    %v5467 = vand.u32 2147483647, %v5457
    %vm5468 = vcmp.eq.f32.partialorder %v5467, 8.507059e+37
    %v5469 = vand.u32 %v5457, 2147483648
    %v5470 = vor.u32 1.1754944e-38, %v5469
    %v5471 = vsel %vm5468, %v5470, %v5466
    %v5472 = vmul.f32 1.0, %v5471
    %v5473 = vtanh.pop %v5392
    %v5474 = vxor.u32 %v5434, 2147483648
    %v5475 = vmul.f32 %v5474, 1.442695
    %v5476 = vpow.pop %v5475
    %v5477 = vadd.f32 %v5476, 1.0
    %v5478 = vrcp.pop %v5477
    %v5479 = vmul.f32 %v5477, %v5478
    %v5480 = vsub.f32 1.0, %v5479
    %v5481 = vmul.f32 %v5478, %v5480
    %v5482 = vadd.f32 %v5478, %v5481
    %vm5483 = vweird.f32 %v5477
    %vm5484 = vweird.f32 %v5478
    %vm5485 = vmor %vm5483, %vm5484
    %v5486 = vsel %vm5485, %v5478, %v5482
    %v5487 = vand.u32 2147483647, %v5477
    %vm5488 = vcmp.eq.f32.partialorder %v5487, 8.507059e+37
    %v5489 = vand.u32 %v5477, 2147483648
    %v5490 = vor.u32 1.1754944e-38, %v5489
    %v5491 = vsel %vm5488, %v5490, %v5486
    %v5492 = vmul.f32 1.0, %v5491
    %v5493 = vmul.f32 %v5472, 0.0
    %v5494 = vmul.f32 %v5453, %v5473
    %v5495 = vadd.f32 %v5493, %v5494
    %v5496 = vtanh.pop %v5495
    %v5497 = vmul.f32 %v5492, %v5496
    %v5499 = vsel %vm652, %v5497, 0
    %5501 = vmatpush.msra.mxu0 0.0
    %5502 = vmatpush.msra.mxu0 0.0
    %5503 = vmatpush.msra.mxu0 0.0
    %5504 = vmatpush.msra.mxu0 0.0
    %5505 = vmatpush.msra.mxu0 0.0
    %5506 = vmatpush.msra.mxu0 0.0
    %5507 = vmatpush.msra.mxu0 0.0
    %5508 = vmatpush.msra.mxu0 0.0
    %5509 = vmatpush.msra.mxu0 0.0
    %5510 = vmatpush.msra.mxu0 0.0
    %5511 = vmatpush.msra.mxu0 0.0
    %5512 = vmatpush.msra.mxu0 0.0
    %5513 = vmatpush.msra.mxu0 %v1606
    %5514 = vmatpush.msra.mxu0 %v1605
    %5515 = vmatpush.msra.mxu0 %v1604
    %5516 = vmatpush.msra.mxu0 %v1603
    %5517 = vmatmul.f32.gmra.mxu0 %v5499
    %v5518 = vpop.f32.mrf.mxu0
    %v5519 = vadd.f32 %v1607, %v5518
    %5520 = vdwg.mxu0
    %s5521 = scalar_lea.vmem %s25, 24
    %5522 = vst.msk [vmem:[%s5521] sm:$0x3] %vm751, %v5519
    %v5523 = vsel %vm751, %v5519, -inf
    %5524 = vmax.xlane.f32.xlu0 %v5523
    %v5525 = vpop.xlane.xlu0 %5524
    %v5526 = vsub.f32 %v5519, %v5525
    %v5527 = vmul.f32 %v5526, 1.442695
    %v5528 = vpow.pop %v5527
    %v5529 = vsel %vm751, %v5528, 0.0
    %5530 = vadd.xlane.f32.xlu0 %v5529
    %v5531 = vpop.xlane.xlu0 %5530
    %v5532 = vrcp.pop %v5531
    %v5533 = vmul.f32 %v5528, %v5532
    %v5535 = vsel %vm782, %v5533, 0
    %5537 = vmatpush.msra.mxu0 0.0
    %5538 = vmatpush.msra.mxu0 0.0
    %5539 = vmatpush.msra.mxu0 0.0
    %5540 = vmatpush.msra.mxu0 0.0
    %5541 = vmatpush.msra.mxu0 0.0
    %5542 = vmatpush.msra.mxu0 0.0
    %5543 = vmatpush.msra.mxu0 0.0
    %5544 = vmatpush.msra.mxu0 0.0
    %5545 = vmatpush.msra.mxu0 0.0
    %5546 = vmatpush.msra.mxu0 0.0
    %5547 = vmatpush.msra.mxu0 0.0
    %5548 = vmatpush.msra.mxu0 0.0
    %5549 = vmatpush.msra.mxu0 0.0
    %5550 = vmatpush.msra.mxu0 0.0
    %5551 = vmatpush.msra.mxu0 %v1574
    %5552 = vmatpush.msra.mxu0 %v1573
    %5553 = vmatmul.f32.gmra.mxu0 %v5535
    %v5554 = vpop.f32.mrf.mxu0
    %v5555 = vadd.f32 0.0, %v5554
    %5556 = vdwg.mxu0
    %v5557 = vadd.f32 %v5184, %v5555
    %5558 = vmatpush.msra.mxu0 0.0
    %5559 = vmatpush.msra.mxu0 0.0
    %5560 = vmatpush.msra.mxu0 0.0
    %5561 = vmatpush.msra.mxu0 0.0
    %5562 = vmatpush.msra.mxu0 0.0
    %5563 = vmatpush.msra.mxu0 0.0
    %5564 = vmatpush.msra.mxu0 0.0
    %5565 = vmatpush.msra.mxu0 0.0
    %5566 = vmatpush.msra.mxu0 0.0
    %5567 = vmatpush.msra.mxu0 0.0
    %5568 = vmatpush.msra.mxu0 0.0
    %5569 = vmatpush.msra.mxu0 0.0
    %5570 = vmatpush.msra.mxu0 %v1587
    %5571 = vmatpush.msra.mxu0 %v1586
    %5572 = vmatpush.msra.mxu0 %v1585
    %5573 = vmatpush.msra.mxu0 %v1584
    %5574 = vmatmul.f32.gmra.mxu0 %v5499
    %v5575 = vpop.f32.mrf.mxu0
    %v5576 = vadd.f32 0.0, %v5575
    %5577 = vdwg.mxu0
    %v5578 = vadd.f32 %v5557, %v5576
    %5579 = vmatpush.msra.mxu0 0.0
    %5580 = vmatpush.msra.mxu0 0.0
    %5581 = vmatpush.msra.mxu0 0.0
    %5582 = vmatpush.msra.mxu0 0.0
    %5583 = vmatpush.msra.mxu0 0.0
    %5584 = vmatpush.msra.mxu0 0.0
    %5585 = vmatpush.msra.mxu0 0.0
    %5586 = vmatpush.msra.mxu0 0.0
    %5587 = vmatpush.msra.mxu0 0.0
    %5588 = vmatpush.msra.mxu0 0.0
    %5589 = vmatpush.msra.mxu0 0.0
    %5590 = vmatpush.msra.mxu0 0.0
    %5591 = vmatpush.msra.mxu0 0.0
    %5592 = vmatpush.msra.mxu0 0.0
    %5593 = vmatpush.msra.mxu0 %v1577
    %5594 = vmatpush.msra.mxu0 %v1576
    %5595 = vmatmul.f32.gmra.mxu0 %v5535
    %v5596 = vpop.f32.mrf.mxu0
    %v5597 = vadd.f32 0.0, %v5596
    %5598 = vdwg.mxu0
    %v5599 = vadd.f32 %v5209, %v5597
    %5600 = vmatpush.msra.mxu0 0.0
    %5601 = vmatpush.msra.mxu0 0.0
    %5602 = vmatpush.msra.mxu0 0.0
    %5603 = vmatpush.msra.mxu0 0.0
    %5604 = vmatpush.msra.mxu0 0.0
    %5605 = vmatpush.msra.mxu0 0.0
    %5606 = vmatpush.msra.mxu0 0.0
    %5607 = vmatpush.msra.mxu0 0.0
    %5608 = vmatpush.msra.mxu0 0.0
    %5609 = vmatpush.msra.mxu0 0.0
    %5610 = vmatpush.msra.mxu0 0.0
    %5611 = vmatpush.msra.mxu0 0.0
    %5612 = vmatpush.msra.mxu0 %v1592
    %5613 = vmatpush.msra.mxu0 %v1591
    %5614 = vmatpush.msra.mxu0 %v1590
    %5615 = vmatpush.msra.mxu0 %v1589
    %5616 = vmatmul.f32.gmra.mxu0 %v5499
    %v5617 = vpop.f32.mrf.mxu0
    %v5618 = vadd.f32 0.0, %v5617
    %5619 = vdwg.mxu0
    %v5620 = vadd.f32 %v5599, %v5618
    %5621 = vmatpush.msra.mxu0 0.0
    %5622 = vmatpush.msra.mxu0 0.0
    %5623 = vmatpush.msra.mxu0 0.0
    %5624 = vmatpush.msra.mxu0 0.0
    %5625 = vmatpush.msra.mxu0 0.0
    %5626 = vmatpush.msra.mxu0 0.0
    %5627 = vmatpush.msra.mxu0 0.0
    %5628 = vmatpush.msra.mxu0 0.0
    %5629 = vmatpush.msra.mxu0 0.0
    %5630 = vmatpush.msra.mxu0 0.0
    %5631 = vmatpush.msra.mxu0 0.0
    %5632 = vmatpush.msra.mxu0 0.0
    %5633 = vmatpush.msra.mxu0 0.0
    %5634 = vmatpush.msra.mxu0 0.0
    %5635 = vmatpush.msra.mxu0 %v1580
    %5636 = vmatpush.msra.mxu0 %v1579
    %5637 = vmatmul.f32.gmra.mxu0 %v5535
    %v5638 = vpop.f32.mrf.mxu0
    %v5639 = vadd.f32 0.0, %v5638
    %5640 = vdwg.mxu0
    %v5641 = vadd.f32 %v5234, %v5639
    %5642 = vmatpush.msra.mxu0 0.0
    %5643 = vmatpush.msra.mxu0 0.0
    %5644 = vmatpush.msra.mxu0 0.0
    %5645 = vmatpush.msra.mxu0 0.0
    %5646 = vmatpush.msra.mxu0 0.0
    %5647 = vmatpush.msra.mxu0 0.0
    %5648 = vmatpush.msra.mxu0 0.0
    %5649 = vmatpush.msra.mxu0 0.0
    %5650 = vmatpush.msra.mxu0 0.0
    %5651 = vmatpush.msra.mxu0 0.0
    %5652 = vmatpush.msra.mxu0 0.0
    %5653 = vmatpush.msra.mxu0 0.0
    %5654 = vmatpush.msra.mxu0 %v1597
    %5655 = vmatpush.msra.mxu0 %v1596
    %5656 = vmatpush.msra.mxu0 %v1595
    %5657 = vmatpush.msra.mxu0 %v1594
    %5658 = vmatmul.f32.gmra.mxu0 %v5499
    %v5659 = vpop.f32.mrf.mxu0
    %v5660 = vadd.f32 0.0, %v5659
    %5661 = vdwg.mxu0
    %v5662 = vadd.f32 %v5641, %v5660
    %5663 = vmatpush.msra.mxu0 0.0
    %5664 = vmatpush.msra.mxu0 0.0
    %5665 = vmatpush.msra.mxu0 0.0
    %5666 = vmatpush.msra.mxu0 0.0
    %5667 = vmatpush.msra.mxu0 0.0
    %5668 = vmatpush.msra.mxu0 0.0
    %5669 = vmatpush.msra.mxu0 0.0
    %5670 = vmatpush.msra.mxu0 0.0
    %5671 = vmatpush.msra.mxu0 0.0
    %5672 = vmatpush.msra.mxu0 0.0
    %5673 = vmatpush.msra.mxu0 0.0
    %5674 = vmatpush.msra.mxu0 0.0
    %5675 = vmatpush.msra.mxu0 0.0
    %5676 = vmatpush.msra.mxu0 0.0
    %5677 = vmatpush.msra.mxu0 %v1583
    %5678 = vmatpush.msra.mxu0 %v1582
    %5679 = vmatmul.f32.gmra.mxu0 %v5535
    %v5680 = vpop.f32.mrf.mxu0
    %v5681 = vadd.f32 0.0, %v5680
    %5682 = vdwg.mxu0
    %v5683 = vadd.f32 %v5259, %v5681
    %5684 = vmatpush.msra.mxu0 0.0
    %5685 = vmatpush.msra.mxu0 0.0
    %5686 = vmatpush.msra.mxu0 0.0
    %5687 = vmatpush.msra.mxu0 0.0
    %5688 = vmatpush.msra.mxu0 0.0
    %5689 = vmatpush.msra.mxu0 0.0
    %5690 = vmatpush.msra.mxu0 0.0
    %5691 = vmatpush.msra.mxu0 0.0
    %5692 = vmatpush.msra.mxu0 0.0
    %5693 = vmatpush.msra.mxu0 0.0
    %5694 = vmatpush.msra.mxu0 0.0
    %5695 = vmatpush.msra.mxu0 0.0
    %5696 = vmatpush.msra.mxu0 %v1602
    %5697 = vmatpush.msra.mxu0 %v1601
    %5698 = vmatpush.msra.mxu0 %v1600
    %5699 = vmatpush.msra.mxu0 %v1599
    %5700 = vmatmul.f32.gmra.mxu0 %v5499
    %v5701 = vpop.f32.mrf.mxu0
    %v5702 = vadd.f32 0.0, %v5701
    %5703 = vdwg.mxu0
    %v5704 = vadd.f32 %v5683, %v5702
    %v5705 = vxor.u32 %v5578, 2147483648
    %v5706 = vmul.f32 %v5705, 1.442695
    %v5707 = vpow.pop %v5706
    %v5708 = vadd.f32 %v5707, 1.0
    %v5709 = vrcp.pop %v5708
    %v5710 = vmul.f32 %v5708, %v5709
    %v5711 = vsub.f32 1.0, %v5710
    %v5712 = vmul.f32 %v5709, %v5711
    %v5713 = vadd.f32 %v5709, %v5712
    %vm5714 = vweird.f32 %v5708
    %vm5715 = vweird.f32 %v5709
    %vm5716 = vmor %vm5714, %vm5715
    %v5717 = vsel %vm5716, %v5709, %v5713
    %v5718 = vand.u32 2147483647, %v5708
    %vm5719 = vcmp.eq.f32.partialorder %v5718, 8.507059e+37
    %v5720 = vand.u32 %v5708, 2147483648
    %v5721 = vor.u32 1.1754944e-38, %v5720
    %v5722 = vsel %vm5719, %v5721, %v5717
    %v5723 = vmul.f32 1.0, %v5722
    %v5724 = vxor.u32 %v5620, 2147483648
    %v5725 = vmul.f32 %v5724, 1.442695
    %v5726 = vpow.pop %v5725
    %v5727 = vadd.f32 %v5726, 1.0
    %v5728 = vrcp.pop %v5727
    %v5729 = vmul.f32 %v5727, %v5728
    %v5730 = vsub.f32 1.0, %v5729
    %v5731 = vmul.f32 %v5728, %v5730
    %v5732 = vadd.f32 %v5728, %v5731
    %vm5733 = vweird.f32 %v5727
    %vm5734 = vweird.f32 %v5728
    %vm5735 = vmor %vm5733, %vm5734
    %v5736 = vsel %vm5735, %v5728, %v5732
    %v5737 = vand.u32 2147483647, %v5727
    %vm5738 = vcmp.eq.f32.partialorder %v5737, 8.507059e+37
    %v5739 = vand.u32 %v5727, 2147483648
    %v5740 = vor.u32 1.1754944e-38, %v5739
    %v5741 = vsel %vm5738, %v5740, %v5736
    %v5742 = vmul.f32 1.0, %v5741
    %v5743 = vtanh.pop %v5662
    %v5744 = vxor.u32 %v5704, 2147483648
    %v5745 = vmul.f32 %v5744, 1.442695
    %v5746 = vpow.pop %v5745
    %v5747 = vadd.f32 %v5746, 1.0
    %v5748 = vrcp.pop %v5747
    %v5749 = vmul.f32 %v5747, %v5748
    %v5750 = vsub.f32 1.0, %v5749
    %v5751 = vmul.f32 %v5748, %v5750
    %v5752 = vadd.f32 %v5748, %v5751
    %vm5753 = vweird.f32 %v5747
    %vm5754 = vweird.f32 %v5748
    %vm5755 = vmor %vm5753, %vm5754
    %v5756 = vsel %vm5755, %v5748, %v5752
    %v5757 = vand.u32 2147483647, %v5747
    %vm5758 = vcmp.eq.f32.partialorder %v5757, 8.507059e+37
    %v5759 = vand.u32 %v5747, 2147483648
    %v5760 = vor.u32 1.1754944e-38, %v5759
    %v5761 = vsel %vm5758, %v5760, %v5756
    %v5762 = vmul.f32 1.0, %v5761
    %v5763 = vmul.f32 %v5742, %v5495
    %v5764 = vmul.f32 %v5723, %v5743
    %v5765 = vadd.f32 %v5763, %v5764
    %v5766 = vtanh.pop %v5765
    %v5767 = vmul.f32 %v5762, %v5766
    %v5769 = vsel %vm652, %v5767, 0
    %5771 = vmatpush.msra.mxu0 0.0
    %5772 = vmatpush.msra.mxu0 0.0
    %5773 = vmatpush.msra.mxu0 0.0
    %5774 = vmatpush.msra.mxu0 0.0
    %5775 = vmatpush.msra.mxu0 0.0
    %5776 = vmatpush.msra.mxu0 0.0
    %5777 = vmatpush.msra.mxu0 0.0
    %5778 = vmatpush.msra.mxu0 0.0
    %5779 = vmatpush.msra.mxu0 0.0
    %5780 = vmatpush.msra.mxu0 0.0
    %5781 = vmatpush.msra.mxu0 0.0
    %5782 = vmatpush.msra.mxu0 0.0
    %5783 = vmatpush.msra.mxu0 %v1606
    %5784 = vmatpush.msra.mxu0 %v1605
    %5785 = vmatpush.msra.mxu0 %v1604
    %5786 = vmatpush.msra.mxu0 %v1603
    %5787 = vmatmul.f32.gmra.mxu0 %v5769
    %v5788 = vpop.f32.mrf.mxu0
    %v5789 = vadd.f32 %v1607, %v5788
    %5790 = vdwg.mxu0
    %s5791 = scalar_lea.vmem %s25, 26
    %5792 = vst.msk [vmem:[%s5791] sm:$0x3] %vm751, %v5789
    %v5793 = vsel %vm751, %v5789, -inf
    %5794 = vmax.xlane.f32.xlu0 %v5793
    %v5795 = vpop.xlane.xlu0 %5794
    %v5796 = vsub.f32 %v5789, %v5795
    %v5797 = vmul.f32 %v5796, 1.442695
    %v5798 = vpow.pop %v5797
    %v5799 = vsel %vm751, %v5798, 0.0
    %5800 = vadd.xlane.f32.xlu0 %v5799
    %v5801 = vpop.xlane.xlu0 %5800
    %v5802 = vrcp.pop %v5801
    %v5803 = vmul.f32 %v5798, %v5802
    %v5805 = vsel %vm782, %v5803, 0
    %5807 = vmatpush.msra.mxu0 0.0
    %5808 = vmatpush.msra.mxu0 0.0
    %5809 = vmatpush.msra.mxu0 0.0
    %5810 = vmatpush.msra.mxu0 0.0
    %5811 = vmatpush.msra.mxu0 0.0
    %5812 = vmatpush.msra.mxu0 0.0
    %5813 = vmatpush.msra.mxu0 0.0
    %5814 = vmatpush.msra.mxu0 0.0
    %5815 = vmatpush.msra.mxu0 0.0
    %5816 = vmatpush.msra.mxu0 0.0
    %5817 = vmatpush.msra.mxu0 0.0
    %5818 = vmatpush.msra.mxu0 0.0
    %5819 = vmatpush.msra.mxu0 0.0
    %5820 = vmatpush.msra.mxu0 0.0
    %5821 = vmatpush.msra.mxu0 %v1574
    %5822 = vmatpush.msra.mxu0 %v1573
    %5823 = vmatmul.f32.gmra.mxu0 %v5805
    %v5824 = vpop.f32.mrf.mxu0
    %v5825 = vadd.f32 0.0, %v5824
    %5826 = vdwg.mxu0
    %v5827 = vadd.f32 %v5184, %v5825
    %5828 = vmatpush.msra.mxu0 0.0
    %5829 = vmatpush.msra.mxu0 0.0
    %5830 = vmatpush.msra.mxu0 0.0
    %5831 = vmatpush.msra.mxu0 0.0
    %5832 = vmatpush.msra.mxu0 0.0
    %5833 = vmatpush.msra.mxu0 0.0
    %5834 = vmatpush.msra.mxu0 0.0
    %5835 = vmatpush.msra.mxu0 0.0
    %5836 = vmatpush.msra.mxu0 0.0
    %5837 = vmatpush.msra.mxu0 0.0
    %5838 = vmatpush.msra.mxu0 0.0
    %5839 = vmatpush.msra.mxu0 0.0
    %5840 = vmatpush.msra.mxu0 %v1587
    %5841 = vmatpush.msra.mxu0 %v1586
    %5842 = vmatpush.msra.mxu0 %v1585
    %5843 = vmatpush.msra.mxu0 %v1584
    %5844 = vmatmul.f32.gmra.mxu0 %v5769
    %v5845 = vpop.f32.mrf.mxu0
    %v5846 = vadd.f32 0.0, %v5845
    %5847 = vdwg.mxu0
    %v5848 = vadd.f32 %v5827, %v5846
    %5849 = vmatpush.msra.mxu0 0.0
    %5850 = vmatpush.msra.mxu0 0.0
    %5851 = vmatpush.msra.mxu0 0.0
    %5852 = vmatpush.msra.mxu0 0.0
    %5853 = vmatpush.msra.mxu0 0.0
    %5854 = vmatpush.msra.mxu0 0.0
    %5855 = vmatpush.msra.mxu0 0.0
    %5856 = vmatpush.msra.mxu0 0.0
    %5857 = vmatpush.msra.mxu0 0.0
    %5858 = vmatpush.msra.mxu0 0.0
    %5859 = vmatpush.msra.mxu0 0.0
    %5860 = vmatpush.msra.mxu0 0.0
    %5861 = vmatpush.msra.mxu0 0.0
    %5862 = vmatpush.msra.mxu0 0.0
    %5863 = vmatpush.msra.mxu0 %v1577
    %5864 = vmatpush.msra.mxu0 %v1576
    %5865 = vmatmul.f32.gmra.mxu0 %v5805
    %v5866 = vpop.f32.mrf.mxu0
    %v5867 = vadd.f32 0.0, %v5866
    %5868 = vdwg.mxu0
    %v5869 = vadd.f32 %v5209, %v5867
    %5870 = vmatpush.msra.mxu0 0.0
    %5871 = vmatpush.msra.mxu0 0.0
    %5872 = vmatpush.msra.mxu0 0.0
    %5873 = vmatpush.msra.mxu0 0.0
    %5874 = vmatpush.msra.mxu0 0.0
    %5875 = vmatpush.msra.mxu0 0.0
    %5876 = vmatpush.msra.mxu0 0.0
    %5877 = vmatpush.msra.mxu0 0.0
    %5878 = vmatpush.msra.mxu0 0.0
    %5879 = vmatpush.msra.mxu0 0.0
    %5880 = vmatpush.msra.mxu0 0.0
    %5881 = vmatpush.msra.mxu0 0.0
    %5882 = vmatpush.msra.mxu0 %v1592
    %5883 = vmatpush.msra.mxu0 %v1591
    %5884 = vmatpush.msra.mxu0 %v1590
    %5885 = vmatpush.msra.mxu0 %v1589
    %5886 = vmatmul.f32.gmra.mxu0 %v5769
    %v5887 = vpop.f32.mrf.mxu0
    %v5888 = vadd.f32 0.0, %v5887
    %5889 = vdwg.mxu0
    %v5890 = vadd.f32 %v5869, %v5888
    %5891 = vmatpush.msra.mxu0 0.0
    %5892 = vmatpush.msra.mxu0 0.0
    %5893 = vmatpush.msra.mxu0 0.0
    %5894 = vmatpush.msra.mxu0 0.0
    %5895 = vmatpush.msra.mxu0 0.0
    %5896 = vmatpush.msra.mxu0 0.0
    %5897 = vmatpush.msra.mxu0 0.0
    %5898 = vmatpush.msra.mxu0 0.0
    %5899 = vmatpush.msra.mxu0 0.0
    %5900 = vmatpush.msra.mxu0 0.0
    %5901 = vmatpush.msra.mxu0 0.0
    %5902 = vmatpush.msra.mxu0 0.0
    %5903 = vmatpush.msra.mxu0 0.0
    %5904 = vmatpush.msra.mxu0 0.0
    %5905 = vmatpush.msra.mxu0 %v1580
    %5906 = vmatpush.msra.mxu0 %v1579
    %5907 = vmatmul.f32.gmra.mxu0 %v5805
    %v5908 = vpop.f32.mrf.mxu0
    %v5909 = vadd.f32 0.0, %v5908
    %5910 = vdwg.mxu0
    %v5911 = vadd.f32 %v5234, %v5909
    %5912 = vmatpush.msra.mxu0 0.0
    %5913 = vmatpush.msra.mxu0 0.0
    %5914 = vmatpush.msra.mxu0 0.0
    %5915 = vmatpush.msra.mxu0 0.0
    %5916 = vmatpush.msra.mxu0 0.0
    %5917 = vmatpush.msra.mxu0 0.0
    %5918 = vmatpush.msra.mxu0 0.0
    %5919 = vmatpush.msra.mxu0 0.0
    %5920 = vmatpush.msra.mxu0 0.0
    %5921 = vmatpush.msra.mxu0 0.0
    %5922 = vmatpush.msra.mxu0 0.0
    %5923 = vmatpush.msra.mxu0 0.0
    %5924 = vmatpush.msra.mxu0 %v1597
    %5925 = vmatpush.msra.mxu0 %v1596
    %5926 = vmatpush.msra.mxu0 %v1595
    %5927 = vmatpush.msra.mxu0 %v1594
    %5928 = vmatmul.f32.gmra.mxu0 %v5769
    %v5929 = vpop.f32.mrf.mxu0
    %v5930 = vadd.f32 0.0, %v5929
    %5931 = vdwg.mxu0
    %v5932 = vadd.f32 %v5911, %v5930
    %5933 = vmatpush.msra.mxu0 0.0
    %5934 = vmatpush.msra.mxu0 0.0
    %5935 = vmatpush.msra.mxu0 0.0
    %5936 = vmatpush.msra.mxu0 0.0
    %5937 = vmatpush.msra.mxu0 0.0
    %5938 = vmatpush.msra.mxu0 0.0
    %5939 = vmatpush.msra.mxu0 0.0
    %5940 = vmatpush.msra.mxu0 0.0
    %5941 = vmatpush.msra.mxu0 0.0
    %5942 = vmatpush.msra.mxu0 0.0
    %5943 = vmatpush.msra.mxu0 0.0
    %5944 = vmatpush.msra.mxu0 0.0
    %5945 = vmatpush.msra.mxu0 0.0
    %5946 = vmatpush.msra.mxu0 0.0
    %5947 = vmatpush.msra.mxu0 %v1583
    %5948 = vmatpush.msra.mxu0 %v1582
    %5949 = vmatmul.f32.gmra.mxu0 %v5805
    %v5950 = vpop.f32.mrf.mxu0
    %v5951 = vadd.f32 0.0, %v5950
    %5952 = vdwg.mxu0
    %v5953 = vadd.f32 %v5259, %v5951
    %5954 = vmatpush.msra.mxu0 0.0
    %5955 = vmatpush.msra.mxu0 0.0
    %5956 = vmatpush.msra.mxu0 0.0
    %5957 = vmatpush.msra.mxu0 0.0
    %5958 = vmatpush.msra.mxu0 0.0
    %5959 = vmatpush.msra.mxu0 0.0
    %5960 = vmatpush.msra.mxu0 0.0
    %5961 = vmatpush.msra.mxu0 0.0
    %5962 = vmatpush.msra.mxu0 0.0
    %5963 = vmatpush.msra.mxu0 0.0
    %5964 = vmatpush.msra.mxu0 0.0
    %5965 = vmatpush.msra.mxu0 0.0
    %5966 = vmatpush.msra.mxu0 %v1602
    %5967 = vmatpush.msra.mxu0 %v1601
    %5968 = vmatpush.msra.mxu0 %v1600
    %5969 = vmatpush.msra.mxu0 %v1599
    %5970 = vmatmul.f32.gmra.mxu0 %v5769
    %v5971 = vpop.f32.mrf.mxu0
    %v5972 = vadd.f32 0.0, %v5971
    %5973 = vdwg.mxu0
    %v5974 = vadd.f32 %v5953, %v5972
    %v5975 = vxor.u32 %v5848, 2147483648
    %v5976 = vmul.f32 %v5975, 1.442695
    %v5977 = vpow.pop %v5976
    %v5978 = vadd.f32 %v5977, 1.0
    %v5979 = vrcp.pop %v5978
    %v5980 = vmul.f32 %v5978, %v5979
    %v5981 = vsub.f32 1.0, %v5980
    %v5982 = vmul.f32 %v5979, %v5981
    %v5983 = vadd.f32 %v5979, %v5982
    %vm5984 = vweird.f32 %v5978
    %vm5985 = vweird.f32 %v5979
    %vm5986 = vmor %vm5984, %vm5985
    %v5987 = vsel %vm5986, %v5979, %v5983
    %v5988 = vand.u32 2147483647, %v5978
    %vm5989 = vcmp.eq.f32.partialorder %v5988, 8.507059e+37
    %v5990 = vand.u32 %v5978, 2147483648
    %v5991 = vor.u32 1.1754944e-38, %v5990
    %v5992 = vsel %vm5989, %v5991, %v5987
    %v5993 = vmul.f32 1.0, %v5992
    %v5994 = vxor.u32 %v5890, 2147483648
    %v5995 = vmul.f32 %v5994, 1.442695
    %v5996 = vpow.pop %v5995
    %v5997 = vadd.f32 %v5996, 1.0
    %v5998 = vrcp.pop %v5997
    %v5999 = vmul.f32 %v5997, %v5998
    %v6000 = vsub.f32 1.0, %v5999
    %v6001 = vmul.f32 %v5998, %v6000
    %v6002 = vadd.f32 %v5998, %v6001
    %vm6003 = vweird.f32 %v5997
    %vm6004 = vweird.f32 %v5998
    %vm6005 = vmor %vm6003, %vm6004
    %v6006 = vsel %vm6005, %v5998, %v6002
    %v6007 = vand.u32 2147483647, %v5997
    %vm6008 = vcmp.eq.f32.partialorder %v6007, 8.507059e+37
    %v6009 = vand.u32 %v5997, 2147483648
    %v6010 = vor.u32 1.1754944e-38, %v6009
    %v6011 = vsel %vm6008, %v6010, %v6006
    %v6012 = vmul.f32 1.0, %v6011
    %v6013 = vtanh.pop %v5932
    %v6014 = vxor.u32 %v5974, 2147483648
    %v6015 = vmul.f32 %v6014, 1.442695
    %v6016 = vpow.pop %v6015
    %v6017 = vadd.f32 %v6016, 1.0
    %v6018 = vrcp.pop %v6017
    %v6019 = vmul.f32 %v6017, %v6018
    %v6020 = vsub.f32 1.0, %v6019
    %v6021 = vmul.f32 %v6018, %v6020
    %v6022 = vadd.f32 %v6018, %v6021
    %vm6023 = vweird.f32 %v6017
    %vm6024 = vweird.f32 %v6018
    %vm6025 = vmor %vm6023, %vm6024
    %v6026 = vsel %vm6025, %v6018, %v6022
    %v6027 = vand.u32 2147483647, %v6017
    %vm6028 = vcmp.eq.f32.partialorder %v6027, 8.507059e+37
    %v6029 = vand.u32 %v6017, 2147483648
    %v6030 = vor.u32 1.1754944e-38, %v6029
    %v6031 = vsel %vm6028, %v6030, %v6026
    %v6032 = vmul.f32 1.0, %v6031
    %v6033 = vmul.f32 %v6012, %v5765
    %v6034 = vmul.f32 %v5993, %v6013
    %v6035 = vadd.f32 %v6033, %v6034
    %v6036 = vtanh.pop %v6035
    %v6037 = vmul.f32 %v6032, %v6036
    %v6039 = vsel %vm652, %v6037, 0
    %6041 = vmatpush.msra.mxu0 0.0
    %6042 = vmatpush.msra.mxu0 0.0
    %6043 = vmatpush.msra.mxu0 0.0
    %6044 = vmatpush.msra.mxu0 0.0
    %6045 = vmatpush.msra.mxu0 0.0
    %6046 = vmatpush.msra.mxu0 0.0
    %6047 = vmatpush.msra.mxu0 0.0
    %6048 = vmatpush.msra.mxu0 0.0
    %6049 = vmatpush.msra.mxu0 0.0
    %6050 = vmatpush.msra.mxu0 0.0
    %6051 = vmatpush.msra.mxu0 0.0
    %6052 = vmatpush.msra.mxu0 0.0
    %6053 = vmatpush.msra.mxu0 %v1606
    %6054 = vmatpush.msra.mxu0 %v1605
    %6055 = vmatpush.msra.mxu0 %v1604
    %6056 = vmatpush.msra.mxu0 %v1603
    %6057 = vmatmul.f32.gmra.mxu0 %v6039
    %v6058 = vpop.f32.mrf.mxu0
    %v6059 = vadd.f32 %v1607, %v6058
    %6060 = vdwg.mxu0
    %s6061 = scalar_lea.vmem %s25, 28
    %6062 = vst.msk [vmem:[%s6061] sm:$0x3] %vm751, %v6059
    %v6063 = vsel %vm751, %v6059, -inf
    %6064 = vmax.xlane.f32.xlu0 %v6063
    %v6065 = vpop.xlane.xlu0 %6064
    %v6066 = vsub.f32 %v6059, %v6065
    %v6067 = vmul.f32 %v6066, 1.442695
    %v6068 = vpow.pop %v6067
    %v6069 = vsel %vm751, %v6068, 0.0
    %6070 = vadd.xlane.f32.xlu0 %v6069
    %v6071 = vpop.xlane.xlu0 %6070
    %v6072 = vrcp.pop %v6071
    %v6073 = vmul.f32 %v6068, %v6072
    %v6075 = vsel %vm782, %v6073, 0
    %6077 = vmatpush.msra.mxu0 0.0
    %6078 = vmatpush.msra.mxu0 0.0
    %6079 = vmatpush.msra.mxu0 0.0
    %6080 = vmatpush.msra.mxu0 0.0
    %6081 = vmatpush.msra.mxu0 0.0
    %6082 = vmatpush.msra.mxu0 0.0
    %6083 = vmatpush.msra.mxu0 0.0
    %6084 = vmatpush.msra.mxu0 0.0
    %6085 = vmatpush.msra.mxu0 0.0
    %6086 = vmatpush.msra.mxu0 0.0
    %6087 = vmatpush.msra.mxu0 0.0
    %6088 = vmatpush.msra.mxu0 0.0
    %6089 = vmatpush.msra.mxu0 0.0
    %6090 = vmatpush.msra.mxu0 0.0
    %6091 = vmatpush.msra.mxu0 %v1574
    %6092 = vmatpush.msra.mxu0 %v1573
    %6093 = vmatmul.f32.gmra.mxu0 %v6075
    %v6094 = vpop.f32.mrf.mxu0
    %v6095 = vadd.f32 0.0, %v6094
    %6096 = vdwg.mxu0
    %v6097 = vadd.f32 %v5184, %v6095
    %6098 = vmatpush.msra.mxu0 0.0
    %6099 = vmatpush.msra.mxu0 0.0
    %6100 = vmatpush.msra.mxu0 0.0
    %6101 = vmatpush.msra.mxu0 0.0
    %6102 = vmatpush.msra.mxu0 0.0
    %6103 = vmatpush.msra.mxu0 0.0
    %6104 = vmatpush.msra.mxu0 0.0
    %6105 = vmatpush.msra.mxu0 0.0
    %6106 = vmatpush.msra.mxu0 0.0
    %6107 = vmatpush.msra.mxu0 0.0
    %6108 = vmatpush.msra.mxu0 0.0
    %6109 = vmatpush.msra.mxu0 0.0
    %6110 = vmatpush.msra.mxu0 %v1587
    %6111 = vmatpush.msra.mxu0 %v1586
    %6112 = vmatpush.msra.mxu0 %v1585
    %6113 = vmatpush.msra.mxu0 %v1584
    %6114 = vmatmul.f32.gmra.mxu0 %v6039
    %v6115 = vpop.f32.mrf.mxu0
    %v6116 = vadd.f32 0.0, %v6115
    %6117 = vdwg.mxu0
    %v6118 = vadd.f32 %v6097, %v6116
    %6119 = vmatpush.msra.mxu0 0.0
    %6120 = vmatpush.msra.mxu0 0.0
    %6121 = vmatpush.msra.mxu0 0.0
    %6122 = vmatpush.msra.mxu0 0.0
    %6123 = vmatpush.msra.mxu0 0.0
    %6124 = vmatpush.msra.mxu0 0.0
    %6125 = vmatpush.msra.mxu0 0.0
    %6126 = vmatpush.msra.mxu0 0.0
    %6127 = vmatpush.msra.mxu0 0.0
    %6128 = vmatpush.msra.mxu0 0.0
    %6129 = vmatpush.msra.mxu0 0.0
    %6130 = vmatpush.msra.mxu0 0.0
    %6131 = vmatpush.msra.mxu0 0.0
    %6132 = vmatpush.msra.mxu0 0.0
    %6133 = vmatpush.msra.mxu0 %v1577
    %6134 = vmatpush.msra.mxu0 %v1576
    %6135 = vmatmul.f32.gmra.mxu0 %v6075
    %v6136 = vpop.f32.mrf.mxu0
    %v6137 = vadd.f32 0.0, %v6136
    %6138 = vdwg.mxu0
    %v6139 = vadd.f32 %v5209, %v6137
    %6140 = vmatpush.msra.mxu0 0.0
    %6141 = vmatpush.msra.mxu0 0.0
    %6142 = vmatpush.msra.mxu0 0.0
    %6143 = vmatpush.msra.mxu0 0.0
    %6144 = vmatpush.msra.mxu0 0.0
    %6145 = vmatpush.msra.mxu0 0.0
    %6146 = vmatpush.msra.mxu0 0.0
    %6147 = vmatpush.msra.mxu0 0.0
    %6148 = vmatpush.msra.mxu0 0.0
    %6149 = vmatpush.msra.mxu0 0.0
    %6150 = vmatpush.msra.mxu0 0.0
    %6151 = vmatpush.msra.mxu0 0.0
    %6152 = vmatpush.msra.mxu0 %v1592
    %6153 = vmatpush.msra.mxu0 %v1591
    %6154 = vmatpush.msra.mxu0 %v1590
    %6155 = vmatpush.msra.mxu0 %v1589
    %6156 = vmatmul.f32.gmra.mxu0 %v6039
    %v6157 = vpop.f32.mrf.mxu0
    %v6158 = vadd.f32 0.0, %v6157
    %6159 = vdwg.mxu0
    %v6160 = vadd.f32 %v6139, %v6158
    %6161 = vmatpush.msra.mxu0 0.0
    %6162 = vmatpush.msra.mxu0 0.0
    %6163 = vmatpush.msra.mxu0 0.0
    %6164 = vmatpush.msra.mxu0 0.0
    %6165 = vmatpush.msra.mxu0 0.0
    %6166 = vmatpush.msra.mxu0 0.0
    %6167 = vmatpush.msra.mxu0 0.0
    %6168 = vmatpush.msra.mxu0 0.0
    %6169 = vmatpush.msra.mxu0 0.0
    %6170 = vmatpush.msra.mxu0 0.0
    %6171 = vmatpush.msra.mxu0 0.0
    %6172 = vmatpush.msra.mxu0 0.0
    %6173 = vmatpush.msra.mxu0 0.0
    %6174 = vmatpush.msra.mxu0 0.0
    %6175 = vmatpush.msra.mxu0 %v1580
    %6176 = vmatpush.msra.mxu0 %v1579
    %6177 = vmatmul.f32.gmra.mxu0 %v6075
    %v6178 = vpop.f32.mrf.mxu0
    %v6179 = vadd.f32 0.0, %v6178
    %6180 = vdwg.mxu0
    %v6181 = vadd.f32 %v5234, %v6179
    %6182 = vmatpush.msra.mxu0 0.0
    %6183 = vmatpush.msra.mxu0 0.0
    %6184 = vmatpush.msra.mxu0 0.0
    %6185 = vmatpush.msra.mxu0 0.0
    %6186 = vmatpush.msra.mxu0 0.0
    %6187 = vmatpush.msra.mxu0 0.0
    %6188 = vmatpush.msra.mxu0 0.0
    %6189 = vmatpush.msra.mxu0 0.0
    %6190 = vmatpush.msra.mxu0 0.0
    %6191 = vmatpush.msra.mxu0 0.0
    %6192 = vmatpush.msra.mxu0 0.0
    %6193 = vmatpush.msra.mxu0 0.0
    %6194 = vmatpush.msra.mxu0 %v1597
    %6195 = vmatpush.msra.mxu0 %v1596
    %6196 = vmatpush.msra.mxu0 %v1595
    %6197 = vmatpush.msra.mxu0 %v1594
    %6198 = vmatmul.f32.gmra.mxu0 %v6039
    %v6199 = vpop.f32.mrf.mxu0
    %v6200 = vadd.f32 0.0, %v6199
    %6201 = vdwg.mxu0
    %v6202 = vadd.f32 %v6181, %v6200
    %6203 = vmatpush.msra.mxu0 0.0
    %6204 = vmatpush.msra.mxu0 0.0
    %6205 = vmatpush.msra.mxu0 0.0
    %6206 = vmatpush.msra.mxu0 0.0
    %6207 = vmatpush.msra.mxu0 0.0
    %6208 = vmatpush.msra.mxu0 0.0
    %6209 = vmatpush.msra.mxu0 0.0
    %6210 = vmatpush.msra.mxu0 0.0
    %6211 = vmatpush.msra.mxu0 0.0
    %6212 = vmatpush.msra.mxu0 0.0
    %6213 = vmatpush.msra.mxu0 0.0
    %6214 = vmatpush.msra.mxu0 0.0
    %6215 = vmatpush.msra.mxu0 0.0
    %6216 = vmatpush.msra.mxu0 0.0
    %6217 = vmatpush.msra.mxu0 %v1583
    %6218 = vmatpush.msra.mxu0 %v1582
    %6219 = vmatmul.f32.gmra.mxu0 %v6075
    %v6220 = vpop.f32.mrf.mxu0
    %v6221 = vadd.f32 0.0, %v6220
    %6222 = vdwg.mxu0
    %v6223 = vadd.f32 %v5259, %v6221
    %6224 = vmatpush.msra.mxu0 0.0
    %6225 = vmatpush.msra.mxu0 0.0
    %6226 = vmatpush.msra.mxu0 0.0
    %6227 = vmatpush.msra.mxu0 0.0
    %6228 = vmatpush.msra.mxu0 0.0
    %6229 = vmatpush.msra.mxu0 0.0
    %6230 = vmatpush.msra.mxu0 0.0
    %6231 = vmatpush.msra.mxu0 0.0
    %6232 = vmatpush.msra.mxu0 0.0
    %6233 = vmatpush.msra.mxu0 0.0
    %6234 = vmatpush.msra.mxu0 0.0
    %6235 = vmatpush.msra.mxu0 0.0
    %6236 = vmatpush.msra.mxu0 %v1602
    %6237 = vmatpush.msra.mxu0 %v1601
    %6238 = vmatpush.msra.mxu0 %v1600
    %6239 = vmatpush.msra.mxu0 %v1599
    %6240 = vmatmul.f32.gmra.mxu0 %v6039
    %v6241 = vpop.f32.mrf.mxu0
    %v6242 = vadd.f32 0.0, %v6241
    %6243 = vdwg.mxu0
    %v6244 = vadd.f32 %v6223, %v6242
    %v6245 = vxor.u32 %v6118, 2147483648
    %v6246 = vmul.f32 %v6245, 1.442695
    %v6247 = vpow.pop %v6246
    %v6248 = vadd.f32 %v6247, 1.0
    %v6249 = vrcp.pop %v6248
    %v6250 = vmul.f32 %v6248, %v6249
    %v6251 = vsub.f32 1.0, %v6250
    %v6252 = vmul.f32 %v6249, %v6251
    %v6253 = vadd.f32 %v6249, %v6252
    %vm6254 = vweird.f32 %v6248
    %vm6255 = vweird.f32 %v6249
    %vm6256 = vmor %vm6254, %vm6255
    %v6257 = vsel %vm6256, %v6249, %v6253
    %v6258 = vand.u32 2147483647, %v6248
    %vm6259 = vcmp.eq.f32.partialorder %v6258, 8.507059e+37
    %v6260 = vand.u32 %v6248, 2147483648
    %v6261 = vor.u32 1.1754944e-38, %v6260
    %v6262 = vsel %vm6259, %v6261, %v6257
    %v6263 = vmul.f32 1.0, %v6262
    %v6264 = vxor.u32 %v6160, 2147483648
    %v6265 = vmul.f32 %v6264, 1.442695
    %v6266 = vpow.pop %v6265
    %v6267 = vadd.f32 %v6266, 1.0
    %v6268 = vrcp.pop %v6267
    %v6269 = vmul.f32 %v6267, %v6268
    %v6270 = vsub.f32 1.0, %v6269
    %v6271 = vmul.f32 %v6268, %v6270
    %v6272 = vadd.f32 %v6268, %v6271
    %vm6273 = vweird.f32 %v6267
    %vm6274 = vweird.f32 %v6268
    %vm6275 = vmor %vm6273, %vm6274
    %v6276 = vsel %vm6275, %v6268, %v6272
    %v6277 = vand.u32 2147483647, %v6267
    %vm6278 = vcmp.eq.f32.partialorder %v6277, 8.507059e+37
    %v6279 = vand.u32 %v6267, 2147483648
    %v6280 = vor.u32 1.1754944e-38, %v6279
    %v6281 = vsel %vm6278, %v6280, %v6276
    %v6282 = vmul.f32 1.0, %v6281
    %v6283 = vtanh.pop %v6202
    %v6284 = vxor.u32 %v6244, 2147483648
    %v6285 = vmul.f32 %v6284, 1.442695
    %v6286 = vpow.pop %v6285
    %v6287 = vadd.f32 %v6286, 1.0
    %v6288 = vrcp.pop %v6287
    %v6289 = vmul.f32 %v6287, %v6288
    %v6290 = vsub.f32 1.0, %v6289
    %v6291 = vmul.f32 %v6288, %v6290
    %v6292 = vadd.f32 %v6288, %v6291
    %vm6293 = vweird.f32 %v6287
    %vm6294 = vweird.f32 %v6288
    %vm6295 = vmor %vm6293, %vm6294
    %v6296 = vsel %vm6295, %v6288, %v6292
    %v6297 = vand.u32 2147483647, %v6287
    %vm6298 = vcmp.eq.f32.partialorder %v6297, 8.507059e+37
    %v6299 = vand.u32 %v6287, 2147483648
    %v6300 = vor.u32 1.1754944e-38, %v6299
    %v6301 = vsel %vm6298, %v6300, %v6296
    %v6302 = vmul.f32 1.0, %v6301
    %v6303 = vmul.f32 %v6282, %v6035
    %v6304 = vmul.f32 %v6263, %v6283
    %v6305 = vadd.f32 %v6303, %v6304
    %v6306 = vtanh.pop %v6305
    %v6307 = vmul.f32 %v6302, %v6306
    %v6309 = vsel %vm652, %v6307, 0
    %6311 = vmatpush.msra.mxu0 0.0
    %6312 = vmatpush.msra.mxu0 0.0
    %6313 = vmatpush.msra.mxu0 0.0
    %6314 = vmatpush.msra.mxu0 0.0
    %6315 = vmatpush.msra.mxu0 0.0
    %6316 = vmatpush.msra.mxu0 0.0
    %6317 = vmatpush.msra.mxu0 0.0
    %6318 = vmatpush.msra.mxu0 0.0
    %6319 = vmatpush.msra.mxu0 0.0
    %6320 = vmatpush.msra.mxu0 0.0
    %6321 = vmatpush.msra.mxu0 0.0
    %6322 = vmatpush.msra.mxu0 0.0
    %6323 = vmatpush.msra.mxu0 %v1606
    %6324 = vmatpush.msra.mxu0 %v1605
    %6325 = vmatpush.msra.mxu0 %v1604
    %6326 = vmatpush.msra.mxu0 %v1603
    %6327 = vmatmul.f32.gmra.mxu0 %v6309
    %v6328 = vpop.f32.mrf.mxu0
    %v6329 = vadd.f32 %v1607, %v6328
    %6330 = vdwg.mxu0
    %s6331 = scalar_lea.vmem %s25, 30
    %6332 = vst.msk [vmem:[%s6331] sm:$0x3] %vm751, %v6329
    // Predicated region
    $region109: #{music_vae_forward.1} parent=1 // pred_check
      _
    $region110: #{music_vae_forward.1} parent=1 // pred_check_branch
      %6334 = sbr.rel (0) target = $region112
    $region111: #{music_vae_forward.1} parent=1 // pred_region
      _
    $region112: #{music_vae_forward.1} parent=1 // pred_fallthru
      _
    // Predicated region
    $region113: #{music_vae_forward.1} parent=1 // pred_check
      _
    $region114: #{music_vae_forward.1} parent=1 // pred_check_branch
      %6336 = sbr.rel (0) target = $region116
    $region115: #{music_vae_forward.1} parent=1 // pred_region
      %6338 = vsyncadd [#allocation3], 0
      %s6340 = sshll.u32 [#allocation2], 4
      %s6341 = int_to_ptr.vmem [resolvable:$true] %s6340
      %s6342 = sshll.u32 %s26, 4
      %s6343 = int_to_ptr.hbm [resolvable:$true] %s6342
      %6345 = dma.vmem_to_hbm [thread:$0]  %s6341, 32, %s6343, [#allocation3]
    $region116: #{music_vae_forward.1} parent=1 // pred_fallthru
      _
    // Predicated region
    $region117: #{music_vae_forward.1} parent=1 // pred_check
      _
    $region118: #{music_vae_forward.1} parent=1 // pred_check_branch
      %6347 = sbr.rel (0) target = $region120
    $region119: #{music_vae_forward.1} parent=1 // pred_region
      %6349 = vsyncadd [#allocation5], 0
      %s6351 = sshll.u32 [#allocation4], 4
      %s6352 = int_to_ptr.vmem [resolvable:$true] %s6351
      %s6353 = sshll.u32 %s27, 4
      %s6354 = int_to_ptr.hbm [resolvable:$true] %s6353
      %6356 = dma.vmem_to_hbm [thread:$0]  %s6352, 32, %s6354, [#allocation5]
    $region120: #{music_vae_forward.1} parent=1 // pred_fallthru
      _
    // Predicated region
    $region121: #{music_vae_forward.1} parent=1 // pred_check
      _
    $region122: #{music_vae_forward.1} parent=1 // pred_check_branch
      %6358 = sbr.rel (0) target = $region124
    $region123: #{music_vae_forward.1} parent=1 // pred_region
      _
    $region124: #{music_vae_forward.1} parent=1 // pred_fallthru
      _
    // Predicated region
    $region125: #{music_vae_forward.1} parent=1 // pred_check
      _
    $region126: #{music_vae_forward.1} parent=1 // pred_check_branch
      %6360 = sbr.rel (0) target = $region128
    $region127: #{music_vae_forward.1} parent=1 // pred_region
      %6362 = dma.done [#allocation3], 32
    $region128: #{music_vae_forward.1} parent=1 // pred_fallthru
      _
    // Predicated region
    $region129: #{music_vae_forward.1} parent=1 // pred_check
      _
    $region130: #{music_vae_forward.1} parent=1 // pred_check_branch
      %6364 = sbr.rel (0) target = $region132
    $region131: #{music_vae_forward.1} parent=1 // pred_region
      %6366 = dma.done [#allocation5], 32
    $region132: #{music_vae_forward.1} parent=1 // pred_fallthru
      _
    %6367 = vsyncpa [#allocation3], 1
    %6368 = vsyncpa [#allocation5], 1

</llo_original>
